<compile_context>
chip_gen: v7x
topology: tpu7x:2x2x1
jax: 0.10.0
libtpu: 0.0.40
codegen_flags: <defaults>
</compile_context>

<pallas_src>
import functools
import math

import jax
import jax.numpy as jnp
import numpy as np
from jax.experimental import pallas as pl
from jax.experimental.pallas import tpu as pltpu


# ----------------------------------------------------------------------------- kernel
def _window_attention_kernel(*refs, num_heads, nW, compute_dtype):
    # refs (masked):   x, wqkv, bqkv, rel_bias, mask, wproj, bproj, out, qkv_scr, head_scr
    # refs (unmasked): x, wqkv, bqkv, rel_bias,       wproj, bproj, out, qkv_scr, head_scr
    if nW is None:
        (x_ref, wqkv_ref, bqkv_ref, bias_ref,
         wproj_ref, bproj_ref, o_ref, qkv_scr, head_scr) = refs
        mask_ref = None
    else:
        (x_ref, wqkv_ref, bqkv_ref, bias_ref, mask_ref,
         wproj_ref, bproj_ref, o_ref, qkv_scr, head_scr) = refs

    BW, N, C = x_ref.shape
    d = C // num_heads

    # --- fused qkv projection (bf16 MXU, f32 accumulation), parked in VMEM scratch.
    x2d = x_ref[...].reshape(BW * N, C)
    qkv = jnp.dot(x2d, wqkv_ref[...], preferred_element_type=jnp.float32)
    qkv = qkv + bqkv_ref[...]                 # f32 bias add (qk scale pre-folded into Q cols)
    qkv_scr[...] = qkv.reshape(BW, N, 3 * C).astype(compute_dtype)

    if mask_ref is not None:
        mask = mask_ref[...]                  # (nW, N, N) f32, VMEM-resident
        G = BW // nW                          # groups of nW windows inside this block

    # --- per-head attention; head outputs land in the columns of head_scr.
    for h in range(num_heads):                # static unroll; num_heads is small
        qh = qkv_scr[:, :, h * d:(h + 1) * d]                   # (BW, N, d) bf16
        kh = qkv_scr[:, :, C + h * d:C + (h + 1) * d]           # (BW, N, d) bf16
        vh = qkv_scr[:, :, 2 * C + h * d:2 * C + (h + 1) * d]   # (BW, N, d) bf16

        s = jnp.einsum('bnd,bmd->bnm', qh, kh,
                       preferred_element_type=jnp.float32)      # (BW, N, N) f32
        s = s + bias_ref[h][None, :, :]
        if mask_ref is not None:
            s = (s.reshape(G, nW, N, N) + mask[None, :, :, :]).reshape(BW, N, N)

        # numerically stable softmax over keys (all f32)
        s = s - jnp.max(s, axis=-1, keepdims=True)
        p = jnp.exp(s)
        p = p * pl.reciprocal(jnp.sum(p, axis=-1, keepdims=True), approx=True)
        # attn_drop(p=0.0) -> identity

        head_scr[:, :, h * d:(h + 1) * d] = jnp.einsum(
            'bnm,bmd->bnd', p.astype(compute_dtype), vh,
            preferred_element_type=jnp.float32).astype(compute_dtype)

    # --- single full-contraction output projection (bf16 MXU, f32 accumulation).
    out = jnp.dot(head_scr[...].reshape(BW * N, C), wproj_ref[...],
                  preferred_element_type=jnp.float32) + bproj_ref[...]
    # proj_drop(p=0.0) -> identity
    o_ref[...] = out.reshape(BW, N, C).astype(o_ref.dtype)


# ----------------------------------------------------------------------------- tiling
def _choose_block_windows(B_, N, nW=None, target_rows=1024):
    """Largest divisor of B_ (multiple of nW when masked) giving ~target_rows tokens
    per grid step, preferring >= 2 grid steps (megacore / v7x 2-TC sharding)."""
    max_bw = max(1, target_rows // max(N, 1))
    divisors = [bw for bw in range(1, B_ + 1)
                if B_ % bw == 0 and (nW is None or bw % nW == 0)]
    under = [bw for bw in divisors if bw <= max_bw]
    under2 = [bw for bw in under if B_ // bw >= 2]
    if under2:
        return max(under2)
    if under:
        return max(under)
    return min(divisors)


# ----------------------------------------------------------------------------- wrapper
def window_attention_pallas(x, wqkv, bqkv, wproj, bproj, rel_bias, mask=None, *,
                            num_heads, scale, block_windows=None,
                            compute_dtype=jnp.bfloat16):
    """x: (B_, N, C). wqkv: (C, 3C) (in, out), bqkv: (3C,), wproj: (C, C), bproj: (C,),
    rel_bias: (num_heads, N, N). mask: (nW, N, N) of 0 / -inf-like values, or None."""
    B_, N, C = x.shape
    nH = num_heads
    d = C // nH
    assert C % nH == 0

    nW = None
    if mask is not None:
        nW = int(mask.shape[0])
        assert B_ % nW == 0, "batch must be a multiple of the number of windows"

    BW = block_windows if block_windows is not None else _choose_block_windows(B_, N, nW)
    assert B_ % BW == 0, "block_windows must divide the number of windows"
    if nW is not None:
        assert BW % nW == 0, "block_windows must be a multiple of nW on the masked path"

    cd_bytes = np.dtype(compute_dtype).itemsize
    out_bytes = x.dtype.itemsize

    # --- parameter prep (one-time, amortized): fold qk scale into the Q columns,
    #     cast MXU operands to the compute dtype, keep biases / additive terms f32.
    col_scale = jnp.concatenate([jnp.full((C,), scale, wqkv.dtype),
                                 jnp.ones((2 * C,), wqkv.dtype)])
    wqkv_c = (wqkv * col_scale[None, :]).astype(compute_dtype)       # (C, 3C)
    bqkv_f = (bqkv * col_scale).astype(jnp.float32).reshape(1, 3 * C)
    wproj_c = wproj.astype(compute_dtype)                            # (C, C)
    bproj_f = bproj.astype(jnp.float32).reshape(1, C)
    x_c = x.astype(compute_dtype)
    rel_bias_f = rel_bias.astype(jnp.float32)                        # (H, N, N)

    # --- cost estimate (bf16 operand sizes, resident mask).
    flops = 2 * B_ * N * C * 3 * C + 4 * B_ * nH * N * N * d + 2 * B_ * N * C * C
    bytes_accessed = (x.size * cd_bytes + B_ * N * C * out_bytes
                      + wqkv.size * cd_bytes + wproj.size * cd_bytes
                      + 4 * (3 * C + C) + rel_bias.size * 4
                      + (mask.size * 4 if mask is not None else 0))
    cost = pl.CostEstimate(flops=int(flops), transcendentals=int(B_ * nH * N * N),
                           bytes_accessed=int(bytes_accessed))

    # --- VMEM budget computed from the actual footprint (capped for v7x's 64 MiB).
    resident = ((wqkv_c.size + wproj_c.size) * cd_bytes
                + (bqkv_f.size + bproj_f.size + rel_bias_f.size) * 4
                + (mask.size * 4 if mask is not None else 0))
    block_io = BW * N * C * cd_bytes + BW * N * C * out_bytes        # x in + out, per buffer
    scratch_bytes = BW * N * 3 * C * cd_bytes + BW * N * C * cd_bytes
    interm = 6 * BW * N * N * 4                                      # logits / probs, f32
    vmem_limit = int(min(max(resident + 2 * block_io + scratch_bytes + interm + (4 << 20),
                             16 << 20), 32 << 20))

    in_specs = [
        pl.BlockSpec((BW, N, C), lambda i: (i, 0, 0)),         # x (streamed)
        pl.BlockSpec((C, 3 * C), lambda i: (0, 0)),            # qkv weight (resident)
        pl.BlockSpec((1, 3 * C), lambda i: (0, 0)),            # qkv bias
        pl.BlockSpec((nH, N, N), lambda i: (0, 0, 0)),         # rel pos bias (resident)
    ]
    args = [x_c, wqkv_c, bqkv_f, rel_bias_f]
    if mask is not None:
        in_specs.append(pl.BlockSpec((nW, N, N), lambda i: (0, 0, 0)))  # mask (resident)
        args.append(mask.astype(jnp.float32))
    in_specs += [
        pl.BlockSpec((C, C), lambda i: (0, 0)),                # proj weight (resident)
        pl.BlockSpec((1, C), lambda i: (0, 0)),                # proj bias
    ]
    args += [wproj_c, bproj_f]

    kernel = functools.partial(_window_attention_kernel, num_heads=nH, nW=nW,
                               compute_dtype=compute_dtype)

    out = pl.pallas_call(
        kernel,
        out_shape=jax.ShapeDtypeStruct((B_, N, C), x.dtype),
        grid_spec=pltpu.PrefetchScalarGridSpec(
            num_scalar_prefetch=0,
            grid=(B_ // BW,),
            in_specs=in_specs,
            out_specs=pl.BlockSpec((BW, N, C), lambda i: (i, 0, 0)),
            scratch_shapes=[pltpu.VMEM((BW, N, 3 * C), compute_dtype),   # fused qkv
                            pltpu.VMEM((BW, N, C), compute_dtype)],      # head outputs
        ),
        compiler_params=pltpu.CompilerParams(
            dimension_semantics=("parallel",),
            vmem_limit_bytes=vmem_limit,
        ),
        cost_estimate=cost,
    )(*args)
    return out


# ----------------------------------------------------------------------------- reference
def make_relative_position_index(window_size):
    Wh, Ww = window_size
    coords = np.stack(np.meshgrid(np.arange(Wh), np.arange(Ww), indexing="ij"))  # (2,Wh,Ww)
    coords_flatten = coords.reshape(2, -1)                                        # (2, N)
    rel = coords_flatten[:, :, None] - coords_flatten[:, None, :]                 # (2, N, N)
    rel = rel.transpose(1, 2, 0).astype(np.int64)                                 # (N, N, 2)
    rel[:, :, 0] += Wh - 1
    rel[:, :, 1] += Ww - 1
    rel[:, :, 0] *= 2 * Ww - 1
    return rel.sum(-1)                                                            # (N, N)


def window_attention_reference(x, wqkv, bqkv, wproj, bproj, rel_bias, mask,
                               num_heads, scale, compute_dtype=jnp.bfloat16):
    """Pure-JAX reference mirroring the kernel's precision choices (bf16 MXU operands
    with f32 accumulation, f32 softmax), so the comparison isolates kernel bugs."""
    B_, N, C = x.shape
    d = C // num_heads
    cd = compute_dtype
    col_scale = jnp.concatenate([jnp.full((C,), scale, wqkv.dtype),
                                 jnp.ones((2 * C,), wqkv.dtype)])
    wqkv_c = (wqkv * col_scale[None, :]).astype(cd)
    bqkv_f = (bqkv * col_scale).astype(jnp.float32)

    qkv = jax.lax.dot_general(x.astype(cd), wqkv_c, (((2,), (0,)), ((), ())),
                              preferred_element_type=jnp.float32) + bqkv_f
    qkv = qkv.astype(cd).astype(jnp.float32)          # mirror the bf16 scratch round-trip
    qkv = qkv.reshape(B_, N, 3, num_heads, d).transpose(2, 0, 3, 1, 4)
    q, k, v = qkv[0], qkv[1], qkv[2]                  # scale already folded into q

    attn = jnp.einsum('bhnd,bhmd->bhnm', q.astype(cd), k.astype(cd),
                      preferred_element_type=jnp.float32)
    attn = attn + rel_bias[None].astype(jnp.float32)
    if mask is not None:
        nW = mask.shape[0]
        attn = attn.reshape(B_ // nW, nW, num_heads, N, N) + mask[None, :, None].astype(jnp.float32)
        attn = attn.reshape(B_, num_heads, N, N)
    attn = jax.nn.softmax(attn, axis=-1)

    out = jnp.einsum('bhnm,bhmd->bhnd', attn.astype(cd), v.astype(cd),
                     preferred_element_type=jnp.float32)
    out = out.transpose(0, 2, 1, 3).reshape(B_, N, C).astype(cd)
    out = jax.lax.dot_general(out, wproj.astype(cd), (((2,), (0,)), ((), ())),
                              preferred_element_type=jnp.float32) + bproj.astype(jnp.float32)
    return out


# ----------------------------------------------------------------------------- main
if __name__ == "__main__":
    # WindowAttention shapes: dim=128, 8x8 windows (N=64 tokens), 4 heads,
    # batch=2 images x 4 windows each -> B_ = 8 window rows.
    B = 2
    num_windows = 4
    window_size = (8, 8)
    dim = 128
    num_heads = 4

    Wh, Ww = window_size
    N = Wh * Ww
    B_ = B * num_windows
    head_dim = dim // num_heads
    scale = head_dim ** (-0.5)

    key = jax.random.PRNGKey(0)
    kx, kqw, kqb, kpw, kpb, kt = jax.random.split(key, 6)

    x = jax.random.normal(kx, (B_, N, dim), jnp.float32)

    # nn.Linear parameters, stored pre-transposed as (in, out) for row-major matmul.
    wqkv = jax.random.normal(kqw, (dim, 3 * dim), jnp.float32) / math.sqrt(dim)
    bqkv = jax.random.normal(kqb, (3 * dim,), jnp.float32) * 0.02
    wproj = jax.random.normal(kpw, (dim, dim), jnp.float32) / math.sqrt(dim)
    bproj = jax.random.normal(kpb, (dim,), jnp.float32) * 0.02

    # Relative position bias: table + static index gather (done once, wrapper-side).
    table = jax.random.normal(kt, ((2 * Wh - 1) * (2 * Ww - 1), num_heads),
                              jnp.float32) * 0.02
    rel_index = make_relative_position_index(window_size)                 # (N, N) int
    rel_bias = table[rel_index.reshape(-1)].reshape(N, N, num_heads)
    rel_bias = jnp.transpose(rel_bias, (2, 0, 1))                          # (H, N, N)

    # Shifted-window style additive mask (0 = allowed, -100 = blocked), per window.
    group = jnp.arange(N) // (N // 4)
    base = jnp.where(group[:, None] == group[None, :], 0.0, -100.0).astype(jnp.float32)
    mask = jnp.stack([base * float(w % 2) for w in range(num_windows)], axis=0)  # (nW,N,N)

    # Tolerance covers bf16 MXU operands + the approximate EUP reciprocal; the
    # reference mirrors the same bf16 casts so the remaining gap is tiny.
    tol = dict(atol=1e-2, rtol=1e-2)

    # --- no-mask path (separate kernel variant, no mask streamed at all) ---
    out0 = window_attention_pallas(x, wqkv, bqkv, wproj, bproj, rel_bias,
                                   mask=None, num_heads=num_heads, scale=scale)
    out0 = jax.block_until_ready(out0)
    ref0 = window_attention_reference(x, wqkv, bqkv, wproj, bproj, rel_bias,
                                      None, num_heads, scale)
    assert out0.shape == (B_, N, dim)
    assert jnp.allclose(out0, ref0, **tol), "mismatch vs reference (no mask)"

    # --- masked (shifted-window) path ---
    out1 = window_attention_pallas(x, wqkv, bqkv, wproj, bproj, rel_bias,
                                   mask=mask, num_heads=num_heads, scale=scale)
    out1 = jax.block_until_ready(out1)
    ref1 = window_attention_reference(x, wqkv, bqkv, wproj, bproj, rel_bias,
                                      mask, num_heads, scale)
    assert out1.shape == (B_, N, dim)
    assert jnp.allclose(out1, ref1, **tol), "mismatch vs reference (mask)"

    print("KERNEL_OK")
</pallas_src>

<mosaic_0001>
module attributes {stable_mosaic.version = 11 : i64} {
  func.func @_window_attention_kernel(%arg0: i32, %arg1: memref<4x64x128xbf16, #tpu.memory_space<vmem>>, %arg2: memref<128x384xbf16, #tpu.memory_space<vmem>>, %arg3: memref<1x384xf32, #tpu.memory_space<vmem>>, %arg4: memref<4x64x64xf32, #tpu.memory_space<vmem>>, %arg5: memref<128x128xbf16, #tpu.memory_space<vmem>>, %arg6: memref<1x128xf32, #tpu.memory_space<vmem>>, %arg7: memref<4x64x128xf32, #tpu.memory_space<vmem>>, %arg8: memref<4x64x384xbf16, #tpu.memory_space<vmem>>, %arg9: memref<4x64x128xbf16, #tpu.memory_space<vmem>>) attributes {dimension_semantics = [#tpu.dimension_semantics<parallel>], iteration_bounds = array<i64: 2>, scalar_prefetch = 0 : i64, scratch_operands = 2 : i64, tpu.core_type = #tpu.core_type<tc>, window_params = [{transform_indices = @transform_0, window_bounds = array<i64: 4, 64, 128>}, {pipeline_mode = #tpu.pipeline_mode<synchronous>, transform_indices = @transform_1, window_bounds = array<i64: 128, 384>}, {pipeline_mode = #tpu.pipeline_mode<synchronous>, transform_indices = @transform_2, window_bounds = array<i64: 1, 384>}, {pipeline_mode = #tpu.pipeline_mode<synchronous>, transform_indices = @transform_3, window_bounds = array<i64: 4, 64, 64>}, {pipeline_mode = #tpu.pipeline_mode<synchronous>, transform_indices = @transform_4, window_bounds = array<i64: 128, 128>}, {pipeline_mode = #tpu.pipeline_mode<synchronous>, transform_indices = @transform_5, window_bounds = array<i64: 1, 128>}, {transform_indices = @transform_6, window_bounds = array<i64: 4, 64, 128>}]} {
    %c0 = arith.constant 0 : index
    %c0_0 = arith.constant 0 : index
    %c0_1 = arith.constant 0 : index
    %0 = vector.load %arg1[%c0, %c0_0, %c0_1] : memref<4x64x128xbf16, #tpu.memory_space<vmem>>, vector<4x64x128xbf16>
    %1 = vector.shape_cast %0 : vector<4x64x128xbf16> to vector<256x128xbf16>
    %c0_2 = arith.constant 0 : index
    %c0_3 = arith.constant 0 : index
    %2 = vector.load %arg2[%c0_2, %c0_3] : memref<128x384xbf16, #tpu.memory_space<vmem>>, vector<128x384xbf16>
    %cst = arith.constant dense<0.000000e+00> : vector<256x384xf32>
    %3 = tpu.matmul %1, %2, %cst {dimension_numbers = #tpu.dot_dimension_numbers<[1], [0], [0], [1], [0, 0, 1, 1], [], []>} : vector<256x128xbf16>, vector<128x384xbf16>, vector<256x384xf32> -> vector<256x384xf32>
    %c0_4 = arith.constant 0 : index
    %c0_5 = arith.constant 0 : index
    %4 = vector.load %arg3[%c0_4, %c0_5] : memref<1x384xf32, #tpu.memory_space<vmem>>, vector<1x384xf32>
    %5 = vector.broadcast %4 : vector<1x384xf32> to vector<256x384xf32>
    %6 = arith.addf %3, %5 : vector<256x384xf32>
    %7 = vector.shape_cast %6 : vector<256x384xf32> to vector<4x64x384xf32>
    %8 = arith.truncf %7 : vector<4x64x384xf32> to vector<4x64x384xbf16>
    %c0_6 = arith.constant 0 : index
    %c0_7 = arith.constant 0 : index
    %c0_8 = arith.constant 0 : index
    %9 = vector.load %arg8[%c0_6, %c0_7, %c0_8] : memref<4x64x384xbf16, #tpu.memory_space<vmem>>, vector<4x64x384xbf16>
    tpu.vector_store %arg8[%c0_6, %c0_7, %c0_8], %8 {strides = array<i32>} : memref<4x64x384xbf16, #tpu.memory_space<vmem>>, vector<4x64x384xbf16>,
    %c0_9 = arith.constant 0 : index
    %c0_10 = arith.constant 0 : index
    %c0_11 = arith.constant 0 : index
    %10 = vector.load %arg8[%c0_9, %c0_10, %c0_11] : memref<4x64x384xbf16, #tpu.memory_space<vmem>>, vector<4x64x32xbf16>
    %c0_12 = arith.constant 0 : index
    %c0_13 = arith.constant 0 : index
    %c128 = arith.constant 128 : index
    %11 = vector.load %arg8[%c0_12, %c0_13, %c128] : memref<4x64x384xbf16, #tpu.memory_space<vmem>>, vector<4x64x32xbf16>
    %c0_14 = arith.constant 0 : index
    %c0_15 = arith.constant 0 : index
    %c256 = arith.constant 256 : index
    %12 = vector.load %arg8[%c0_14, %c0_15, %c256] : memref<4x64x384xbf16, #tpu.memory_space<vmem>>, vector<4x64x32xbf16>
    "tpu.trace_start"() <{level = 10 : i32, message = "bnd,bmd->bnm"}> : () -> ()
    %cst_16 = arith.constant dense<0.000000e+00> : vector<4x64x64xf32>
    %13 = tpu.matmul %10, %11, %cst_16 {dimension_numbers = #tpu.dot_dimension_numbers<[2], [2], [1], [1], [0, 0, 0, 1, 1, 1], [0], [0]>} : vector<4x64x32xbf16>, vector<4x64x32xbf16>, vector<4x64x64xf32> -> vector<4x64x64xf32>
    "tpu.trace_stop"() : () -> ()
    %c0_17 = arith.constant 0 : index
    %c0_18 = arith.constant 0 : index
    %c0_19 = arith.constant 0 : index
    %14 = vector.load %arg4[%c0_17, %c0_18, %c0_19] : memref<4x64x64xf32, #tpu.memory_space<vmem>>, vector<1x64x64xf32>
    %15 = vector.shape_cast %14 : vector<1x64x64xf32> to vector<64x64xf32>
    %16 = vector.shape_cast %15 : vector<64x64xf32> to vector<1x64x64xf32>
    %17 = vector.broadcast %16 : vector<1x64x64xf32> to vector<4x64x64xf32>
    %18 = arith.addf %13, %17 : vector<4x64x64xf32>
    %cst_20 = arith.constant dense<0xFF800000> : vector<4x64xf32>
    %19 = vector.multi_reduction <maximumf>, %18, %cst_20 [2] : vector<4x64x64xf32> to vector<4x64xf32>
    %20 = vector.shape_cast %19 : vector<4x64xf32> to vector<4x64x1xf32>
    %21 = vector.broadcast %20 : vector<4x64x1xf32> to vector<4x64x64xf32>
    %22 = arith.subf %18, %21 : vector<4x64x64xf32>
    %23 = math.exp %22 : vector<4x64x64xf32>
    %cst_21 = arith.constant dense<0.000000e+00> : vector<4x64xf32>
    %24 = vector.multi_reduction <add>, %23, %cst_21 [2] : vector<4x64x64xf32> to vector<4x64xf32>
    %25 = vector.shape_cast %24 : vector<4x64xf32> to vector<4x64x1xf32>
    %26 = tpu.reciprocal %25 {approx = true} : vector<4x64x1xf32> -> vector<4x64x1xf32>
    %27 = vector.broadcast %26 : vector<4x64x1xf32> to vector<4x64x64xf32>
    %28 = arith.mulf %23, %27 : vector<4x64x64xf32>
    %29 = arith.truncf %28 : vector<4x64x64xf32> to vector<4x64x64xbf16>
    "tpu.trace_start"() <{level = 10 : i32, message = "bnm,bmd->bnd"}> : () -> ()
    %cst_22 = arith.constant dense<0.000000e+00> : vector<4x64x32xf32>
    %30 = tpu.matmul %29, %12, %cst_22 {dimension_numbers = #tpu.dot_dimension_numbers<[2], [1], [1], [2], [0, 0, 0, 1, 1, 2], [0], [0]>} : vector<4x64x64xbf16>, vector<4x64x32xbf16>, vector<4x64x32xf32> -> vector<4x64x32xf32>
    "tpu.trace_stop"() : () -> ()
    %31 = arith.truncf %30 : vector<4x64x32xf32> to vector<4x64x32xbf16>
    %c0_23 = arith.constant 0 : index
    %c0_24 = arith.constant 0 : index
    %c0_25 = arith.constant 0 : index
    %32 = vector.load %arg9[%c0_23, %c0_24, %c0_25] : memref<4x64x128xbf16, #tpu.memory_space<vmem>>, vector<4x64x32xbf16>
    tpu.vector_store %arg9[%c0_23, %c0_24, %c0_25], %31 {strides = array<i32>} : memref<4x64x128xbf16, #tpu.memory_space<vmem>>, vector<4x64x32xbf16>,
    %c0_26 = arith.constant 0 : index
    %c0_27 = arith.constant 0 : index
    %c32 = arith.constant 32 : index
    %33 = vector.load %arg8[%c0_26, %c0_27, %c32] : memref<4x64x384xbf16, #tpu.memory_space<vmem>>, vector<4x64x32xbf16>
    %c0_28 = arith.constant 0 : index
    %c0_29 = arith.constant 0 : index
    %c160 = arith.constant 160 : index
    %34 = vector.load %arg8[%c0_28, %c0_29, %c160] : memref<4x64x384xbf16, #tpu.memory_space<vmem>>, vector<4x64x32xbf16>
    %c0_30 = arith.constant 0 : index
    %c0_31 = arith.constant 0 : index
    %c288 = arith.constant 288 : index
    %35 = vector.load %arg8[%c0_30, %c0_31, %c288] : memref<4x64x384xbf16, #tpu.memory_space<vmem>>, vector<4x64x32xbf16>
    "tpu.trace_start"() <{level = 10 : i32, message = "bnd,bmd->bnm"}> : () -> ()
    %cst_32 = arith.constant dense<0.000000e+00> : vector<4x64x64xf32>
    %36 = tpu.matmul %33, %34, %cst_32 {dimension_numbers = #tpu.dot_dimension_numbers<[2], [2], [1], [1], [0, 0, 0, 1, 1, 1], [0], [0]>} : vector<4x64x32xbf16>, vector<4x64x32xbf16>, vector<4x64x64xf32> -> vector<4x64x64xf32>
    "tpu.trace_stop"() : () -> ()
    %c1 = arith.constant 1 : index
    %c0_33 = arith.constant 0 : index
    %c0_34 = arith.constant 0 : index
    %37 = vector.load %arg4[%c1, %c0_33, %c0_34] : memref<4x64x64xf32, #tpu.memory_space<vmem>>, vector<1x64x64xf32>
    %38 = vector.shape_cast %37 : vector<1x64x64xf32> to vector<64x64xf32>
    %39 = vector.shape_cast %38 : vector<64x64xf32> to vector<1x64x64xf32>
    %40 = vector.broadcast %39 : vector<1x64x64xf32> to vector<4x64x64xf32>
    %41 = arith.addf %36, %40 : vector<4x64x64xf32>
    %cst_35 = arith.constant dense<0xFF800000> : vector<4x64xf32>
    %42 = vector.multi_reduction <maximumf>, %41, %cst_35 [2] : vector<4x64x64xf32> to vector<4x64xf32>
    %43 = vector.shape_cast %42 : vector<4x64xf32> to vector<4x64x1xf32>
    %44 = vector.broadcast %43 : vector<4x64x1xf32> to vector<4x64x64xf32>
    %45 = arith.subf %41, %44 : vector<4x64x64xf32>
    %46 = math.exp %45 : vector<4x64x64xf32>
    %cst_36 = arith.constant dense<0.000000e+00> : vector<4x64xf32>
    %47 = vector.multi_reduction <add>, %46, %cst_36 [2] : vector<4x64x64xf32> to vector<4x64xf32>
    %48 = vector.shape_cast %47 : vector<4x64xf32> to vector<4x64x1xf32>
    %49 = tpu.reciprocal %48 {approx = true} : vector<4x64x1xf32> -> vector<4x64x1xf32>
    %50 = vector.broadcast %49 : vector<4x64x1xf32> to vector<4x64x64xf32>
    %51 = arith.mulf %46, %50 : vector<4x64x64xf32>
    %52 = arith.truncf %51 : vector<4x64x64xf32> to vector<4x64x64xbf16>
    "tpu.trace_start"() <{level = 10 : i32, message = "bnm,bmd->bnd"}> : () -> ()
    %cst_37 = arith.constant dense<0.000000e+00> : vector<4x64x32xf32>
    %53 = tpu.matmul %52, %35, %cst_37 {dimension_numbers = #tpu.dot_dimension_numbers<[2], [1], [1], [2], [0, 0, 0, 1, 1, 2], [0], [0]>} : vector<4x64x64xbf16>, vector<4x64x32xbf16>, vector<4x64x32xf32> -> vector<4x64x32xf32>
    "tpu.trace_stop"() : () -> ()
    %54 = arith.truncf %53 : vector<4x64x32xf32> to vector<4x64x32xbf16>
    %c0_38 = arith.constant 0 : index
    %c0_39 = arith.constant 0 : index
    %c32_40 = arith.constant 32 : index
    %55 = vector.load %arg9[%c0_38, %c0_39, %c32_40] : memref<4x64x128xbf16, #tpu.memory_space<vmem>>, vector<4x64x32xbf16>
    tpu.vector_store %arg9[%c0_38, %c0_39, %c32_40], %54 {strides = array<i32>} : memref<4x64x128xbf16, #tpu.memory_space<vmem>>, vector<4x64x32xbf16>,
    %c0_41 = arith.constant 0 : index
    %c0_42 = arith.constant 0 : index
    %c64 = arith.constant 64 : index
    %56 = vector.load %arg8[%c0_41, %c0_42, %c64] : memref<4x64x384xbf16, #tpu.memory_space<vmem>>, vector<4x64x32xbf16>
    %c0_43 = arith.constant 0 : index
    %c0_44 = arith.constant 0 : index
    %c192 = arith.constant 192 : index
    %57 = vector.load %arg8[%c0_43, %c0_44, %c192] : memref<4x64x384xbf16, #tpu.memory_space<vmem>>, vector<4x64x32xbf16>
    %c0_45 = arith.constant 0 : index
    %c0_46 = arith.constant 0 : index
    %c320 = arith.constant 320 : index
    %58 = vector.load %arg8[%c0_45, %c0_46, %c320] : memref<4x64x384xbf16, #tpu.memory_space<vmem>>, vector<4x64x32xbf16>
    "tpu.trace_start"() <{level = 10 : i32, message = "bnd,bmd->bnm"}> : () -> ()
    %cst_47 = arith.constant dense<0.000000e+00> : vector<4x64x64xf32>
    %59 = tpu.matmul %56, %57, %cst_47 {dimension_numbers = #tpu.dot_dimension_numbers<[2], [2], [1], [1], [0, 0, 0, 1, 1, 1], [0], [0]>} : vector<4x64x32xbf16>, vector<4x64x32xbf16>, vector<4x64x64xf32> -> vector<4x64x64xf32>
    "tpu.trace_stop"() : () -> ()
    %c2 = arith.constant 2 : index
    %c0_48 = arith.constant 0 : index
    %c0_49 = arith.constant 0 : index
    %60 = vector.load %arg4[%c2, %c0_48, %c0_49] : memref<4x64x64xf32, #tpu.memory_space<vmem>>, vector<1x64x64xf32>
    %61 = vector.shape_cast %60 : vector<1x64x64xf32> to vector<64x64xf32>
    %62 = vector.shape_cast %61 : vector<64x64xf32> to vector<1x64x64xf32>
    %63 = vector.broadcast %62 : vector<1x64x64xf32> to vector<4x64x64xf32>
    %64 = arith.addf %59, %63 : vector<4x64x64xf32>
    %cst_50 = arith.constant dense<0xFF800000> : vector<4x64xf32>
    %65 = vector.multi_reduction <maximumf>, %64, %cst_50 [2] : vector<4x64x64xf32> to vector<4x64xf32>
    %66 = vector.shape_cast %65 : vector<4x64xf32> to vector<4x64x1xf32>
    %67 = vector.broadcast %66 : vector<4x64x1xf32> to vector<4x64x64xf32>
    %68 = arith.subf %64, %67 : vector<4x64x64xf32>
    %69 = math.exp %68 : vector<4x64x64xf32>
    %cst_51 = arith.constant dense<0.000000e+00> : vector<4x64xf32>
    %70 = vector.multi_reduction <add>, %69, %cst_51 [2] : vector<4x64x64xf32> to vector<4x64xf32>
    %71 = vector.shape_cast %70 : vector<4x64xf32> to vector<4x64x1xf32>
    %72 = tpu.reciprocal %71 {approx = true} : vector<4x64x1xf32> -> vector<4x64x1xf32>
    %73 = vector.broadcast %72 : vector<4x64x1xf32> to vector<4x64x64xf32>
    %74 = arith.mulf %69, %73 : vector<4x64x64xf32>
    %75 = arith.truncf %74 : vector<4x64x64xf32> to vector<4x64x64xbf16>
    "tpu.trace_start"() <{level = 10 : i32, message = "bnm,bmd->bnd"}> : () -> ()
    %cst_52 = arith.constant dense<0.000000e+00> : vector<4x64x32xf32>
    %76 = tpu.matmul %75, %58, %cst_52 {dimension_numbers = #tpu.dot_dimension_numbers<[2], [1], [1], [2], [0, 0, 0, 1, 1, 2], [0], [0]>} : vector<4x64x64xbf16>, vector<4x64x32xbf16>, vector<4x64x32xf32> -> vector<4x64x32xf32>
    "tpu.trace_stop"() : () -> ()
    %77 = arith.truncf %76 : vector<4x64x32xf32> to vector<4x64x32xbf16>
    %c0_53 = arith.constant 0 : index
    %c0_54 = arith.constant 0 : index
    %c64_55 = arith.constant 64 : index
    %78 = vector.load %arg9[%c0_53, %c0_54, %c64_55] : memref<4x64x128xbf16, #tpu.memory_space<vmem>>, vector<4x64x32xbf16>
    tpu.vector_store %arg9[%c0_53, %c0_54, %c64_55], %77 {strides = array<i32>} : memref<4x64x128xbf16, #tpu.memory_space<vmem>>, vector<4x64x32xbf16>,
    %c0_56 = arith.constant 0 : index
    %c0_57 = arith.constant 0 : index
    %c96 = arith.constant 96 : index
    %79 = vector.load %arg8[%c0_56, %c0_57, %c96] : memref<4x64x384xbf16, #tpu.memory_space<vmem>>, vector<4x64x32xbf16>
    %c0_58 = arith.constant 0 : index
    %c0_59 = arith.constant 0 : index
    %c224 = arith.constant 224 : index
    %80 = vector.load %arg8[%c0_58, %c0_59, %c224] : memref<4x64x384xbf16, #tpu.memory_space<vmem>>, vector<4x64x32xbf16>
    %c0_60 = arith.constant 0 : index
    %c0_61 = arith.constant 0 : index
    %c352 = arith.constant 352 : index
    %81 = vector.load %arg8[%c0_60, %c0_61, %c352] : memref<4x64x384xbf16, #tpu.memory_space<vmem>>, vector<4x64x32xbf16>
    "tpu.trace_start"() <{level = 10 : i32, message = "bnd,bmd->bnm"}> : () -> ()
    %cst_62 = arith.constant dense<0.000000e+00> : vector<4x64x64xf32>
    %82 = tpu.matmul %79, %80, %cst_62 {dimension_numbers = #tpu.dot_dimension_numbers<[2], [2], [1], [1], [0, 0, 0, 1, 1, 1], [0], [0]>} : vector<4x64x32xbf16>, vector<4x64x32xbf16>, vector<4x64x64xf32> -> vector<4x64x64xf32>
    "tpu.trace_stop"() : () -> ()
    %c3 = arith.constant 3 : index
    %c0_63 = arith.constant 0 : index
    %c0_64 = arith.constant 0 : index
    %83 = vector.load %arg4[%c3, %c0_63, %c0_64] : memref<4x64x64xf32, #tpu.memory_space<vmem>>, vector<1x64x64xf32>
    %84 = vector.shape_cast %83 : vector<1x64x64xf32> to vector<64x64xf32>
    %85 = vector.shape_cast %84 : vector<64x64xf32> to vector<1x64x64xf32>
    %86 = vector.broadcast %85 : vector<1x64x64xf32> to vector<4x64x64xf32>
    %87 = arith.addf %82, %86 : vector<4x64x64xf32>
    %cst_65 = arith.constant dense<0xFF800000> : vector<4x64xf32>
    %88 = vector.multi_reduction <maximumf>, %87, %cst_65 [2] : vector<4x64x64xf32> to vector<4x64xf32>
    %89 = vector.shape_cast %88 : vector<4x64xf32> to vector<4x64x1xf32>
    %90 = vector.broadcast %89 : vector<4x64x1xf32> to vector<4x64x64xf32>
    %91 = arith.subf %87, %90 : vector<4x64x64xf32>
    %92 = math.exp %91 : vector<4x64x64xf32>
    %cst_66 = arith.constant dense<0.000000e+00> : vector<4x64xf32>
    %93 = vector.multi_reduction <add>, %92, %cst_66 [2] : vector<4x64x64xf32> to vector<4x64xf32>
    %94 = vector.shape_cast %93 : vector<4x64xf32> to vector<4x64x1xf32>
    %95 = tpu.reciprocal %94 {approx = true} : vector<4x64x1xf32> -> vector<4x64x1xf32>
    %96 = vector.broadcast %95 : vector<4x64x1xf32> to vector<4x64x64xf32>
    %97 = arith.mulf %92, %96 : vector<4x64x64xf32>
    %98 = arith.truncf %97 : vector<4x64x64xf32> to vector<4x64x64xbf16>
    "tpu.trace_start"() <{level = 10 : i32, message = "bnm,bmd->bnd"}> : () -> ()
    %cst_67 = arith.constant dense<0.000000e+00> : vector<4x64x32xf32>
    %99 = tpu.matmul %98, %81, %cst_67 {dimension_numbers = #tpu.dot_dimension_numbers<[2], [1], [1], [2], [0, 0, 0, 1, 1, 2], [0], [0]>} : vector<4x64x64xbf16>, vector<4x64x32xbf16>, vector<4x64x32xf32> -> vector<4x64x32xf32>
    "tpu.trace_stop"() : () -> ()
    %100 = arith.truncf %99 : vector<4x64x32xf32> to vector<4x64x32xbf16>
    %c0_68 = arith.constant 0 : index
    %c0_69 = arith.constant 0 : index
    %c96_70 = arith.constant 96 : index
    %101 = vector.load %arg9[%c0_68, %c0_69, %c96_70] : memref<4x64x128xbf16, #tpu.memory_space<vmem>>, vector<4x64x32xbf16>
    tpu.vector_store %arg9[%c0_68, %c0_69, %c96_70], %100 {strides = array<i32>} : memref<4x64x128xbf16, #tpu.memory_space<vmem>>, vector<4x64x32xbf16>,
    %c0_71 = arith.constant 0 : index
    %c0_72 = arith.constant 0 : index
    %c0_73 = arith.constant 0 : index
    %102 = vector.load %arg9[%c0_71, %c0_72, %c0_73] : memref<4x64x128xbf16, #tpu.memory_space<vmem>>, vector<4x64x128xbf16>
    %103 = vector.shape_cast %102 : vector<4x64x128xbf16> to vector<256x128xbf16>
    %c0_74 = arith.constant 0 : index
    %c0_75 = arith.constant 0 : index
    %104 = vector.load %arg5[%c0_74, %c0_75] : memref<128x128xbf16, #tpu.memory_space<vmem>>, vector<128x128xbf16>
    %cst_76 = arith.constant dense<0.000000e+00> : vector<256x128xf32>
    %105 = tpu.matmul %103, %104, %cst_76 {dimension_numbers = #tpu.dot_dimension_numbers<[1], [0], [0], [1], [0, 0, 1, 1], [], []>} : vector<256x128xbf16>, vector<128x128xbf16>, vector<256x128xf32> -> vector<256x128xf32>
    %c0_77 = arith.constant 0 : index
    %c0_78 = arith.constant 0 : index
    %106 = vector.load %arg6[%c0_77, %c0_78] : memref<1x128xf32, #tpu.memory_space<vmem>>, vector<1x128xf32>
    %107 = vector.broadcast %106 : vector<1x128xf32> to vector<256x128xf32>
    %108 = arith.addf %105, %107 : vector<256x128xf32>
    %109 = vector.shape_cast %108 : vector<256x128xf32> to vector<4x64x128xf32>
    %c0_79 = arith.constant 0 : index
    %c0_80 = arith.constant 0 : index
    %c0_81 = arith.constant 0 : index
    %110 = vector.load %arg7[%c0_79, %c0_80, %c0_81] : memref<4x64x128xf32, #tpu.memory_space<vmem>>, vector<4x64x128xf32>
    tpu.vector_store %arg7[%c0_79, %c0_80, %c0_81], %109 {strides = array<i32>} : memref<4x64x128xf32, #tpu.memory_space<vmem>>, vector<4x64x128xf32>,
    return
  }
  func.func @transform_0(%arg0: i32) -> (i32, i32, i32) {
    %c0_i32 = arith.constant 0 : i32
    %c0_i32_0 = arith.constant 0 : i32
    %c0_i32_1 = arith.constant 0 : i32
    return %arg0, %c0_i32, %c0_i32_0 : i32, i32, i32
  }
  func.func @transform_1(%arg0: i32) -> (i32, i32) {
    %c0_i32 = arith.constant 0 : i32
    %c0_i32_0 = arith.constant 0 : i32
    %c0_i32_1 = arith.constant 0 : i32
    return %c0_i32, %c0_i32_0 : i32, i32
  }
  func.func @transform_2(%arg0: i32) -> (i32, i32) {
    %c0_i32 = arith.constant 0 : i32
    %c0_i32_0 = arith.constant 0 : i32
    %c0_i32_1 = arith.constant 0 : i32
    return %c0_i32, %c0_i32_0 : i32, i32
  }
  func.func @transform_3(%arg0: i32) -> (i32, i32, i32) {
    %c0_i32 = arith.constant 0 : i32
    %c0_i32_0 = arith.constant 0 : i32
    %c0_i32_1 = arith.constant 0 : i32
    %c0_i32_2 = arith.constant 0 : i32
    return %c0_i32, %c0_i32_0, %c0_i32_1 : i32, i32, i32
  }
  func.func @transform_4(%arg0: i32) -> (i32, i32) {
    %c0_i32 = arith.constant 0 : i32
    %c0_i32_0 = arith.constant 0 : i32
    %c0_i32_1 = arith.constant 0 : i32
    return %c0_i32, %c0_i32_0 : i32, i32
  }
  func.func @transform_5(%arg0: i32) -> (i32, i32) {
    %c0_i32 = arith.constant 0 : i32
    %c0_i32_0 = arith.constant 0 : i32
    %c0_i32_1 = arith.constant 0 : i32
    return %c0_i32, %c0_i32_0 : i32, i32
  }
  func.func @transform_6(%arg0: i32) -> (i32, i32, i32) {
    %c0_i32 = arith.constant 0 : i32
    %c0_i32_0 = arith.constant 0 : i32
    %c0_i32_1 = arith.constant 0 : i32
    return %arg0, %c0_i32, %c0_i32_0 : i32, i32, i32
  }
}

</mosaic_0001>

<llo_original>
// kernel: tpu_custom_call.1
$region0: #{tpu_custom_call.1}
  #allocation0 [shape = 'u32[]', space=smem, size = 0x4, offset = 0x4, fixed_abs, tag = 'smem constant byte address 0x4 - core index']
  #allocation1 [shape = 'u32[144,128]{1,0:T(1,128)}', space=vmem, size = 0x12000, scoped, tag = 'internal scratch']
  #allocation2 [shape = 'bf16[4,64,384]{2,1,0:T(16,128)(2,1)}', space=vmem, size = 0x30000, scoped, tag = 'scratch operand']
  #allocation3 [shape = 'bf16[4,64,128]{2,1,0:T(16,128)(2,1)}', space=vmem, size = 0x10000, scoped, tag = 'scratch operand']
  %s0 = inlined_call_operand.hbm [shape: bf16[8,64,128], index: 0, kind: input, shape index: {}]
  %s1 = inlined_call_operand.hbm [shape: bf16[128,384], index: 1, kind: input, shape index: {}]
  %s2 = inlined_call_operand.vmem [shape: f32[1,384], index: 2, kind: input, shape index: {}]
  %s3 = inlined_call_operand.hbm [shape: f32[4,64,64], index: 3, kind: input, shape index: {}]
  %s4 = inlined_call_operand.hbm [shape: bf16[128,128], index: 4, kind: input, shape index: {}]
  %s5 = inlined_call_operand.vmem [shape: f32[1,128], index: 5, kind: input, shape index: {}]
  %s6 = inlined_call_operand.hbm [shape: f32[8,64,128], index: 6, kind: output, shape index: {}]
  %s7 = sld [smem:[#allocation0]]
  $region73: #{tpu_custom_call.1} parent=0
    _
  %s9 = ssub.s32 1, %s7
  %s10 = scalar_select 0, %s9, %s7
  $region1: #{tpu_custom_call.1} parent=0
    #allocation4 [shape = 'u8[131072]{0}', space=vmem, size = 0x20000, scoped, tag = 'input window, operand 0']
    #allocation5 [shape = 's32[2]{0}', space=sflag, size = 0x8, scoped, tag = 'scoped memory for tpu_custom_call.1']
    #allocation6 [shape = 's32[2]{0}', space=sflag, size = 0x8, scoped, tag = 'scoped memory for tpu_custom_call.1']
    #allocation7 [shape = 'u8[98304]{0}', space=vmem, size = 0x18000, scoped, tag = 'input window, operand 1, single buffered']
    #allocation8 [shape = 's32[1]{0}', space=sflag, size = 0x4, scoped, tag = 'scoped memory for tpu_custom_call.1']
    #allocation9 [shape = 'u8[131072]{0}', space=vmem, size = 0x20000, scoped, tag = 'input window, operand 3, single buffered']
    #allocation10 [shape = 'u8[32768]{0}', space=vmem, size = 0x8000, scoped, tag = 'input window, operand 4, single buffered']
    #allocation11 [shape = 's32[1]{0}', space=sflag, size = 0x4, scoped, tag = 'scoped memory for tpu_custom_call.1']
    #allocation12 [shape = 'u8[262144]{0}', space=vmem, size = 0x40000, scoped, tag = 'output window, operand 0']
    %11 = vsyncpa [#allocation5], 0
    %s12 = scalar_lea.sflag [#allocation5], 1
    %13 = vsyncpa %s12, 0
    %14 = vsyncpa [#allocation8], 0
    %15 = vsyncpa [#allocation11], 0
    %16 = vsyncpa [#allocation6], 0
    %s17 = scalar_lea.sflag [#allocation6], 1
    %18 = vsyncpa %s17, 0
    loop: start=0, step=1, limit=4
    $region2: #{tpu_custom_call.1} parent=1 // loop_pre_header
      _
    $region3: #{tpu_custom_call.1} parent=1 // loop_header
      %s20 = sphi 0, %s24
      %p21 = scmp.ge.s32.totalorder %s20, 4
      %s30 = sphi 0, %s32
      %s33 = sphi 0, %s30
      %s34 = sphi 0, %s33
      %s50 = sphi 0, %s34
      %s54 = sphi 0, %s54
      %s56 = sphi 0, %s54
      %s57 = sphi 0, %s56
      %s71 = sphi 0, %s57
      %s75 = sphi 0, %s75
      %s77 = sphi 0, %s75
      %s78 = sphi 0, %s77
      %s92 = sphi 0, %s78
      %s96 = sphi 0, %s96
      %s98 = sphi 0, %s96
      %s99 = sphi 0, %s98
      %s113 = sphi 0, %s99
      %s117 = sphi 0, %s117
      %s119 = sphi 0, %s117
      %s120 = sphi 0, %s119
      %s134 = sphi 0, %s120
      %s138 = sphi 0, %s138
      %s140 = sphi 0, %s138
      %s141 = sphi 0, %s140
      %s155 = sphi 0, %s141
      %s161 = sphi 0, %s163
      %s164 = sphi 0, %s161
      %s165 = sphi 0, %s164
      %s181 = sphi 0, %s165
    $region4: #{tpu_custom_call.1} parent=1 // loop_header_branch
      %23 = sbr.rel (%p21) target = $region8
    $region5: #{tpu_custom_call.1} parent=1 // loop_body
      %s25 = ssub.s32 %s20, 1
      %s26 = ssub.s32 %s20, 2
      %s27 = sadd.s32 %s20, 1
      %s28 = ssub.s32 %s20, %s27
      %p29 = scmp.eq.s32.totalorder %s28, 0
      %s31 = sadd.s32 %s30, 1
      %s32 = scalar_select %p29, %s30, %s31
      %p35 = pneg %p29
      %p36 = scmp.eq.s32.totalorder %s20, 1
      %p37 = por %p35, %p36
      %p38 = scmp.ne.s32.totalorder %s30, %s33
      %p39 = scmp.eq.s32.totalorder %s20, 0
      %p40 = por %p38, %p39
      %p41 = scmp.ne.s32.totalorder %s30, %s33
      %p42 = scmp.eq.s32.totalorder %s25, 1
      %p43 = por %p41, %p42
      %p44 = scmp.ne.s32.totalorder %s33, %s34
      %p45 = scmp.eq.s32.totalorder %s25, 0
      %p46 = por %p44, %p45
      %p47 = scmp.ne.s32.totalorder %s33, %s34
      %p48 = scmp.eq.s32.totalorder %s26, 1
      %p49 = por %p47, %p48
      %p51 = scmp.ne.s32.totalorder %s34, %s50
      %p52 = scmp.eq.s32.totalorder %s26, 0
      %p53 = por %p51, %p52
      %s55 = sadd.s32 %s54, 1
      %p58 = scmp.eq.s32.totalorder %s20, 1
      %p59 = scmp.ne.s32.totalorder %s54, %s56
      %p60 = scmp.eq.s32.totalorder %s20, 0
      %p61 = por %p59, %p60
      %p62 = scmp.ne.s32.totalorder %s54, %s56
      %p63 = scmp.eq.s32.totalorder %s25, 1
      %p64 = por %p62, %p63
      %p65 = scmp.ne.s32.totalorder %s56, %s57
      %p66 = scmp.eq.s32.totalorder %s25, 0
      %p67 = por %p65, %p66
      %p68 = scmp.ne.s32.totalorder %s56, %s57
      %p69 = scmp.eq.s32.totalorder %s26, 1
      %p70 = por %p68, %p69
      %p72 = scmp.ne.s32.totalorder %s57, %s71
      %p73 = scmp.eq.s32.totalorder %s26, 0
      %p74 = por %p72, %p73
      %s76 = sadd.s32 %s75, 1
      %p79 = scmp.eq.s32.totalorder %s20, 1
      %p80 = scmp.ne.s32.totalorder %s75, %s77
      %p81 = scmp.eq.s32.totalorder %s20, 0
      %p82 = por %p80, %p81
      %p83 = scmp.ne.s32.totalorder %s75, %s77
      %p84 = scmp.eq.s32.totalorder %s25, 1
      %p85 = por %p83, %p84
      %p86 = scmp.ne.s32.totalorder %s77, %s78
      %p87 = scmp.eq.s32.totalorder %s25, 0
      %p88 = por %p86, %p87
      %p89 = scmp.ne.s32.totalorder %s77, %s78
      %p90 = scmp.eq.s32.totalorder %s26, 1
      %p91 = por %p89, %p90
      %p93 = scmp.ne.s32.totalorder %s78, %s92
      %p94 = scmp.eq.s32.totalorder %s26, 0
      %p95 = por %p93, %p94
      %s97 = sadd.s32 %s96, 1
      %p100 = scmp.eq.s32.totalorder %s20, 1
      %p101 = scmp.ne.s32.totalorder %s96, %s98
      %p102 = scmp.eq.s32.totalorder %s20, 0
      %p103 = por %p101, %p102
      %p104 = scmp.ne.s32.totalorder %s96, %s98
      %p105 = scmp.eq.s32.totalorder %s25, 1
      %p106 = por %p104, %p105
      %p107 = scmp.ne.s32.totalorder %s98, %s99
      %p108 = scmp.eq.s32.totalorder %s25, 0
      %p109 = por %p107, %p108
      %p110 = scmp.ne.s32.totalorder %s98, %s99
      %p111 = scmp.eq.s32.totalorder %s26, 1
      %p112 = por %p110, %p111
      %p114 = scmp.ne.s32.totalorder %s99, %s113
      %p115 = scmp.eq.s32.totalorder %s26, 0
      %p116 = por %p114, %p115
      %s118 = sadd.s32 %s117, 1
      %p121 = scmp.eq.s32.totalorder %s20, 1
      %p122 = scmp.ne.s32.totalorder %s117, %s119
      %p123 = scmp.eq.s32.totalorder %s20, 0
      %p124 = por %p122, %p123
      %p125 = scmp.ne.s32.totalorder %s117, %s119
      %p126 = scmp.eq.s32.totalorder %s25, 1
      %p127 = por %p125, %p126
      %p128 = scmp.ne.s32.totalorder %s119, %s120
      %p129 = scmp.eq.s32.totalorder %s25, 0
      %p130 = por %p128, %p129
      %p131 = scmp.ne.s32.totalorder %s119, %s120
      %p132 = scmp.eq.s32.totalorder %s26, 1
      %p133 = por %p131, %p132
      %p135 = scmp.ne.s32.totalorder %s120, %s134
      %p136 = scmp.eq.s32.totalorder %s26, 0
      %p137 = por %p135, %p136
      %s139 = sadd.s32 %s138, 1
      %p142 = scmp.eq.s32.totalorder %s20, 1
      %p143 = scmp.ne.s32.totalorder %s138, %s140
      %p144 = scmp.eq.s32.totalorder %s20, 0
      %p145 = por %p143, %p144
      %p146 = scmp.ne.s32.totalorder %s138, %s140
      %p147 = scmp.eq.s32.totalorder %s25, 1
      %p148 = por %p146, %p147
      %p149 = scmp.ne.s32.totalorder %s140, %s141
      %p150 = scmp.eq.s32.totalorder %s25, 0
      %p151 = por %p149, %p150
      %p152 = scmp.ne.s32.totalorder %s140, %s141
      %p153 = scmp.eq.s32.totalorder %s26, 1
      %p154 = por %p152, %p153
      %p156 = scmp.ne.s32.totalorder %s141, %s155
      %p157 = scmp.eq.s32.totalorder %s26, 0
      %p158 = por %p156, %p157
      %s159 = ssub.s32 %s20, %s27
      %p160 = scmp.eq.s32.totalorder %s159, 0
      %s162 = sadd.s32 %s161, 1
      %s163 = scalar_select %p160, %s161, %s162
      %p166 = pneg %p160
      %p167 = scmp.eq.s32.totalorder %s20, 1
      %p168 = por %p166, %p167
      %p169 = scmp.ne.s32.totalorder %s161, %s164
      %p170 = scmp.eq.s32.totalorder %s20, 0
      %p171 = por %p169, %p170
      %p172 = scmp.ne.s32.totalorder %s161, %s164
      %p173 = scmp.eq.s32.totalorder %s25, 1
      %p174 = por %p172, %p173
      %p175 = scmp.ne.s32.totalorder %s164, %s165
      %p176 = scmp.eq.s32.totalorder %s25, 0
      %p177 = por %p175, %p176
      %p178 = scmp.ne.s32.totalorder %s164, %s165
      %p179 = scmp.eq.s32.totalorder %s26, 1
      %p180 = por %p178, %p179
      %p182 = scmp.ne.s32.totalorder %s165, %s181
      %p183 = scmp.eq.s32.totalorder %s26, 0
      %p184 = por %p182, %p183
      %p185 = scmp.le.s32.totalorder 1, %s20
      %p186 = scmp.lt.s32.totalorder %s20, 3
      %p187 = pnand %p185, %p186
      %p188 = pneg %p187
      // Predicated region
      $region9: #{tpu_custom_call.1} parent=5 // pred_check
        _
      $region10: #{tpu_custom_call.1} parent=5 // pred_check_branch
        %190 = sbr.rel (%p187) target = $region12
      $region11: #{tpu_custom_call.1} parent=5 // pred_region
        %s191 = ssub.s32 %s20, 1
        // Predicated region
        $region13: #{tpu_custom_call.1} parent=11 // pred_check
          %p192 = pneg %p67
        $region14: #{tpu_custom_call.1} parent=11 // pred_check_branch
          %194 = sbr.rel (%p192) target = $region16
        $region15: #{tpu_custom_call.1} parent=11 // pred_region
          %s196 = ssub.s32 3072, 3072
          %197 = vsyncadd [#allocation8], %s196
          %s198 = sshll.u32 [#allocation7], 4
          %s199 = int_to_ptr.vmem [resolvable:$true] %s198
          %204 = dma.hbm_to_vmem [thread:$0]  %s1, 3072, %s199, [#allocation8], 192, 192, 12
        $region16: #{tpu_custom_call.1} parent=11 // pred_fallthru
          _
        // Predicated region
        $region17: #{tpu_custom_call.1} parent=11 // pred_check
          %p205 = pneg %p88
        $region18: #{tpu_custom_call.1} parent=11 // pred_check_branch
          %207 = sbr.rel (%p205) target = $region20
        $region19: #{tpu_custom_call.1} parent=11 // pred_region
          _
        $region20: #{tpu_custom_call.1} parent=11 // pred_fallthru
          _
        // Predicated region
        $region21: #{tpu_custom_call.1} parent=11 // pred_check
          %p208 = pneg %p109
        $region22: #{tpu_custom_call.1} parent=11 // pred_check_branch
          %210 = sbr.rel (%p208) target = $region24
        $region23: #{tpu_custom_call.1} parent=11 // pred_region
          %s212 = ssub.s32 4096, 4096
          %213 = vsyncadd [#allocation8], %s212
          %s214 = sshll.u32 [#allocation9], 4
          %s215 = int_to_ptr.vmem [resolvable:$true] %s214
          %220 = dma.hbm_to_vmem [thread:$0]  %s3, 4096, %s215, [#allocation8], 128, 128, 8
        $region24: #{tpu_custom_call.1} parent=11 // pred_fallthru
          _
        // Predicated region
        $region25: #{tpu_custom_call.1} parent=11 // pred_check
          %p221 = pneg %p130
        $region26: #{tpu_custom_call.1} parent=11 // pred_check_branch
          %223 = sbr.rel (%p221) target = $region28
        $region27: #{tpu_custom_call.1} parent=11 // pred_region
          %s225 = ssub.s32 1024, 1024
          %226 = vsyncadd [#allocation11], %s225
          %s227 = sshll.u32 [#allocation10], 4
          %s228 = int_to_ptr.vmem [resolvable:$true] %s227
          %233 = dma.hbm_to_vmem [thread:$0]  %s4, 1024, %s228, [#allocation11], 64, 64, 4
        $region28: #{tpu_custom_call.1} parent=11 // pred_fallthru
          _
        // Predicated region
        $region29: #{tpu_custom_call.1} parent=11 // pred_check
          %p234 = pneg %p151
        $region30: #{tpu_custom_call.1} parent=11 // pred_check_branch
          %236 = sbr.rel (%p234) target = $region32
        $region31: #{tpu_custom_call.1} parent=11 // pred_region
          _
        $region32: #{tpu_custom_call.1} parent=11 // pred_fallthru
          _
      $region12: #{tpu_custom_call.1} parent=5 // pred_fallthru
        _
      %p237 = scmp.lt.s32.totalorder %s20, 2
      // Predicated region
      $region33: #{tpu_custom_call.1} parent=5 // pred_check
        %p238 = pneg %p237
      $region34: #{tpu_custom_call.1} parent=5 // pred_check_branch
        %240 = sbr.rel (%p238) target = $region36
      $region35: #{tpu_custom_call.1} parent=5 // pred_region
        // Predicated region
        $region37: #{tpu_custom_call.1} parent=35 // pred_check
          %p241 = pneg %p40
        $region38: #{tpu_custom_call.1} parent=35 // pred_check_branch
          %243 = sbr.rel (%p241) target = $region40
        $region39: #{tpu_custom_call.1} parent=35 // pred_region
          %s244 = sand.u32 %s30, 1
          %s245 = scalar_lea.sflag [#allocation5], %s244
          %s246 = sand.u32 %s30, 1
          %s247 = smul.addr %s246, 128
          %s248 = scalar_lea.vmem [#allocation4], %s247
          %s249 = smul.u32 4, %s20
          %s251 = ssub.s32 2048, 2048
          %252 = vsyncadd %s245, %s251
          %s253 = smul.addr %s249, 8
          %s254 = smul.addr %s253, 64
          %s255 = scalar_lea.hbm %s0, %s254
          %s256 = sshll.u32 %s248, 4
          %s257 = int_to_ptr.vmem [resolvable:$true] %s256
          %262 = dma.hbm_to_vmem [thread:$0]  %s255, 2048, %s257, %s245, 64, 64, 4
        $region40: #{tpu_custom_call.1} parent=35 // pred_fallthru
          _
      $region36: #{tpu_custom_call.1} parent=5 // pred_fallthru
        _
      %p263 = scmp.le.s32.totalorder 1, %s20
      %p264 = scmp.lt.s32.totalorder %s20, 3
      %p265 = pnand %p263, %p264
      %p266 = pneg %p265
      // Predicated region
      $region41: #{tpu_custom_call.1} parent=5 // pred_check
        _
      $region42: #{tpu_custom_call.1} parent=5 // pred_check_branch
        %268 = sbr.rel (%p265) target = $region44
      $region43: #{tpu_custom_call.1} parent=5 // pred_region
        %s269 = ssub.s32 %s20, 1
        %s270 = sand.u32 %s33, 1
        %s271 = scalar_lea.sflag [#allocation5], %s270
        %s272 = sand.u32 %s33, 1
        %s273 = smul.addr %s272, 128
        %s274 = scalar_lea.vmem [#allocation4], %s273
        // Predicated region
        $region45: #{tpu_custom_call.1} parent=43 // pred_check
          %p275 = pneg %p46
        $region46: #{tpu_custom_call.1} parent=43 // pred_check_branch
          %277 = sbr.rel (%p275) target = $region48
        $region47: #{tpu_custom_call.1} parent=43 // pred_region
          %278 = dma.done %s271, 2048
        $region48: #{tpu_custom_call.1} parent=43 // pred_fallthru
          _
        // Predicated region
        $region49: #{tpu_custom_call.1} parent=43 // pred_check
          %p279 = pneg %p67
        $region50: #{tpu_custom_call.1} parent=43 // pred_check_branch
          %281 = sbr.rel (%p279) target = $region52
        $region51: #{tpu_custom_call.1} parent=43 // pred_region
          %282 = dma.done [#allocation8], 3072
        $region52: #{tpu_custom_call.1} parent=43 // pred_fallthru
          _
        // Predicated region
        $region53: #{tpu_custom_call.1} parent=43 // pred_check
          %p283 = pneg %p109
        $region54: #{tpu_custom_call.1} parent=43 // pred_check_branch
          %285 = sbr.rel (%p283) target = $region56
        $region55: #{tpu_custom_call.1} parent=43 // pred_region
          %286 = dma.done [#allocation8], 4096
        $region56: #{tpu_custom_call.1} parent=43 // pred_fallthru
          _
        // Predicated region
        $region57: #{tpu_custom_call.1} parent=43 // pred_check
          %p287 = pneg %p130
        $region58: #{tpu_custom_call.1} parent=43 // pred_check_branch
          %289 = sbr.rel (%p287) target = $region60
        $region59: #{tpu_custom_call.1} parent=43 // pred_region
          %290 = dma.done [#allocation11], 1024
        $region60: #{tpu_custom_call.1} parent=43 // pred_fallthru
          _
        %s291 = sand.u32 %s33, 1
        %s292 = scalar_lea.sflag [#allocation5], %s291
        %s293 = sand.u32 %s33, 1
        %s294 = smul.addr %s293, 128
        %s295 = scalar_lea.vmem [#allocation4], %s294
        %p296 = pneg %p46
        %p297 = pneg %p43
        %p298 = pneg %p67
        %p299 = pneg %p64
        %p300 = pneg %p88
        %p301 = pneg %p85
        %p302 = pneg %p109
        %p303 = pneg %p106
        %p304 = pneg %p130
        %p305 = pneg %p127
        %p306 = pneg %p151
        %p307 = pneg %p148
        %p308 = pneg %p177
        %p309 = pneg %p174
        %s310 = sand.u32 %s164, 1
        %s311 = scalar_lea.sflag [#allocation6], %s310
        %s312 = sand.u32 %s164, 1
        %s313 = smul.addr %s312, 256
        %s314 = scalar_lea.vmem [#allocation12], %s313
        %s315 = smul.u32 4, %s25
        %s316 = smul.u32 4, %s25
        %v318 = vld [vmem:[%s274] sm:$0xf]
        %v319 = vld [vmem:[%s274 + $0x4] sm:$0xf]
        %v320 = vld [vmem:[%s274 + $0x8] sm:$0xf]
        %v321 = vld [vmem:[%s274 + $0xc] sm:$0xf]
        %v322 = vld [vmem:[%s274 + $0x10] sm:$0xf]
        %v323 = vld [vmem:[%s274 + $0x14] sm:$0xf]
        %v324 = vld [vmem:[%s274 + $0x18] sm:$0xf]
        %v325 = vld [vmem:[%s274 + $0x1c] sm:$0xf]
        %v326 = vld [vmem:[%s274 + $0x20] sm:$0xf]
        %v327 = vld [vmem:[%s274 + $0x24] sm:$0xf]
        %v328 = vld [vmem:[%s274 + $0x28] sm:$0xf]
        %v329 = vld [vmem:[%s274 + $0x2c] sm:$0xf]
        %v330 = vld [vmem:[%s274 + $0x30] sm:$0xf]
        %v331 = vld [vmem:[%s274 + $0x34] sm:$0xf]
        %v332 = vld [vmem:[%s274 + $0x38] sm:$0xf]
        %v333 = vld [vmem:[%s274 + $0x3c] sm:$0xf]
        %v334 = vld [vmem:[%s274 + $0x40] sm:$0xf]
        %v335 = vld [vmem:[%s274 + $0x44] sm:$0xf]
        %v336 = vld [vmem:[%s274 + $0x48] sm:$0xf]
        %v337 = vld [vmem:[%s274 + $0x4c] sm:$0xf]
        %v338 = vld [vmem:[%s274 + $0x50] sm:$0xf]
        %v339 = vld [vmem:[%s274 + $0x54] sm:$0xf]
        %v340 = vld [vmem:[%s274 + $0x58] sm:$0xf]
        %v341 = vld [vmem:[%s274 + $0x5c] sm:$0xf]
        %v342 = vld [vmem:[%s274 + $0x60] sm:$0xf]
        %v343 = vld [vmem:[%s274 + $0x64] sm:$0xf]
        %v344 = vld [vmem:[%s274 + $0x68] sm:$0xf]
        %v345 = vld [vmem:[%s274 + $0x6c] sm:$0xf]
        %v346 = vld [vmem:[%s274 + $0x70] sm:$0xf]
        %v347 = vld [vmem:[%s274 + $0x74] sm:$0xf]
        %v348 = vld [vmem:[%s274 + $0x78] sm:$0xf]
        %v349 = vld [vmem:[%s274 + $0x7c] sm:$0xf]
        %v350 = vld [vmem:[#allocation7] sm:$0xff]
        %v351 = vld [vmem:[#allocation7 + $0x8] sm:$0xf]
        %v352 = vld [vmem:[#allocation7 + $0xc] sm:$0xff]
        %v353 = vld [vmem:[#allocation7 + $0x14] sm:$0xf]
        %v354 = vld [vmem:[#allocation7 + $0x18] sm:$0xff]
        %v355 = vld [vmem:[#allocation7 + $0x20] sm:$0xf]
        %v356 = vld [vmem:[#allocation7 + $0x24] sm:$0xff]
        %v357 = vld [vmem:[#allocation7 + $0x2c] sm:$0xf]
        %v358 = vld [vmem:[#allocation7 + $0x30] sm:$0xff]
        %v359 = vld [vmem:[#allocation7 + $0x38] sm:$0xf]
        %v360 = vld [vmem:[#allocation7 + $0x3c] sm:$0xff]
        %v361 = vld [vmem:[#allocation7 + $0x44] sm:$0xf]
        %v362 = vld [vmem:[#allocation7 + $0x48] sm:$0xff]
        %v363 = vld [vmem:[#allocation7 + $0x50] sm:$0xf]
        %v364 = vld [vmem:[#allocation7 + $0x54] sm:$0xff]
        %v365 = vld [vmem:[#allocation7 + $0x5c] sm:$0xf]
        %v366 = vld [vmem:[#allocation7 + $0x60] sm:$0xff]
        %v367 = vld [vmem:[#allocation7 + $0x68] sm:$0xf]
        %v368 = vld [vmem:[#allocation7 + $0x6c] sm:$0xff]
        %v369 = vld [vmem:[#allocation7 + $0x74] sm:$0xf]
        %v370 = vld [vmem:[#allocation7 + $0x78] sm:$0xff]
        %v371 = vld [vmem:[#allocation7 + $0x80] sm:$0xf]
        %v372 = vld [vmem:[#allocation7 + $0x84] sm:$0xff]
        %v373 = vld [vmem:[#allocation7 + $0x8c] sm:$0xf]
        %v374 = vld [vmem:[#allocation7 + $0x90] sm:$0xff]
        %v375 = vld [vmem:[#allocation7 + $0x98] sm:$0xf]
        %v376 = vld [vmem:[#allocation7 + $0x9c] sm:$0xff]
        %v377 = vld [vmem:[#allocation7 + $0xa4] sm:$0xf]
        %v378 = vld [vmem:[#allocation7 + $0xa8] sm:$0xff]
        %v379 = vld [vmem:[#allocation7 + $0xb0] sm:$0xf]
        %v380 = vld [vmem:[#allocation7 + $0xb4] sm:$0xff]
        %v381 = vld [vmem:[#allocation7 + $0xbc] sm:$0xf]
        %v382 = vld [vmem:[%s2] sm:$0x7]
        %v384 = vlaneseq
        %v385 = vshrl.u32 %v384, 7
        %v386 = vsub.s32 0, %v385
        %v387 = vrot.slane %v382, %v386
        %v388 = vlaneseq
        %v389 = vshrl.u32 %v388, 7
        %v390 = vsub.s32 1, %v389
        %v391 = vrot.slane %v382, %v390
        %v392 = vlaneseq
        %v393 = vshrl.u32 %v392, 7
        %v394 = vsub.s32 2, %v393
        %v395 = vrot.slane %v382, %v394
        %v431 = vunpack.c.l.b16 %v318
        %v432 = vunpack.c.l.b16 %v319
        %v433 = vunpack.c.l.b16 %v320
        %v434 = vunpack.c.l.b16 %v321
        %v435 = vunpack.c.l.b16 %v322
        %v436 = vunpack.c.l.b16 %v323
        %v437 = vunpack.c.l.b16 %v324
        %v438 = vunpack.c.l.b16 %v325
        %v439 = vunpack.c.l.b16 %v326
        %v440 = vunpack.c.l.b16 %v327
        %v441 = vunpack.c.l.b16 %v328
        %v442 = vunpack.c.l.b16 %v329
        %v443 = vunpack.c.l.b16 %v330
        %v444 = vunpack.c.l.b16 %v331
        %v445 = vunpack.c.l.b16 %v332
        %v446 = vunpack.c.l.b16 %v333
        %v447 = vunpack.c.l.b16 %v334
        %v448 = vunpack.c.l.b16 %v335
        %v449 = vunpack.c.l.b16 %v336
        %v450 = vunpack.c.l.b16 %v337
        %v451 = vunpack.c.l.b16 %v338
        %v452 = vunpack.c.l.b16 %v339
        %v453 = vunpack.c.l.b16 %v340
        %v454 = vunpack.c.l.b16 %v341
        %v455 = vunpack.c.l.b16 %v342
        %v456 = vunpack.c.l.b16 %v343
        %v457 = vunpack.c.l.b16 %v344
        %v458 = vunpack.c.l.b16 %v345
        %v459 = vunpack.c.l.b16 %v346
        %v460 = vunpack.c.l.b16 %v347
        %v461 = vunpack.c.l.b16 %v348
        %v462 = vunpack.c.l.b16 %v349
        %v463 = vpack.c.b16 %v432, %v431
        %v464 = vpack.c.b16 %v434, %v433
        %v465 = vpack.c.b16 %v436, %v435
        %v466 = vpack.c.b16 %v438, %v437
        %v467 = vpack.c.b16 %v440, %v439
        %v468 = vpack.c.b16 %v442, %v441
        %v469 = vpack.c.b16 %v444, %v443
        %v470 = vpack.c.b16 %v446, %v445
        %v471 = vpack.c.b16 %v448, %v447
        %v472 = vpack.c.b16 %v450, %v449
        %v473 = vpack.c.b16 %v452, %v451
        %v474 = vpack.c.b16 %v454, %v453
        %v475 = vpack.c.b16 %v456, %v455
        %v476 = vpack.c.b16 %v458, %v457
        %v477 = vpack.c.b16 %v460, %v459
        %v478 = vpack.c.b16 %v462, %v461
        %v527 = vunpack.c.l.b16 %v350
        %v528 = vunpack.c.h.b16 %v350
        %v529 = vunpack.c.l.b16 %v351
        %v530 = vunpack.c.l.b16 %v352
        %v531 = vunpack.c.h.b16 %v352
        %v532 = vunpack.c.l.b16 %v353
        %v533 = vunpack.c.l.b16 %v354
        %v534 = vunpack.c.h.b16 %v354
        %v535 = vunpack.c.l.b16 %v355
        %v536 = vunpack.c.l.b16 %v356
        %v537 = vunpack.c.h.b16 %v356
        %v538 = vunpack.c.l.b16 %v357
        %v539 = vunpack.c.l.b16 %v358
        %v540 = vunpack.c.h.b16 %v358
        %v541 = vunpack.c.l.b16 %v359
        %v542 = vunpack.c.l.b16 %v360
        %v543 = vunpack.c.h.b16 %v360
        %v544 = vunpack.c.l.b16 %v361
        %v545 = vunpack.c.l.b16 %v362
        %v546 = vunpack.c.h.b16 %v362
        %v547 = vunpack.c.l.b16 %v363
        %v548 = vunpack.c.l.b16 %v364
        %v549 = vunpack.c.h.b16 %v364
        %v550 = vunpack.c.l.b16 %v365
        %v551 = vunpack.c.l.b16 %v366
        %v552 = vunpack.c.h.b16 %v366
        %v553 = vunpack.c.l.b16 %v367
        %v554 = vunpack.c.l.b16 %v368
        %v555 = vunpack.c.h.b16 %v368
        %v556 = vunpack.c.l.b16 %v369
        %v557 = vunpack.c.l.b16 %v370
        %v558 = vunpack.c.h.b16 %v370
        %v559 = vunpack.c.l.b16 %v371
        %v560 = vunpack.c.l.b16 %v372
        %v561 = vunpack.c.h.b16 %v372
        %v562 = vunpack.c.l.b16 %v373
        %v563 = vunpack.c.l.b16 %v374
        %v564 = vunpack.c.h.b16 %v374
        %v565 = vunpack.c.l.b16 %v375
        %v566 = vunpack.c.l.b16 %v376
        %v567 = vunpack.c.h.b16 %v376
        %v568 = vunpack.c.l.b16 %v377
        %v569 = vunpack.c.l.b16 %v378
        %v570 = vunpack.c.h.b16 %v378
        %v571 = vunpack.c.l.b16 %v379
        %v572 = vunpack.c.l.b16 %v380
        %v573 = vunpack.c.h.b16 %v380
        %v574 = vunpack.c.l.b16 %v381
        %v575 = vpack.c.b16 %v530, %v527
        %v576 = vpack.c.b16 %v531, %v528
        %v577 = vpack.c.b16 %v532, %v529
        %v578 = vpack.c.b16 %v536, %v533
        %v579 = vpack.c.b16 %v537, %v534
        %v580 = vpack.c.b16 %v538, %v535
        %v581 = vpack.c.b16 %v542, %v539
        %v582 = vpack.c.b16 %v543, %v540
        %v583 = vpack.c.b16 %v544, %v541
        %v584 = vpack.c.b16 %v548, %v545
        %v585 = vpack.c.b16 %v549, %v546
        %v586 = vpack.c.b16 %v550, %v547
        %v587 = vpack.c.b16 %v554, %v551
        %v588 = vpack.c.b16 %v555, %v552
        %v589 = vpack.c.b16 %v556, %v553
        %v590 = vpack.c.b16 %v560, %v557
        %v591 = vpack.c.b16 %v561, %v558
        %v592 = vpack.c.b16 %v562, %v559
        %v593 = vpack.c.b16 %v566, %v563
        %v594 = vpack.c.b16 %v567, %v564
        %v595 = vpack.c.b16 %v568, %v565
        %v596 = vpack.c.b16 %v572, %v569
        %v597 = vpack.c.b16 %v573, %v570
        %v598 = vpack.c.b16 %v574, %v571
        %623 = vmatprep.subr.bf16.mxu0 %v576
        %624 = vmatpush1.bf16.msra.mxu0 %v575
        %625 = vmatprep.subr.bf16.mxu0 %v579
        %626 = vmatpush1.bf16.msra.mxu0 %v578
        %627 = vmatprep.subr.bf16.mxu0 %v582
        %628 = vmatpush1.bf16.msra.mxu0 %v581
        %629 = vmatprep.subr.bf16.mxu0 %v585
        %630 = vmatpush1.bf16.msra.mxu0 %v584
        %631 = vmatprep.subr.bf16.mxu0 %v588
        %632 = vmatpush1.bf16.msra.mxu0 %v587
        %633 = vmatprep.subr.bf16.mxu0 %v591
        %634 = vmatpush1.bf16.msra.mxu0 %v590
        %635 = vmatprep.subr.bf16.mxu0 %v594
        %636 = vmatpush1.bf16.msra.mxu0 %v593
        %637 = vmatprep.subr.bf16.mxu0 %v597
        %638 = vmatpush1.bf16.msra.mxu0 %v596
        %639 = vmatprep.subr.bf16.mxu0 0
        %640 = vmatpush1.bf16.msra.mxu0 0
        %641 = vmatprep.subr.bf16.mxu0 0
        %642 = vmatpush1.bf16.msra.mxu0 0
        %643 = vmatprep.subr.bf16.mxu0 0
        %644 = vmatpush1.bf16.msra.mxu0 0
        %645 = vmatprep.subr.bf16.mxu0 0
        %646 = vmatpush1.bf16.msra.mxu0 0
        %647 = vmatprep.subr.bf16.mxu0 0
        %648 = vmatpush1.bf16.msra.mxu0 0
        %649 = vmatprep.subr.bf16.mxu0 0
        %650 = vmatpush1.bf16.msra.mxu0 0
        %651 = vmatprep.subr.bf16.mxu0 0
        %652 = vmatpush1.bf16.msra.mxu0 0
        %653 = vmatprep.subr.bf16.mxu0 0
        %654 = vmatpush1.bf16.msra.mxu0 0
        %655 = vmatprep.mubr.bf16.mxu0 0
        %656 = vmatmul.mubr.bf16.gmra.mrb[0].mxu0 %v463
        %v657 = vpop.f32.mrb[0].mxu0
        %v658 = vadd.f32 %v387, %v657
        %v659 = vpop.f32.mrb[0].mxu0
        %v660 = vadd.f32 %v391, %v659
        %v661 = vpop.f32.mrb[0].mxu0
        %v662 = vadd.f32 %v387, %v661
        %v663 = vpop.f32.mrb[0].mxu0
        %v664 = vadd.f32 %v391, %v663
        %665 = vmatprep.mubr.bf16.mxu0 0
        %666 = vmatmul.mubr.bf16.gmra.mrb[0].mxu0 %v464
        %v667 = vpop.f32.mrb[0].mxu0
        %v668 = vadd.f32 %v387, %v667
        %v669 = vpop.f32.mrb[0].mxu0
        %v670 = vadd.f32 %v391, %v669
        %v671 = vpop.f32.mrb[0].mxu0
        %v672 = vadd.f32 %v387, %v671
        %v673 = vpop.f32.mrb[0].mxu0
        %v674 = vadd.f32 %v391, %v673
        %675 = vmatprep.mubr.bf16.mxu0 0
        %676 = vmatmul.mubr.bf16.gmra.mrb[0].mxu0 %v465
        %v677 = vpop.f32.mrb[0].mxu0
        %v678 = vadd.f32 %v387, %v677
        %v679 = vpop.f32.mrb[0].mxu0
        %v680 = vadd.f32 %v391, %v679
        %v681 = vpop.f32.mrb[0].mxu0
        %v682 = vadd.f32 %v387, %v681
        %v683 = vpop.f32.mrb[0].mxu0
        %v684 = vadd.f32 %v391, %v683
        %685 = vmatprep.mubr.bf16.mxu0 0
        %686 = vmatmul.mubr.bf16.gmra.mrb[0].mxu0 %v466
        %v687 = vpop.f32.mrb[0].mxu0
        %v688 = vadd.f32 %v387, %v687
        %v689 = vpop.f32.mrb[0].mxu0
        %v690 = vadd.f32 %v391, %v689
        %v691 = vpop.f32.mrb[0].mxu0
        %v692 = vadd.f32 %v387, %v691
        %v693 = vpop.f32.mrb[0].mxu0
        %v694 = vadd.f32 %v391, %v693
        %695 = vmatprep.mubr.bf16.mxu0 0
        %696 = vmatmul.mubr.bf16.gmra.mrb[0].mxu0 %v467
        %v697 = vpop.f32.mrb[0].mxu0
        %v698 = vadd.f32 %v387, %v697
        %v699 = vpop.f32.mrb[0].mxu0
        %v700 = vadd.f32 %v391, %v699
        %v701 = vpop.f32.mrb[0].mxu0
        %v702 = vadd.f32 %v387, %v701
        %v703 = vpop.f32.mrb[0].mxu0
        %v704 = vadd.f32 %v391, %v703
        %705 = vmatprep.mubr.bf16.mxu0 0
        %706 = vmatmul.mubr.bf16.gmra.mrb[0].mxu0 %v468
        %v707 = vpop.f32.mrb[0].mxu0
        %v708 = vadd.f32 %v387, %v707
        %v709 = vpop.f32.mrb[0].mxu0
        %v710 = vadd.f32 %v391, %v709
        %v711 = vpop.f32.mrb[0].mxu0
        %v712 = vadd.f32 %v387, %v711
        %v713 = vpop.f32.mrb[0].mxu0
        %v714 = vadd.f32 %v391, %v713
        %715 = vmatprep.mubr.bf16.mxu0 0
        %716 = vmatmul.mubr.bf16.gmra.mrb[0].mxu0 %v469
        %v717 = vpop.f32.mrb[0].mxu0
        %v718 = vadd.f32 %v387, %v717
        %v719 = vpop.f32.mrb[0].mxu0
        %v720 = vadd.f32 %v391, %v719
        %v721 = vpop.f32.mrb[0].mxu0
        %v722 = vadd.f32 %v387, %v721
        %v723 = vpop.f32.mrb[0].mxu0
        %v724 = vadd.f32 %v391, %v723
        %725 = vmatprep.mubr.bf16.mxu0 0
        %726 = vmatmul.mubr.bf16.gmra.mrb[0].mxu0 %v470
        %v727 = vpop.f32.mrb[0].mxu0
        %v728 = vadd.f32 %v387, %v727
        %v729 = vpop.f32.mrb[0].mxu0
        %v730 = vadd.f32 %v391, %v729
        %v731 = vpop.f32.mrb[0].mxu0
        %v732 = vadd.f32 %v387, %v731
        %v733 = vpop.f32.mrb[0].mxu0
        %v734 = vadd.f32 %v391, %v733
        %735 = vmatprep.mubr.bf16.mxu0 0
        %736 = vmatmul.mubr.bf16.gmra.mrb[0].mxu0 %v471
        %v737 = vpop.f32.mrb[0].mxu0
        %v738 = vadd.f32 %v387, %v737
        %v739 = vpop.f32.mrb[0].mxu0
        %v740 = vadd.f32 %v391, %v739
        %v741 = vpop.f32.mrb[0].mxu0
        %v742 = vadd.f32 %v387, %v741
        %v743 = vpop.f32.mrb[0].mxu0
        %v744 = vadd.f32 %v391, %v743
        %745 = vmatprep.mubr.bf16.mxu0 0
        %746 = vmatmul.mubr.bf16.gmra.mrb[0].mxu0 %v472
        %v747 = vpop.f32.mrb[0].mxu0
        %v748 = vadd.f32 %v387, %v747
        %v749 = vpop.f32.mrb[0].mxu0
        %v750 = vadd.f32 %v391, %v749
        %v751 = vpop.f32.mrb[0].mxu0
        %v752 = vadd.f32 %v387, %v751
        %v753 = vpop.f32.mrb[0].mxu0
        %v754 = vadd.f32 %v391, %v753
        %755 = vmatprep.mubr.bf16.mxu0 0
        %756 = vmatmul.mubr.bf16.gmra.mrb[0].mxu0 %v473
        %v757 = vpop.f32.mrb[0].mxu0
        %v758 = vadd.f32 %v387, %v757
        %v759 = vpop.f32.mrb[0].mxu0
        %v760 = vadd.f32 %v391, %v759
        %v761 = vpop.f32.mrb[0].mxu0
        %v762 = vadd.f32 %v387, %v761
        %v763 = vpop.f32.mrb[0].mxu0
        %v764 = vadd.f32 %v391, %v763
        %765 = vmatprep.mubr.bf16.mxu0 0
        %766 = vmatmul.mubr.bf16.gmra.mrb[0].mxu0 %v474
        %v767 = vpop.f32.mrb[0].mxu0
        %v768 = vadd.f32 %v387, %v767
        %v769 = vpop.f32.mrb[0].mxu0
        %v770 = vadd.f32 %v391, %v769
        %v771 = vpop.f32.mrb[0].mxu0
        %v772 = vadd.f32 %v387, %v771
        %v773 = vpop.f32.mrb[0].mxu0
        %v774 = vadd.f32 %v391, %v773
        %775 = vmatprep.mubr.bf16.mxu0 0
        %776 = vmatmul.mubr.bf16.gmra.mrb[0].mxu0 %v475
        %v777 = vpop.f32.mrb[0].mxu0
        %v778 = vadd.f32 %v387, %v777
        %v779 = vpop.f32.mrb[0].mxu0
        %v780 = vadd.f32 %v391, %v779
        %v781 = vpop.f32.mrb[0].mxu0
        %v782 = vadd.f32 %v387, %v781
        %v783 = vpop.f32.mrb[0].mxu0
        %v784 = vadd.f32 %v391, %v783
        %785 = vmatprep.mubr.bf16.mxu0 0
        %786 = vmatmul.mubr.bf16.gmra.mrb[0].mxu0 %v476
        %v787 = vpop.f32.mrb[0].mxu0
        %v788 = vadd.f32 %v387, %v787
        %v789 = vpop.f32.mrb[0].mxu0
        %v790 = vadd.f32 %v391, %v789
        %v791 = vpop.f32.mrb[0].mxu0
        %v792 = vadd.f32 %v387, %v791
        %v793 = vpop.f32.mrb[0].mxu0
        %v794 = vadd.f32 %v391, %v793
        %795 = vmatprep.mubr.bf16.mxu0 0
        %796 = vmatmul.mubr.bf16.gmra.mrb[0].mxu0 %v477
        %v797 = vpop.f32.mrb[0].mxu0
        %v798 = vadd.f32 %v387, %v797
        %v799 = vpop.f32.mrb[0].mxu0
        %v800 = vadd.f32 %v391, %v799
        %v801 = vpop.f32.mrb[0].mxu0
        %v802 = vadd.f32 %v387, %v801
        %v803 = vpop.f32.mrb[0].mxu0
        %v804 = vadd.f32 %v391, %v803
        %805 = vmatprep.mubr.bf16.mxu0 0
        %806 = vmatmul.mubr.bf16.gmra.mrb[0].mxu0 %v478
        %v807 = vpop.f32.mrb[0].mxu0
        %v808 = vadd.f32 %v387, %v807
        %v809 = vpop.f32.mrb[0].mxu0
        %v810 = vadd.f32 %v391, %v809
        %v811 = vpop.f32.mrb[0].mxu0
        %v812 = vadd.f32 %v387, %v811
        %v813 = vpop.f32.mrb[0].mxu0
        %v814 = vadd.f32 %v391, %v813
        %815 = vdwg.mxu0
        %816 = vmatprep.subr.bf16.mxu0 0
        %817 = vmatpush1.bf16.msra.mxu0 %v577
        %818 = vmatprep.subr.bf16.mxu0 0
        %819 = vmatpush1.bf16.msra.mxu0 %v580
        %820 = vmatprep.subr.bf16.mxu0 0
        %821 = vmatpush1.bf16.msra.mxu0 %v583
        %822 = vmatprep.subr.bf16.mxu0 0
        %823 = vmatpush1.bf16.msra.mxu0 %v586
        %824 = vmatprep.subr.bf16.mxu0 0
        %825 = vmatpush1.bf16.msra.mxu0 %v589
        %826 = vmatprep.subr.bf16.mxu0 0
        %827 = vmatpush1.bf16.msra.mxu0 %v592
        %828 = vmatprep.subr.bf16.mxu0 0
        %829 = vmatpush1.bf16.msra.mxu0 %v595
        %830 = vmatprep.subr.bf16.mxu0 0
        %831 = vmatpush1.bf16.msra.mxu0 %v598
        %832 = vmatprep.subr.bf16.mxu0 0
        %833 = vmatpush1.bf16.msra.mxu0 0
        %834 = vmatprep.subr.bf16.mxu0 0
        %835 = vmatpush1.bf16.msra.mxu0 0
        %836 = vmatprep.subr.bf16.mxu0 0
        %837 = vmatpush1.bf16.msra.mxu0 0
        %838 = vmatprep.subr.bf16.mxu0 0
        %839 = vmatpush1.bf16.msra.mxu0 0
        %840 = vmatprep.subr.bf16.mxu0 0
        %841 = vmatpush1.bf16.msra.mxu0 0
        %842 = vmatprep.subr.bf16.mxu0 0
        %843 = vmatpush1.bf16.msra.mxu0 0
        %844 = vmatprep.subr.bf16.mxu0 0
        %845 = vmatpush1.bf16.msra.mxu0 0
        %846 = vmatprep.subr.bf16.mxu0 0
        %847 = vmatpush1.bf16.msra.mxu0 0
        %848 = vmatprep.mubr.bf16.mxu0 0
        %849 = vmatmul.mubr.bf16.gmra.mrb[0].mxu0 %v463
        %v850 = vpop.f32.mrb[0].mxu0
        %v851 = vadd.f32 %v395, %v850
        %v852 = vpop.f32.mrb[0].mxu0
        %v853 = vpop.f32.mrb[0].mxu0
        %v854 = vadd.f32 %v395, %v853
        %v855 = vpop.f32.mrb[0].mxu0
        %856 = vmatprep.mubr.bf16.mxu0 0
        %857 = vmatmul.mubr.bf16.gmra.mrb[0].mxu0 %v464
        %v858 = vpop.f32.mrb[0].mxu0
        %v859 = vadd.f32 %v395, %v858
        %v860 = vpop.f32.mrb[0].mxu0
        %v861 = vpop.f32.mrb[0].mxu0
        %v862 = vadd.f32 %v395, %v861
        %v863 = vpop.f32.mrb[0].mxu0
        %864 = vmatprep.mubr.bf16.mxu0 0
        %865 = vmatmul.mubr.bf16.gmra.mrb[0].mxu0 %v465
        %v866 = vpop.f32.mrb[0].mxu0
        %v867 = vadd.f32 %v395, %v866
        %v868 = vpop.f32.mrb[0].mxu0
        %v869 = vpop.f32.mrb[0].mxu0
        %v870 = vadd.f32 %v395, %v869
        %v871 = vpop.f32.mrb[0].mxu0
        %872 = vmatprep.mubr.bf16.mxu0 0
        %873 = vmatmul.mubr.bf16.gmra.mrb[0].mxu0 %v466
        %v874 = vpop.f32.mrb[0].mxu0
        %v875 = vadd.f32 %v395, %v874
        %v876 = vpop.f32.mrb[0].mxu0
        %v877 = vpop.f32.mrb[0].mxu0
        %v878 = vadd.f32 %v395, %v877
        %v879 = vpop.f32.mrb[0].mxu0
        %880 = vmatprep.mubr.bf16.mxu0 0
        %881 = vmatmul.mubr.bf16.gmra.mrb[0].mxu0 %v467
        %v882 = vpop.f32.mrb[0].mxu0
        %v883 = vadd.f32 %v395, %v882
        %v884 = vpop.f32.mrb[0].mxu0
        %v885 = vpop.f32.mrb[0].mxu0
        %v886 = vadd.f32 %v395, %v885
        %v887 = vpop.f32.mrb[0].mxu0
        %888 = vmatprep.mubr.bf16.mxu0 0
        %889 = vmatmul.mubr.bf16.gmra.mrb[0].mxu0 %v468
        %v890 = vpop.f32.mrb[0].mxu0
        %v891 = vadd.f32 %v395, %v890
        %v892 = vpop.f32.mrb[0].mxu0
        %v893 = vpop.f32.mrb[0].mxu0
        %v894 = vadd.f32 %v395, %v893
        %v895 = vpop.f32.mrb[0].mxu0
        %896 = vmatprep.mubr.bf16.mxu0 0
        %897 = vmatmul.mubr.bf16.gmra.mrb[0].mxu0 %v469
        %v898 = vpop.f32.mrb[0].mxu0
        %v899 = vadd.f32 %v395, %v898
        %v900 = vpop.f32.mrb[0].mxu0
        %v901 = vpop.f32.mrb[0].mxu0
        %v902 = vadd.f32 %v395, %v901
        %v903 = vpop.f32.mrb[0].mxu0
        %904 = vmatprep.mubr.bf16.mxu0 0
        %905 = vmatmul.mubr.bf16.gmra.mrb[0].mxu0 %v470
        %v906 = vpop.f32.mrb[0].mxu0
        %v907 = vadd.f32 %v395, %v906
        %v908 = vpop.f32.mrb[0].mxu0
        %v909 = vpop.f32.mrb[0].mxu0
        %v910 = vadd.f32 %v395, %v909
        %v911 = vpop.f32.mrb[0].mxu0
        %912 = vmatprep.mubr.bf16.mxu0 0
        %913 = vmatmul.mubr.bf16.gmra.mrb[0].mxu0 %v471
        %v914 = vpop.f32.mrb[0].mxu0
        %v915 = vadd.f32 %v395, %v914
        %v916 = vpop.f32.mrb[0].mxu0
        %v917 = vpop.f32.mrb[0].mxu0
        %v918 = vadd.f32 %v395, %v917
        %v919 = vpop.f32.mrb[0].mxu0
        %920 = vmatprep.mubr.bf16.mxu0 0
        %921 = vmatmul.mubr.bf16.gmra.mrb[0].mxu0 %v472
        %v922 = vpop.f32.mrb[0].mxu0
        %v923 = vadd.f32 %v395, %v922
        %v924 = vpop.f32.mrb[0].mxu0
        %v925 = vpop.f32.mrb[0].mxu0
        %v926 = vadd.f32 %v395, %v925
        %v927 = vpop.f32.mrb[0].mxu0
        %928 = vmatprep.mubr.bf16.mxu0 0
        %929 = vmatmul.mubr.bf16.gmra.mrb[0].mxu0 %v473
        %v930 = vpop.f32.mrb[0].mxu0
        %v931 = vadd.f32 %v395, %v930
        %v932 = vpop.f32.mrb[0].mxu0
        %v933 = vpop.f32.mrb[0].mxu0
        %v934 = vadd.f32 %v395, %v933
        %v935 = vpop.f32.mrb[0].mxu0
        %936 = vmatprep.mubr.bf16.mxu0 0
        %937 = vmatmul.mubr.bf16.gmra.mrb[0].mxu0 %v474
        %v938 = vpop.f32.mrb[0].mxu0
        %v939 = vadd.f32 %v395, %v938
        %v940 = vpop.f32.mrb[0].mxu0
        %v941 = vpop.f32.mrb[0].mxu0
        %v942 = vadd.f32 %v395, %v941
        %v943 = vpop.f32.mrb[0].mxu0
        %944 = vmatprep.mubr.bf16.mxu0 0
        %945 = vmatmul.mubr.bf16.gmra.mrb[0].mxu0 %v475
        %v946 = vpop.f32.mrb[0].mxu0
        %v947 = vadd.f32 %v395, %v946
        %v948 = vpop.f32.mrb[0].mxu0
        %v949 = vpop.f32.mrb[0].mxu0
        %v950 = vadd.f32 %v395, %v949
        %v951 = vpop.f32.mrb[0].mxu0
        %952 = vmatprep.mubr.bf16.mxu0 0
        %953 = vmatmul.mubr.bf16.gmra.mrb[0].mxu0 %v476
        %v954 = vpop.f32.mrb[0].mxu0
        %v955 = vadd.f32 %v395, %v954
        %v956 = vpop.f32.mrb[0].mxu0
        %v957 = vpop.f32.mrb[0].mxu0
        %v958 = vadd.f32 %v395, %v957
        %v959 = vpop.f32.mrb[0].mxu0
        %960 = vmatprep.mubr.bf16.mxu0 0
        %961 = vmatmul.mubr.bf16.gmra.mrb[0].mxu0 %v477
        %v962 = vpop.f32.mrb[0].mxu0
        %v963 = vadd.f32 %v395, %v962
        %v964 = vpop.f32.mrb[0].mxu0
        %v965 = vpop.f32.mrb[0].mxu0
        %v966 = vadd.f32 %v395, %v965
        %v967 = vpop.f32.mrb[0].mxu0
        %968 = vmatprep.mubr.bf16.mxu0 0
        %969 = vmatmul.mubr.bf16.gmra.mrb[0].mxu0 %v478
        %v970 = vpop.f32.mrb[0].mxu0
        %v971 = vadd.f32 %v395, %v970
        %v972 = vpop.f32.mrb[0].mxu0
        %v973 = vpop.f32.mrb[0].mxu0
        %v974 = vadd.f32 %v395, %v973
        %v975 = vpop.f32.mrb[0].mxu0
        %976 = vdwg.mxu0
        %v977 = vpack.c.bf16 %v662, %v658
        %v978 = vpack.c.bf16 %v664, %v660
        %v979 = vpack.c.bf16 %v854, %v851
        %v980 = vpack.c.bf16 %v672, %v668
        %v981 = vpack.c.bf16 %v674, %v670
        %v982 = vpack.c.bf16 %v862, %v859
        %v983 = vpack.c.bf16 %v682, %v678
        %v984 = vpack.c.bf16 %v684, %v680
        %v985 = vpack.c.bf16 %v870, %v867
        %v986 = vpack.c.bf16 %v692, %v688
        %v987 = vpack.c.bf16 %v694, %v690
        %v988 = vpack.c.bf16 %v878, %v875
        %v989 = vpack.c.bf16 %v702, %v698
        %v990 = vpack.c.bf16 %v704, %v700
        %v991 = vpack.c.bf16 %v886, %v883
        %v992 = vpack.c.bf16 %v712, %v708
        %v993 = vpack.c.bf16 %v714, %v710
        %v994 = vpack.c.bf16 %v894, %v891
        %v995 = vpack.c.bf16 %v722, %v718
        %v996 = vpack.c.bf16 %v724, %v720
        %v997 = vpack.c.bf16 %v902, %v899
        %v998 = vpack.c.bf16 %v732, %v728
        %v999 = vpack.c.bf16 %v734, %v730
        %v1000 = vpack.c.bf16 %v910, %v907
        %v1001 = vpack.c.bf16 %v742, %v738
        %v1002 = vpack.c.bf16 %v744, %v740
        %v1003 = vpack.c.bf16 %v918, %v915
        %v1004 = vpack.c.bf16 %v752, %v748
        %v1005 = vpack.c.bf16 %v754, %v750
        %v1006 = vpack.c.bf16 %v926, %v923
        %v1007 = vpack.c.bf16 %v762, %v758
        %v1008 = vpack.c.bf16 %v764, %v760
        %v1009 = vpack.c.bf16 %v934, %v931
        %v1010 = vpack.c.bf16 %v772, %v768
        %v1011 = vpack.c.bf16 %v774, %v770
        %v1012 = vpack.c.bf16 %v942, %v939
        %v1013 = vpack.c.bf16 %v782, %v778
        %v1014 = vpack.c.bf16 %v784, %v780
        %v1015 = vpack.c.bf16 %v950, %v947
        %v1016 = vpack.c.bf16 %v792, %v788
        %v1017 = vpack.c.bf16 %v794, %v790
        %v1018 = vpack.c.bf16 %v958, %v955
        %v1019 = vpack.c.bf16 %v802, %v798
        %v1020 = vpack.c.bf16 %v804, %v800
        %v1021 = vpack.c.bf16 %v966, %v963
        %v1022 = vpack.c.bf16 %v812, %v808
        %v1023 = vpack.c.bf16 %v814, %v810
        %v1024 = vpack.c.bf16 %v974, %v971
        %1025 = vst [vmem:[#allocation2] sm:$0xff] %v977
        %1026 = vst [vmem:[#allocation2 + $0x8] sm:$0xff] %v978
        %1027 = vst [vmem:[#allocation2 + $0x10] sm:$0xff] %v979
        %1028 = vst [vmem:[#allocation2 + $0x18] sm:$0xff] %v980
        %1029 = vst [vmem:[#allocation2 + $0x20] sm:$0xff] %v981
        %1030 = vst [vmem:[#allocation2 + $0x28] sm:$0xff] %v982
        %1031 = vst [vmem:[#allocation2 + $0x30] sm:$0xff] %v983
        %1032 = vst [vmem:[#allocation2 + $0x38] sm:$0xff] %v984
        %1033 = vst [vmem:[#allocation2 + $0x40] sm:$0xff] %v985
        %1034 = vst [vmem:[#allocation2 + $0x48] sm:$0xff] %v986
        %1035 = vst [vmem:[#allocation2 + $0x50] sm:$0xff] %v987
        %1036 = vst [vmem:[#allocation2 + $0x58] sm:$0xff] %v988
        %1037 = vst [vmem:[#allocation2 + $0x60] sm:$0xff] %v989
        %1038 = vst [vmem:[#allocation2 + $0x68] sm:$0xff] %v990
        %1039 = vst [vmem:[#allocation2 + $0x70] sm:$0xff] %v991
        %1040 = vst [vmem:[#allocation2 + $0x78] sm:$0xff] %v992
        %1041 = vst [vmem:[#allocation2 + $0x80] sm:$0xff] %v993
        %1042 = vst [vmem:[#allocation2 + $0x88] sm:$0xff] %v994
        %1043 = vst [vmem:[#allocation2 + $0x90] sm:$0xff] %v995
        %1044 = vst [vmem:[#allocation2 + $0x98] sm:$0xff] %v996
        %1045 = vst [vmem:[#allocation2 + $0xa0] sm:$0xff] %v997
        %1046 = vst [vmem:[#allocation2 + $0xa8] sm:$0xff] %v998
        %1047 = vst [vmem:[#allocation2 + $0xb0] sm:$0xff] %v999
        %1048 = vst [vmem:[#allocation2 + $0xb8] sm:$0xff] %v1000
        %1049 = vst [vmem:[#allocation2 + $0xc0] sm:$0xff] %v1001
        %1050 = vst [vmem:[#allocation2 + $0xc8] sm:$0xff] %v1002
        %1051 = vst [vmem:[#allocation2 + $0xd0] sm:$0xff] %v1003
        %1052 = vst [vmem:[#allocation2 + $0xd8] sm:$0xff] %v1004
        %1053 = vst [vmem:[#allocation2 + $0xe0] sm:$0xff] %v1005
        %1054 = vst [vmem:[#allocation2 + $0xe8] sm:$0xff] %v1006
        %1055 = vst [vmem:[#allocation2 + $0xf0] sm:$0xff] %v1007
        %1056 = vst [vmem:[#allocation2 + $0xf8] sm:$0xff] %v1008
        %1057 = vst [vmem:[#allocation2 + $0x100] sm:$0xff] %v1009
        %1058 = vst [vmem:[#allocation2 + $0x108] sm:$0xff] %v1010
        %1059 = vst [vmem:[#allocation2 + $0x110] sm:$0xff] %v1011
        %1060 = vst [vmem:[#allocation2 + $0x118] sm:$0xff] %v1012
        %1061 = vst [vmem:[#allocation2 + $0x120] sm:$0xff] %v1013
        %1062 = vst [vmem:[#allocation2 + $0x128] sm:$0xff] %v1014
        %1063 = vst [vmem:[#allocation2 + $0x130] sm:$0xff] %v1015
        %1064 = vst [vmem:[#allocation2 + $0x138] sm:$0xff] %v1016
        %1065 = vst [vmem:[#allocation2 + $0x140] sm:$0xff] %v1017
        %1066 = vst [vmem:[#allocation2 + $0x148] sm:$0xff] %v1018
        %1067 = vst [vmem:[#allocation2 + $0x150] sm:$0xff] %v1019
        %1068 = vst [vmem:[#allocation2 + $0x158] sm:$0xff] %v1020
        %1069 = vst [vmem:[#allocation2 + $0x160] sm:$0xff] %v1021
        %1070 = vst [vmem:[#allocation2 + $0x168] sm:$0xff] %v1022
        %1071 = vst [vmem:[#allocation2 + $0x170] sm:$0xff] %v1023
        %1072 = vst [vmem:[#allocation2 + $0x178] sm:$0xff] %v1024
        %v1073 = vld [vmem:[#allocation2] sm:$0xff]
        %v1074 = vld [vmem:[#allocation2 + $0x18] sm:$0xff]
        %v1075 = vld [vmem:[#allocation2 + $0x30] sm:$0xff]
        %v1076 = vld [vmem:[#allocation2 + $0x48] sm:$0xff]
        %v1077 = vld [vmem:[#allocation2 + $0x60] sm:$0xff]
        %v1078 = vld [vmem:[#allocation2 + $0x78] sm:$0xff]
        %v1079 = vld [vmem:[#allocation2 + $0x90] sm:$0xff]
        %v1080 = vld [vmem:[#allocation2 + $0xa8] sm:$0xff]
        %v1081 = vld [vmem:[#allocation2 + $0xc0] sm:$0xff]
        %v1082 = vld [vmem:[#allocation2 + $0xd8] sm:$0xff]
        %v1083 = vld [vmem:[#allocation2 + $0xf0] sm:$0xff]
        %v1084 = vld [vmem:[#allocation2 + $0x108] sm:$0xff]
        %v1085 = vld [vmem:[#allocation2 + $0x120] sm:$0xff]
        %v1086 = vld [vmem:[#allocation2 + $0x138] sm:$0xff]
        %v1087 = vld [vmem:[#allocation2 + $0x150] sm:$0xff]
        %v1088 = vld [vmem:[#allocation2 + $0x168] sm:$0xff]
        %v1089 = vld [vmem:[#allocation2 + $0x8] sm:$0xff]
        %v1090 = vld [vmem:[#allocation2 + $0x20] sm:$0xff]
        %v1091 = vld [vmem:[#allocation2 + $0x38] sm:$0xff]
        %v1092 = vld [vmem:[#allocation2 + $0x50] sm:$0xff]
        %v1093 = vld [vmem:[#allocation2 + $0x68] sm:$0xff]
        %v1094 = vld [vmem:[#allocation2 + $0x80] sm:$0xff]
        %v1095 = vld [vmem:[#allocation2 + $0x98] sm:$0xff]
        %v1096 = vld [vmem:[#allocation2 + $0xb0] sm:$0xff]
        %v1097 = vld [vmem:[#allocation2 + $0xc8] sm:$0xff]
        %v1098 = vld [vmem:[#allocation2 + $0xe0] sm:$0xff]
        %v1099 = vld [vmem:[#allocation2 + $0xf8] sm:$0xff]
        %v1100 = vld [vmem:[#allocation2 + $0x110] sm:$0xff]
        %v1101 = vld [vmem:[#allocation2 + $0x128] sm:$0xff]
        %v1102 = vld [vmem:[#allocation2 + $0x140] sm:$0xff]
        %v1103 = vld [vmem:[#allocation2 + $0x158] sm:$0xff]
        %v1104 = vld [vmem:[#allocation2 + $0x170] sm:$0xff]
        %v1105 = vld [vmem:[#allocation2 + $0x10] sm:$0xff]
        %v1106 = vld [vmem:[#allocation2 + $0x28] sm:$0xff]
        %v1107 = vld [vmem:[#allocation2 + $0x40] sm:$0xff]
        %v1108 = vld [vmem:[#allocation2 + $0x58] sm:$0xff]
        %v1109 = vld [vmem:[#allocation2 + $0x70] sm:$0xff]
        %v1110 = vld [vmem:[#allocation2 + $0x88] sm:$0xff]
        %v1111 = vld [vmem:[#allocation2 + $0xa0] sm:$0xff]
        %v1112 = vld [vmem:[#allocation2 + $0xb8] sm:$0xff]
        %v1113 = vld [vmem:[#allocation2 + $0xd0] sm:$0xff]
        %v1114 = vld [vmem:[#allocation2 + $0xe8] sm:$0xff]
        %v1115 = vld [vmem:[#allocation2 + $0x100] sm:$0xff]
        %v1116 = vld [vmem:[#allocation2 + $0x118] sm:$0xff]
        %v1117 = vld [vmem:[#allocation2 + $0x130] sm:$0xff]
        %v1118 = vld [vmem:[#allocation2 + $0x148] sm:$0xff]
        %v1119 = vld [vmem:[#allocation2 + $0x160] sm:$0xff]
        %v1120 = vld [vmem:[#allocation2 + $0x178] sm:$0xff]
        %v1121 = vld [vmem:[#allocation9] sm:$0xff]
        %v1122 = vld [vmem:[#allocation9 + $0x8] sm:$0xff]
        %v1123 = vld [vmem:[#allocation9 + $0x10] sm:$0xff]
        %v1124 = vld [vmem:[#allocation9 + $0x18] sm:$0xff]
        %v1125 = vld [vmem:[#allocation9 + $0x20] sm:$0xff]
        %v1126 = vld [vmem:[#allocation9 + $0x28] sm:$0xff]
        %v1127 = vld [vmem:[#allocation9 + $0x30] sm:$0xff]
        %v1128 = vld [vmem:[#allocation9 + $0x38] sm:$0xff]
        %vm1129 = vcmask 261120
        %v1131 = vsel %vm1129, %v1073, 0
        %v1134 = vsel %vm1129, %v1074, 0
        %v1137 = vsel %vm1129, %v1075, 0
        %v1140 = vsel %vm1129, %v1076, 0
        %v1143 = vsel %vm1129, %v1089, 0
        %v1146 = vsel %vm1129, %v1090, 0
        %v1149 = vsel %vm1129, %v1091, 0
        %v1152 = vsel %vm1129, %v1092, 0
        %1154 = vmatprep.subr.bf16.mxu0 0
        %1155 = vmatpush1.bf16.xpose.msra.mxu0 %v1143
        %1156 = vmatprep.subr.bf16.mxu0 0
        %1157 = vmatpush1.bf16.xpose.msra.mxu0 %v1146
        %1158 = vmatprep.subr.bf16.mxu0 0
        %1159 = vmatpush1.bf16.xpose.msra.mxu0 %v1149
        %1160 = vmatprep.subr.bf16.mxu0 0
        %1161 = vmatpush1.bf16.xpose.msra.mxu0 %v1152
        %1162 = vmatprep.subr.bf16.mxu0 0
        %1163 = vmatpush1.bf16.xpose.msra.mxu0 0
        %1164 = vmatprep.subr.bf16.mxu0 0
        %1165 = vmatpush1.bf16.xpose.msra.mxu0 0
        %1166 = vmatprep.subr.bf16.mxu0 0
        %1167 = vmatpush1.bf16.xpose.msra.mxu0 0
        %1168 = vmatprep.subr.bf16.mxu0 0
        %1169 = vmatpush1.bf16.xpose.msra.mxu0 0
        %1170 = vmatprep.subr.bf16.mxu0 0
        %1171 = vmatpush1.bf16.xpose.msra.mxu0 0
        %1172 = vmatprep.subr.bf16.mxu0 0
        %1173 = vmatpush1.bf16.xpose.msra.mxu0 0
        %1174 = vmatprep.subr.bf16.mxu0 0
        %1175 = vmatpush1.bf16.xpose.msra.mxu0 0
        %1176 = vmatprep.subr.bf16.mxu0 0
        %1177 = vmatpush1.bf16.xpose.msra.mxu0 0
        %1178 = vmatprep.subr.bf16.mxu0 0
        %1179 = vmatpush1.bf16.xpose.msra.mxu0 0
        %1180 = vmatprep.subr.bf16.mxu0 0
        %1181 = vmatpush1.bf16.xpose.msra.mxu0 0
        %1182 = vmatprep.subr.bf16.mxu0 0
        %1183 = vmatpush1.bf16.xpose.msra.mxu0 0
        %1184 = vmatprep.subr.bf16.mxu0 0
        %1185 = vmatpush1.bf16.xpose.msra.mxu0 0
        %1186 = vmatprep.mubr.bf16.mxu0 0
        %1187 = vmatmul.mubr.bf16.gmra.mrb[0].mxu0 %v1131
        %v1188 = vpop.f32.mrb[0].mxu0
        %v1189 = vadd.f32 %v1121, %v1188
        %v1190 = vpop.f32.mrb[0].mxu0
        %v1191 = vpop.f32.mrb[0].mxu0
        %v1192 = vadd.f32 %v1122, %v1191
        %v1193 = vpop.f32.mrb[0].mxu0
        %1194 = vmatprep.mubr.bf16.mxu0 0
        %1195 = vmatmul.mubr.bf16.gmra.mrb[0].mxu0 %v1134
        %v1196 = vpop.f32.mrb[0].mxu0
        %v1197 = vadd.f32 %v1123, %v1196
        %v1198 = vpop.f32.mrb[0].mxu0
        %v1199 = vpop.f32.mrb[0].mxu0
        %v1200 = vadd.f32 %v1124, %v1199
        %v1201 = vpop.f32.mrb[0].mxu0
        %1202 = vmatprep.mubr.bf16.mxu0 0
        %1203 = vmatmul.mubr.bf16.gmra.mrb[0].mxu0 %v1137
        %v1204 = vpop.f32.mrb[0].mxu0
        %v1205 = vadd.f32 %v1125, %v1204
        %v1206 = vpop.f32.mrb[0].mxu0
        %v1207 = vpop.f32.mrb[0].mxu0
        %v1208 = vadd.f32 %v1126, %v1207
        %v1209 = vpop.f32.mrb[0].mxu0
        %1210 = vmatprep.mubr.bf16.mxu0 0
        %1211 = vmatmul.mubr.bf16.gmra.mrb[0].mxu0 %v1140
        %v1212 = vpop.f32.mrb[0].mxu0
        %v1213 = vadd.f32 %v1127, %v1212
        %v1214 = vpop.f32.mrb[0].mxu0
        %v1215 = vpop.f32.mrb[0].mxu0
        %v1216 = vadd.f32 %v1128, %v1215
        %v1217 = vpop.f32.mrb[0].mxu0
        %1218 = vdwg.mxu0
        %v1220 = vsel %vm1129, %v1077, 0
        %v1223 = vsel %vm1129, %v1078, 0
        %v1226 = vsel %vm1129, %v1079, 0
        %v1229 = vsel %vm1129, %v1080, 0
        %v1232 = vsel %vm1129, %v1093, 0
        %v1235 = vsel %vm1129, %v1094, 0
        %v1238 = vsel %vm1129, %v1095, 0
        %v1241 = vsel %vm1129, %v1096, 0
        %1243 = vmatprep.subr.bf16.mxu0 0
        %1244 = vmatpush1.bf16.xpose.msra.mxu0 %v1232
        %1245 = vmatprep.subr.bf16.mxu0 0
        %1246 = vmatpush1.bf16.xpose.msra.mxu0 %v1235
        %1247 = vmatprep.subr.bf16.mxu0 0
        %1248 = vmatpush1.bf16.xpose.msra.mxu0 %v1238
        %1249 = vmatprep.subr.bf16.mxu0 0
        %1250 = vmatpush1.bf16.xpose.msra.mxu0 %v1241
        %1251 = vmatprep.subr.bf16.mxu0 0
        %1252 = vmatpush1.bf16.xpose.msra.mxu0 0
        %1253 = vmatprep.subr.bf16.mxu0 0
        %1254 = vmatpush1.bf16.xpose.msra.mxu0 0
        %1255 = vmatprep.subr.bf16.mxu0 0
        %1256 = vmatpush1.bf16.xpose.msra.mxu0 0
        %1257 = vmatprep.subr.bf16.mxu0 0
        %1258 = vmatpush1.bf16.xpose.msra.mxu0 0
        %1259 = vmatprep.subr.bf16.mxu0 0
        %1260 = vmatpush1.bf16.xpose.msra.mxu0 0
        %1261 = vmatprep.subr.bf16.mxu0 0
        %1262 = vmatpush1.bf16.xpose.msra.mxu0 0
        %1263 = vmatprep.subr.bf16.mxu0 0
        %1264 = vmatpush1.bf16.xpose.msra.mxu0 0
        %1265 = vmatprep.subr.bf16.mxu0 0
        %1266 = vmatpush1.bf16.xpose.msra.mxu0 0
        %1267 = vmatprep.subr.bf16.mxu0 0
        %1268 = vmatpush1.bf16.xpose.msra.mxu0 0
        %1269 = vmatprep.subr.bf16.mxu0 0
        %1270 = vmatpush1.bf16.xpose.msra.mxu0 0
        %1271 = vmatprep.subr.bf16.mxu0 0
        %1272 = vmatpush1.bf16.xpose.msra.mxu0 0
        %1273 = vmatprep.subr.bf16.mxu0 0
        %1274 = vmatpush1.bf16.xpose.msra.mxu0 0
        %1275 = vmatprep.mubr.bf16.mxu0 0
        %1276 = vmatmul.mubr.bf16.gmra.mrb[0].mxu0 %v1220
        %v1277 = vpop.f32.mrb[0].mxu0
        %v1278 = vadd.f32 %v1121, %v1277
        %v1279 = vpop.f32.mrb[0].mxu0
        %v1280 = vpop.f32.mrb[0].mxu0
        %v1281 = vadd.f32 %v1122, %v1280
        %v1282 = vpop.f32.mrb[0].mxu0
        %1283 = vmatprep.mubr.bf16.mxu0 0
        %1284 = vmatmul.mubr.bf16.gmra.mrb[0].mxu0 %v1223
        %v1285 = vpop.f32.mrb[0].mxu0
        %v1286 = vadd.f32 %v1123, %v1285
        %v1287 = vpop.f32.mrb[0].mxu0
        %v1288 = vpop.f32.mrb[0].mxu0
        %v1289 = vadd.f32 %v1124, %v1288
        %v1290 = vpop.f32.mrb[0].mxu0
        %1291 = vmatprep.mubr.bf16.mxu0 0
        %1292 = vmatmul.mubr.bf16.gmra.mrb[0].mxu0 %v1226
        %v1293 = vpop.f32.mrb[0].mxu0
        %v1294 = vadd.f32 %v1125, %v1293
        %v1295 = vpop.f32.mrb[0].mxu0
        %v1296 = vpop.f32.mrb[0].mxu0
        %v1297 = vadd.f32 %v1126, %v1296
        %v1298 = vpop.f32.mrb[0].mxu0
        %1299 = vmatprep.mubr.bf16.mxu0 0
        %1300 = vmatmul.mubr.bf16.gmra.mrb[0].mxu0 %v1229
        %v1301 = vpop.f32.mrb[0].mxu0
        %v1302 = vadd.f32 %v1127, %v1301
        %v1303 = vpop.f32.mrb[0].mxu0
        %v1304 = vpop.f32.mrb[0].mxu0
        %v1305 = vadd.f32 %v1128, %v1304
        %v1306 = vpop.f32.mrb[0].mxu0
        %1307 = vdwg.mxu0
        %v1309 = vsel %vm1129, %v1081, 0
        %v1312 = vsel %vm1129, %v1082, 0
        %v1315 = vsel %vm1129, %v1083, 0
        %v1318 = vsel %vm1129, %v1084, 0
        %v1321 = vsel %vm1129, %v1097, 0
        %v1324 = vsel %vm1129, %v1098, 0
        %v1327 = vsel %vm1129, %v1099, 0
        %v1330 = vsel %vm1129, %v1100, 0
        %1332 = vmatprep.subr.bf16.mxu0 0
        %1333 = vmatpush1.bf16.xpose.msra.mxu0 %v1321
        %1334 = vmatprep.subr.bf16.mxu0 0
        %1335 = vmatpush1.bf16.xpose.msra.mxu0 %v1324
        %1336 = vmatprep.subr.bf16.mxu0 0
        %1337 = vmatpush1.bf16.xpose.msra.mxu0 %v1327
        %1338 = vmatprep.subr.bf16.mxu0 0
        %1339 = vmatpush1.bf16.xpose.msra.mxu0 %v1330
        %1340 = vmatprep.subr.bf16.mxu0 0
        %1341 = vmatpush1.bf16.xpose.msra.mxu0 0
        %1342 = vmatprep.subr.bf16.mxu0 0
        %1343 = vmatpush1.bf16.xpose.msra.mxu0 0
        %1344 = vmatprep.subr.bf16.mxu0 0
        %1345 = vmatpush1.bf16.xpose.msra.mxu0 0
        %1346 = vmatprep.subr.bf16.mxu0 0
        %1347 = vmatpush1.bf16.xpose.msra.mxu0 0
        %1348 = vmatprep.subr.bf16.mxu0 0
        %1349 = vmatpush1.bf16.xpose.msra.mxu0 0
        %1350 = vmatprep.subr.bf16.mxu0 0
        %1351 = vmatpush1.bf16.xpose.msra.mxu0 0
        %1352 = vmatprep.subr.bf16.mxu0 0
        %1353 = vmatpush1.bf16.xpose.msra.mxu0 0
        %1354 = vmatprep.subr.bf16.mxu0 0
        %1355 = vmatpush1.bf16.xpose.msra.mxu0 0
        %1356 = vmatprep.subr.bf16.mxu0 0
        %1357 = vmatpush1.bf16.xpose.msra.mxu0 0
        %1358 = vmatprep.subr.bf16.mxu0 0
        %1359 = vmatpush1.bf16.xpose.msra.mxu0 0
        %1360 = vmatprep.subr.bf16.mxu0 0
        %1361 = vmatpush1.bf16.xpose.msra.mxu0 0
        %1362 = vmatprep.subr.bf16.mxu0 0
        %1363 = vmatpush1.bf16.xpose.msra.mxu0 0
        %1364 = vmatprep.mubr.bf16.mxu0 0
        %1365 = vmatmul.mubr.bf16.gmra.mrb[0].mxu0 %v1309
        %v1366 = vpop.f32.mrb[0].mxu0
        %v1367 = vadd.f32 %v1121, %v1366
        %v1368 = vpop.f32.mrb[0].mxu0
        %v1369 = vpop.f32.mrb[0].mxu0
        %v1370 = vadd.f32 %v1122, %v1369
        %v1371 = vpop.f32.mrb[0].mxu0
        %1372 = vmatprep.mubr.bf16.mxu0 0
        %1373 = vmatmul.mubr.bf16.gmra.mrb[0].mxu0 %v1312
        %v1374 = vpop.f32.mrb[0].mxu0
        %v1375 = vadd.f32 %v1123, %v1374
        %v1376 = vpop.f32.mrb[0].mxu0
        %v1377 = vpop.f32.mrb[0].mxu0
        %v1378 = vadd.f32 %v1124, %v1377
        %v1379 = vpop.f32.mrb[0].mxu0
        %1380 = vmatprep.mubr.bf16.mxu0 0
        %1381 = vmatmul.mubr.bf16.gmra.mrb[0].mxu0 %v1315
        %v1382 = vpop.f32.mrb[0].mxu0
        %v1383 = vadd.f32 %v1125, %v1382
        %v1384 = vpop.f32.mrb[0].mxu0
        %v1385 = vpop.f32.mrb[0].mxu0
        %v1386 = vadd.f32 %v1126, %v1385
        %v1387 = vpop.f32.mrb[0].mxu0
        %1388 = vmatprep.mubr.bf16.mxu0 0
        %1389 = vmatmul.mubr.bf16.gmra.mrb[0].mxu0 %v1318
        %v1390 = vpop.f32.mrb[0].mxu0
        %v1391 = vadd.f32 %v1127, %v1390
        %v1392 = vpop.f32.mrb[0].mxu0
        %v1393 = vpop.f32.mrb[0].mxu0
        %v1394 = vadd.f32 %v1128, %v1393
        %v1395 = vpop.f32.mrb[0].mxu0
        %1396 = vdwg.mxu0
        %v1398 = vsel %vm1129, %v1085, 0
        %v1401 = vsel %vm1129, %v1086, 0
        %v1404 = vsel %vm1129, %v1087, 0
        %v1407 = vsel %vm1129, %v1088, 0
        %v1410 = vsel %vm1129, %v1101, 0
        %v1413 = vsel %vm1129, %v1102, 0
        %v1416 = vsel %vm1129, %v1103, 0
        %v1419 = vsel %vm1129, %v1104, 0
        %1421 = vmatprep.subr.bf16.mxu0 0
        %1422 = vmatpush1.bf16.xpose.msra.mxu0 %v1410
        %1423 = vmatprep.subr.bf16.mxu0 0
        %1424 = vmatpush1.bf16.xpose.msra.mxu0 %v1413
        %1425 = vmatprep.subr.bf16.mxu0 0
        %1426 = vmatpush1.bf16.xpose.msra.mxu0 %v1416
        %1427 = vmatprep.subr.bf16.mxu0 0
        %1428 = vmatpush1.bf16.xpose.msra.mxu0 %v1419
        %1429 = vmatprep.subr.bf16.mxu0 0
        %1430 = vmatpush1.bf16.xpose.msra.mxu0 0
        %1431 = vmatprep.subr.bf16.mxu0 0
        %1432 = vmatpush1.bf16.xpose.msra.mxu0 0
        %1433 = vmatprep.subr.bf16.mxu0 0
        %1434 = vmatpush1.bf16.xpose.msra.mxu0 0
        %1435 = vmatprep.subr.bf16.mxu0 0
        %1436 = vmatpush1.bf16.xpose.msra.mxu0 0
        %1437 = vmatprep.subr.bf16.mxu0 0
        %1438 = vmatpush1.bf16.xpose.msra.mxu0 0
        %1439 = vmatprep.subr.bf16.mxu0 0
        %1440 = vmatpush1.bf16.xpose.msra.mxu0 0
        %1441 = vmatprep.subr.bf16.mxu0 0
        %1442 = vmatpush1.bf16.xpose.msra.mxu0 0
        %1443 = vmatprep.subr.bf16.mxu0 0
        %1444 = vmatpush1.bf16.xpose.msra.mxu0 0
        %1445 = vmatprep.subr.bf16.mxu0 0
        %1446 = vmatpush1.bf16.xpose.msra.mxu0 0
        %1447 = vmatprep.subr.bf16.mxu0 0
        %1448 = vmatpush1.bf16.xpose.msra.mxu0 0
        %1449 = vmatprep.subr.bf16.mxu0 0
        %1450 = vmatpush1.bf16.xpose.msra.mxu0 0
        %1451 = vmatprep.subr.bf16.mxu0 0
        %1452 = vmatpush1.bf16.xpose.msra.mxu0 0
        %1453 = vmatprep.mubr.bf16.mxu0 0
        %1454 = vmatmul.mubr.bf16.gmra.mrb[0].mxu0 %v1398
        %v1455 = vpop.f32.mrb[0].mxu0
        %v1456 = vadd.f32 %v1121, %v1455
        %v1457 = vpop.f32.mrb[0].mxu0
        %v1458 = vpop.f32.mrb[0].mxu0
        %v1459 = vadd.f32 %v1122, %v1458
        %v1460 = vpop.f32.mrb[0].mxu0
        %1461 = vmatprep.mubr.bf16.mxu0 0
        %1462 = vmatmul.mubr.bf16.gmra.mrb[0].mxu0 %v1401
        %v1463 = vpop.f32.mrb[0].mxu0
        %v1464 = vadd.f32 %v1123, %v1463
        %v1465 = vpop.f32.mrb[0].mxu0
        %v1466 = vpop.f32.mrb[0].mxu0
        %v1467 = vadd.f32 %v1124, %v1466
        %v1468 = vpop.f32.mrb[0].mxu0
        %1469 = vmatprep.mubr.bf16.mxu0 0
        %1470 = vmatmul.mubr.bf16.gmra.mrb[0].mxu0 %v1404
        %v1471 = vpop.f32.mrb[0].mxu0
        %v1472 = vadd.f32 %v1125, %v1471
        %v1473 = vpop.f32.mrb[0].mxu0
        %v1474 = vpop.f32.mrb[0].mxu0
        %v1475 = vadd.f32 %v1126, %v1474
        %v1476 = vpop.f32.mrb[0].mxu0
        %1477 = vmatprep.mubr.bf16.mxu0 0
        %1478 = vmatmul.mubr.bf16.gmra.mrb[0].mxu0 %v1407
        %v1479 = vpop.f32.mrb[0].mxu0
        %v1480 = vadd.f32 %v1127, %v1479
        %v1481 = vpop.f32.mrb[0].mxu0
        %v1482 = vpop.f32.mrb[0].mxu0
        %v1483 = vadd.f32 %v1128, %v1482
        %v1484 = vpop.f32.mrb[0].mxu0
        %1485 = vdwg.mxu0
        %vm1486 = vcmask 523264
        %v1487 = vsel %vm1486, %v1189, -inf
        %1488 = vmax.xlane.f32.xlu0 %v1487
        %v1489 = vpop.xlane.xlu0 %1488
        %v1490 = vsel %vm1486, %v1192, -inf
        %1491 = vmax.xlane.f32.xlu0 %v1490
        %v1492 = vpop.xlane.xlu0 %1491
        %v1493 = vsel %vm1486, %v1197, -inf
        %1494 = vmax.xlane.f32.xlu0 %v1493
        %v1495 = vpop.xlane.xlu0 %1494
        %v1496 = vsel %vm1486, %v1200, -inf
        %1497 = vmax.xlane.f32.xlu0 %v1496
        %v1498 = vpop.xlane.xlu0 %1497
        %v1499 = vsel %vm1486, %v1205, -inf
        %1500 = vmax.xlane.f32.xlu0 %v1499
        %v1501 = vpop.xlane.xlu0 %1500
        %v1502 = vsel %vm1486, %v1208, -inf
        %1503 = vmax.xlane.f32.xlu0 %v1502
        %v1504 = vpop.xlane.xlu0 %1503
        %v1505 = vsel %vm1486, %v1213, -inf
        %1506 = vmax.xlane.f32.xlu0 %v1505
        %v1507 = vpop.xlane.xlu0 %1506
        %v1508 = vsel %vm1486, %v1216, -inf
        %1509 = vmax.xlane.f32.xlu0 %v1508
        %v1510 = vpop.xlane.xlu0 %1509
        %v1511 = vsel %vm1486, %v1278, -inf
        %1512 = vmax.xlane.f32.xlu0 %v1511
        %v1513 = vpop.xlane.xlu0 %1512
        %v1514 = vsel %vm1486, %v1281, -inf
        %1515 = vmax.xlane.f32.xlu0 %v1514
        %v1516 = vpop.xlane.xlu0 %1515
        %v1517 = vsel %vm1486, %v1286, -inf
        %1518 = vmax.xlane.f32.xlu0 %v1517
        %v1519 = vpop.xlane.xlu0 %1518
        %v1520 = vsel %vm1486, %v1289, -inf
        %1521 = vmax.xlane.f32.xlu0 %v1520
        %v1522 = vpop.xlane.xlu0 %1521
        %v1523 = vsel %vm1486, %v1294, -inf
        %1524 = vmax.xlane.f32.xlu0 %v1523
        %v1525 = vpop.xlane.xlu0 %1524
        %v1526 = vsel %vm1486, %v1297, -inf
        %1527 = vmax.xlane.f32.xlu0 %v1526
        %v1528 = vpop.xlane.xlu0 %1527
        %v1529 = vsel %vm1486, %v1302, -inf
        %1530 = vmax.xlane.f32.xlu0 %v1529
        %v1531 = vpop.xlane.xlu0 %1530
        %v1532 = vsel %vm1486, %v1305, -inf
        %1533 = vmax.xlane.f32.xlu0 %v1532
        %v1534 = vpop.xlane.xlu0 %1533
        %v1535 = vsel %vm1486, %v1367, -inf
        %1536 = vmax.xlane.f32.xlu0 %v1535
        %v1537 = vpop.xlane.xlu0 %1536
        %v1538 = vsel %vm1486, %v1370, -inf
        %1539 = vmax.xlane.f32.xlu0 %v1538
        %v1540 = vpop.xlane.xlu0 %1539
        %v1541 = vsel %vm1486, %v1375, -inf
        %1542 = vmax.xlane.f32.xlu0 %v1541
        %v1543 = vpop.xlane.xlu0 %1542
        %v1544 = vsel %vm1486, %v1378, -inf
        %1545 = vmax.xlane.f32.xlu0 %v1544
        %v1546 = vpop.xlane.xlu0 %1545
        %v1547 = vsel %vm1486, %v1383, -inf
        %1548 = vmax.xlane.f32.xlu0 %v1547
        %v1549 = vpop.xlane.xlu0 %1548
        %v1550 = vsel %vm1486, %v1386, -inf
        %1551 = vmax.xlane.f32.xlu0 %v1550
        %v1552 = vpop.xlane.xlu0 %1551
        %v1553 = vsel %vm1486, %v1391, -inf
        %1554 = vmax.xlane.f32.xlu0 %v1553
        %v1555 = vpop.xlane.xlu0 %1554
        %v1556 = vsel %vm1486, %v1394, -inf
        %1557 = vmax.xlane.f32.xlu0 %v1556
        %v1558 = vpop.xlane.xlu0 %1557
        %v1559 = vsel %vm1486, %v1456, -inf
        %1560 = vmax.xlane.f32.xlu0 %v1559
        %v1561 = vpop.xlane.xlu0 %1560
        %v1562 = vsel %vm1486, %v1459, -inf
        %1563 = vmax.xlane.f32.xlu0 %v1562
        %v1564 = vpop.xlane.xlu0 %1563
        %v1565 = vsel %vm1486, %v1464, -inf
        %1566 = vmax.xlane.f32.xlu0 %v1565
        %v1567 = vpop.xlane.xlu0 %1566
        %v1568 = vsel %vm1486, %v1467, -inf
        %1569 = vmax.xlane.f32.xlu0 %v1568
        %v1570 = vpop.xlane.xlu0 %1569
        %v1571 = vsel %vm1486, %v1472, -inf
        %1572 = vmax.xlane.f32.xlu0 %v1571
        %v1573 = vpop.xlane.xlu0 %1572
        %v1574 = vsel %vm1486, %v1475, -inf
        %1575 = vmax.xlane.f32.xlu0 %v1574
        %v1576 = vpop.xlane.xlu0 %1575
        %v1577 = vsel %vm1486, %v1480, -inf
        %1578 = vmax.xlane.f32.xlu0 %v1577
        %v1579 = vpop.xlane.xlu0 %1578
        %v1580 = vsel %vm1486, %v1483, -inf
        %1581 = vmax.xlane.f32.xlu0 %v1580
        %v1582 = vpop.xlane.xlu0 %1581
        %v1583 = vsub.f32 %v1189, %v1489
        %v1584 = vsub.f32 %v1192, %v1492
        %v1585 = vsub.f32 %v1197, %v1495
        %v1586 = vsub.f32 %v1200, %v1498
        %v1587 = vsub.f32 %v1205, %v1501
        %v1588 = vsub.f32 %v1208, %v1504
        %v1589 = vsub.f32 %v1213, %v1507
        %v1590 = vsub.f32 %v1216, %v1510
        %v1591 = vsub.f32 %v1278, %v1513
        %v1592 = vsub.f32 %v1281, %v1516
        %v1593 = vsub.f32 %v1286, %v1519
        %v1594 = vsub.f32 %v1289, %v1522
        %v1595 = vsub.f32 %v1294, %v1525
        %v1596 = vsub.f32 %v1297, %v1528
        %v1597 = vsub.f32 %v1302, %v1531
        %v1598 = vsub.f32 %v1305, %v1534
        %v1599 = vsub.f32 %v1367, %v1537
        %v1600 = vsub.f32 %v1370, %v1540
        %v1601 = vsub.f32 %v1375, %v1543
        %v1602 = vsub.f32 %v1378, %v1546
        %v1603 = vsub.f32 %v1383, %v1549
        %v1604 = vsub.f32 %v1386, %v1552
        %v1605 = vsub.f32 %v1391, %v1555
        %v1606 = vsub.f32 %v1394, %v1558
        %v1607 = vsub.f32 %v1456, %v1561
        %v1608 = vsub.f32 %v1459, %v1564
        %v1609 = vsub.f32 %v1464, %v1567
        %v1610 = vsub.f32 %v1467, %v1570
        %v1611 = vsub.f32 %v1472, %v1573
        %v1612 = vsub.f32 %v1475, %v1576
        %v1613 = vsub.f32 %v1480, %v1579
        %v1614 = vsub.f32 %v1483, %v1582
        %v1615 = vmul.f32 %v1583, 1.442695
        %v1616 = vpow.pop %v1615
        %v1617 = vmul.f32 %v1584, 1.442695
        %v1618 = vpow.pop %v1617
        %v1619 = vmul.f32 %v1585, 1.442695
        %v1620 = vpow.pop %v1619
        %v1621 = vmul.f32 %v1586, 1.442695
        %v1622 = vpow.pop %v1621
        %v1623 = vmul.f32 %v1587, 1.442695
        %v1624 = vpow.pop %v1623
        %v1625 = vmul.f32 %v1588, 1.442695
        %v1626 = vpow.pop %v1625
        %v1627 = vmul.f32 %v1589, 1.442695
        %v1628 = vpow.pop %v1627
        %v1629 = vmul.f32 %v1590, 1.442695
        %v1630 = vpow.pop %v1629
        %v1631 = vmul.f32 %v1591, 1.442695
        %v1632 = vpow.pop %v1631
        %v1633 = vmul.f32 %v1592, 1.442695
        %v1634 = vpow.pop %v1633
        %v1635 = vmul.f32 %v1593, 1.442695
        %v1636 = vpow.pop %v1635
        %v1637 = vmul.f32 %v1594, 1.442695
        %v1638 = vpow.pop %v1637
        %v1639 = vmul.f32 %v1595, 1.442695
        %v1640 = vpow.pop %v1639
        %v1641 = vmul.f32 %v1596, 1.442695
        %v1642 = vpow.pop %v1641
        %v1643 = vmul.f32 %v1597, 1.442695
        %v1644 = vpow.pop %v1643
        %v1645 = vmul.f32 %v1598, 1.442695
        %v1646 = vpow.pop %v1645
        %v1647 = vmul.f32 %v1599, 1.442695
        %v1648 = vpow.pop %v1647
        %v1649 = vmul.f32 %v1600, 1.442695
        %v1650 = vpow.pop %v1649
        %v1651 = vmul.f32 %v1601, 1.442695
        %v1652 = vpow.pop %v1651
        %v1653 = vmul.f32 %v1602, 1.442695
        %v1654 = vpow.pop %v1653
        %v1655 = vmul.f32 %v1603, 1.442695
        %v1656 = vpow.pop %v1655
        %v1657 = vmul.f32 %v1604, 1.442695
        %v1658 = vpow.pop %v1657
        %v1659 = vmul.f32 %v1605, 1.442695
        %v1660 = vpow.pop %v1659
        %v1661 = vmul.f32 %v1606, 1.442695
        %v1662 = vpow.pop %v1661
        %v1663 = vmul.f32 %v1607, 1.442695
        %v1664 = vpow.pop %v1663
        %v1665 = vmul.f32 %v1608, 1.442695
        %v1666 = vpow.pop %v1665
        %v1667 = vmul.f32 %v1609, 1.442695
        %v1668 = vpow.pop %v1667
        %v1669 = vmul.f32 %v1610, 1.442695
        %v1670 = vpow.pop %v1669
        %v1671 = vmul.f32 %v1611, 1.442695
        %v1672 = vpow.pop %v1671
        %v1673 = vmul.f32 %v1612, 1.442695
        %v1674 = vpow.pop %v1673
        %v1675 = vmul.f32 %v1613, 1.442695
        %v1676 = vpow.pop %v1675
        %v1677 = vmul.f32 %v1614, 1.442695
        %v1678 = vpow.pop %v1677
        %v1679 = vsel %vm1486, %v1616, 0.0
        %1680 = vadd.xlane.f32.xlu0 %v1679
        %v1681 = vpop.xlane.xlu0 %1680
        %v1682 = vsel %vm1486, %v1618, 0.0
        %1683 = vadd.xlane.f32.xlu0 %v1682
        %v1684 = vpop.xlane.xlu0 %1683
        %v1685 = vsel %vm1486, %v1620, 0.0
        %1686 = vadd.xlane.f32.xlu0 %v1685
        %v1687 = vpop.xlane.xlu0 %1686
        %v1688 = vsel %vm1486, %v1622, 0.0
        %1689 = vadd.xlane.f32.xlu0 %v1688
        %v1690 = vpop.xlane.xlu0 %1689
        %v1691 = vsel %vm1486, %v1624, 0.0
        %1692 = vadd.xlane.f32.xlu0 %v1691
        %v1693 = vpop.xlane.xlu0 %1692
        %v1694 = vsel %vm1486, %v1626, 0.0
        %1695 = vadd.xlane.f32.xlu0 %v1694
        %v1696 = vpop.xlane.xlu0 %1695
        %v1697 = vsel %vm1486, %v1628, 0.0
        %1698 = vadd.xlane.f32.xlu0 %v1697
        %v1699 = vpop.xlane.xlu0 %1698
        %v1700 = vsel %vm1486, %v1630, 0.0
        %1701 = vadd.xlane.f32.xlu0 %v1700
        %v1702 = vpop.xlane.xlu0 %1701
        %v1703 = vsel %vm1486, %v1632, 0.0
        %1704 = vadd.xlane.f32.xlu0 %v1703
        %v1705 = vpop.xlane.xlu0 %1704
        %v1706 = vsel %vm1486, %v1634, 0.0
        %1707 = vadd.xlane.f32.xlu0 %v1706
        %v1708 = vpop.xlane.xlu0 %1707
        %v1709 = vsel %vm1486, %v1636, 0.0
        %1710 = vadd.xlane.f32.xlu0 %v1709
        %v1711 = vpop.xlane.xlu0 %1710
        %v1712 = vsel %vm1486, %v1638, 0.0
        %1713 = vadd.xlane.f32.xlu0 %v1712
        %v1714 = vpop.xlane.xlu0 %1713
        %v1715 = vsel %vm1486, %v1640, 0.0
        %1716 = vadd.xlane.f32.xlu0 %v1715
        %v1717 = vpop.xlane.xlu0 %1716
        %v1718 = vsel %vm1486, %v1642, 0.0
        %1719 = vadd.xlane.f32.xlu0 %v1718
        %v1720 = vpop.xlane.xlu0 %1719
        %v1721 = vsel %vm1486, %v1644, 0.0
        %1722 = vadd.xlane.f32.xlu0 %v1721
        %v1723 = vpop.xlane.xlu0 %1722
        %v1724 = vsel %vm1486, %v1646, 0.0
        %1725 = vadd.xlane.f32.xlu0 %v1724
        %v1726 = vpop.xlane.xlu0 %1725
        %v1727 = vsel %vm1486, %v1648, 0.0
        %1728 = vadd.xlane.f32.xlu0 %v1727
        %v1729 = vpop.xlane.xlu0 %1728
        %v1730 = vsel %vm1486, %v1650, 0.0
        %1731 = vadd.xlane.f32.xlu0 %v1730
        %v1732 = vpop.xlane.xlu0 %1731
        %v1733 = vsel %vm1486, %v1652, 0.0
        %1734 = vadd.xlane.f32.xlu0 %v1733
        %v1735 = vpop.xlane.xlu0 %1734
        %v1736 = vsel %vm1486, %v1654, 0.0
        %1737 = vadd.xlane.f32.xlu0 %v1736
        %v1738 = vpop.xlane.xlu0 %1737
        %v1739 = vsel %vm1486, %v1656, 0.0
        %1740 = vadd.xlane.f32.xlu0 %v1739
        %v1741 = vpop.xlane.xlu0 %1740
        %v1742 = vsel %vm1486, %v1658, 0.0
        %1743 = vadd.xlane.f32.xlu0 %v1742
        %v1744 = vpop.xlane.xlu0 %1743
        %v1745 = vsel %vm1486, %v1660, 0.0
        %1746 = vadd.xlane.f32.xlu0 %v1745
        %v1747 = vpop.xlane.xlu0 %1746
        %v1748 = vsel %vm1486, %v1662, 0.0
        %1749 = vadd.xlane.f32.xlu0 %v1748
        %v1750 = vpop.xlane.xlu0 %1749
        %v1751 = vsel %vm1486, %v1664, 0.0
        %1752 = vadd.xlane.f32.xlu0 %v1751
        %v1753 = vpop.xlane.xlu0 %1752
        %v1754 = vsel %vm1486, %v1666, 0.0
        %1755 = vadd.xlane.f32.xlu0 %v1754
        %v1756 = vpop.xlane.xlu0 %1755
        %v1757 = vsel %vm1486, %v1668, 0.0
        %1758 = vadd.xlane.f32.xlu0 %v1757
        %v1759 = vpop.xlane.xlu0 %1758
        %v1760 = vsel %vm1486, %v1670, 0.0
        %1761 = vadd.xlane.f32.xlu0 %v1760
        %v1762 = vpop.xlane.xlu0 %1761
        %v1763 = vsel %vm1486, %v1672, 0.0
        %1764 = vadd.xlane.f32.xlu0 %v1763
        %v1765 = vpop.xlane.xlu0 %1764
        %v1766 = vsel %vm1486, %v1674, 0.0
        %1767 = vadd.xlane.f32.xlu0 %v1766
        %v1768 = vpop.xlane.xlu0 %1767
        %v1769 = vsel %vm1486, %v1676, 0.0
        %1770 = vadd.xlane.f32.xlu0 %v1769
        %v1771 = vpop.xlane.xlu0 %1770
        %v1772 = vsel %vm1486, %v1678, 0.0
        %1773 = vadd.xlane.f32.xlu0 %v1772
        %v1774 = vpop.xlane.xlu0 %1773
        %v1775 = vrcp.pop %v1681
        %v1776 = vrcp.pop %v1684
        %v1777 = vrcp.pop %v1687
        %v1778 = vrcp.pop %v1690
        %v1779 = vrcp.pop %v1693
        %v1780 = vrcp.pop %v1696
        %v1781 = vrcp.pop %v1699
        %v1782 = vrcp.pop %v1702
        %v1783 = vrcp.pop %v1705
        %v1784 = vrcp.pop %v1708
        %v1785 = vrcp.pop %v1711
        %v1786 = vrcp.pop %v1714
        %v1787 = vrcp.pop %v1717
        %v1788 = vrcp.pop %v1720
        %v1789 = vrcp.pop %v1723
        %v1790 = vrcp.pop %v1726
        %v1791 = vrcp.pop %v1729
        %v1792 = vrcp.pop %v1732
        %v1793 = vrcp.pop %v1735
        %v1794 = vrcp.pop %v1738
        %v1795 = vrcp.pop %v1741
        %v1796 = vrcp.pop %v1744
        %v1797 = vrcp.pop %v1747
        %v1798 = vrcp.pop %v1750
        %v1799 = vrcp.pop %v1753
        %v1800 = vrcp.pop %v1756
        %v1801 = vrcp.pop %v1759
        %v1802 = vrcp.pop %v1762
        %v1803 = vrcp.pop %v1765
        %v1804 = vrcp.pop %v1768
        %v1805 = vrcp.pop %v1771
        %v1806 = vrcp.pop %v1774
        %v1807 = vmul.f32 %v1616, %v1775
        %v1808 = vmul.f32 %v1618, %v1776
        %v1809 = vmul.f32 %v1620, %v1777
        %v1810 = vmul.f32 %v1622, %v1778
        %v1811 = vmul.f32 %v1624, %v1779
        %v1812 = vmul.f32 %v1626, %v1780
        %v1813 = vmul.f32 %v1628, %v1781
        %v1814 = vmul.f32 %v1630, %v1782
        %v1815 = vmul.f32 %v1632, %v1783
        %v1816 = vmul.f32 %v1634, %v1784
        %v1817 = vmul.f32 %v1636, %v1785
        %v1818 = vmul.f32 %v1638, %v1786
        %v1819 = vmul.f32 %v1640, %v1787
        %v1820 = vmul.f32 %v1642, %v1788
        %v1821 = vmul.f32 %v1644, %v1789
        %v1822 = vmul.f32 %v1646, %v1790
        %v1823 = vmul.f32 %v1648, %v1791
        %v1824 = vmul.f32 %v1650, %v1792
        %v1825 = vmul.f32 %v1652, %v1793
        %v1826 = vmul.f32 %v1654, %v1794
        %v1827 = vmul.f32 %v1656, %v1795
        %v1828 = vmul.f32 %v1658, %v1796
        %v1829 = vmul.f32 %v1660, %v1797
        %v1830 = vmul.f32 %v1662, %v1798
        %v1831 = vmul.f32 %v1664, %v1799
        %v1832 = vmul.f32 %v1666, %v1800
        %v1833 = vmul.f32 %v1668, %v1801
        %v1834 = vmul.f32 %v1670, %v1802
        %v1835 = vmul.f32 %v1672, %v1803
        %v1836 = vmul.f32 %v1674, %v1804
        %v1837 = vmul.f32 %v1676, %v1805
        %v1838 = vmul.f32 %v1678, %v1806
        %v1839 = vpack.c.bf16 %v1808, %v1807
        %v1840 = vpack.c.bf16 %v1810, %v1809
        %v1841 = vpack.c.bf16 %v1812, %v1811
        %v1842 = vpack.c.bf16 %v1814, %v1813
        %v1843 = vpack.c.bf16 %v1816, %v1815
        %v1844 = vpack.c.bf16 %v1818, %v1817
        %v1845 = vpack.c.bf16 %v1820, %v1819
        %v1846 = vpack.c.bf16 %v1822, %v1821
        %v1847 = vpack.c.bf16 %v1824, %v1823
        %v1848 = vpack.c.bf16 %v1826, %v1825
        %v1849 = vpack.c.bf16 %v1828, %v1827
        %v1850 = vpack.c.bf16 %v1830, %v1829
        %v1851 = vpack.c.bf16 %v1832, %v1831
        %v1852 = vpack.c.bf16 %v1834, %v1833
        %v1853 = vpack.c.bf16 %v1836, %v1835
        %v1854 = vpack.c.bf16 %v1838, %v1837
        %v1856 = vsel %vm1486, %v1839, 0
        %v1859 = vsel %vm1486, %v1840, 0
        %v1862 = vsel %vm1486, %v1841, 0
        %v1865 = vsel %vm1486, %v1842, 0
        %1867 = vmatprep.subr.bf16.mxu0 0
        %1868 = vmatpush1.bf16.msra.mxu0 %v1105
        %1869 = vmatprep.subr.bf16.mxu0 0
        %1870 = vmatpush1.bf16.msra.mxu0 %v1106
        %1871 = vmatprep.subr.bf16.mxu0 0
        %1872 = vmatpush1.bf16.msra.mxu0 %v1107
        %1873 = vmatprep.subr.bf16.mxu0 0
        %1874 = vmatpush1.bf16.msra.mxu0 %v1108
        %1875 = vmatprep.subr.bf16.mxu0 0
        %1876 = vmatpush1.bf16.msra.mxu0 0
        %1877 = vmatprep.subr.bf16.mxu0 0
        %1878 = vmatpush1.bf16.msra.mxu0 0
        %1879 = vmatprep.subr.bf16.mxu0 0
        %1880 = vmatpush1.bf16.msra.mxu0 0
        %1881 = vmatprep.subr.bf16.mxu0 0
        %1882 = vmatpush1.bf16.msra.mxu0 0
        %1883 = vmatprep.subr.bf16.mxu0 0
        %1884 = vmatpush1.bf16.msra.mxu0 0
        %1885 = vmatprep.subr.bf16.mxu0 0
        %1886 = vmatpush1.bf16.msra.mxu0 0
        %1887 = vmatprep.subr.bf16.mxu0 0
        %1888 = vmatpush1.bf16.msra.mxu0 0
        %1889 = vmatprep.subr.bf16.mxu0 0
        %1890 = vmatpush1.bf16.msra.mxu0 0
        %1891 = vmatprep.subr.bf16.mxu0 0
        %1892 = vmatpush1.bf16.msra.mxu0 0
        %1893 = vmatprep.subr.bf16.mxu0 0
        %1894 = vmatpush1.bf16.msra.mxu0 0
        %1895 = vmatprep.subr.bf16.mxu0 0
        %1896 = vmatpush1.bf16.msra.mxu0 0
        %1897 = vmatprep.subr.bf16.mxu0 0
        %1898 = vmatpush1.bf16.msra.mxu0 0
        %1899 = vmatprep.mubr.bf16.mxu0 0
        %1900 = vmatmul.mubr.bf16.gmra.mrb[0].mxu0 %v1856
        %v1901 = vpop.f32.mrb[0].mxu0
        %v1902 = vadd.f32 0.0, %v1901
        %v1903 = vpop.f32.mrb[0].mxu0
        %v1904 = vpop.f32.mrb[0].mxu0
        %v1905 = vadd.f32 0.0, %v1904
        %v1906 = vpop.f32.mrb[0].mxu0
        %1907 = vmatprep.mubr.bf16.mxu0 0
        %1908 = vmatmul.mubr.bf16.gmra.mrb[0].mxu0 %v1859
        %v1909 = vpop.f32.mrb[0].mxu0
        %v1910 = vadd.f32 0.0, %v1909
        %v1911 = vpop.f32.mrb[0].mxu0
        %v1912 = vpop.f32.mrb[0].mxu0
        %v1913 = vadd.f32 0.0, %v1912
        %v1914 = vpop.f32.mrb[0].mxu0
        %1915 = vmatprep.mubr.bf16.mxu0 0
        %1916 = vmatmul.mubr.bf16.gmra.mrb[0].mxu0 %v1862
        %v1917 = vpop.f32.mrb[0].mxu0
        %v1918 = vadd.f32 0.0, %v1917
        %v1919 = vpop.f32.mrb[0].mxu0
        %v1920 = vpop.f32.mrb[0].mxu0
        %v1921 = vadd.f32 0.0, %v1920
        %v1922 = vpop.f32.mrb[0].mxu0
        %1923 = vmatprep.mubr.bf16.mxu0 0
        %1924 = vmatmul.mubr.bf16.gmra.mrb[0].mxu0 %v1865
        %v1925 = vpop.f32.mrb[0].mxu0
        %v1926 = vadd.f32 0.0, %v1925
        %v1927 = vpop.f32.mrb[0].mxu0
        %v1928 = vpop.f32.mrb[0].mxu0
        %v1929 = vadd.f32 0.0, %v1928
        %v1930 = vpop.f32.mrb[0].mxu0
        %1931 = vdwg.mxu0
        %v1933 = vsel %vm1486, %v1843, 0
        %v1936 = vsel %vm1486, %v1844, 0
        %v1939 = vsel %vm1486, %v1845, 0
        %v1942 = vsel %vm1486, %v1846, 0
        %1944 = vmatprep.subr.bf16.mxu0 0
        %1945 = vmatpush1.bf16.msra.mxu0 %v1109
        %1946 = vmatprep.subr.bf16.mxu0 0
        %1947 = vmatpush1.bf16.msra.mxu0 %v1110
        %1948 = vmatprep.subr.bf16.mxu0 0
        %1949 = vmatpush1.bf16.msra.mxu0 %v1111
        %1950 = vmatprep.subr.bf16.mxu0 0
        %1951 = vmatpush1.bf16.msra.mxu0 %v1112
        %1952 = vmatprep.subr.bf16.mxu0 0
        %1953 = vmatpush1.bf16.msra.mxu0 0
        %1954 = vmatprep.subr.bf16.mxu0 0
        %1955 = vmatpush1.bf16.msra.mxu0 0
        %1956 = vmatprep.subr.bf16.mxu0 0
        %1957 = vmatpush1.bf16.msra.mxu0 0
        %1958 = vmatprep.subr.bf16.mxu0 0
        %1959 = vmatpush1.bf16.msra.mxu0 0
        %1960 = vmatprep.subr.bf16.mxu0 0
        %1961 = vmatpush1.bf16.msra.mxu0 0
        %1962 = vmatprep.subr.bf16.mxu0 0
        %1963 = vmatpush1.bf16.msra.mxu0 0
        %1964 = vmatprep.subr.bf16.mxu0 0
        %1965 = vmatpush1.bf16.msra.mxu0 0
        %1966 = vmatprep.subr.bf16.mxu0 0
        %1967 = vmatpush1.bf16.msra.mxu0 0
        %1968 = vmatprep.subr.bf16.mxu0 0
        %1969 = vmatpush1.bf16.msra.mxu0 0
        %1970 = vmatprep.subr.bf16.mxu0 0
        %1971 = vmatpush1.bf16.msra.mxu0 0
        %1972 = vmatprep.subr.bf16.mxu0 0
        %1973 = vmatpush1.bf16.msra.mxu0 0
        %1974 = vmatprep.subr.bf16.mxu0 0
        %1975 = vmatpush1.bf16.msra.mxu0 0
        %1976 = vmatprep.mubr.bf16.mxu0 0
        %1977 = vmatmul.mubr.bf16.gmra.mrb[0].mxu0 %v1933
        %v1978 = vpop.f32.mrb[0].mxu0
        %v1979 = vadd.f32 0.0, %v1978
        %v1980 = vpop.f32.mrb[0].mxu0
        %v1981 = vpop.f32.mrb[0].mxu0
        %v1982 = vadd.f32 0.0, %v1981
        %v1983 = vpop.f32.mrb[0].mxu0
        %1984 = vmatprep.mubr.bf16.mxu0 0
        %1985 = vmatmul.mubr.bf16.gmra.mrb[0].mxu0 %v1936
        %v1986 = vpop.f32.mrb[0].mxu0
        %v1987 = vadd.f32 0.0, %v1986
        %v1988 = vpop.f32.mrb[0].mxu0
        %v1989 = vpop.f32.mrb[0].mxu0
        %v1990 = vadd.f32 0.0, %v1989
        %v1991 = vpop.f32.mrb[0].mxu0
        %1992 = vmatprep.mubr.bf16.mxu0 0
        %1993 = vmatmul.mubr.bf16.gmra.mrb[0].mxu0 %v1939
        %v1994 = vpop.f32.mrb[0].mxu0
        %v1995 = vadd.f32 0.0, %v1994
        %v1996 = vpop.f32.mrb[0].mxu0
        %v1997 = vpop.f32.mrb[0].mxu0
        %v1998 = vadd.f32 0.0, %v1997
        %v1999 = vpop.f32.mrb[0].mxu0
        %2000 = vmatprep.mubr.bf16.mxu0 0
        %2001 = vmatmul.mubr.bf16.gmra.mrb[0].mxu0 %v1942
        %v2002 = vpop.f32.mrb[0].mxu0
        %v2003 = vadd.f32 0.0, %v2002
        %v2004 = vpop.f32.mrb[0].mxu0
        %v2005 = vpop.f32.mrb[0].mxu0
        %v2006 = vadd.f32 0.0, %v2005
        %v2007 = vpop.f32.mrb[0].mxu0
        %2008 = vdwg.mxu0
        %v2010 = vsel %vm1486, %v1847, 0
        %v2013 = vsel %vm1486, %v1848, 0
        %v2016 = vsel %vm1486, %v1849, 0
        %v2019 = vsel %vm1486, %v1850, 0
        %2021 = vmatprep.subr.bf16.mxu0 0
        %2022 = vmatpush1.bf16.msra.mxu0 %v1113
        %2023 = vmatprep.subr.bf16.mxu0 0
        %2024 = vmatpush1.bf16.msra.mxu0 %v1114
        %2025 = vmatprep.subr.bf16.mxu0 0
        %2026 = vmatpush1.bf16.msra.mxu0 %v1115
        %2027 = vmatprep.subr.bf16.mxu0 0
        %2028 = vmatpush1.bf16.msra.mxu0 %v1116
        %2029 = vmatprep.subr.bf16.mxu0 0
        %2030 = vmatpush1.bf16.msra.mxu0 0
        %2031 = vmatprep.subr.bf16.mxu0 0
        %2032 = vmatpush1.bf16.msra.mxu0 0
        %2033 = vmatprep.subr.bf16.mxu0 0
        %2034 = vmatpush1.bf16.msra.mxu0 0
        %2035 = vmatprep.subr.bf16.mxu0 0
        %2036 = vmatpush1.bf16.msra.mxu0 0
        %2037 = vmatprep.subr.bf16.mxu0 0
        %2038 = vmatpush1.bf16.msra.mxu0 0
        %2039 = vmatprep.subr.bf16.mxu0 0
        %2040 = vmatpush1.bf16.msra.mxu0 0
        %2041 = vmatprep.subr.bf16.mxu0 0
        %2042 = vmatpush1.bf16.msra.mxu0 0
        %2043 = vmatprep.subr.bf16.mxu0 0
        %2044 = vmatpush1.bf16.msra.mxu0 0
        %2045 = vmatprep.subr.bf16.mxu0 0
        %2046 = vmatpush1.bf16.msra.mxu0 0
        %2047 = vmatprep.subr.bf16.mxu0 0
        %2048 = vmatpush1.bf16.msra.mxu0 0
        %2049 = vmatprep.subr.bf16.mxu0 0
        %2050 = vmatpush1.bf16.msra.mxu0 0
        %2051 = vmatprep.subr.bf16.mxu0 0
        %2052 = vmatpush1.bf16.msra.mxu0 0
        %2053 = vmatprep.mubr.bf16.mxu0 0
        %2054 = vmatmul.mubr.bf16.gmra.mrb[0].mxu0 %v2010
        %v2055 = vpop.f32.mrb[0].mxu0
        %v2056 = vadd.f32 0.0, %v2055
        %v2057 = vpop.f32.mrb[0].mxu0
        %v2058 = vpop.f32.mrb[0].mxu0
        %v2059 = vadd.f32 0.0, %v2058
        %v2060 = vpop.f32.mrb[0].mxu0
        %2061 = vmatprep.mubr.bf16.mxu0 0
        %2062 = vmatmul.mubr.bf16.gmra.mrb[0].mxu0 %v2013
        %v2063 = vpop.f32.mrb[0].mxu0
        %v2064 = vadd.f32 0.0, %v2063
        %v2065 = vpop.f32.mrb[0].mxu0
        %v2066 = vpop.f32.mrb[0].mxu0
        %v2067 = vadd.f32 0.0, %v2066
        %v2068 = vpop.f32.mrb[0].mxu0
        %2069 = vmatprep.mubr.bf16.mxu0 0
        %2070 = vmatmul.mubr.bf16.gmra.mrb[0].mxu0 %v2016
        %v2071 = vpop.f32.mrb[0].mxu0
        %v2072 = vadd.f32 0.0, %v2071
        %v2073 = vpop.f32.mrb[0].mxu0
        %v2074 = vpop.f32.mrb[0].mxu0
        %v2075 = vadd.f32 0.0, %v2074
        %v2076 = vpop.f32.mrb[0].mxu0
        %2077 = vmatprep.mubr.bf16.mxu0 0
        %2078 = vmatmul.mubr.bf16.gmra.mrb[0].mxu0 %v2019
        %v2079 = vpop.f32.mrb[0].mxu0
        %v2080 = vadd.f32 0.0, %v2079
        %v2081 = vpop.f32.mrb[0].mxu0
        %v2082 = vpop.f32.mrb[0].mxu0
        %v2083 = vadd.f32 0.0, %v2082
        %v2084 = vpop.f32.mrb[0].mxu0
        %2085 = vdwg.mxu0
        %v2087 = vsel %vm1486, %v1851, 0
        %v2090 = vsel %vm1486, %v1852, 0
        %v2093 = vsel %vm1486, %v1853, 0
        %v2096 = vsel %vm1486, %v1854, 0
        %2098 = vmatprep.subr.bf16.mxu0 0
        %2099 = vmatpush1.bf16.msra.mxu0 %v1117
        %2100 = vmatprep.subr.bf16.mxu0 0
        %2101 = vmatpush1.bf16.msra.mxu0 %v1118
        %2102 = vmatprep.subr.bf16.mxu0 0
        %2103 = vmatpush1.bf16.msra.mxu0 %v1119
        %2104 = vmatprep.subr.bf16.mxu0 0
        %2105 = vmatpush1.bf16.msra.mxu0 %v1120
        %2106 = vmatprep.subr.bf16.mxu0 0
        %2107 = vmatpush1.bf16.msra.mxu0 0
        %2108 = vmatprep.subr.bf16.mxu0 0
        %2109 = vmatpush1.bf16.msra.mxu0 0
        %2110 = vmatprep.subr.bf16.mxu0 0
        %2111 = vmatpush1.bf16.msra.mxu0 0
        %2112 = vmatprep.subr.bf16.mxu0 0
        %2113 = vmatpush1.bf16.msra.mxu0 0
        %2114 = vmatprep.subr.bf16.mxu0 0
        %2115 = vmatpush1.bf16.msra.mxu0 0
        %2116 = vmatprep.subr.bf16.mxu0 0
        %2117 = vmatpush1.bf16.msra.mxu0 0
        %2118 = vmatprep.subr.bf16.mxu0 0
        %2119 = vmatpush1.bf16.msra.mxu0 0
        %2120 = vmatprep.subr.bf16.mxu0 0
        %2121 = vmatpush1.bf16.msra.mxu0 0
        %2122 = vmatprep.subr.bf16.mxu0 0
        %2123 = vmatpush1.bf16.msra.mxu0 0
        %2124 = vmatprep.subr.bf16.mxu0 0
        %2125 = vmatpush1.bf16.msra.mxu0 0
        %2126 = vmatprep.subr.bf16.mxu0 0
        %2127 = vmatpush1.bf16.msra.mxu0 0
        %2128 = vmatprep.subr.bf16.mxu0 0
        %2129 = vmatpush1.bf16.msra.mxu0 0
        %2130 = vmatprep.mubr.bf16.mxu0 0
        %2131 = vmatmul.mubr.bf16.gmra.mrb[0].mxu0 %v2087
        %v2132 = vpop.f32.mrb[0].mxu0
        %v2133 = vadd.f32 0.0, %v2132
        %v2134 = vpop.f32.mrb[0].mxu0
        %v2135 = vpop.f32.mrb[0].mxu0
        %v2136 = vadd.f32 0.0, %v2135
        %v2137 = vpop.f32.mrb[0].mxu0
        %2138 = vmatprep.mubr.bf16.mxu0 0
        %2139 = vmatmul.mubr.bf16.gmra.mrb[0].mxu0 %v2090
        %v2140 = vpop.f32.mrb[0].mxu0
        %v2141 = vadd.f32 0.0, %v2140
        %v2142 = vpop.f32.mrb[0].mxu0
        %v2143 = vpop.f32.mrb[0].mxu0
        %v2144 = vadd.f32 0.0, %v2143
        %v2145 = vpop.f32.mrb[0].mxu0
        %2146 = vmatprep.mubr.bf16.mxu0 0
        %2147 = vmatmul.mubr.bf16.gmra.mrb[0].mxu0 %v2093
        %v2148 = vpop.f32.mrb[0].mxu0
        %v2149 = vadd.f32 0.0, %v2148
        %v2150 = vpop.f32.mrb[0].mxu0
        %v2151 = vpop.f32.mrb[0].mxu0
        %v2152 = vadd.f32 0.0, %v2151
        %v2153 = vpop.f32.mrb[0].mxu0
        %2154 = vmatprep.mubr.bf16.mxu0 0
        %2155 = vmatmul.mubr.bf16.gmra.mrb[0].mxu0 %v2096
        %v2156 = vpop.f32.mrb[0].mxu0
        %v2157 = vadd.f32 0.0, %v2156
        %v2158 = vpop.f32.mrb[0].mxu0
        %v2159 = vpop.f32.mrb[0].mxu0
        %v2160 = vadd.f32 0.0, %v2159
        %v2161 = vpop.f32.mrb[0].mxu0
        %2162 = vdwg.mxu0
        %v2163 = vpack.c.bf16 %v1905, %v1902
        %v2164 = vpack.c.bf16 %v1913, %v1910
        %v2165 = vpack.c.bf16 %v1921, %v1918
        %v2166 = vpack.c.bf16 %v1929, %v1926
        %v2167 = vpack.c.bf16 %v1982, %v1979
        %v2168 = vpack.c.bf16 %v1990, %v1987
        %v2169 = vpack.c.bf16 %v1998, %v1995
        %v2170 = vpack.c.bf16 %v2006, %v2003
        %v2171 = vpack.c.bf16 %v2059, %v2056
        %v2172 = vpack.c.bf16 %v2067, %v2064
        %v2173 = vpack.c.bf16 %v2075, %v2072
        %v2174 = vpack.c.bf16 %v2083, %v2080
        %v2175 = vpack.c.bf16 %v2136, %v2133
        %v2176 = vpack.c.bf16 %v2144, %v2141
        %v2177 = vpack.c.bf16 %v2152, %v2149
        %v2178 = vpack.c.bf16 %v2160, %v2157
        %2179 = vst.msk [vmem:[#allocation3] sm:$0xff] %vm1129, %v2163
        %2180 = vst.msk [vmem:[#allocation3 + $0x8] sm:$0xff] %vm1129, %v2164
        %2181 = vst.msk [vmem:[#allocation3 + $0x10] sm:$0xff] %vm1129, %v2165
        %2182 = vst.msk [vmem:[#allocation3 + $0x18] sm:$0xff] %vm1129, %v2166
        %2183 = vst.msk [vmem:[#allocation3 + $0x20] sm:$0xff] %vm1129, %v2167
        %2184 = vst.msk [vmem:[#allocation3 + $0x28] sm:$0xff] %vm1129, %v2168
        %2185 = vst.msk [vmem:[#allocation3 + $0x30] sm:$0xff] %vm1129, %v2169
        %2186 = vst.msk [vmem:[#allocation3 + $0x38] sm:$0xff] %vm1129, %v2170
        %2187 = vst.msk [vmem:[#allocation3 + $0x40] sm:$0xff] %vm1129, %v2171
        %2188 = vst.msk [vmem:[#allocation3 + $0x48] sm:$0xff] %vm1129, %v2172
        %2189 = vst.msk [vmem:[#allocation3 + $0x50] sm:$0xff] %vm1129, %v2173
        %2190 = vst.msk [vmem:[#allocation3 + $0x58] sm:$0xff] %vm1129, %v2174
        %2191 = vst.msk [vmem:[#allocation3 + $0x60] sm:$0xff] %vm1129, %v2175
        %2192 = vst.msk [vmem:[#allocation3 + $0x68] sm:$0xff] %vm1129, %v2176
        %2193 = vst.msk [vmem:[#allocation3 + $0x70] sm:$0xff] %vm1129, %v2177
        %2194 = vst.msk [vmem:[#allocation3 + $0x78] sm:$0xff] %vm1129, %v2178
        %v2195 = vld [vmem:[#allocation2] sm:$0xff]
        %v2196 = vld [vmem:[#allocation2 + $0x18] sm:$0xff]
        %v2197 = vld [vmem:[#allocation2 + $0x30] sm:$0xff]
        %v2198 = vld [vmem:[#allocation2 + $0x48] sm:$0xff]
        %v2199 = vld [vmem:[#allocation2 + $0x60] sm:$0xff]
        %v2200 = vld [vmem:[#allocation2 + $0x78] sm:$0xff]
        %v2201 = vld [vmem:[#allocation2 + $0x90] sm:$0xff]
        %v2202 = vld [vmem:[#allocation2 + $0xa8] sm:$0xff]
        %v2203 = vld [vmem:[#allocation2 + $0xc0] sm:$0xff]
        %v2204 = vld [vmem:[#allocation2 + $0xd8] sm:$0xff]
        %v2205 = vld [vmem:[#allocation2 + $0xf0] sm:$0xff]
        %v2206 = vld [vmem:[#allocation2 + $0x108] sm:$0xff]
        %v2207 = vld [vmem:[#allocation2 + $0x120] sm:$0xff]
        %v2208 = vld [vmem:[#allocation2 + $0x138] sm:$0xff]
        %v2209 = vld [vmem:[#allocation2 + $0x150] sm:$0xff]
        %v2210 = vld [vmem:[#allocation2 + $0x168] sm:$0xff]
        %v2211 = vld [vmem:[#allocation2 + $0x8] sm:$0xff]
        %v2212 = vld [vmem:[#allocation2 + $0x20] sm:$0xff]
        %v2213 = vld [vmem:[#allocation2 + $0x38] sm:$0xff]
        %v2214 = vld [vmem:[#allocation2 + $0x50] sm:$0xff]
        %v2215 = vld [vmem:[#allocation2 + $0x68] sm:$0xff]
        %v2216 = vld [vmem:[#allocation2 + $0x80] sm:$0xff]
        %v2217 = vld [vmem:[#allocation2 + $0x98] sm:$0xff]
        %v2218 = vld [vmem:[#allocation2 + $0xb0] sm:$0xff]
        %v2219 = vld [vmem:[#allocation2 + $0xc8] sm:$0xff]
        %v2220 = vld [vmem:[#allocation2 + $0xe0] sm:$0xff]
        %v2221 = vld [vmem:[#allocation2 + $0xf8] sm:$0xff]
        %v2222 = vld [vmem:[#allocation2 + $0x110] sm:$0xff]
        %v2223 = vld [vmem:[#allocation2 + $0x128] sm:$0xff]
        %v2224 = vld [vmem:[#allocation2 + $0x140] sm:$0xff]
        %v2225 = vld [vmem:[#allocation2 + $0x158] sm:$0xff]
        %v2226 = vld [vmem:[#allocation2 + $0x170] sm:$0xff]
        %v2227 = vld [vmem:[#allocation2 + $0x10] sm:$0xff]
        %v2228 = vld [vmem:[#allocation2 + $0x28] sm:$0xff]
        %v2229 = vld [vmem:[#allocation2 + $0x40] sm:$0xff]
        %v2230 = vld [vmem:[#allocation2 + $0x58] sm:$0xff]
        %v2231 = vld [vmem:[#allocation2 + $0x70] sm:$0xff]
        %v2232 = vld [vmem:[#allocation2 + $0x88] sm:$0xff]
        %v2233 = vld [vmem:[#allocation2 + $0xa0] sm:$0xff]
        %v2234 = vld [vmem:[#allocation2 + $0xb8] sm:$0xff]
        %v2235 = vld [vmem:[#allocation2 + $0xd0] sm:$0xff]
        %v2236 = vld [vmem:[#allocation2 + $0xe8] sm:$0xff]
        %v2237 = vld [vmem:[#allocation2 + $0x100] sm:$0xff]
        %v2238 = vld [vmem:[#allocation2 + $0x118] sm:$0xff]
        %v2239 = vld [vmem:[#allocation2 + $0x130] sm:$0xff]
        %v2240 = vld [vmem:[#allocation2 + $0x148] sm:$0xff]
        %v2241 = vld [vmem:[#allocation2 + $0x160] sm:$0xff]
        %v2242 = vld [vmem:[#allocation2 + $0x178] sm:$0xff]
        %s2243 = scalar_lea.vmem [#allocation9], 64
        %v2244 = vld [vmem:[%s2243] sm:$0xff]
        %v2245 = vld [vmem:[%s2243 + $0x8] sm:$0xff]
        %v2246 = vld [vmem:[%s2243 + $0x10] sm:$0xff]
        %v2247 = vld [vmem:[%s2243 + $0x18] sm:$0xff]
        %v2248 = vld [vmem:[%s2243 + $0x20] sm:$0xff]
        %v2249 = vld [vmem:[%s2243 + $0x28] sm:$0xff]
        %v2250 = vld [vmem:[%s2243 + $0x30] sm:$0xff]
        %v2251 = vld [vmem:[%s2243 + $0x38] sm:$0xff]
        %2256 = vrot.lane.b32.xlu0 %v2195, 96
        %v2257 = vpop.permute.xlu0 %2256
        %2258 = vrot.lane.b32.xlu0 %v2196, 96
        %v2259 = vpop.permute.xlu0 %2258
        %2260 = vrot.lane.b32.xlu0 %v2197, 96
        %v2261 = vpop.permute.xlu0 %2260
        %2262 = vrot.lane.b32.xlu0 %v2198, 96
        %v2263 = vpop.permute.xlu0 %2262
        %2268 = vrot.lane.b32.xlu0 %v2211, 96
        %v2269 = vpop.permute.xlu0 %2268
        %2270 = vrot.lane.b32.xlu0 %v2212, 96
        %v2271 = vpop.permute.xlu0 %2270
        %2272 = vrot.lane.b32.xlu0 %v2213, 96
        %v2273 = vpop.permute.xlu0 %2272
        %2274 = vrot.lane.b32.xlu0 %v2214, 96
        %v2275 = vpop.permute.xlu0 %2274
        %v2277 = vsel %vm1129, %v2257, 0
        %v2280 = vsel %vm1129, %v2259, 0
        %v2283 = vsel %vm1129, %v2261, 0
        %v2286 = vsel %vm1129, %v2263, 0
        %v2289 = vsel %vm1129, %v2269, 0
        %v2292 = vsel %vm1129, %v2271, 0
        %v2295 = vsel %vm1129, %v2273, 0
        %v2298 = vsel %vm1129, %v2275, 0
        %2300 = vmatprep.subr.bf16.mxu0 0
        %2301 = vmatpush1.bf16.xpose.msra.mxu0 %v2289
        %2302 = vmatprep.subr.bf16.mxu0 0
        %2303 = vmatpush1.bf16.xpose.msra.mxu0 %v2292
        %2304 = vmatprep.subr.bf16.mxu0 0
        %2305 = vmatpush1.bf16.xpose.msra.mxu0 %v2295
        %2306 = vmatprep.subr.bf16.mxu0 0
        %2307 = vmatpush1.bf16.xpose.msra.mxu0 %v2298
        %2308 = vmatprep.subr.bf16.mxu0 0
        %2309 = vmatpush1.bf16.xpose.msra.mxu0 0
        %2310 = vmatprep.subr.bf16.mxu0 0
        %2311 = vmatpush1.bf16.xpose.msra.mxu0 0
        %2312 = vmatprep.subr.bf16.mxu0 0
        %2313 = vmatpush1.bf16.xpose.msra.mxu0 0
        %2314 = vmatprep.subr.bf16.mxu0 0
        %2315 = vmatpush1.bf16.xpose.msra.mxu0 0
        %2316 = vmatprep.subr.bf16.mxu0 0
        %2317 = vmatpush1.bf16.xpose.msra.mxu0 0
        %2318 = vmatprep.subr.bf16.mxu0 0
        %2319 = vmatpush1.bf16.xpose.msra.mxu0 0
        %2320 = vmatprep.subr.bf16.mxu0 0
        %2321 = vmatpush1.bf16.xpose.msra.mxu0 0
        %2322 = vmatprep.subr.bf16.mxu0 0
        %2323 = vmatpush1.bf16.xpose.msra.mxu0 0
        %2324 = vmatprep.subr.bf16.mxu0 0
        %2325 = vmatpush1.bf16.xpose.msra.mxu0 0
        %2326 = vmatprep.subr.bf16.mxu0 0
        %2327 = vmatpush1.bf16.xpose.msra.mxu0 0
        %2328 = vmatprep.subr.bf16.mxu0 0
        %2329 = vmatpush1.bf16.xpose.msra.mxu0 0
        %2330 = vmatprep.subr.bf16.mxu0 0
        %2331 = vmatpush1.bf16.xpose.msra.mxu0 0
        %2332 = vmatprep.mubr.bf16.mxu0 0
        %2333 = vmatmul.mubr.bf16.gmra.mrb[0].mxu0 %v2277
        %v2334 = vpop.f32.mrb[0].mxu0
        %v2335 = vadd.f32 %v2244, %v2334
        %v2336 = vpop.f32.mrb[0].mxu0
        %v2337 = vpop.f32.mrb[0].mxu0
        %v2338 = vadd.f32 %v2245, %v2337
        %v2339 = vpop.f32.mrb[0].mxu0
        %2340 = vmatprep.mubr.bf16.mxu0 0
        %2341 = vmatmul.mubr.bf16.gmra.mrb[0].mxu0 %v2280
        %v2342 = vpop.f32.mrb[0].mxu0
        %v2343 = vadd.f32 %v2246, %v2342
        %v2344 = vpop.f32.mrb[0].mxu0
        %v2345 = vpop.f32.mrb[0].mxu0
        %v2346 = vadd.f32 %v2247, %v2345
        %v2347 = vpop.f32.mrb[0].mxu0
        %2348 = vmatprep.mubr.bf16.mxu0 0
        %2349 = vmatmul.mubr.bf16.gmra.mrb[0].mxu0 %v2283
        %v2350 = vpop.f32.mrb[0].mxu0
        %v2351 = vadd.f32 %v2248, %v2350
        %v2352 = vpop.f32.mrb[0].mxu0
        %v2353 = vpop.f32.mrb[0].mxu0
        %v2354 = vadd.f32 %v2249, %v2353
        %v2355 = vpop.f32.mrb[0].mxu0
        %2356 = vmatprep.mubr.bf16.mxu0 0
        %2357 = vmatmul.mubr.bf16.gmra.mrb[0].mxu0 %v2286
        %v2358 = vpop.f32.mrb[0].mxu0
        %v2359 = vadd.f32 %v2250, %v2358
        %v2360 = vpop.f32.mrb[0].mxu0
        %v2361 = vpop.f32.mrb[0].mxu0
        %v2362 = vadd.f32 %v2251, %v2361
        %v2363 = vpop.f32.mrb[0].mxu0
        %2364 = vdwg.mxu0
        %2369 = vrot.lane.b32.xlu0 %v2199, 96
        %v2370 = vpop.permute.xlu0 %2369
        %2371 = vrot.lane.b32.xlu0 %v2200, 96
        %v2372 = vpop.permute.xlu0 %2371
        %2373 = vrot.lane.b32.xlu0 %v2201, 96
        %v2374 = vpop.permute.xlu0 %2373
        %2375 = vrot.lane.b32.xlu0 %v2202, 96
        %v2376 = vpop.permute.xlu0 %2375
        %2381 = vrot.lane.b32.xlu0 %v2215, 96
        %v2382 = vpop.permute.xlu0 %2381
        %2383 = vrot.lane.b32.xlu0 %v2216, 96
        %v2384 = vpop.permute.xlu0 %2383
        %2385 = vrot.lane.b32.xlu0 %v2217, 96
        %v2386 = vpop.permute.xlu0 %2385
        %2387 = vrot.lane.b32.xlu0 %v2218, 96
        %v2388 = vpop.permute.xlu0 %2387
        %v2390 = vsel %vm1129, %v2370, 0
        %v2393 = vsel %vm1129, %v2372, 0
        %v2396 = vsel %vm1129, %v2374, 0
        %v2399 = vsel %vm1129, %v2376, 0
        %v2402 = vsel %vm1129, %v2382, 0
        %v2405 = vsel %vm1129, %v2384, 0
        %v2408 = vsel %vm1129, %v2386, 0
        %v2411 = vsel %vm1129, %v2388, 0
        %2413 = vmatprep.subr.bf16.mxu0 0
        %2414 = vmatpush1.bf16.xpose.msra.mxu0 %v2402
        %2415 = vmatprep.subr.bf16.mxu0 0
        %2416 = vmatpush1.bf16.xpose.msra.mxu0 %v2405
        %2417 = vmatprep.subr.bf16.mxu0 0
        %2418 = vmatpush1.bf16.xpose.msra.mxu0 %v2408
        %2419 = vmatprep.subr.bf16.mxu0 0
        %2420 = vmatpush1.bf16.xpose.msra.mxu0 %v2411
        %2421 = vmatprep.subr.bf16.mxu0 0
        %2422 = vmatpush1.bf16.xpose.msra.mxu0 0
        %2423 = vmatprep.subr.bf16.mxu0 0
        %2424 = vmatpush1.bf16.xpose.msra.mxu0 0
        %2425 = vmatprep.subr.bf16.mxu0 0
        %2426 = vmatpush1.bf16.xpose.msra.mxu0 0
        %2427 = vmatprep.subr.bf16.mxu0 0
        %2428 = vmatpush1.bf16.xpose.msra.mxu0 0
        %2429 = vmatprep.subr.bf16.mxu0 0
        %2430 = vmatpush1.bf16.xpose.msra.mxu0 0
        %2431 = vmatprep.subr.bf16.mxu0 0
        %2432 = vmatpush1.bf16.xpose.msra.mxu0 0
        %2433 = vmatprep.subr.bf16.mxu0 0
        %2434 = vmatpush1.bf16.xpose.msra.mxu0 0
        %2435 = vmatprep.subr.bf16.mxu0 0
        %2436 = vmatpush1.bf16.xpose.msra.mxu0 0
        %2437 = vmatprep.subr.bf16.mxu0 0
        %2438 = vmatpush1.bf16.xpose.msra.mxu0 0
        %2439 = vmatprep.subr.bf16.mxu0 0
        %2440 = vmatpush1.bf16.xpose.msra.mxu0 0
        %2441 = vmatprep.subr.bf16.mxu0 0
        %2442 = vmatpush1.bf16.xpose.msra.mxu0 0
        %2443 = vmatprep.subr.bf16.mxu0 0
        %2444 = vmatpush1.bf16.xpose.msra.mxu0 0
        %2445 = vmatprep.mubr.bf16.mxu0 0
        %2446 = vmatmul.mubr.bf16.gmra.mrb[0].mxu0 %v2390
        %v2447 = vpop.f32.mrb[0].mxu0
        %v2448 = vadd.f32 %v2244, %v2447
        %v2449 = vpop.f32.mrb[0].mxu0
        %v2450 = vpop.f32.mrb[0].mxu0
        %v2451 = vadd.f32 %v2245, %v2450
        %v2452 = vpop.f32.mrb[0].mxu0
        %2453 = vmatprep.mubr.bf16.mxu0 0
        %2454 = vmatmul.mubr.bf16.gmra.mrb[0].mxu0 %v2393
        %v2455 = vpop.f32.mrb[0].mxu0
        %v2456 = vadd.f32 %v2246, %v2455
        %v2457 = vpop.f32.mrb[0].mxu0
        %v2458 = vpop.f32.mrb[0].mxu0
        %v2459 = vadd.f32 %v2247, %v2458
        %v2460 = vpop.f32.mrb[0].mxu0
        %2461 = vmatprep.mubr.bf16.mxu0 0
        %2462 = vmatmul.mubr.bf16.gmra.mrb[0].mxu0 %v2396
        %v2463 = vpop.f32.mrb[0].mxu0
        %v2464 = vadd.f32 %v2248, %v2463
        %v2465 = vpop.f32.mrb[0].mxu0
        %v2466 = vpop.f32.mrb[0].mxu0
        %v2467 = vadd.f32 %v2249, %v2466
        %v2468 = vpop.f32.mrb[0].mxu0
        %2469 = vmatprep.mubr.bf16.mxu0 0
        %2470 = vmatmul.mubr.bf16.gmra.mrb[0].mxu0 %v2399
        %v2471 = vpop.f32.mrb[0].mxu0
        %v2472 = vadd.f32 %v2250, %v2471
        %v2473 = vpop.f32.mrb[0].mxu0
        %v2474 = vpop.f32.mrb[0].mxu0
        %v2475 = vadd.f32 %v2251, %v2474
        %v2476 = vpop.f32.mrb[0].mxu0
        %2477 = vdwg.mxu0
        %2482 = vrot.lane.b32.xlu0 %v2203, 96
        %v2483 = vpop.permute.xlu0 %2482
        %2484 = vrot.lane.b32.xlu0 %v2204, 96
        %v2485 = vpop.permute.xlu0 %2484
        %2486 = vrot.lane.b32.xlu0 %v2205, 96
        %v2487 = vpop.permute.xlu0 %2486
        %2488 = vrot.lane.b32.xlu0 %v2206, 96
        %v2489 = vpop.permute.xlu0 %2488
        %2494 = vrot.lane.b32.xlu0 %v2219, 96
        %v2495 = vpop.permute.xlu0 %2494
        %2496 = vrot.lane.b32.xlu0 %v2220, 96
        %v2497 = vpop.permute.xlu0 %2496
        %2498 = vrot.lane.b32.xlu0 %v2221, 96
        %v2499 = vpop.permute.xlu0 %2498
        %2500 = vrot.lane.b32.xlu0 %v2222, 96
        %v2501 = vpop.permute.xlu0 %2500
        %v2503 = vsel %vm1129, %v2483, 0
        %v2506 = vsel %vm1129, %v2485, 0
        %v2509 = vsel %vm1129, %v2487, 0
        %v2512 = vsel %vm1129, %v2489, 0
        %v2515 = vsel %vm1129, %v2495, 0
        %v2518 = vsel %vm1129, %v2497, 0
        %v2521 = vsel %vm1129, %v2499, 0
        %v2524 = vsel %vm1129, %v2501, 0
        %2526 = vmatprep.subr.bf16.mxu0 0
        %2527 = vmatpush1.bf16.xpose.msra.mxu0 %v2515
        %2528 = vmatprep.subr.bf16.mxu0 0
        %2529 = vmatpush1.bf16.xpose.msra.mxu0 %v2518
        %2530 = vmatprep.subr.bf16.mxu0 0
        %2531 = vmatpush1.bf16.xpose.msra.mxu0 %v2521
        %2532 = vmatprep.subr.bf16.mxu0 0
        %2533 = vmatpush1.bf16.xpose.msra.mxu0 %v2524
        %2534 = vmatprep.subr.bf16.mxu0 0
        %2535 = vmatpush1.bf16.xpose.msra.mxu0 0
        %2536 = vmatprep.subr.bf16.mxu0 0
        %2537 = vmatpush1.bf16.xpose.msra.mxu0 0
        %2538 = vmatprep.subr.bf16.mxu0 0
        %2539 = vmatpush1.bf16.xpose.msra.mxu0 0
        %2540 = vmatprep.subr.bf16.mxu0 0
        %2541 = vmatpush1.bf16.xpose.msra.mxu0 0
        %2542 = vmatprep.subr.bf16.mxu0 0
        %2543 = vmatpush1.bf16.xpose.msra.mxu0 0
        %2544 = vmatprep.subr.bf16.mxu0 0
        %2545 = vmatpush1.bf16.xpose.msra.mxu0 0
        %2546 = vmatprep.subr.bf16.mxu0 0
        %2547 = vmatpush1.bf16.xpose.msra.mxu0 0
        %2548 = vmatprep.subr.bf16.mxu0 0
        %2549 = vmatpush1.bf16.xpose.msra.mxu0 0
        %2550 = vmatprep.subr.bf16.mxu0 0
        %2551 = vmatpush1.bf16.xpose.msra.mxu0 0
        %2552 = vmatprep.subr.bf16.mxu0 0
        %2553 = vmatpush1.bf16.xpose.msra.mxu0 0
        %2554 = vmatprep.subr.bf16.mxu0 0
        %2555 = vmatpush1.bf16.xpose.msra.mxu0 0
        %2556 = vmatprep.subr.bf16.mxu0 0
        %2557 = vmatpush1.bf16.xpose.msra.mxu0 0
        %2558 = vmatprep.mubr.bf16.mxu0 0
        %2559 = vmatmul.mubr.bf16.gmra.mrb[0].mxu0 %v2503
        %v2560 = vpop.f32.mrb[0].mxu0
        %v2561 = vadd.f32 %v2244, %v2560
        %v2562 = vpop.f32.mrb[0].mxu0
        %v2563 = vpop.f32.mrb[0].mxu0
        %v2564 = vadd.f32 %v2245, %v2563
        %v2565 = vpop.f32.mrb[0].mxu0
        %2566 = vmatprep.mubr.bf16.mxu0 0
        %2567 = vmatmul.mubr.bf16.gmra.mrb[0].mxu0 %v2506
        %v2568 = vpop.f32.mrb[0].mxu0
        %v2569 = vadd.f32 %v2246, %v2568
        %v2570 = vpop.f32.mrb[0].mxu0
        %v2571 = vpop.f32.mrb[0].mxu0
        %v2572 = vadd.f32 %v2247, %v2571
        %v2573 = vpop.f32.mrb[0].mxu0
        %2574 = vmatprep.mubr.bf16.mxu0 0
        %2575 = vmatmul.mubr.bf16.gmra.mrb[0].mxu0 %v2509
        %v2576 = vpop.f32.mrb[0].mxu0
        %v2577 = vadd.f32 %v2248, %v2576
        %v2578 = vpop.f32.mrb[0].mxu0
        %v2579 = vpop.f32.mrb[0].mxu0
        %v2580 = vadd.f32 %v2249, %v2579
        %v2581 = vpop.f32.mrb[0].mxu0
        %2582 = vmatprep.mubr.bf16.mxu0 0
        %2583 = vmatmul.mubr.bf16.gmra.mrb[0].mxu0 %v2512
        %v2584 = vpop.f32.mrb[0].mxu0
        %v2585 = vadd.f32 %v2250, %v2584
        %v2586 = vpop.f32.mrb[0].mxu0
        %v2587 = vpop.f32.mrb[0].mxu0
        %v2588 = vadd.f32 %v2251, %v2587
        %v2589 = vpop.f32.mrb[0].mxu0
        %2590 = vdwg.mxu0
        %2595 = vrot.lane.b32.xlu0 %v2207, 96
        %v2596 = vpop.permute.xlu0 %2595
        %2597 = vrot.lane.b32.xlu0 %v2208, 96
        %v2598 = vpop.permute.xlu0 %2597
        %2599 = vrot.lane.b32.xlu0 %v2209, 96
        %v2600 = vpop.permute.xlu0 %2599
        %2601 = vrot.lane.b32.xlu0 %v2210, 96
        %v2602 = vpop.permute.xlu0 %2601
        %2607 = vrot.lane.b32.xlu0 %v2223, 96
        %v2608 = vpop.permute.xlu0 %2607
        %2609 = vrot.lane.b32.xlu0 %v2224, 96
        %v2610 = vpop.permute.xlu0 %2609
        %2611 = vrot.lane.b32.xlu0 %v2225, 96
        %v2612 = vpop.permute.xlu0 %2611
        %2613 = vrot.lane.b32.xlu0 %v2226, 96
        %v2614 = vpop.permute.xlu0 %2613
        %v2616 = vsel %vm1129, %v2596, 0
        %v2619 = vsel %vm1129, %v2598, 0
        %v2622 = vsel %vm1129, %v2600, 0
        %v2625 = vsel %vm1129, %v2602, 0
        %v2628 = vsel %vm1129, %v2608, 0
        %v2631 = vsel %vm1129, %v2610, 0
        %v2634 = vsel %vm1129, %v2612, 0
        %v2637 = vsel %vm1129, %v2614, 0
        %2639 = vmatprep.subr.bf16.mxu0 0
        %2640 = vmatpush1.bf16.xpose.msra.mxu0 %v2628
        %2641 = vmatprep.subr.bf16.mxu0 0
        %2642 = vmatpush1.bf16.xpose.msra.mxu0 %v2631
        %2643 = vmatprep.subr.bf16.mxu0 0
        %2644 = vmatpush1.bf16.xpose.msra.mxu0 %v2634
        %2645 = vmatprep.subr.bf16.mxu0 0
        %2646 = vmatpush1.bf16.xpose.msra.mxu0 %v2637
        %2647 = vmatprep.subr.bf16.mxu0 0
        %2648 = vmatpush1.bf16.xpose.msra.mxu0 0
        %2649 = vmatprep.subr.bf16.mxu0 0
        %2650 = vmatpush1.bf16.xpose.msra.mxu0 0
        %2651 = vmatprep.subr.bf16.mxu0 0
        %2652 = vmatpush1.bf16.xpose.msra.mxu0 0
        %2653 = vmatprep.subr.bf16.mxu0 0
        %2654 = vmatpush1.bf16.xpose.msra.mxu0 0
        %2655 = vmatprep.subr.bf16.mxu0 0
        %2656 = vmatpush1.bf16.xpose.msra.mxu0 0
        %2657 = vmatprep.subr.bf16.mxu0 0
        %2658 = vmatpush1.bf16.xpose.msra.mxu0 0
        %2659 = vmatprep.subr.bf16.mxu0 0
        %2660 = vmatpush1.bf16.xpose.msra.mxu0 0
        %2661 = vmatprep.subr.bf16.mxu0 0
        %2662 = vmatpush1.bf16.xpose.msra.mxu0 0
        %2663 = vmatprep.subr.bf16.mxu0 0
        %2664 = vmatpush1.bf16.xpose.msra.mxu0 0
        %2665 = vmatprep.subr.bf16.mxu0 0
        %2666 = vmatpush1.bf16.xpose.msra.mxu0 0
        %2667 = vmatprep.subr.bf16.mxu0 0
        %2668 = vmatpush1.bf16.xpose.msra.mxu0 0
        %2669 = vmatprep.subr.bf16.mxu0 0
        %2670 = vmatpush1.bf16.xpose.msra.mxu0 0
        %2671 = vmatprep.mubr.bf16.mxu0 0
        %2672 = vmatmul.mubr.bf16.gmra.mrb[0].mxu0 %v2616
        %v2673 = vpop.f32.mrb[0].mxu0
        %v2674 = vadd.f32 %v2244, %v2673
        %v2675 = vpop.f32.mrb[0].mxu0
        %v2676 = vpop.f32.mrb[0].mxu0
        %v2677 = vadd.f32 %v2245, %v2676
        %v2678 = vpop.f32.mrb[0].mxu0
        %2679 = vmatprep.mubr.bf16.mxu0 0
        %2680 = vmatmul.mubr.bf16.gmra.mrb[0].mxu0 %v2619
        %v2681 = vpop.f32.mrb[0].mxu0
        %v2682 = vadd.f32 %v2246, %v2681
        %v2683 = vpop.f32.mrb[0].mxu0
        %v2684 = vpop.f32.mrb[0].mxu0
        %v2685 = vadd.f32 %v2247, %v2684
        %v2686 = vpop.f32.mrb[0].mxu0
        %2687 = vmatprep.mubr.bf16.mxu0 0
        %2688 = vmatmul.mubr.bf16.gmra.mrb[0].mxu0 %v2622
        %v2689 = vpop.f32.mrb[0].mxu0
        %v2690 = vadd.f32 %v2248, %v2689
        %v2691 = vpop.f32.mrb[0].mxu0
        %v2692 = vpop.f32.mrb[0].mxu0
        %v2693 = vadd.f32 %v2249, %v2692
        %v2694 = vpop.f32.mrb[0].mxu0
        %2695 = vmatprep.mubr.bf16.mxu0 0
        %2696 = vmatmul.mubr.bf16.gmra.mrb[0].mxu0 %v2625
        %v2697 = vpop.f32.mrb[0].mxu0
        %v2698 = vadd.f32 %v2250, %v2697
        %v2699 = vpop.f32.mrb[0].mxu0
        %v2700 = vpop.f32.mrb[0].mxu0
        %v2701 = vadd.f32 %v2251, %v2700
        %v2702 = vpop.f32.mrb[0].mxu0
        %2703 = vdwg.mxu0
        %v2704 = vsel %vm1486, %v2335, -inf
        %2705 = vmax.xlane.f32.xlu0 %v2704
        %v2706 = vpop.xlane.xlu0 %2705
        %v2707 = vsel %vm1486, %v2338, -inf
        %2708 = vmax.xlane.f32.xlu0 %v2707
        %v2709 = vpop.xlane.xlu0 %2708
        %v2710 = vsel %vm1486, %v2343, -inf
        %2711 = vmax.xlane.f32.xlu0 %v2710
        %v2712 = vpop.xlane.xlu0 %2711
        %v2713 = vsel %vm1486, %v2346, -inf
        %2714 = vmax.xlane.f32.xlu0 %v2713
        %v2715 = vpop.xlane.xlu0 %2714
        %v2716 = vsel %vm1486, %v2351, -inf
        %2717 = vmax.xlane.f32.xlu0 %v2716
        %v2718 = vpop.xlane.xlu0 %2717
        %v2719 = vsel %vm1486, %v2354, -inf
        %2720 = vmax.xlane.f32.xlu0 %v2719
        %v2721 = vpop.xlane.xlu0 %2720
        %v2722 = vsel %vm1486, %v2359, -inf
        %2723 = vmax.xlane.f32.xlu0 %v2722
        %v2724 = vpop.xlane.xlu0 %2723
        %v2725 = vsel %vm1486, %v2362, -inf
        %2726 = vmax.xlane.f32.xlu0 %v2725
        %v2727 = vpop.xlane.xlu0 %2726
        %v2728 = vsel %vm1486, %v2448, -inf
        %2729 = vmax.xlane.f32.xlu0 %v2728
        %v2730 = vpop.xlane.xlu0 %2729
        %v2731 = vsel %vm1486, %v2451, -inf
        %2732 = vmax.xlane.f32.xlu0 %v2731
        %v2733 = vpop.xlane.xlu0 %2732
        %v2734 = vsel %vm1486, %v2456, -inf
        %2735 = vmax.xlane.f32.xlu0 %v2734
        %v2736 = vpop.xlane.xlu0 %2735
        %v2737 = vsel %vm1486, %v2459, -inf
        %2738 = vmax.xlane.f32.xlu0 %v2737
        %v2739 = vpop.xlane.xlu0 %2738
        %v2740 = vsel %vm1486, %v2464, -inf
        %2741 = vmax.xlane.f32.xlu0 %v2740
        %v2742 = vpop.xlane.xlu0 %2741
        %v2743 = vsel %vm1486, %v2467, -inf
        %2744 = vmax.xlane.f32.xlu0 %v2743
        %v2745 = vpop.xlane.xlu0 %2744
        %v2746 = vsel %vm1486, %v2472, -inf
        %2747 = vmax.xlane.f32.xlu0 %v2746
        %v2748 = vpop.xlane.xlu0 %2747
        %v2749 = vsel %vm1486, %v2475, -inf
        %2750 = vmax.xlane.f32.xlu0 %v2749
        %v2751 = vpop.xlane.xlu0 %2750
        %v2752 = vsel %vm1486, %v2561, -inf
        %2753 = vmax.xlane.f32.xlu0 %v2752
        %v2754 = vpop.xlane.xlu0 %2753
        %v2755 = vsel %vm1486, %v2564, -inf
        %2756 = vmax.xlane.f32.xlu0 %v2755
        %v2757 = vpop.xlane.xlu0 %2756
        %v2758 = vsel %vm1486, %v2569, -inf
        %2759 = vmax.xlane.f32.xlu0 %v2758
        %v2760 = vpop.xlane.xlu0 %2759
        %v2761 = vsel %vm1486, %v2572, -inf
        %2762 = vmax.xlane.f32.xlu0 %v2761
        %v2763 = vpop.xlane.xlu0 %2762
        %v2764 = vsel %vm1486, %v2577, -inf
        %2765 = vmax.xlane.f32.xlu0 %v2764
        %v2766 = vpop.xlane.xlu0 %2765
        %v2767 = vsel %vm1486, %v2580, -inf
        %2768 = vmax.xlane.f32.xlu0 %v2767
        %v2769 = vpop.xlane.xlu0 %2768
        %v2770 = vsel %vm1486, %v2585, -inf
        %2771 = vmax.xlane.f32.xlu0 %v2770
        %v2772 = vpop.xlane.xlu0 %2771
        %v2773 = vsel %vm1486, %v2588, -inf
        %2774 = vmax.xlane.f32.xlu0 %v2773
        %v2775 = vpop.xlane.xlu0 %2774
        %v2776 = vsel %vm1486, %v2674, -inf
        %2777 = vmax.xlane.f32.xlu0 %v2776
        %v2778 = vpop.xlane.xlu0 %2777
        %v2779 = vsel %vm1486, %v2677, -inf
        %2780 = vmax.xlane.f32.xlu0 %v2779
        %v2781 = vpop.xlane.xlu0 %2780
        %v2782 = vsel %vm1486, %v2682, -inf
        %2783 = vmax.xlane.f32.xlu0 %v2782
        %v2784 = vpop.xlane.xlu0 %2783
        %v2785 = vsel %vm1486, %v2685, -inf
        %2786 = vmax.xlane.f32.xlu0 %v2785
        %v2787 = vpop.xlane.xlu0 %2786
        %v2788 = vsel %vm1486, %v2690, -inf
        %2789 = vmax.xlane.f32.xlu0 %v2788
        %v2790 = vpop.xlane.xlu0 %2789
        %v2791 = vsel %vm1486, %v2693, -inf
        %2792 = vmax.xlane.f32.xlu0 %v2791
        %v2793 = vpop.xlane.xlu0 %2792
        %v2794 = vsel %vm1486, %v2698, -inf
        %2795 = vmax.xlane.f32.xlu0 %v2794
        %v2796 = vpop.xlane.xlu0 %2795
        %v2797 = vsel %vm1486, %v2701, -inf
        %2798 = vmax.xlane.f32.xlu0 %v2797
        %v2799 = vpop.xlane.xlu0 %2798
        %v2800 = vsub.f32 %v2335, %v2706
        %v2801 = vsub.f32 %v2338, %v2709
        %v2802 = vsub.f32 %v2343, %v2712
        %v2803 = vsub.f32 %v2346, %v2715
        %v2804 = vsub.f32 %v2351, %v2718
        %v2805 = vsub.f32 %v2354, %v2721
        %v2806 = vsub.f32 %v2359, %v2724
        %v2807 = vsub.f32 %v2362, %v2727
        %v2808 = vsub.f32 %v2448, %v2730
        %v2809 = vsub.f32 %v2451, %v2733
        %v2810 = vsub.f32 %v2456, %v2736
        %v2811 = vsub.f32 %v2459, %v2739
        %v2812 = vsub.f32 %v2464, %v2742
        %v2813 = vsub.f32 %v2467, %v2745
        %v2814 = vsub.f32 %v2472, %v2748
        %v2815 = vsub.f32 %v2475, %v2751
        %v2816 = vsub.f32 %v2561, %v2754
        %v2817 = vsub.f32 %v2564, %v2757
        %v2818 = vsub.f32 %v2569, %v2760
        %v2819 = vsub.f32 %v2572, %v2763
        %v2820 = vsub.f32 %v2577, %v2766
        %v2821 = vsub.f32 %v2580, %v2769
        %v2822 = vsub.f32 %v2585, %v2772
        %v2823 = vsub.f32 %v2588, %v2775
        %v2824 = vsub.f32 %v2674, %v2778
        %v2825 = vsub.f32 %v2677, %v2781
        %v2826 = vsub.f32 %v2682, %v2784
        %v2827 = vsub.f32 %v2685, %v2787
        %v2828 = vsub.f32 %v2690, %v2790
        %v2829 = vsub.f32 %v2693, %v2793
        %v2830 = vsub.f32 %v2698, %v2796
        %v2831 = vsub.f32 %v2701, %v2799
        %v2832 = vmul.f32 %v2800, 1.442695
        %v2833 = vpow.pop %v2832
        %v2834 = vmul.f32 %v2801, 1.442695
        %v2835 = vpow.pop %v2834
        %v2836 = vmul.f32 %v2802, 1.442695
        %v2837 = vpow.pop %v2836
        %v2838 = vmul.f32 %v2803, 1.442695
        %v2839 = vpow.pop %v2838
        %v2840 = vmul.f32 %v2804, 1.442695
        %v2841 = vpow.pop %v2840
        %v2842 = vmul.f32 %v2805, 1.442695
        %v2843 = vpow.pop %v2842
        %v2844 = vmul.f32 %v2806, 1.442695
        %v2845 = vpow.pop %v2844
        %v2846 = vmul.f32 %v2807, 1.442695
        %v2847 = vpow.pop %v2846
        %v2848 = vmul.f32 %v2808, 1.442695
        %v2849 = vpow.pop %v2848
        %v2850 = vmul.f32 %v2809, 1.442695
        %v2851 = vpow.pop %v2850
        %v2852 = vmul.f32 %v2810, 1.442695
        %v2853 = vpow.pop %v2852
        %v2854 = vmul.f32 %v2811, 1.442695
        %v2855 = vpow.pop %v2854
        %v2856 = vmul.f32 %v2812, 1.442695
        %v2857 = vpow.pop %v2856
        %v2858 = vmul.f32 %v2813, 1.442695
        %v2859 = vpow.pop %v2858
        %v2860 = vmul.f32 %v2814, 1.442695
        %v2861 = vpow.pop %v2860
        %v2862 = vmul.f32 %v2815, 1.442695
        %v2863 = vpow.pop %v2862
        %v2864 = vmul.f32 %v2816, 1.442695
        %v2865 = vpow.pop %v2864
        %v2866 = vmul.f32 %v2817, 1.442695
        %v2867 = vpow.pop %v2866
        %v2868 = vmul.f32 %v2818, 1.442695
        %v2869 = vpow.pop %v2868
        %v2870 = vmul.f32 %v2819, 1.442695
        %v2871 = vpow.pop %v2870
        %v2872 = vmul.f32 %v2820, 1.442695
        %v2873 = vpow.pop %v2872
        %v2874 = vmul.f32 %v2821, 1.442695
        %v2875 = vpow.pop %v2874
        %v2876 = vmul.f32 %v2822, 1.442695
        %v2877 = vpow.pop %v2876
        %v2878 = vmul.f32 %v2823, 1.442695
        %v2879 = vpow.pop %v2878
        %v2880 = vmul.f32 %v2824, 1.442695
        %v2881 = vpow.pop %v2880
        %v2882 = vmul.f32 %v2825, 1.442695
        %v2883 = vpow.pop %v2882
        %v2884 = vmul.f32 %v2826, 1.442695
        %v2885 = vpow.pop %v2884
        %v2886 = vmul.f32 %v2827, 1.442695
        %v2887 = vpow.pop %v2886
        %v2888 = vmul.f32 %v2828, 1.442695
        %v2889 = vpow.pop %v2888
        %v2890 = vmul.f32 %v2829, 1.442695
        %v2891 = vpow.pop %v2890
        %v2892 = vmul.f32 %v2830, 1.442695
        %v2893 = vpow.pop %v2892
        %v2894 = vmul.f32 %v2831, 1.442695
        %v2895 = vpow.pop %v2894
        %v2896 = vsel %vm1486, %v2833, 0.0
        %2897 = vadd.xlane.f32.xlu0 %v2896
        %v2898 = vpop.xlane.xlu0 %2897
        %v2899 = vsel %vm1486, %v2835, 0.0
        %2900 = vadd.xlane.f32.xlu0 %v2899
        %v2901 = vpop.xlane.xlu0 %2900
        %v2902 = vsel %vm1486, %v2837, 0.0
        %2903 = vadd.xlane.f32.xlu0 %v2902
        %v2904 = vpop.xlane.xlu0 %2903
        %v2905 = vsel %vm1486, %v2839, 0.0
        %2906 = vadd.xlane.f32.xlu0 %v2905
        %v2907 = vpop.xlane.xlu0 %2906
        %v2908 = vsel %vm1486, %v2841, 0.0
        %2909 = vadd.xlane.f32.xlu0 %v2908
        %v2910 = vpop.xlane.xlu0 %2909
        %v2911 = vsel %vm1486, %v2843, 0.0
        %2912 = vadd.xlane.f32.xlu0 %v2911
        %v2913 = vpop.xlane.xlu0 %2912
        %v2914 = vsel %vm1486, %v2845, 0.0
        %2915 = vadd.xlane.f32.xlu0 %v2914
        %v2916 = vpop.xlane.xlu0 %2915
        %v2917 = vsel %vm1486, %v2847, 0.0
        %2918 = vadd.xlane.f32.xlu0 %v2917
        %v2919 = vpop.xlane.xlu0 %2918
        %v2920 = vsel %vm1486, %v2849, 0.0
        %2921 = vadd.xlane.f32.xlu0 %v2920
        %v2922 = vpop.xlane.xlu0 %2921
        %v2923 = vsel %vm1486, %v2851, 0.0
        %2924 = vadd.xlane.f32.xlu0 %v2923
        %v2925 = vpop.xlane.xlu0 %2924
        %v2926 = vsel %vm1486, %v2853, 0.0
        %2927 = vadd.xlane.f32.xlu0 %v2926
        %v2928 = vpop.xlane.xlu0 %2927
        %v2929 = vsel %vm1486, %v2855, 0.0
        %2930 = vadd.xlane.f32.xlu0 %v2929
        %v2931 = vpop.xlane.xlu0 %2930
        %v2932 = vsel %vm1486, %v2857, 0.0
        %2933 = vadd.xlane.f32.xlu0 %v2932
        %v2934 = vpop.xlane.xlu0 %2933
        %v2935 = vsel %vm1486, %v2859, 0.0
        %2936 = vadd.xlane.f32.xlu0 %v2935
        %v2937 = vpop.xlane.xlu0 %2936
        %v2938 = vsel %vm1486, %v2861, 0.0
        %2939 = vadd.xlane.f32.xlu0 %v2938
        %v2940 = vpop.xlane.xlu0 %2939
        %v2941 = vsel %vm1486, %v2863, 0.0
        %2942 = vadd.xlane.f32.xlu0 %v2941
        %v2943 = vpop.xlane.xlu0 %2942
        %v2944 = vsel %vm1486, %v2865, 0.0
        %2945 = vadd.xlane.f32.xlu0 %v2944
        %v2946 = vpop.xlane.xlu0 %2945
        %v2947 = vsel %vm1486, %v2867, 0.0
        %2948 = vadd.xlane.f32.xlu0 %v2947
        %v2949 = vpop.xlane.xlu0 %2948
        %v2950 = vsel %vm1486, %v2869, 0.0
        %2951 = vadd.xlane.f32.xlu0 %v2950
        %v2952 = vpop.xlane.xlu0 %2951
        %v2953 = vsel %vm1486, %v2871, 0.0
        %2954 = vadd.xlane.f32.xlu0 %v2953
        %v2955 = vpop.xlane.xlu0 %2954
        %v2956 = vsel %vm1486, %v2873, 0.0
        %2957 = vadd.xlane.f32.xlu0 %v2956
        %v2958 = vpop.xlane.xlu0 %2957
        %v2959 = vsel %vm1486, %v2875, 0.0
        %2960 = vadd.xlane.f32.xlu0 %v2959
        %v2961 = vpop.xlane.xlu0 %2960
        %v2962 = vsel %vm1486, %v2877, 0.0
        %2963 = vadd.xlane.f32.xlu0 %v2962
        %v2964 = vpop.xlane.xlu0 %2963
        %v2965 = vsel %vm1486, %v2879, 0.0
        %2966 = vadd.xlane.f32.xlu0 %v2965
        %v2967 = vpop.xlane.xlu0 %2966
        %v2968 = vsel %vm1486, %v2881, 0.0
        %2969 = vadd.xlane.f32.xlu0 %v2968
        %v2970 = vpop.xlane.xlu0 %2969
        %v2971 = vsel %vm1486, %v2883, 0.0
        %2972 = vadd.xlane.f32.xlu0 %v2971
        %v2973 = vpop.xlane.xlu0 %2972
        %v2974 = vsel %vm1486, %v2885, 0.0
        %2975 = vadd.xlane.f32.xlu0 %v2974
        %v2976 = vpop.xlane.xlu0 %2975
        %v2977 = vsel %vm1486, %v2887, 0.0
        %2978 = vadd.xlane.f32.xlu0 %v2977
        %v2979 = vpop.xlane.xlu0 %2978
        %v2980 = vsel %vm1486, %v2889, 0.0
        %2981 = vadd.xlane.f32.xlu0 %v2980
        %v2982 = vpop.xlane.xlu0 %2981
        %v2983 = vsel %vm1486, %v2891, 0.0
        %2984 = vadd.xlane.f32.xlu0 %v2983
        %v2985 = vpop.xlane.xlu0 %2984
        %v2986 = vsel %vm1486, %v2893, 0.0
        %2987 = vadd.xlane.f32.xlu0 %v2986
        %v2988 = vpop.xlane.xlu0 %2987
        %v2989 = vsel %vm1486, %v2895, 0.0
        %2990 = vadd.xlane.f32.xlu0 %v2989
        %v2991 = vpop.xlane.xlu0 %2990
        %v2992 = vrcp.pop %v2898
        %v2993 = vrcp.pop %v2901
        %v2994 = vrcp.pop %v2904
        %v2995 = vrcp.pop %v2907
        %v2996 = vrcp.pop %v2910
        %v2997 = vrcp.pop %v2913
        %v2998 = vrcp.pop %v2916
        %v2999 = vrcp.pop %v2919
        %v3000 = vrcp.pop %v2922
        %v3001 = vrcp.pop %v2925
        %v3002 = vrcp.pop %v2928
        %v3003 = vrcp.pop %v2931
        %v3004 = vrcp.pop %v2934
        %v3005 = vrcp.pop %v2937
        %v3006 = vrcp.pop %v2940
        %v3007 = vrcp.pop %v2943
        %v3008 = vrcp.pop %v2946
        %v3009 = vrcp.pop %v2949
        %v3010 = vrcp.pop %v2952
        %v3011 = vrcp.pop %v2955
        %v3012 = vrcp.pop %v2958
        %v3013 = vrcp.pop %v2961
        %v3014 = vrcp.pop %v2964
        %v3015 = vrcp.pop %v2967
        %v3016 = vrcp.pop %v2970
        %v3017 = vrcp.pop %v2973
        %v3018 = vrcp.pop %v2976
        %v3019 = vrcp.pop %v2979
        %v3020 = vrcp.pop %v2982
        %v3021 = vrcp.pop %v2985
        %v3022 = vrcp.pop %v2988
        %v3023 = vrcp.pop %v2991
        %v3024 = vmul.f32 %v2833, %v2992
        %v3025 = vmul.f32 %v2835, %v2993
        %v3026 = vmul.f32 %v2837, %v2994
        %v3027 = vmul.f32 %v2839, %v2995
        %v3028 = vmul.f32 %v2841, %v2996
        %v3029 = vmul.f32 %v2843, %v2997
        %v3030 = vmul.f32 %v2845, %v2998
        %v3031 = vmul.f32 %v2847, %v2999
        %v3032 = vmul.f32 %v2849, %v3000
        %v3033 = vmul.f32 %v2851, %v3001
        %v3034 = vmul.f32 %v2853, %v3002
        %v3035 = vmul.f32 %v2855, %v3003
        %v3036 = vmul.f32 %v2857, %v3004
        %v3037 = vmul.f32 %v2859, %v3005
        %v3038 = vmul.f32 %v2861, %v3006
        %v3039 = vmul.f32 %v2863, %v3007
        %v3040 = vmul.f32 %v2865, %v3008
        %v3041 = vmul.f32 %v2867, %v3009
        %v3042 = vmul.f32 %v2869, %v3010
        %v3043 = vmul.f32 %v2871, %v3011
        %v3044 = vmul.f32 %v2873, %v3012
        %v3045 = vmul.f32 %v2875, %v3013
        %v3046 = vmul.f32 %v2877, %v3014
        %v3047 = vmul.f32 %v2879, %v3015
        %v3048 = vmul.f32 %v2881, %v3016
        %v3049 = vmul.f32 %v2883, %v3017
        %v3050 = vmul.f32 %v2885, %v3018
        %v3051 = vmul.f32 %v2887, %v3019
        %v3052 = vmul.f32 %v2889, %v3020
        %v3053 = vmul.f32 %v2891, %v3021
        %v3054 = vmul.f32 %v2893, %v3022
        %v3055 = vmul.f32 %v2895, %v3023
        %v3056 = vpack.c.bf16 %v3025, %v3024
        %v3057 = vpack.c.bf16 %v3027, %v3026
        %v3058 = vpack.c.bf16 %v3029, %v3028
        %v3059 = vpack.c.bf16 %v3031, %v3030
        %v3060 = vpack.c.bf16 %v3033, %v3032
        %v3061 = vpack.c.bf16 %v3035, %v3034
        %v3062 = vpack.c.bf16 %v3037, %v3036
        %v3063 = vpack.c.bf16 %v3039, %v3038
        %v3064 = vpack.c.bf16 %v3041, %v3040
        %v3065 = vpack.c.bf16 %v3043, %v3042
        %v3066 = vpack.c.bf16 %v3045, %v3044
        %v3067 = vpack.c.bf16 %v3047, %v3046
        %v3068 = vpack.c.bf16 %v3049, %v3048
        %v3069 = vpack.c.bf16 %v3051, %v3050
        %v3070 = vpack.c.bf16 %v3053, %v3052
        %v3071 = vpack.c.bf16 %v3055, %v3054
        %3076 = vrot.lane.b32.xlu0 %v2227, 96
        %v3077 = vpop.permute.xlu0 %3076
        %3078 = vrot.lane.b32.xlu0 %v2228, 96
        %v3079 = vpop.permute.xlu0 %3078
        %3080 = vrot.lane.b32.xlu0 %v2229, 96
        %v3081 = vpop.permute.xlu0 %3080
        %3082 = vrot.lane.b32.xlu0 %v2230, 96
        %v3083 = vpop.permute.xlu0 %3082
        %v3089 = vsel %vm1486, %v3056, 0
        %v3092 = vsel %vm1486, %v3057, 0
        %v3095 = vsel %vm1486, %v3058, 0
        %v3098 = vsel %vm1486, %v3059, 0
        %3100 = vmatprep.subr.bf16.mxu0 0
        %3101 = vmatpush1.bf16.msra.mxu0 %v3077
        %3102 = vmatprep.subr.bf16.mxu0 0
        %3103 = vmatpush1.bf16.msra.mxu0 %v3079
        %3104 = vmatprep.subr.bf16.mxu0 0
        %3105 = vmatpush1.bf16.msra.mxu0 %v3081
        %3106 = vmatprep.subr.bf16.mxu0 0
        %3107 = vmatpush1.bf16.msra.mxu0 %v3083
        %3108 = vmatprep.subr.bf16.mxu0 0
        %3109 = vmatpush1.bf16.msra.mxu0 0
        %3110 = vmatprep.subr.bf16.mxu0 0
        %3111 = vmatpush1.bf16.msra.mxu0 0
        %3112 = vmatprep.subr.bf16.mxu0 0
        %3113 = vmatpush1.bf16.msra.mxu0 0
        %3114 = vmatprep.subr.bf16.mxu0 0
        %3115 = vmatpush1.bf16.msra.mxu0 0
        %3116 = vmatprep.subr.bf16.mxu0 0
        %3117 = vmatpush1.bf16.msra.mxu0 0
        %3118 = vmatprep.subr.bf16.mxu0 0
        %3119 = vmatpush1.bf16.msra.mxu0 0
        %3120 = vmatprep.subr.bf16.mxu0 0
        %3121 = vmatpush1.bf16.msra.mxu0 0
        %3122 = vmatprep.subr.bf16.mxu0 0
        %3123 = vmatpush1.bf16.msra.mxu0 0
        %3124 = vmatprep.subr.bf16.mxu0 0
        %3125 = vmatpush1.bf16.msra.mxu0 0
        %3126 = vmatprep.subr.bf16.mxu0 0
        %3127 = vmatpush1.bf16.msra.mxu0 0
        %3128 = vmatprep.subr.bf16.mxu0 0
        %3129 = vmatpush1.bf16.msra.mxu0 0
        %3130 = vmatprep.subr.bf16.mxu0 0
        %3131 = vmatpush1.bf16.msra.mxu0 0
        %3132 = vmatprep.mubr.bf16.mxu0 0
        %3133 = vmatmul.mubr.bf16.gmra.mrb[0].mxu0 %v3089
        %v3134 = vpop.f32.mrb[0].mxu0
        %v3135 = vadd.f32 0.0, %v3134
        %v3136 = vpop.f32.mrb[0].mxu0
        %v3137 = vpop.f32.mrb[0].mxu0
        %v3138 = vadd.f32 0.0, %v3137
        %v3139 = vpop.f32.mrb[0].mxu0
        %3140 = vmatprep.mubr.bf16.mxu0 0
        %3141 = vmatmul.mubr.bf16.gmra.mrb[0].mxu0 %v3092
        %v3142 = vpop.f32.mrb[0].mxu0
        %v3143 = vadd.f32 0.0, %v3142
        %v3144 = vpop.f32.mrb[0].mxu0
        %v3145 = vpop.f32.mrb[0].mxu0
        %v3146 = vadd.f32 0.0, %v3145
        %v3147 = vpop.f32.mrb[0].mxu0
        %3148 = vmatprep.mubr.bf16.mxu0 0
        %3149 = vmatmul.mubr.bf16.gmra.mrb[0].mxu0 %v3095
        %v3150 = vpop.f32.mrb[0].mxu0
        %v3151 = vadd.f32 0.0, %v3150
        %v3152 = vpop.f32.mrb[0].mxu0
        %v3153 = vpop.f32.mrb[0].mxu0
        %v3154 = vadd.f32 0.0, %v3153
        %v3155 = vpop.f32.mrb[0].mxu0
        %3156 = vmatprep.mubr.bf16.mxu0 0
        %3157 = vmatmul.mubr.bf16.gmra.mrb[0].mxu0 %v3098
        %v3158 = vpop.f32.mrb[0].mxu0
        %v3159 = vadd.f32 0.0, %v3158
        %v3160 = vpop.f32.mrb[0].mxu0
        %v3161 = vpop.f32.mrb[0].mxu0
        %v3162 = vadd.f32 0.0, %v3161
        %v3163 = vpop.f32.mrb[0].mxu0
        %3164 = vdwg.mxu0
        %3169 = vrot.lane.b32.xlu0 %v2231, 96
        %v3170 = vpop.permute.xlu0 %3169
        %3171 = vrot.lane.b32.xlu0 %v2232, 96
        %v3172 = vpop.permute.xlu0 %3171
        %3173 = vrot.lane.b32.xlu0 %v2233, 96
        %v3174 = vpop.permute.xlu0 %3173
        %3175 = vrot.lane.b32.xlu0 %v2234, 96
        %v3176 = vpop.permute.xlu0 %3175
        %v3182 = vsel %vm1486, %v3060, 0
        %v3185 = vsel %vm1486, %v3061, 0
        %v3188 = vsel %vm1486, %v3062, 0
        %v3191 = vsel %vm1486, %v3063, 0
        %3193 = vmatprep.subr.bf16.mxu0 0
        %3194 = vmatpush1.bf16.msra.mxu0 %v3170
        %3195 = vmatprep.subr.bf16.mxu0 0
        %3196 = vmatpush1.bf16.msra.mxu0 %v3172
        %3197 = vmatprep.subr.bf16.mxu0 0
        %3198 = vmatpush1.bf16.msra.mxu0 %v3174
        %3199 = vmatprep.subr.bf16.mxu0 0
        %3200 = vmatpush1.bf16.msra.mxu0 %v3176
        %3201 = vmatprep.subr.bf16.mxu0 0
        %3202 = vmatpush1.bf16.msra.mxu0 0
        %3203 = vmatprep.subr.bf16.mxu0 0
        %3204 = vmatpush1.bf16.msra.mxu0 0
        %3205 = vmatprep.subr.bf16.mxu0 0
        %3206 = vmatpush1.bf16.msra.mxu0 0
        %3207 = vmatprep.subr.bf16.mxu0 0
        %3208 = vmatpush1.bf16.msra.mxu0 0
        %3209 = vmatprep.subr.bf16.mxu0 0
        %3210 = vmatpush1.bf16.msra.mxu0 0
        %3211 = vmatprep.subr.bf16.mxu0 0
        %3212 = vmatpush1.bf16.msra.mxu0 0
        %3213 = vmatprep.subr.bf16.mxu0 0
        %3214 = vmatpush1.bf16.msra.mxu0 0
        %3215 = vmatprep.subr.bf16.mxu0 0
        %3216 = vmatpush1.bf16.msra.mxu0 0
        %3217 = vmatprep.subr.bf16.mxu0 0
        %3218 = vmatpush1.bf16.msra.mxu0 0
        %3219 = vmatprep.subr.bf16.mxu0 0
        %3220 = vmatpush1.bf16.msra.mxu0 0
        %3221 = vmatprep.subr.bf16.mxu0 0
        %3222 = vmatpush1.bf16.msra.mxu0 0
        %3223 = vmatprep.subr.bf16.mxu0 0
        %3224 = vmatpush1.bf16.msra.mxu0 0
        %3225 = vmatprep.mubr.bf16.mxu0 0
        %3226 = vmatmul.mubr.bf16.gmra.mrb[0].mxu0 %v3182
        %v3227 = vpop.f32.mrb[0].mxu0
        %v3228 = vadd.f32 0.0, %v3227
        %v3229 = vpop.f32.mrb[0].mxu0
        %v3230 = vpop.f32.mrb[0].mxu0
        %v3231 = vadd.f32 0.0, %v3230
        %v3232 = vpop.f32.mrb[0].mxu0
        %3233 = vmatprep.mubr.bf16.mxu0 0
        %3234 = vmatmul.mubr.bf16.gmra.mrb[0].mxu0 %v3185
        %v3235 = vpop.f32.mrb[0].mxu0
        %v3236 = vadd.f32 0.0, %v3235
        %v3237 = vpop.f32.mrb[0].mxu0
        %v3238 = vpop.f32.mrb[0].mxu0
        %v3239 = vadd.f32 0.0, %v3238
        %v3240 = vpop.f32.mrb[0].mxu0
        %3241 = vmatprep.mubr.bf16.mxu0 0
        %3242 = vmatmul.mubr.bf16.gmra.mrb[0].mxu0 %v3188
        %v3243 = vpop.f32.mrb[0].mxu0
        %v3244 = vadd.f32 0.0, %v3243
        %v3245 = vpop.f32.mrb[0].mxu0
        %v3246 = vpop.f32.mrb[0].mxu0
        %v3247 = vadd.f32 0.0, %v3246
        %v3248 = vpop.f32.mrb[0].mxu0
        %3249 = vmatprep.mubr.bf16.mxu0 0
        %3250 = vmatmul.mubr.bf16.gmra.mrb[0].mxu0 %v3191
        %v3251 = vpop.f32.mrb[0].mxu0
        %v3252 = vadd.f32 0.0, %v3251
        %v3253 = vpop.f32.mrb[0].mxu0
        %v3254 = vpop.f32.mrb[0].mxu0
        %v3255 = vadd.f32 0.0, %v3254
        %v3256 = vpop.f32.mrb[0].mxu0
        %3257 = vdwg.mxu0
        %3262 = vrot.lane.b32.xlu0 %v2235, 96
        %v3263 = vpop.permute.xlu0 %3262
        %3264 = vrot.lane.b32.xlu0 %v2236, 96
        %v3265 = vpop.permute.xlu0 %3264
        %3266 = vrot.lane.b32.xlu0 %v2237, 96
        %v3267 = vpop.permute.xlu0 %3266
        %3268 = vrot.lane.b32.xlu0 %v2238, 96
        %v3269 = vpop.permute.xlu0 %3268
        %v3275 = vsel %vm1486, %v3064, 0
        %v3278 = vsel %vm1486, %v3065, 0
        %v3281 = vsel %vm1486, %v3066, 0
        %v3284 = vsel %vm1486, %v3067, 0
        %3286 = vmatprep.subr.bf16.mxu0 0
        %3287 = vmatpush1.bf16.msra.mxu0 %v3263
        %3288 = vmatprep.subr.bf16.mxu0 0
        %3289 = vmatpush1.bf16.msra.mxu0 %v3265
        %3290 = vmatprep.subr.bf16.mxu0 0
        %3291 = vmatpush1.bf16.msra.mxu0 %v3267
        %3292 = vmatprep.subr.bf16.mxu0 0
        %3293 = vmatpush1.bf16.msra.mxu0 %v3269
        %3294 = vmatprep.subr.bf16.mxu0 0
        %3295 = vmatpush1.bf16.msra.mxu0 0
        %3296 = vmatprep.subr.bf16.mxu0 0
        %3297 = vmatpush1.bf16.msra.mxu0 0
        %3298 = vmatprep.subr.bf16.mxu0 0
        %3299 = vmatpush1.bf16.msra.mxu0 0
        %3300 = vmatprep.subr.bf16.mxu0 0
        %3301 = vmatpush1.bf16.msra.mxu0 0
        %3302 = vmatprep.subr.bf16.mxu0 0
        %3303 = vmatpush1.bf16.msra.mxu0 0
        %3304 = vmatprep.subr.bf16.mxu0 0
        %3305 = vmatpush1.bf16.msra.mxu0 0
        %3306 = vmatprep.subr.bf16.mxu0 0
        %3307 = vmatpush1.bf16.msra.mxu0 0
        %3308 = vmatprep.subr.bf16.mxu0 0
        %3309 = vmatpush1.bf16.msra.mxu0 0
        %3310 = vmatprep.subr.bf16.mxu0 0
        %3311 = vmatpush1.bf16.msra.mxu0 0
        %3312 = vmatprep.subr.bf16.mxu0 0
        %3313 = vmatpush1.bf16.msra.mxu0 0
        %3314 = vmatprep.subr.bf16.mxu0 0
        %3315 = vmatpush1.bf16.msra.mxu0 0
        %3316 = vmatprep.subr.bf16.mxu0 0
        %3317 = vmatpush1.bf16.msra.mxu0 0
        %3318 = vmatprep.mubr.bf16.mxu0 0
        %3319 = vmatmul.mubr.bf16.gmra.mrb[0].mxu0 %v3275
        %v3320 = vpop.f32.mrb[0].mxu0
        %v3321 = vadd.f32 0.0, %v3320
        %v3322 = vpop.f32.mrb[0].mxu0
        %v3323 = vpop.f32.mrb[0].mxu0
        %v3324 = vadd.f32 0.0, %v3323
        %v3325 = vpop.f32.mrb[0].mxu0
        %3326 = vmatprep.mubr.bf16.mxu0 0
        %3327 = vmatmul.mubr.bf16.gmra.mrb[0].mxu0 %v3278
        %v3328 = vpop.f32.mrb[0].mxu0
        %v3329 = vadd.f32 0.0, %v3328
        %v3330 = vpop.f32.mrb[0].mxu0
        %v3331 = vpop.f32.mrb[0].mxu0
        %v3332 = vadd.f32 0.0, %v3331
        %v3333 = vpop.f32.mrb[0].mxu0
        %3334 = vmatprep.mubr.bf16.mxu0 0
        %3335 = vmatmul.mubr.bf16.gmra.mrb[0].mxu0 %v3281
        %v3336 = vpop.f32.mrb[0].mxu0
        %v3337 = vadd.f32 0.0, %v3336
        %v3338 = vpop.f32.mrb[0].mxu0
        %v3339 = vpop.f32.mrb[0].mxu0
        %v3340 = vadd.f32 0.0, %v3339
        %v3341 = vpop.f32.mrb[0].mxu0
        %3342 = vmatprep.mubr.bf16.mxu0 0
        %3343 = vmatmul.mubr.bf16.gmra.mrb[0].mxu0 %v3284
        %v3344 = vpop.f32.mrb[0].mxu0
        %v3345 = vadd.f32 0.0, %v3344
        %v3346 = vpop.f32.mrb[0].mxu0
        %v3347 = vpop.f32.mrb[0].mxu0
        %v3348 = vadd.f32 0.0, %v3347
        %v3349 = vpop.f32.mrb[0].mxu0
        %3350 = vdwg.mxu0
        %3355 = vrot.lane.b32.xlu0 %v2239, 96
        %v3356 = vpop.permute.xlu0 %3355
        %3357 = vrot.lane.b32.xlu0 %v2240, 96
        %v3358 = vpop.permute.xlu0 %3357
        %3359 = vrot.lane.b32.xlu0 %v2241, 96
        %v3360 = vpop.permute.xlu0 %3359
        %3361 = vrot.lane.b32.xlu0 %v2242, 96
        %v3362 = vpop.permute.xlu0 %3361
        %v3368 = vsel %vm1486, %v3068, 0
        %v3371 = vsel %vm1486, %v3069, 0
        %v3374 = vsel %vm1486, %v3070, 0
        %v3377 = vsel %vm1486, %v3071, 0
        %3379 = vmatprep.subr.bf16.mxu0 0
        %3380 = vmatpush1.bf16.msra.mxu0 %v3356
        %3381 = vmatprep.subr.bf16.mxu0 0
        %3382 = vmatpush1.bf16.msra.mxu0 %v3358
        %3383 = vmatprep.subr.bf16.mxu0 0
        %3384 = vmatpush1.bf16.msra.mxu0 %v3360
        %3385 = vmatprep.subr.bf16.mxu0 0
        %3386 = vmatpush1.bf16.msra.mxu0 %v3362
        %3387 = vmatprep.subr.bf16.mxu0 0
        %3388 = vmatpush1.bf16.msra.mxu0 0
        %3389 = vmatprep.subr.bf16.mxu0 0
        %3390 = vmatpush1.bf16.msra.mxu0 0
        %3391 = vmatprep.subr.bf16.mxu0 0
        %3392 = vmatpush1.bf16.msra.mxu0 0
        %3393 = vmatprep.subr.bf16.mxu0 0
        %3394 = vmatpush1.bf16.msra.mxu0 0
        %3395 = vmatprep.subr.bf16.mxu0 0
        %3396 = vmatpush1.bf16.msra.mxu0 0
        %3397 = vmatprep.subr.bf16.mxu0 0
        %3398 = vmatpush1.bf16.msra.mxu0 0
        %3399 = vmatprep.subr.bf16.mxu0 0
        %3400 = vmatpush1.bf16.msra.mxu0 0
        %3401 = vmatprep.subr.bf16.mxu0 0
        %3402 = vmatpush1.bf16.msra.mxu0 0
        %3403 = vmatprep.subr.bf16.mxu0 0
        %3404 = vmatpush1.bf16.msra.mxu0 0
        %3405 = vmatprep.subr.bf16.mxu0 0
        %3406 = vmatpush1.bf16.msra.mxu0 0
        %3407 = vmatprep.subr.bf16.mxu0 0
        %3408 = vmatpush1.bf16.msra.mxu0 0
        %3409 = vmatprep.subr.bf16.mxu0 0
        %3410 = vmatpush1.bf16.msra.mxu0 0
        %3411 = vmatprep.mubr.bf16.mxu0 0
        %3412 = vmatmul.mubr.bf16.gmra.mrb[0].mxu0 %v3368
        %v3413 = vpop.f32.mrb[0].mxu0
        %v3414 = vadd.f32 0.0, %v3413
        %v3415 = vpop.f32.mrb[0].mxu0
        %v3416 = vpop.f32.mrb[0].mxu0
        %v3417 = vadd.f32 0.0, %v3416
        %v3418 = vpop.f32.mrb[0].mxu0
        %3419 = vmatprep.mubr.bf16.mxu0 0
        %3420 = vmatmul.mubr.bf16.gmra.mrb[0].mxu0 %v3371
        %v3421 = vpop.f32.mrb[0].mxu0
        %v3422 = vadd.f32 0.0, %v3421
        %v3423 = vpop.f32.mrb[0].mxu0
        %v3424 = vpop.f32.mrb[0].mxu0
        %v3425 = vadd.f32 0.0, %v3424
        %v3426 = vpop.f32.mrb[0].mxu0
        %3427 = vmatprep.mubr.bf16.mxu0 0
        %3428 = vmatmul.mubr.bf16.gmra.mrb[0].mxu0 %v3374
        %v3429 = vpop.f32.mrb[0].mxu0
        %v3430 = vadd.f32 0.0, %v3429
        %v3431 = vpop.f32.mrb[0].mxu0
        %v3432 = vpop.f32.mrb[0].mxu0
        %v3433 = vadd.f32 0.0, %v3432
        %v3434 = vpop.f32.mrb[0].mxu0
        %3435 = vmatprep.mubr.bf16.mxu0 0
        %3436 = vmatmul.mubr.bf16.gmra.mrb[0].mxu0 %v3377
        %v3437 = vpop.f32.mrb[0].mxu0
        %v3438 = vadd.f32 0.0, %v3437
        %v3439 = vpop.f32.mrb[0].mxu0
        %v3440 = vpop.f32.mrb[0].mxu0
        %v3441 = vadd.f32 0.0, %v3440
        %v3442 = vpop.f32.mrb[0].mxu0
        %3443 = vdwg.mxu0
        %v3444 = vpack.c.bf16 %v3138, %v3135
        %v3445 = vpack.c.bf16 %v3146, %v3143
        %v3446 = vpack.c.bf16 %v3154, %v3151
        %v3447 = vpack.c.bf16 %v3162, %v3159
        %v3448 = vpack.c.bf16 %v3231, %v3228
        %v3449 = vpack.c.bf16 %v3239, %v3236
        %v3450 = vpack.c.bf16 %v3247, %v3244
        %v3451 = vpack.c.bf16 %v3255, %v3252
        %v3452 = vpack.c.bf16 %v3324, %v3321
        %v3453 = vpack.c.bf16 %v3332, %v3329
        %v3454 = vpack.c.bf16 %v3340, %v3337
        %v3455 = vpack.c.bf16 %v3348, %v3345
        %v3456 = vpack.c.bf16 %v3417, %v3414
        %v3457 = vpack.c.bf16 %v3425, %v3422
        %v3458 = vpack.c.bf16 %v3433, %v3430
        %v3459 = vpack.c.bf16 %v3441, %v3438
        %3476 = vrot.lane.b32.xlu0 %v3444, 32
        %v3477 = vpop.permute.xlu0 %3476
        %3478 = vrot.lane.b32.xlu0 %v3445, 32
        %v3479 = vpop.permute.xlu0 %3478
        %3480 = vrot.lane.b32.xlu0 %v3446, 32
        %v3481 = vpop.permute.xlu0 %3480
        %3482 = vrot.lane.b32.xlu0 %v3447, 32
        %v3483 = vpop.permute.xlu0 %3482
        %3484 = vrot.lane.b32.xlu0 %v3448, 32
        %v3485 = vpop.permute.xlu0 %3484
        %3486 = vrot.lane.b32.xlu0 %v3449, 32
        %v3487 = vpop.permute.xlu0 %3486
        %3488 = vrot.lane.b32.xlu0 %v3450, 32
        %v3489 = vpop.permute.xlu0 %3488
        %3490 = vrot.lane.b32.xlu0 %v3451, 32
        %v3491 = vpop.permute.xlu0 %3490
        %3492 = vrot.lane.b32.xlu0 %v3452, 32
        %v3493 = vpop.permute.xlu0 %3492
        %3494 = vrot.lane.b32.xlu0 %v3453, 32
        %v3495 = vpop.permute.xlu0 %3494
        %3496 = vrot.lane.b32.xlu0 %v3454, 32
        %v3497 = vpop.permute.xlu0 %3496
        %3498 = vrot.lane.b32.xlu0 %v3455, 32
        %v3499 = vpop.permute.xlu0 %3498
        %3500 = vrot.lane.b32.xlu0 %v3456, 32
        %v3501 = vpop.permute.xlu0 %3500
        %3502 = vrot.lane.b32.xlu0 %v3457, 32
        %v3503 = vpop.permute.xlu0 %3502
        %3504 = vrot.lane.b32.xlu0 %v3458, 32
        %v3505 = vpop.permute.xlu0 %3504
        %3506 = vrot.lane.b32.xlu0 %v3459, 32
        %v3507 = vpop.permute.xlu0 %3506
        %vm3524 = vcmask 523520
        %3525 = vst.msk [vmem:[#allocation3] sm:$0xff] %vm3524, %v3477
        %3526 = vst.msk [vmem:[#allocation3 + $0x8] sm:$0xff] %vm3524, %v3479
        %3527 = vst.msk [vmem:[#allocation3 + $0x10] sm:$0xff] %vm3524, %v3481
        %3528 = vst.msk [vmem:[#allocation3 + $0x18] sm:$0xff] %vm3524, %v3483
        %3529 = vst.msk [vmem:[#allocation3 + $0x20] sm:$0xff] %vm3524, %v3485
        %3530 = vst.msk [vmem:[#allocation3 + $0x28] sm:$0xff] %vm3524, %v3487
        %3531 = vst.msk [vmem:[#allocation3 + $0x30] sm:$0xff] %vm3524, %v3489
        %3532 = vst.msk [vmem:[#allocation3 + $0x38] sm:$0xff] %vm3524, %v3491
        %3533 = vst.msk [vmem:[#allocation3 + $0x40] sm:$0xff] %vm3524, %v3493
        %3534 = vst.msk [vmem:[#allocation3 + $0x48] sm:$0xff] %vm3524, %v3495
        %3535 = vst.msk [vmem:[#allocation3 + $0x50] sm:$0xff] %vm3524, %v3497
        %3536 = vst.msk [vmem:[#allocation3 + $0x58] sm:$0xff] %vm3524, %v3499
        %3537 = vst.msk [vmem:[#allocation3 + $0x60] sm:$0xff] %vm3524, %v3501
        %3538 = vst.msk [vmem:[#allocation3 + $0x68] sm:$0xff] %vm3524, %v3503
        %3539 = vst.msk [vmem:[#allocation3 + $0x70] sm:$0xff] %vm3524, %v3505
        %3540 = vst.msk [vmem:[#allocation3 + $0x78] sm:$0xff] %vm3524, %v3507
        %v3541 = vld [vmem:[#allocation2] sm:$0xff]
        %v3542 = vld [vmem:[#allocation2 + $0x18] sm:$0xff]
        %v3543 = vld [vmem:[#allocation2 + $0x30] sm:$0xff]
        %v3544 = vld [vmem:[#allocation2 + $0x48] sm:$0xff]
        %v3545 = vld [vmem:[#allocation2 + $0x60] sm:$0xff]
        %v3546 = vld [vmem:[#allocation2 + $0x78] sm:$0xff]
        %v3547 = vld [vmem:[#allocation2 + $0x90] sm:$0xff]
        %v3548 = vld [vmem:[#allocation2 + $0xa8] sm:$0xff]
        %v3549 = vld [vmem:[#allocation2 + $0xc0] sm:$0xff]
        %v3550 = vld [vmem:[#allocation2 + $0xd8] sm:$0xff]
        %v3551 = vld [vmem:[#allocation2 + $0xf0] sm:$0xff]
        %v3552 = vld [vmem:[#allocation2 + $0x108] sm:$0xff]
        %v3553 = vld [vmem:[#allocation2 + $0x120] sm:$0xff]
        %v3554 = vld [vmem:[#allocation2 + $0x138] sm:$0xff]
        %v3555 = vld [vmem:[#allocation2 + $0x150] sm:$0xff]
        %v3556 = vld [vmem:[#allocation2 + $0x168] sm:$0xff]
        %v3557 = vld [vmem:[#allocation2 + $0x8] sm:$0xff]
        %v3558 = vld [vmem:[#allocation2 + $0x20] sm:$0xff]
        %v3559 = vld [vmem:[#allocation2 + $0x38] sm:$0xff]
        %v3560 = vld [vmem:[#allocation2 + $0x50] sm:$0xff]
        %v3561 = vld [vmem:[#allocation2 + $0x68] sm:$0xff]
        %v3562 = vld [vmem:[#allocation2 + $0x80] sm:$0xff]
        %v3563 = vld [vmem:[#allocation2 + $0x98] sm:$0xff]
        %v3564 = vld [vmem:[#allocation2 + $0xb0] sm:$0xff]
        %v3565 = vld [vmem:[#allocation2 + $0xc8] sm:$0xff]
        %v3566 = vld [vmem:[#allocation2 + $0xe0] sm:$0xff]
        %v3567 = vld [vmem:[#allocation2 + $0xf8] sm:$0xff]
        %v3568 = vld [vmem:[#allocation2 + $0x110] sm:$0xff]
        %v3569 = vld [vmem:[#allocation2 + $0x128] sm:$0xff]
        %v3570 = vld [vmem:[#allocation2 + $0x140] sm:$0xff]
        %v3571 = vld [vmem:[#allocation2 + $0x158] sm:$0xff]
        %v3572 = vld [vmem:[#allocation2 + $0x170] sm:$0xff]
        %v3573 = vld [vmem:[#allocation2 + $0x10] sm:$0xff]
        %v3574 = vld [vmem:[#allocation2 + $0x28] sm:$0xff]
        %v3575 = vld [vmem:[#allocation2 + $0x40] sm:$0xff]
        %v3576 = vld [vmem:[#allocation2 + $0x58] sm:$0xff]
        %v3577 = vld [vmem:[#allocation2 + $0x70] sm:$0xff]
        %v3578 = vld [vmem:[#allocation2 + $0x88] sm:$0xff]
        %v3579 = vld [vmem:[#allocation2 + $0xa0] sm:$0xff]
        %v3580 = vld [vmem:[#allocation2 + $0xb8] sm:$0xff]
        %v3581 = vld [vmem:[#allocation2 + $0xd0] sm:$0xff]
        %v3582 = vld [vmem:[#allocation2 + $0xe8] sm:$0xff]
        %v3583 = vld [vmem:[#allocation2 + $0x100] sm:$0xff]
        %v3584 = vld [vmem:[#allocation2 + $0x118] sm:$0xff]
        %v3585 = vld [vmem:[#allocation2 + $0x130] sm:$0xff]
        %v3586 = vld [vmem:[#allocation2 + $0x148] sm:$0xff]
        %v3587 = vld [vmem:[#allocation2 + $0x160] sm:$0xff]
        %v3588 = vld [vmem:[#allocation2 + $0x178] sm:$0xff]
        %s3589 = scalar_lea.vmem [#allocation9], 128
        %v3590 = vld [vmem:[%s3589] sm:$0xff]
        %v3591 = vld [vmem:[%s3589 + $0x8] sm:$0xff]
        %v3592 = vld [vmem:[%s3589 + $0x10] sm:$0xff]
        %v3593 = vld [vmem:[%s3589 + $0x18] sm:$0xff]
        %v3594 = vld [vmem:[%s3589 + $0x20] sm:$0xff]
        %v3595 = vld [vmem:[%s3589 + $0x28] sm:$0xff]
        %v3596 = vld [vmem:[%s3589 + $0x30] sm:$0xff]
        %v3597 = vld [vmem:[%s3589 + $0x38] sm:$0xff]
        %3602 = vrot.lane.b32.xlu0 %v3541, 64
        %v3603 = vpop.permute.xlu0 %3602
        %3604 = vrot.lane.b32.xlu0 %v3542, 64
        %v3605 = vpop.permute.xlu0 %3604
        %3606 = vrot.lane.b32.xlu0 %v3543, 64
        %v3607 = vpop.permute.xlu0 %3606
        %3608 = vrot.lane.b32.xlu0 %v3544, 64
        %v3609 = vpop.permute.xlu0 %3608
        %3614 = vrot.lane.b32.xlu0 %v3557, 64
        %v3615 = vpop.permute.xlu0 %3614
        %3616 = vrot.lane.b32.xlu0 %v3558, 64
        %v3617 = vpop.permute.xlu0 %3616
        %3618 = vrot.lane.b32.xlu0 %v3559, 64
        %v3619 = vpop.permute.xlu0 %3618
        %3620 = vrot.lane.b32.xlu0 %v3560, 64
        %v3621 = vpop.permute.xlu0 %3620
        %v3623 = vsel %vm1129, %v3603, 0
        %v3626 = vsel %vm1129, %v3605, 0
        %v3629 = vsel %vm1129, %v3607, 0
        %v3632 = vsel %vm1129, %v3609, 0
        %v3635 = vsel %vm1129, %v3615, 0
        %v3638 = vsel %vm1129, %v3617, 0
        %v3641 = vsel %vm1129, %v3619, 0
        %v3644 = vsel %vm1129, %v3621, 0
        %3646 = vmatprep.subr.bf16.mxu0 0
        %3647 = vmatpush1.bf16.xpose.msra.mxu0 %v3635
        %3648 = vmatprep.subr.bf16.mxu0 0
        %3649 = vmatpush1.bf16.xpose.msra.mxu0 %v3638
        %3650 = vmatprep.subr.bf16.mxu0 0
        %3651 = vmatpush1.bf16.xpose.msra.mxu0 %v3641
        %3652 = vmatprep.subr.bf16.mxu0 0
        %3653 = vmatpush1.bf16.xpose.msra.mxu0 %v3644
        %3654 = vmatprep.subr.bf16.mxu0 0
        %3655 = vmatpush1.bf16.xpose.msra.mxu0 0
        %3656 = vmatprep.subr.bf16.mxu0 0
        %3657 = vmatpush1.bf16.xpose.msra.mxu0 0
        %3658 = vmatprep.subr.bf16.mxu0 0
        %3659 = vmatpush1.bf16.xpose.msra.mxu0 0
        %3660 = vmatprep.subr.bf16.mxu0 0
        %3661 = vmatpush1.bf16.xpose.msra.mxu0 0
        %3662 = vmatprep.subr.bf16.mxu0 0
        %3663 = vmatpush1.bf16.xpose.msra.mxu0 0
        %3664 = vmatprep.subr.bf16.mxu0 0
        %3665 = vmatpush1.bf16.xpose.msra.mxu0 0
        %3666 = vmatprep.subr.bf16.mxu0 0
        %3667 = vmatpush1.bf16.xpose.msra.mxu0 0
        %3668 = vmatprep.subr.bf16.mxu0 0
        %3669 = vmatpush1.bf16.xpose.msra.mxu0 0
        %3670 = vmatprep.subr.bf16.mxu0 0
        %3671 = vmatpush1.bf16.xpose.msra.mxu0 0
        %3672 = vmatprep.subr.bf16.mxu0 0
        %3673 = vmatpush1.bf16.xpose.msra.mxu0 0
        %3674 = vmatprep.subr.bf16.mxu0 0
        %3675 = vmatpush1.bf16.xpose.msra.mxu0 0
        %3676 = vmatprep.subr.bf16.mxu0 0
        %3677 = vmatpush1.bf16.xpose.msra.mxu0 0
        %3678 = vmatprep.mubr.bf16.mxu0 0
        %3679 = vmatmul.mubr.bf16.gmra.mrb[0].mxu0 %v3623
        %v3680 = vpop.f32.mrb[0].mxu0
        %v3681 = vadd.f32 %v3590, %v3680
        %v3682 = vpop.f32.mrb[0].mxu0
        %v3683 = vpop.f32.mrb[0].mxu0
        %v3684 = vadd.f32 %v3591, %v3683
        %v3685 = vpop.f32.mrb[0].mxu0
        %3686 = vmatprep.mubr.bf16.mxu0 0
        %3687 = vmatmul.mubr.bf16.gmra.mrb[0].mxu0 %v3626
        %v3688 = vpop.f32.mrb[0].mxu0
        %v3689 = vadd.f32 %v3592, %v3688
        %v3690 = vpop.f32.mrb[0].mxu0
        %v3691 = vpop.f32.mrb[0].mxu0
        %v3692 = vadd.f32 %v3593, %v3691
        %v3693 = vpop.f32.mrb[0].mxu0
        %3694 = vmatprep.mubr.bf16.mxu0 0
        %3695 = vmatmul.mubr.bf16.gmra.mrb[0].mxu0 %v3629
        %v3696 = vpop.f32.mrb[0].mxu0
        %v3697 = vadd.f32 %v3594, %v3696
        %v3698 = vpop.f32.mrb[0].mxu0
        %v3699 = vpop.f32.mrb[0].mxu0
        %v3700 = vadd.f32 %v3595, %v3699
        %v3701 = vpop.f32.mrb[0].mxu0
        %3702 = vmatprep.mubr.bf16.mxu0 0
        %3703 = vmatmul.mubr.bf16.gmra.mrb[0].mxu0 %v3632
        %v3704 = vpop.f32.mrb[0].mxu0
        %v3705 = vadd.f32 %v3596, %v3704
        %v3706 = vpop.f32.mrb[0].mxu0
        %v3707 = vpop.f32.mrb[0].mxu0
        %v3708 = vadd.f32 %v3597, %v3707
        %v3709 = vpop.f32.mrb[0].mxu0
        %3710 = vdwg.mxu0
        %3715 = vrot.lane.b32.xlu0 %v3545, 64
        %v3716 = vpop.permute.xlu0 %3715
        %3717 = vrot.lane.b32.xlu0 %v3546, 64
        %v3718 = vpop.permute.xlu0 %3717
        %3719 = vrot.lane.b32.xlu0 %v3547, 64
        %v3720 = vpop.permute.xlu0 %3719
        %3721 = vrot.lane.b32.xlu0 %v3548, 64
        %v3722 = vpop.permute.xlu0 %3721
        %3727 = vrot.lane.b32.xlu0 %v3561, 64
        %v3728 = vpop.permute.xlu0 %3727
        %3729 = vrot.lane.b32.xlu0 %v3562, 64
        %v3730 = vpop.permute.xlu0 %3729
        %3731 = vrot.lane.b32.xlu0 %v3563, 64
        %v3732 = vpop.permute.xlu0 %3731
        %3733 = vrot.lane.b32.xlu0 %v3564, 64
        %v3734 = vpop.permute.xlu0 %3733
        %v3736 = vsel %vm1129, %v3716, 0
        %v3739 = vsel %vm1129, %v3718, 0
        %v3742 = vsel %vm1129, %v3720, 0
        %v3745 = vsel %vm1129, %v3722, 0
        %v3748 = vsel %vm1129, %v3728, 0
        %v3751 = vsel %vm1129, %v3730, 0
        %v3754 = vsel %vm1129, %v3732, 0
        %v3757 = vsel %vm1129, %v3734, 0
        %3759 = vmatprep.subr.bf16.mxu0 0
        %3760 = vmatpush1.bf16.xpose.msra.mxu0 %v3748
        %3761 = vmatprep.subr.bf16.mxu0 0
        %3762 = vmatpush1.bf16.xpose.msra.mxu0 %v3751
        %3763 = vmatprep.subr.bf16.mxu0 0
        %3764 = vmatpush1.bf16.xpose.msra.mxu0 %v3754
        %3765 = vmatprep.subr.bf16.mxu0 0
        %3766 = vmatpush1.bf16.xpose.msra.mxu0 %v3757
        %3767 = vmatprep.subr.bf16.mxu0 0
        %3768 = vmatpush1.bf16.xpose.msra.mxu0 0
        %3769 = vmatprep.subr.bf16.mxu0 0
        %3770 = vmatpush1.bf16.xpose.msra.mxu0 0
        %3771 = vmatprep.subr.bf16.mxu0 0
        %3772 = vmatpush1.bf16.xpose.msra.mxu0 0
        %3773 = vmatprep.subr.bf16.mxu0 0
        %3774 = vmatpush1.bf16.xpose.msra.mxu0 0
        %3775 = vmatprep.subr.bf16.mxu0 0
        %3776 = vmatpush1.bf16.xpose.msra.mxu0 0
        %3777 = vmatprep.subr.bf16.mxu0 0
        %3778 = vmatpush1.bf16.xpose.msra.mxu0 0
        %3779 = vmatprep.subr.bf16.mxu0 0
        %3780 = vmatpush1.bf16.xpose.msra.mxu0 0
        %3781 = vmatprep.subr.bf16.mxu0 0
        %3782 = vmatpush1.bf16.xpose.msra.mxu0 0
        %3783 = vmatprep.subr.bf16.mxu0 0
        %3784 = vmatpush1.bf16.xpose.msra.mxu0 0
        %3785 = vmatprep.subr.bf16.mxu0 0
        %3786 = vmatpush1.bf16.xpose.msra.mxu0 0
        %3787 = vmatprep.subr.bf16.mxu0 0
        %3788 = vmatpush1.bf16.xpose.msra.mxu0 0
        %3789 = vmatprep.subr.bf16.mxu0 0
        %3790 = vmatpush1.bf16.xpose.msra.mxu0 0
        %3791 = vmatprep.mubr.bf16.mxu0 0
        %3792 = vmatmul.mubr.bf16.gmra.mrb[0].mxu0 %v3736
        %v3793 = vpop.f32.mrb[0].mxu0
        %v3794 = vadd.f32 %v3590, %v3793
        %v3795 = vpop.f32.mrb[0].mxu0
        %v3796 = vpop.f32.mrb[0].mxu0
        %v3797 = vadd.f32 %v3591, %v3796
        %v3798 = vpop.f32.mrb[0].mxu0
        %3799 = vmatprep.mubr.bf16.mxu0 0
        %3800 = vmatmul.mubr.bf16.gmra.mrb[0].mxu0 %v3739
        %v3801 = vpop.f32.mrb[0].mxu0
        %v3802 = vadd.f32 %v3592, %v3801
        %v3803 = vpop.f32.mrb[0].mxu0
        %v3804 = vpop.f32.mrb[0].mxu0
        %v3805 = vadd.f32 %v3593, %v3804
        %v3806 = vpop.f32.mrb[0].mxu0
        %3807 = vmatprep.mubr.bf16.mxu0 0
        %3808 = vmatmul.mubr.bf16.gmra.mrb[0].mxu0 %v3742
        %v3809 = vpop.f32.mrb[0].mxu0
        %v3810 = vadd.f32 %v3594, %v3809
        %v3811 = vpop.f32.mrb[0].mxu0
        %v3812 = vpop.f32.mrb[0].mxu0
        %v3813 = vadd.f32 %v3595, %v3812
        %v3814 = vpop.f32.mrb[0].mxu0
        %3815 = vmatprep.mubr.bf16.mxu0 0
        %3816 = vmatmul.mubr.bf16.gmra.mrb[0].mxu0 %v3745
        %v3817 = vpop.f32.mrb[0].mxu0
        %v3818 = vadd.f32 %v3596, %v3817
        %v3819 = vpop.f32.mrb[0].mxu0
        %v3820 = vpop.f32.mrb[0].mxu0
        %v3821 = vadd.f32 %v3597, %v3820
        %v3822 = vpop.f32.mrb[0].mxu0
        %3823 = vdwg.mxu0
        %3828 = vrot.lane.b32.xlu0 %v3549, 64
        %v3829 = vpop.permute.xlu0 %3828
        %3830 = vrot.lane.b32.xlu0 %v3550, 64
        %v3831 = vpop.permute.xlu0 %3830
        %3832 = vrot.lane.b32.xlu0 %v3551, 64
        %v3833 = vpop.permute.xlu0 %3832
        %3834 = vrot.lane.b32.xlu0 %v3552, 64
        %v3835 = vpop.permute.xlu0 %3834
        %3840 = vrot.lane.b32.xlu0 %v3565, 64
        %v3841 = vpop.permute.xlu0 %3840
        %3842 = vrot.lane.b32.xlu0 %v3566, 64
        %v3843 = vpop.permute.xlu0 %3842
        %3844 = vrot.lane.b32.xlu0 %v3567, 64
        %v3845 = vpop.permute.xlu0 %3844
        %3846 = vrot.lane.b32.xlu0 %v3568, 64
        %v3847 = vpop.permute.xlu0 %3846
        %v3849 = vsel %vm1129, %v3829, 0
        %v3852 = vsel %vm1129, %v3831, 0
        %v3855 = vsel %vm1129, %v3833, 0
        %v3858 = vsel %vm1129, %v3835, 0
        %v3861 = vsel %vm1129, %v3841, 0
        %v3864 = vsel %vm1129, %v3843, 0
        %v3867 = vsel %vm1129, %v3845, 0
        %v3870 = vsel %vm1129, %v3847, 0
        %3872 = vmatprep.subr.bf16.mxu0 0
        %3873 = vmatpush1.bf16.xpose.msra.mxu0 %v3861
        %3874 = vmatprep.subr.bf16.mxu0 0
        %3875 = vmatpush1.bf16.xpose.msra.mxu0 %v3864
        %3876 = vmatprep.subr.bf16.mxu0 0
        %3877 = vmatpush1.bf16.xpose.msra.mxu0 %v3867
        %3878 = vmatprep.subr.bf16.mxu0 0
        %3879 = vmatpush1.bf16.xpose.msra.mxu0 %v3870
        %3880 = vmatprep.subr.bf16.mxu0 0
        %3881 = vmatpush1.bf16.xpose.msra.mxu0 0
        %3882 = vmatprep.subr.bf16.mxu0 0
        %3883 = vmatpush1.bf16.xpose.msra.mxu0 0
        %3884 = vmatprep.subr.bf16.mxu0 0
        %3885 = vmatpush1.bf16.xpose.msra.mxu0 0
        %3886 = vmatprep.subr.bf16.mxu0 0
        %3887 = vmatpush1.bf16.xpose.msra.mxu0 0
        %3888 = vmatprep.subr.bf16.mxu0 0
        %3889 = vmatpush1.bf16.xpose.msra.mxu0 0
        %3890 = vmatprep.subr.bf16.mxu0 0
        %3891 = vmatpush1.bf16.xpose.msra.mxu0 0
        %3892 = vmatprep.subr.bf16.mxu0 0
        %3893 = vmatpush1.bf16.xpose.msra.mxu0 0
        %3894 = vmatprep.subr.bf16.mxu0 0
        %3895 = vmatpush1.bf16.xpose.msra.mxu0 0
        %3896 = vmatprep.subr.bf16.mxu0 0
        %3897 = vmatpush1.bf16.xpose.msra.mxu0 0
        %3898 = vmatprep.subr.bf16.mxu0 0
        %3899 = vmatpush1.bf16.xpose.msra.mxu0 0
        %3900 = vmatprep.subr.bf16.mxu0 0
        %3901 = vmatpush1.bf16.xpose.msra.mxu0 0
        %3902 = vmatprep.subr.bf16.mxu0 0
        %3903 = vmatpush1.bf16.xpose.msra.mxu0 0
        %3904 = vmatprep.mubr.bf16.mxu0 0
        %3905 = vmatmul.mubr.bf16.gmra.mrb[0].mxu0 %v3849
        %v3906 = vpop.f32.mrb[0].mxu0
        %v3907 = vadd.f32 %v3590, %v3906
        %v3908 = vpop.f32.mrb[0].mxu0
        %v3909 = vpop.f32.mrb[0].mxu0
        %v3910 = vadd.f32 %v3591, %v3909
        %v3911 = vpop.f32.mrb[0].mxu0
        %3912 = vmatprep.mubr.bf16.mxu0 0
        %3913 = vmatmul.mubr.bf16.gmra.mrb[0].mxu0 %v3852
        %v3914 = vpop.f32.mrb[0].mxu0
        %v3915 = vadd.f32 %v3592, %v3914
        %v3916 = vpop.f32.mrb[0].mxu0
        %v3917 = vpop.f32.mrb[0].mxu0
        %v3918 = vadd.f32 %v3593, %v3917
        %v3919 = vpop.f32.mrb[0].mxu0
        %3920 = vmatprep.mubr.bf16.mxu0 0
        %3921 = vmatmul.mubr.bf16.gmra.mrb[0].mxu0 %v3855
        %v3922 = vpop.f32.mrb[0].mxu0
        %v3923 = vadd.f32 %v3594, %v3922
        %v3924 = vpop.f32.mrb[0].mxu0
        %v3925 = vpop.f32.mrb[0].mxu0
        %v3926 = vadd.f32 %v3595, %v3925
        %v3927 = vpop.f32.mrb[0].mxu0
        %3928 = vmatprep.mubr.bf16.mxu0 0
        %3929 = vmatmul.mubr.bf16.gmra.mrb[0].mxu0 %v3858
        %v3930 = vpop.f32.mrb[0].mxu0
        %v3931 = vadd.f32 %v3596, %v3930
        %v3932 = vpop.f32.mrb[0].mxu0
        %v3933 = vpop.f32.mrb[0].mxu0
        %v3934 = vadd.f32 %v3597, %v3933
        %v3935 = vpop.f32.mrb[0].mxu0
        %3936 = vdwg.mxu0
        %3941 = vrot.lane.b32.xlu0 %v3553, 64
        %v3942 = vpop.permute.xlu0 %3941
        %3943 = vrot.lane.b32.xlu0 %v3554, 64
        %v3944 = vpop.permute.xlu0 %3943
        %3945 = vrot.lane.b32.xlu0 %v3555, 64
        %v3946 = vpop.permute.xlu0 %3945
        %3947 = vrot.lane.b32.xlu0 %v3556, 64
        %v3948 = vpop.permute.xlu0 %3947
        %3953 = vrot.lane.b32.xlu0 %v3569, 64
        %v3954 = vpop.permute.xlu0 %3953
        %3955 = vrot.lane.b32.xlu0 %v3570, 64
        %v3956 = vpop.permute.xlu0 %3955
        %3957 = vrot.lane.b32.xlu0 %v3571, 64
        %v3958 = vpop.permute.xlu0 %3957
        %3959 = vrot.lane.b32.xlu0 %v3572, 64
        %v3960 = vpop.permute.xlu0 %3959
        %v3962 = vsel %vm1129, %v3942, 0
        %v3965 = vsel %vm1129, %v3944, 0
        %v3968 = vsel %vm1129, %v3946, 0
        %v3971 = vsel %vm1129, %v3948, 0
        %v3974 = vsel %vm1129, %v3954, 0
        %v3977 = vsel %vm1129, %v3956, 0
        %v3980 = vsel %vm1129, %v3958, 0
        %v3983 = vsel %vm1129, %v3960, 0
        %3985 = vmatprep.subr.bf16.mxu0 0
        %3986 = vmatpush1.bf16.xpose.msra.mxu0 %v3974
        %3987 = vmatprep.subr.bf16.mxu0 0
        %3988 = vmatpush1.bf16.xpose.msra.mxu0 %v3977
        %3989 = vmatprep.subr.bf16.mxu0 0
        %3990 = vmatpush1.bf16.xpose.msra.mxu0 %v3980
        %3991 = vmatprep.subr.bf16.mxu0 0
        %3992 = vmatpush1.bf16.xpose.msra.mxu0 %v3983
        %3993 = vmatprep.subr.bf16.mxu0 0
        %3994 = vmatpush1.bf16.xpose.msra.mxu0 0
        %3995 = vmatprep.subr.bf16.mxu0 0
        %3996 = vmatpush1.bf16.xpose.msra.mxu0 0
        %3997 = vmatprep.subr.bf16.mxu0 0
        %3998 = vmatpush1.bf16.xpose.msra.mxu0 0
        %3999 = vmatprep.subr.bf16.mxu0 0
        %4000 = vmatpush1.bf16.xpose.msra.mxu0 0
        %4001 = vmatprep.subr.bf16.mxu0 0
        %4002 = vmatpush1.bf16.xpose.msra.mxu0 0
        %4003 = vmatprep.subr.bf16.mxu0 0
        %4004 = vmatpush1.bf16.xpose.msra.mxu0 0
        %4005 = vmatprep.subr.bf16.mxu0 0
        %4006 = vmatpush1.bf16.xpose.msra.mxu0 0
        %4007 = vmatprep.subr.bf16.mxu0 0
        %4008 = vmatpush1.bf16.xpose.msra.mxu0 0
        %4009 = vmatprep.subr.bf16.mxu0 0
        %4010 = vmatpush1.bf16.xpose.msra.mxu0 0
        %4011 = vmatprep.subr.bf16.mxu0 0
        %4012 = vmatpush1.bf16.xpose.msra.mxu0 0
        %4013 = vmatprep.subr.bf16.mxu0 0
        %4014 = vmatpush1.bf16.xpose.msra.mxu0 0
        %4015 = vmatprep.subr.bf16.mxu0 0
        %4016 = vmatpush1.bf16.xpose.msra.mxu0 0
        %4017 = vmatprep.mubr.bf16.mxu0 0
        %4018 = vmatmul.mubr.bf16.gmra.mrb[0].mxu0 %v3962
        %v4019 = vpop.f32.mrb[0].mxu0
        %v4020 = vadd.f32 %v3590, %v4019
        %v4021 = vpop.f32.mrb[0].mxu0
        %v4022 = vpop.f32.mrb[0].mxu0
        %v4023 = vadd.f32 %v3591, %v4022
        %v4024 = vpop.f32.mrb[0].mxu0
        %4025 = vmatprep.mubr.bf16.mxu0 0
        %4026 = vmatmul.mubr.bf16.gmra.mrb[0].mxu0 %v3965
        %v4027 = vpop.f32.mrb[0].mxu0
        %v4028 = vadd.f32 %v3592, %v4027
        %v4029 = vpop.f32.mrb[0].mxu0
        %v4030 = vpop.f32.mrb[0].mxu0
        %v4031 = vadd.f32 %v3593, %v4030
        %v4032 = vpop.f32.mrb[0].mxu0
        %4033 = vmatprep.mubr.bf16.mxu0 0
        %4034 = vmatmul.mubr.bf16.gmra.mrb[0].mxu0 %v3968
        %v4035 = vpop.f32.mrb[0].mxu0
        %v4036 = vadd.f32 %v3594, %v4035
        %v4037 = vpop.f32.mrb[0].mxu0
        %v4038 = vpop.f32.mrb[0].mxu0
        %v4039 = vadd.f32 %v3595, %v4038
        %v4040 = vpop.f32.mrb[0].mxu0
        %4041 = vmatprep.mubr.bf16.mxu0 0
        %4042 = vmatmul.mubr.bf16.gmra.mrb[0].mxu0 %v3971
        %v4043 = vpop.f32.mrb[0].mxu0
        %v4044 = vadd.f32 %v3596, %v4043
        %v4045 = vpop.f32.mrb[0].mxu0
        %v4046 = vpop.f32.mrb[0].mxu0
        %v4047 = vadd.f32 %v3597, %v4046
        %v4048 = vpop.f32.mrb[0].mxu0
        %4049 = vdwg.mxu0
        %v4050 = vsel %vm1486, %v3681, -inf
        %4051 = vmax.xlane.f32.xlu0 %v4050
        %v4052 = vpop.xlane.xlu0 %4051
        %v4053 = vsel %vm1486, %v3684, -inf
        %4054 = vmax.xlane.f32.xlu0 %v4053
        %v4055 = vpop.xlane.xlu0 %4054
        %v4056 = vsel %vm1486, %v3689, -inf
        %4057 = vmax.xlane.f32.xlu0 %v4056
        %v4058 = vpop.xlane.xlu0 %4057
        %v4059 = vsel %vm1486, %v3692, -inf
        %4060 = vmax.xlane.f32.xlu0 %v4059
        %v4061 = vpop.xlane.xlu0 %4060
        %v4062 = vsel %vm1486, %v3697, -inf
        %4063 = vmax.xlane.f32.xlu0 %v4062
        %v4064 = vpop.xlane.xlu0 %4063
        %v4065 = vsel %vm1486, %v3700, -inf
        %4066 = vmax.xlane.f32.xlu0 %v4065
        %v4067 = vpop.xlane.xlu0 %4066
        %v4068 = vsel %vm1486, %v3705, -inf
        %4069 = vmax.xlane.f32.xlu0 %v4068
        %v4070 = vpop.xlane.xlu0 %4069
        %v4071 = vsel %vm1486, %v3708, -inf
        %4072 = vmax.xlane.f32.xlu0 %v4071
        %v4073 = vpop.xlane.xlu0 %4072
        %v4074 = vsel %vm1486, %v3794, -inf
        %4075 = vmax.xlane.f32.xlu0 %v4074
        %v4076 = vpop.xlane.xlu0 %4075
        %v4077 = vsel %vm1486, %v3797, -inf
        %4078 = vmax.xlane.f32.xlu0 %v4077
        %v4079 = vpop.xlane.xlu0 %4078
        %v4080 = vsel %vm1486, %v3802, -inf
        %4081 = vmax.xlane.f32.xlu0 %v4080
        %v4082 = vpop.xlane.xlu0 %4081
        %v4083 = vsel %vm1486, %v3805, -inf
        %4084 = vmax.xlane.f32.xlu0 %v4083
        %v4085 = vpop.xlane.xlu0 %4084
        %v4086 = vsel %vm1486, %v3810, -inf
        %4087 = vmax.xlane.f32.xlu0 %v4086
        %v4088 = vpop.xlane.xlu0 %4087
        %v4089 = vsel %vm1486, %v3813, -inf
        %4090 = vmax.xlane.f32.xlu0 %v4089
        %v4091 = vpop.xlane.xlu0 %4090
        %v4092 = vsel %vm1486, %v3818, -inf
        %4093 = vmax.xlane.f32.xlu0 %v4092
        %v4094 = vpop.xlane.xlu0 %4093
        %v4095 = vsel %vm1486, %v3821, -inf
        %4096 = vmax.xlane.f32.xlu0 %v4095
        %v4097 = vpop.xlane.xlu0 %4096
        %v4098 = vsel %vm1486, %v3907, -inf
        %4099 = vmax.xlane.f32.xlu0 %v4098
        %v4100 = vpop.xlane.xlu0 %4099
        %v4101 = vsel %vm1486, %v3910, -inf
        %4102 = vmax.xlane.f32.xlu0 %v4101
        %v4103 = vpop.xlane.xlu0 %4102
        %v4104 = vsel %vm1486, %v3915, -inf
        %4105 = vmax.xlane.f32.xlu0 %v4104
        %v4106 = vpop.xlane.xlu0 %4105
        %v4107 = vsel %vm1486, %v3918, -inf
        %4108 = vmax.xlane.f32.xlu0 %v4107
        %v4109 = vpop.xlane.xlu0 %4108
        %v4110 = vsel %vm1486, %v3923, -inf
        %4111 = vmax.xlane.f32.xlu0 %v4110
        %v4112 = vpop.xlane.xlu0 %4111
        %v4113 = vsel %vm1486, %v3926, -inf
        %4114 = vmax.xlane.f32.xlu0 %v4113
        %v4115 = vpop.xlane.xlu0 %4114
        %v4116 = vsel %vm1486, %v3931, -inf
        %4117 = vmax.xlane.f32.xlu0 %v4116
        %v4118 = vpop.xlane.xlu0 %4117
        %v4119 = vsel %vm1486, %v3934, -inf
        %4120 = vmax.xlane.f32.xlu0 %v4119
        %v4121 = vpop.xlane.xlu0 %4120
        %v4122 = vsel %vm1486, %v4020, -inf
        %4123 = vmax.xlane.f32.xlu0 %v4122
        %v4124 = vpop.xlane.xlu0 %4123
        %v4125 = vsel %vm1486, %v4023, -inf
        %4126 = vmax.xlane.f32.xlu0 %v4125
        %v4127 = vpop.xlane.xlu0 %4126
        %v4128 = vsel %vm1486, %v4028, -inf
        %4129 = vmax.xlane.f32.xlu0 %v4128
        %v4130 = vpop.xlane.xlu0 %4129
        %v4131 = vsel %vm1486, %v4031, -inf
        %4132 = vmax.xlane.f32.xlu0 %v4131
        %v4133 = vpop.xlane.xlu0 %4132
        %v4134 = vsel %vm1486, %v4036, -inf
        %4135 = vmax.xlane.f32.xlu0 %v4134
        %v4136 = vpop.xlane.xlu0 %4135
        %v4137 = vsel %vm1486, %v4039, -inf
        %4138 = vmax.xlane.f32.xlu0 %v4137
        %v4139 = vpop.xlane.xlu0 %4138
        %v4140 = vsel %vm1486, %v4044, -inf
        %4141 = vmax.xlane.f32.xlu0 %v4140
        %v4142 = vpop.xlane.xlu0 %4141
        %v4143 = vsel %vm1486, %v4047, -inf
        %4144 = vmax.xlane.f32.xlu0 %v4143
        %v4145 = vpop.xlane.xlu0 %4144
        %v4146 = vsub.f32 %v3681, %v4052
        %v4147 = vsub.f32 %v3684, %v4055
        %v4148 = vsub.f32 %v3689, %v4058
        %v4149 = vsub.f32 %v3692, %v4061
        %v4150 = vsub.f32 %v3697, %v4064
        %v4151 = vsub.f32 %v3700, %v4067
        %v4152 = vsub.f32 %v3705, %v4070
        %v4153 = vsub.f32 %v3708, %v4073
        %v4154 = vsub.f32 %v3794, %v4076
        %v4155 = vsub.f32 %v3797, %v4079
        %v4156 = vsub.f32 %v3802, %v4082
        %v4157 = vsub.f32 %v3805, %v4085
        %v4158 = vsub.f32 %v3810, %v4088
        %v4159 = vsub.f32 %v3813, %v4091
        %v4160 = vsub.f32 %v3818, %v4094
        %v4161 = vsub.f32 %v3821, %v4097
        %v4162 = vsub.f32 %v3907, %v4100
        %v4163 = vsub.f32 %v3910, %v4103
        %v4164 = vsub.f32 %v3915, %v4106
        %v4165 = vsub.f32 %v3918, %v4109
        %v4166 = vsub.f32 %v3923, %v4112
        %v4167 = vsub.f32 %v3926, %v4115
        %v4168 = vsub.f32 %v3931, %v4118
        %v4169 = vsub.f32 %v3934, %v4121
        %v4170 = vsub.f32 %v4020, %v4124
        %v4171 = vsub.f32 %v4023, %v4127
        %v4172 = vsub.f32 %v4028, %v4130
        %v4173 = vsub.f32 %v4031, %v4133
        %v4174 = vsub.f32 %v4036, %v4136
        %v4175 = vsub.f32 %v4039, %v4139
        %v4176 = vsub.f32 %v4044, %v4142
        %v4177 = vsub.f32 %v4047, %v4145
        %v4178 = vmul.f32 %v4146, 1.442695
        %v4179 = vpow.pop %v4178
        %v4180 = vmul.f32 %v4147, 1.442695
        %v4181 = vpow.pop %v4180
        %v4182 = vmul.f32 %v4148, 1.442695
        %v4183 = vpow.pop %v4182
        %v4184 = vmul.f32 %v4149, 1.442695
        %v4185 = vpow.pop %v4184
        %v4186 = vmul.f32 %v4150, 1.442695
        %v4187 = vpow.pop %v4186
        %v4188 = vmul.f32 %v4151, 1.442695
        %v4189 = vpow.pop %v4188
        %v4190 = vmul.f32 %v4152, 1.442695
        %v4191 = vpow.pop %v4190
        %v4192 = vmul.f32 %v4153, 1.442695
        %v4193 = vpow.pop %v4192
        %v4194 = vmul.f32 %v4154, 1.442695
        %v4195 = vpow.pop %v4194
        %v4196 = vmul.f32 %v4155, 1.442695
        %v4197 = vpow.pop %v4196
        %v4198 = vmul.f32 %v4156, 1.442695
        %v4199 = vpow.pop %v4198
        %v4200 = vmul.f32 %v4157, 1.442695
        %v4201 = vpow.pop %v4200
        %v4202 = vmul.f32 %v4158, 1.442695
        %v4203 = vpow.pop %v4202
        %v4204 = vmul.f32 %v4159, 1.442695
        %v4205 = vpow.pop %v4204
        %v4206 = vmul.f32 %v4160, 1.442695
        %v4207 = vpow.pop %v4206
        %v4208 = vmul.f32 %v4161, 1.442695
        %v4209 = vpow.pop %v4208
        %v4210 = vmul.f32 %v4162, 1.442695
        %v4211 = vpow.pop %v4210
        %v4212 = vmul.f32 %v4163, 1.442695
        %v4213 = vpow.pop %v4212
        %v4214 = vmul.f32 %v4164, 1.442695
        %v4215 = vpow.pop %v4214
        %v4216 = vmul.f32 %v4165, 1.442695
        %v4217 = vpow.pop %v4216
        %v4218 = vmul.f32 %v4166, 1.442695
        %v4219 = vpow.pop %v4218
        %v4220 = vmul.f32 %v4167, 1.442695
        %v4221 = vpow.pop %v4220
        %v4222 = vmul.f32 %v4168, 1.442695
        %v4223 = vpow.pop %v4222
        %v4224 = vmul.f32 %v4169, 1.442695
        %v4225 = vpow.pop %v4224
        %v4226 = vmul.f32 %v4170, 1.442695
        %v4227 = vpow.pop %v4226
        %v4228 = vmul.f32 %v4171, 1.442695
        %v4229 = vpow.pop %v4228
        %v4230 = vmul.f32 %v4172, 1.442695
        %v4231 = vpow.pop %v4230
        %v4232 = vmul.f32 %v4173, 1.442695
        %v4233 = vpow.pop %v4232
        %v4234 = vmul.f32 %v4174, 1.442695
        %v4235 = vpow.pop %v4234
        %v4236 = vmul.f32 %v4175, 1.442695
        %v4237 = vpow.pop %v4236
        %v4238 = vmul.f32 %v4176, 1.442695
        %v4239 = vpow.pop %v4238
        %v4240 = vmul.f32 %v4177, 1.442695
        %v4241 = vpow.pop %v4240
        %v4242 = vsel %vm1486, %v4179, 0.0
        %4243 = vadd.xlane.f32.xlu0 %v4242
        %v4244 = vpop.xlane.xlu0 %4243
        %v4245 = vsel %vm1486, %v4181, 0.0
        %4246 = vadd.xlane.f32.xlu0 %v4245
        %v4247 = vpop.xlane.xlu0 %4246
        %v4248 = vsel %vm1486, %v4183, 0.0
        %4249 = vadd.xlane.f32.xlu0 %v4248
        %v4250 = vpop.xlane.xlu0 %4249
        %v4251 = vsel %vm1486, %v4185, 0.0
        %4252 = vadd.xlane.f32.xlu0 %v4251
        %v4253 = vpop.xlane.xlu0 %4252
        %v4254 = vsel %vm1486, %v4187, 0.0
        %4255 = vadd.xlane.f32.xlu0 %v4254
        %v4256 = vpop.xlane.xlu0 %4255
        %v4257 = vsel %vm1486, %v4189, 0.0
        %4258 = vadd.xlane.f32.xlu0 %v4257
        %v4259 = vpop.xlane.xlu0 %4258
        %v4260 = vsel %vm1486, %v4191, 0.0
        %4261 = vadd.xlane.f32.xlu0 %v4260
        %v4262 = vpop.xlane.xlu0 %4261
        %v4263 = vsel %vm1486, %v4193, 0.0
        %4264 = vadd.xlane.f32.xlu0 %v4263
        %v4265 = vpop.xlane.xlu0 %4264
        %v4266 = vsel %vm1486, %v4195, 0.0
        %4267 = vadd.xlane.f32.xlu0 %v4266
        %v4268 = vpop.xlane.xlu0 %4267
        %v4269 = vsel %vm1486, %v4197, 0.0
        %4270 = vadd.xlane.f32.xlu0 %v4269
        %v4271 = vpop.xlane.xlu0 %4270
        %v4272 = vsel %vm1486, %v4199, 0.0
        %4273 = vadd.xlane.f32.xlu0 %v4272
        %v4274 = vpop.xlane.xlu0 %4273
        %v4275 = vsel %vm1486, %v4201, 0.0
        %4276 = vadd.xlane.f32.xlu0 %v4275
        %v4277 = vpop.xlane.xlu0 %4276
        %v4278 = vsel %vm1486, %v4203, 0.0
        %4279 = vadd.xlane.f32.xlu0 %v4278
        %v4280 = vpop.xlane.xlu0 %4279
        %v4281 = vsel %vm1486, %v4205, 0.0
        %4282 = vadd.xlane.f32.xlu0 %v4281
        %v4283 = vpop.xlane.xlu0 %4282
        %v4284 = vsel %vm1486, %v4207, 0.0
        %4285 = vadd.xlane.f32.xlu0 %v4284
        %v4286 = vpop.xlane.xlu0 %4285
        %v4287 = vsel %vm1486, %v4209, 0.0
        %4288 = vadd.xlane.f32.xlu0 %v4287
        %v4289 = vpop.xlane.xlu0 %4288
        %v4290 = vsel %vm1486, %v4211, 0.0
        %4291 = vadd.xlane.f32.xlu0 %v4290
        %v4292 = vpop.xlane.xlu0 %4291
        %v4293 = vsel %vm1486, %v4213, 0.0
        %4294 = vadd.xlane.f32.xlu0 %v4293
        %v4295 = vpop.xlane.xlu0 %4294
        %v4296 = vsel %vm1486, %v4215, 0.0
        %4297 = vadd.xlane.f32.xlu0 %v4296
        %v4298 = vpop.xlane.xlu0 %4297
        %v4299 = vsel %vm1486, %v4217, 0.0
        %4300 = vadd.xlane.f32.xlu0 %v4299
        %v4301 = vpop.xlane.xlu0 %4300
        %v4302 = vsel %vm1486, %v4219, 0.0
        %4303 = vadd.xlane.f32.xlu0 %v4302
        %v4304 = vpop.xlane.xlu0 %4303
        %v4305 = vsel %vm1486, %v4221, 0.0
        %4306 = vadd.xlane.f32.xlu0 %v4305
        %v4307 = vpop.xlane.xlu0 %4306
        %v4308 = vsel %vm1486, %v4223, 0.0
        %4309 = vadd.xlane.f32.xlu0 %v4308
        %v4310 = vpop.xlane.xlu0 %4309
        %v4311 = vsel %vm1486, %v4225, 0.0
        %4312 = vadd.xlane.f32.xlu0 %v4311
        %v4313 = vpop.xlane.xlu0 %4312
        %v4314 = vsel %vm1486, %v4227, 0.0
        %4315 = vadd.xlane.f32.xlu0 %v4314
        %v4316 = vpop.xlane.xlu0 %4315
        %v4317 = vsel %vm1486, %v4229, 0.0
        %4318 = vadd.xlane.f32.xlu0 %v4317
        %v4319 = vpop.xlane.xlu0 %4318
        %v4320 = vsel %vm1486, %v4231, 0.0
        %4321 = vadd.xlane.f32.xlu0 %v4320
        %v4322 = vpop.xlane.xlu0 %4321
        %v4323 = vsel %vm1486, %v4233, 0.0
        %4324 = vadd.xlane.f32.xlu0 %v4323
        %v4325 = vpop.xlane.xlu0 %4324
        %v4326 = vsel %vm1486, %v4235, 0.0
        %4327 = vadd.xlane.f32.xlu0 %v4326
        %v4328 = vpop.xlane.xlu0 %4327
        %v4329 = vsel %vm1486, %v4237, 0.0
        %4330 = vadd.xlane.f32.xlu0 %v4329
        %v4331 = vpop.xlane.xlu0 %4330
        %v4332 = vsel %vm1486, %v4239, 0.0
        %4333 = vadd.xlane.f32.xlu0 %v4332
        %v4334 = vpop.xlane.xlu0 %4333
        %v4335 = vsel %vm1486, %v4241, 0.0
        %4336 = vadd.xlane.f32.xlu0 %v4335
        %v4337 = vpop.xlane.xlu0 %4336
        %v4338 = vrcp.pop %v4244
        %v4339 = vrcp.pop %v4247
        %v4340 = vrcp.pop %v4250
        %v4341 = vrcp.pop %v4253
        %v4342 = vrcp.pop %v4256
        %v4343 = vrcp.pop %v4259
        %v4344 = vrcp.pop %v4262
        %v4345 = vrcp.pop %v4265
        %v4346 = vrcp.pop %v4268
        %v4347 = vrcp.pop %v4271
        %v4348 = vrcp.pop %v4274
        %v4349 = vrcp.pop %v4277
        %v4350 = vrcp.pop %v4280
        %v4351 = vrcp.pop %v4283
        %v4352 = vrcp.pop %v4286
        %v4353 = vrcp.pop %v4289
        %v4354 = vrcp.pop %v4292
        %v4355 = vrcp.pop %v4295
        %v4356 = vrcp.pop %v4298
        %v4357 = vrcp.pop %v4301
        %v4358 = vrcp.pop %v4304
        %v4359 = vrcp.pop %v4307
        %v4360 = vrcp.pop %v4310
        %v4361 = vrcp.pop %v4313
        %v4362 = vrcp.pop %v4316
        %v4363 = vrcp.pop %v4319
        %v4364 = vrcp.pop %v4322
        %v4365 = vrcp.pop %v4325
        %v4366 = vrcp.pop %v4328
        %v4367 = vrcp.pop %v4331
        %v4368 = vrcp.pop %v4334
        %v4369 = vrcp.pop %v4337
        %v4370 = vmul.f32 %v4179, %v4338
        %v4371 = vmul.f32 %v4181, %v4339
        %v4372 = vmul.f32 %v4183, %v4340
        %v4373 = vmul.f32 %v4185, %v4341
        %v4374 = vmul.f32 %v4187, %v4342
        %v4375 = vmul.f32 %v4189, %v4343
        %v4376 = vmul.f32 %v4191, %v4344
        %v4377 = vmul.f32 %v4193, %v4345
        %v4378 = vmul.f32 %v4195, %v4346
        %v4379 = vmul.f32 %v4197, %v4347
        %v4380 = vmul.f32 %v4199, %v4348
        %v4381 = vmul.f32 %v4201, %v4349
        %v4382 = vmul.f32 %v4203, %v4350
        %v4383 = vmul.f32 %v4205, %v4351
        %v4384 = vmul.f32 %v4207, %v4352
        %v4385 = vmul.f32 %v4209, %v4353
        %v4386 = vmul.f32 %v4211, %v4354
        %v4387 = vmul.f32 %v4213, %v4355
        %v4388 = vmul.f32 %v4215, %v4356
        %v4389 = vmul.f32 %v4217, %v4357
        %v4390 = vmul.f32 %v4219, %v4358
        %v4391 = vmul.f32 %v4221, %v4359
        %v4392 = vmul.f32 %v4223, %v4360
        %v4393 = vmul.f32 %v4225, %v4361
        %v4394 = vmul.f32 %v4227, %v4362
        %v4395 = vmul.f32 %v4229, %v4363
        %v4396 = vmul.f32 %v4231, %v4364
        %v4397 = vmul.f32 %v4233, %v4365
        %v4398 = vmul.f32 %v4235, %v4366
        %v4399 = vmul.f32 %v4237, %v4367
        %v4400 = vmul.f32 %v4239, %v4368
        %v4401 = vmul.f32 %v4241, %v4369
        %v4402 = vpack.c.bf16 %v4371, %v4370
        %v4403 = vpack.c.bf16 %v4373, %v4372
        %v4404 = vpack.c.bf16 %v4375, %v4374
        %v4405 = vpack.c.bf16 %v4377, %v4376
        %v4406 = vpack.c.bf16 %v4379, %v4378
        %v4407 = vpack.c.bf16 %v4381, %v4380
        %v4408 = vpack.c.bf16 %v4383, %v4382
        %v4409 = vpack.c.bf16 %v4385, %v4384
        %v4410 = vpack.c.bf16 %v4387, %v4386
        %v4411 = vpack.c.bf16 %v4389, %v4388
        %v4412 = vpack.c.bf16 %v4391, %v4390
        %v4413 = vpack.c.bf16 %v4393, %v4392
        %v4414 = vpack.c.bf16 %v4395, %v4394
        %v4415 = vpack.c.bf16 %v4397, %v4396
        %v4416 = vpack.c.bf16 %v4399, %v4398
        %v4417 = vpack.c.bf16 %v4401, %v4400
        %4422 = vrot.lane.b32.xlu0 %v3573, 64
        %v4423 = vpop.permute.xlu0 %4422
        %4424 = vrot.lane.b32.xlu0 %v3574, 64
        %v4425 = vpop.permute.xlu0 %4424
        %4426 = vrot.lane.b32.xlu0 %v3575, 64
        %v4427 = vpop.permute.xlu0 %4426
        %4428 = vrot.lane.b32.xlu0 %v3576, 64
        %v4429 = vpop.permute.xlu0 %4428
        %v4435 = vsel %vm1486, %v4402, 0
        %v4438 = vsel %vm1486, %v4403, 0
        %v4441 = vsel %vm1486, %v4404, 0
        %v4444 = vsel %vm1486, %v4405, 0
        %4446 = vmatprep.subr.bf16.mxu0 0
        %4447 = vmatpush1.bf16.msra.mxu0 %v4423
        %4448 = vmatprep.subr.bf16.mxu0 0
        %4449 = vmatpush1.bf16.msra.mxu0 %v4425
        %4450 = vmatprep.subr.bf16.mxu0 0
        %4451 = vmatpush1.bf16.msra.mxu0 %v4427
        %4452 = vmatprep.subr.bf16.mxu0 0
        %4453 = vmatpush1.bf16.msra.mxu0 %v4429
        %4454 = vmatprep.subr.bf16.mxu0 0
        %4455 = vmatpush1.bf16.msra.mxu0 0
        %4456 = vmatprep.subr.bf16.mxu0 0
        %4457 = vmatpush1.bf16.msra.mxu0 0
        %4458 = vmatprep.subr.bf16.mxu0 0
        %4459 = vmatpush1.bf16.msra.mxu0 0
        %4460 = vmatprep.subr.bf16.mxu0 0
        %4461 = vmatpush1.bf16.msra.mxu0 0
        %4462 = vmatprep.subr.bf16.mxu0 0
        %4463 = vmatpush1.bf16.msra.mxu0 0
        %4464 = vmatprep.subr.bf16.mxu0 0
        %4465 = vmatpush1.bf16.msra.mxu0 0
        %4466 = vmatprep.subr.bf16.mxu0 0
        %4467 = vmatpush1.bf16.msra.mxu0 0
        %4468 = vmatprep.subr.bf16.mxu0 0
        %4469 = vmatpush1.bf16.msra.mxu0 0
        %4470 = vmatprep.subr.bf16.mxu0 0
        %4471 = vmatpush1.bf16.msra.mxu0 0
        %4472 = vmatprep.subr.bf16.mxu0 0
        %4473 = vmatpush1.bf16.msra.mxu0 0
        %4474 = vmatprep.subr.bf16.mxu0 0
        %4475 = vmatpush1.bf16.msra.mxu0 0
        %4476 = vmatprep.subr.bf16.mxu0 0
        %4477 = vmatpush1.bf16.msra.mxu0 0
        %4478 = vmatprep.mubr.bf16.mxu0 0
        %4479 = vmatmul.mubr.bf16.gmra.mrb[0].mxu0 %v4435
        %v4480 = vpop.f32.mrb[0].mxu0
        %v4481 = vadd.f32 0.0, %v4480
        %v4482 = vpop.f32.mrb[0].mxu0
        %v4483 = vpop.f32.mrb[0].mxu0
        %v4484 = vadd.f32 0.0, %v4483
        %v4485 = vpop.f32.mrb[0].mxu0
        %4486 = vmatprep.mubr.bf16.mxu0 0
        %4487 = vmatmul.mubr.bf16.gmra.mrb[0].mxu0 %v4438
        %v4488 = vpop.f32.mrb[0].mxu0
        %v4489 = vadd.f32 0.0, %v4488
        %v4490 = vpop.f32.mrb[0].mxu0
        %v4491 = vpop.f32.mrb[0].mxu0
        %v4492 = vadd.f32 0.0, %v4491
        %v4493 = vpop.f32.mrb[0].mxu0
        %4494 = vmatprep.mubr.bf16.mxu0 0
        %4495 = vmatmul.mubr.bf16.gmra.mrb[0].mxu0 %v4441
        %v4496 = vpop.f32.mrb[0].mxu0
        %v4497 = vadd.f32 0.0, %v4496
        %v4498 = vpop.f32.mrb[0].mxu0
        %v4499 = vpop.f32.mrb[0].mxu0
        %v4500 = vadd.f32 0.0, %v4499
        %v4501 = vpop.f32.mrb[0].mxu0
        %4502 = vmatprep.mubr.bf16.mxu0 0
        %4503 = vmatmul.mubr.bf16.gmra.mrb[0].mxu0 %v4444
        %v4504 = vpop.f32.mrb[0].mxu0
        %v4505 = vadd.f32 0.0, %v4504
        %v4506 = vpop.f32.mrb[0].mxu0
        %v4507 = vpop.f32.mrb[0].mxu0
        %v4508 = vadd.f32 0.0, %v4507
        %v4509 = vpop.f32.mrb[0].mxu0
        %4510 = vdwg.mxu0
        %4515 = vrot.lane.b32.xlu0 %v3577, 64
        %v4516 = vpop.permute.xlu0 %4515
        %4517 = vrot.lane.b32.xlu0 %v3578, 64
        %v4518 = vpop.permute.xlu0 %4517
        %4519 = vrot.lane.b32.xlu0 %v3579, 64
        %v4520 = vpop.permute.xlu0 %4519
        %4521 = vrot.lane.b32.xlu0 %v3580, 64
        %v4522 = vpop.permute.xlu0 %4521
        %v4528 = vsel %vm1486, %v4406, 0
        %v4531 = vsel %vm1486, %v4407, 0
        %v4534 = vsel %vm1486, %v4408, 0
        %v4537 = vsel %vm1486, %v4409, 0
        %4539 = vmatprep.subr.bf16.mxu0 0
        %4540 = vmatpush1.bf16.msra.mxu0 %v4516
        %4541 = vmatprep.subr.bf16.mxu0 0
        %4542 = vmatpush1.bf16.msra.mxu0 %v4518
        %4543 = vmatprep.subr.bf16.mxu0 0
        %4544 = vmatpush1.bf16.msra.mxu0 %v4520
        %4545 = vmatprep.subr.bf16.mxu0 0
        %4546 = vmatpush1.bf16.msra.mxu0 %v4522
        %4547 = vmatprep.subr.bf16.mxu0 0
        %4548 = vmatpush1.bf16.msra.mxu0 0
        %4549 = vmatprep.subr.bf16.mxu0 0
        %4550 = vmatpush1.bf16.msra.mxu0 0
        %4551 = vmatprep.subr.bf16.mxu0 0
        %4552 = vmatpush1.bf16.msra.mxu0 0
        %4553 = vmatprep.subr.bf16.mxu0 0
        %4554 = vmatpush1.bf16.msra.mxu0 0
        %4555 = vmatprep.subr.bf16.mxu0 0
        %4556 = vmatpush1.bf16.msra.mxu0 0
        %4557 = vmatprep.subr.bf16.mxu0 0
        %4558 = vmatpush1.bf16.msra.mxu0 0
        %4559 = vmatprep.subr.bf16.mxu0 0
        %4560 = vmatpush1.bf16.msra.mxu0 0
        %4561 = vmatprep.subr.bf16.mxu0 0
        %4562 = vmatpush1.bf16.msra.mxu0 0
        %4563 = vmatprep.subr.bf16.mxu0 0
        %4564 = vmatpush1.bf16.msra.mxu0 0
        %4565 = vmatprep.subr.bf16.mxu0 0
        %4566 = vmatpush1.bf16.msra.mxu0 0
        %4567 = vmatprep.subr.bf16.mxu0 0
        %4568 = vmatpush1.bf16.msra.mxu0 0
        %4569 = vmatprep.subr.bf16.mxu0 0
        %4570 = vmatpush1.bf16.msra.mxu0 0
        %4571 = vmatprep.mubr.bf16.mxu0 0
        %4572 = vmatmul.mubr.bf16.gmra.mrb[0].mxu0 %v4528
        %v4573 = vpop.f32.mrb[0].mxu0
        %v4574 = vadd.f32 0.0, %v4573
        %v4575 = vpop.f32.mrb[0].mxu0
        %v4576 = vpop.f32.mrb[0].mxu0
        %v4577 = vadd.f32 0.0, %v4576
        %v4578 = vpop.f32.mrb[0].mxu0
        %4579 = vmatprep.mubr.bf16.mxu0 0
        %4580 = vmatmul.mubr.bf16.gmra.mrb[0].mxu0 %v4531
        %v4581 = vpop.f32.mrb[0].mxu0
        %v4582 = vadd.f32 0.0, %v4581
        %v4583 = vpop.f32.mrb[0].mxu0
        %v4584 = vpop.f32.mrb[0].mxu0
        %v4585 = vadd.f32 0.0, %v4584
        %v4586 = vpop.f32.mrb[0].mxu0
        %4587 = vmatprep.mubr.bf16.mxu0 0
        %4588 = vmatmul.mubr.bf16.gmra.mrb[0].mxu0 %v4534
        %v4589 = vpop.f32.mrb[0].mxu0
        %v4590 = vadd.f32 0.0, %v4589
        %v4591 = vpop.f32.mrb[0].mxu0
        %v4592 = vpop.f32.mrb[0].mxu0
        %v4593 = vadd.f32 0.0, %v4592
        %v4594 = vpop.f32.mrb[0].mxu0
        %4595 = vmatprep.mubr.bf16.mxu0 0
        %4596 = vmatmul.mubr.bf16.gmra.mrb[0].mxu0 %v4537
        %v4597 = vpop.f32.mrb[0].mxu0
        %v4598 = vadd.f32 0.0, %v4597
        %v4599 = vpop.f32.mrb[0].mxu0
        %v4600 = vpop.f32.mrb[0].mxu0
        %v4601 = vadd.f32 0.0, %v4600
        %v4602 = vpop.f32.mrb[0].mxu0
        %4603 = vdwg.mxu0
        %4608 = vrot.lane.b32.xlu0 %v3581, 64
        %v4609 = vpop.permute.xlu0 %4608
        %4610 = vrot.lane.b32.xlu0 %v3582, 64
        %v4611 = vpop.permute.xlu0 %4610
        %4612 = vrot.lane.b32.xlu0 %v3583, 64
        %v4613 = vpop.permute.xlu0 %4612
        %4614 = vrot.lane.b32.xlu0 %v3584, 64
        %v4615 = vpop.permute.xlu0 %4614
        %v4621 = vsel %vm1486, %v4410, 0
        %v4624 = vsel %vm1486, %v4411, 0
        %v4627 = vsel %vm1486, %v4412, 0
        %v4630 = vsel %vm1486, %v4413, 0
        %4632 = vmatprep.subr.bf16.mxu0 0
        %4633 = vmatpush1.bf16.msra.mxu0 %v4609
        %4634 = vmatprep.subr.bf16.mxu0 0
        %4635 = vmatpush1.bf16.msra.mxu0 %v4611
        %4636 = vmatprep.subr.bf16.mxu0 0
        %4637 = vmatpush1.bf16.msra.mxu0 %v4613
        %4638 = vmatprep.subr.bf16.mxu0 0
        %4639 = vmatpush1.bf16.msra.mxu0 %v4615
        %4640 = vmatprep.subr.bf16.mxu0 0
        %4641 = vmatpush1.bf16.msra.mxu0 0
        %4642 = vmatprep.subr.bf16.mxu0 0
        %4643 = vmatpush1.bf16.msra.mxu0 0
        %4644 = vmatprep.subr.bf16.mxu0 0
        %4645 = vmatpush1.bf16.msra.mxu0 0
        %4646 = vmatprep.subr.bf16.mxu0 0
        %4647 = vmatpush1.bf16.msra.mxu0 0
        %4648 = vmatprep.subr.bf16.mxu0 0
        %4649 = vmatpush1.bf16.msra.mxu0 0
        %4650 = vmatprep.subr.bf16.mxu0 0
        %4651 = vmatpush1.bf16.msra.mxu0 0
        %4652 = vmatprep.subr.bf16.mxu0 0
        %4653 = vmatpush1.bf16.msra.mxu0 0
        %4654 = vmatprep.subr.bf16.mxu0 0
        %4655 = vmatpush1.bf16.msra.mxu0 0
        %4656 = vmatprep.subr.bf16.mxu0 0
        %4657 = vmatpush1.bf16.msra.mxu0 0
        %4658 = vmatprep.subr.bf16.mxu0 0
        %4659 = vmatpush1.bf16.msra.mxu0 0
        %4660 = vmatprep.subr.bf16.mxu0 0
        %4661 = vmatpush1.bf16.msra.mxu0 0
        %4662 = vmatprep.subr.bf16.mxu0 0
        %4663 = vmatpush1.bf16.msra.mxu0 0
        %4664 = vmatprep.mubr.bf16.mxu0 0
        %4665 = vmatmul.mubr.bf16.gmra.mrb[0].mxu0 %v4621
        %v4666 = vpop.f32.mrb[0].mxu0
        %v4667 = vadd.f32 0.0, %v4666
        %v4668 = vpop.f32.mrb[0].mxu0
        %v4669 = vpop.f32.mrb[0].mxu0
        %v4670 = vadd.f32 0.0, %v4669
        %v4671 = vpop.f32.mrb[0].mxu0
        %4672 = vmatprep.mubr.bf16.mxu0 0
        %4673 = vmatmul.mubr.bf16.gmra.mrb[0].mxu0 %v4624
        %v4674 = vpop.f32.mrb[0].mxu0
        %v4675 = vadd.f32 0.0, %v4674
        %v4676 = vpop.f32.mrb[0].mxu0
        %v4677 = vpop.f32.mrb[0].mxu0
        %v4678 = vadd.f32 0.0, %v4677
        %v4679 = vpop.f32.mrb[0].mxu0
        %4680 = vmatprep.mubr.bf16.mxu0 0
        %4681 = vmatmul.mubr.bf16.gmra.mrb[0].mxu0 %v4627
        %v4682 = vpop.f32.mrb[0].mxu0
        %v4683 = vadd.f32 0.0, %v4682
        %v4684 = vpop.f32.mrb[0].mxu0
        %v4685 = vpop.f32.mrb[0].mxu0
        %v4686 = vadd.f32 0.0, %v4685
        %v4687 = vpop.f32.mrb[0].mxu0
        %4688 = vmatprep.mubr.bf16.mxu0 0
        %4689 = vmatmul.mubr.bf16.gmra.mrb[0].mxu0 %v4630
        %v4690 = vpop.f32.mrb[0].mxu0
        %v4691 = vadd.f32 0.0, %v4690
        %v4692 = vpop.f32.mrb[0].mxu0
        %v4693 = vpop.f32.mrb[0].mxu0
        %v4694 = vadd.f32 0.0, %v4693
        %v4695 = vpop.f32.mrb[0].mxu0
        %4696 = vdwg.mxu0
        %4701 = vrot.lane.b32.xlu0 %v3585, 64
        %v4702 = vpop.permute.xlu0 %4701
        %4703 = vrot.lane.b32.xlu0 %v3586, 64
        %v4704 = vpop.permute.xlu0 %4703
        %4705 = vrot.lane.b32.xlu0 %v3587, 64
        %v4706 = vpop.permute.xlu0 %4705
        %4707 = vrot.lane.b32.xlu0 %v3588, 64
        %v4708 = vpop.permute.xlu0 %4707
        %v4714 = vsel %vm1486, %v4414, 0
        %v4717 = vsel %vm1486, %v4415, 0
        %v4720 = vsel %vm1486, %v4416, 0
        %v4723 = vsel %vm1486, %v4417, 0
        %4725 = vmatprep.subr.bf16.mxu0 0
        %4726 = vmatpush1.bf16.msra.mxu0 %v4702
        %4727 = vmatprep.subr.bf16.mxu0 0
        %4728 = vmatpush1.bf16.msra.mxu0 %v4704
        %4729 = vmatprep.subr.bf16.mxu0 0
        %4730 = vmatpush1.bf16.msra.mxu0 %v4706
        %4731 = vmatprep.subr.bf16.mxu0 0
        %4732 = vmatpush1.bf16.msra.mxu0 %v4708
        %4733 = vmatprep.subr.bf16.mxu0 0
        %4734 = vmatpush1.bf16.msra.mxu0 0
        %4735 = vmatprep.subr.bf16.mxu0 0
        %4736 = vmatpush1.bf16.msra.mxu0 0
        %4737 = vmatprep.subr.bf16.mxu0 0
        %4738 = vmatpush1.bf16.msra.mxu0 0
        %4739 = vmatprep.subr.bf16.mxu0 0
        %4740 = vmatpush1.bf16.msra.mxu0 0
        %4741 = vmatprep.subr.bf16.mxu0 0
        %4742 = vmatpush1.bf16.msra.mxu0 0
        %4743 = vmatprep.subr.bf16.mxu0 0
        %4744 = vmatpush1.bf16.msra.mxu0 0
        %4745 = vmatprep.subr.bf16.mxu0 0
        %4746 = vmatpush1.bf16.msra.mxu0 0
        %4747 = vmatprep.subr.bf16.mxu0 0
        %4748 = vmatpush1.bf16.msra.mxu0 0
        %4749 = vmatprep.subr.bf16.mxu0 0
        %4750 = vmatpush1.bf16.msra.mxu0 0
        %4751 = vmatprep.subr.bf16.mxu0 0
        %4752 = vmatpush1.bf16.msra.mxu0 0
        %4753 = vmatprep.subr.bf16.mxu0 0
        %4754 = vmatpush1.bf16.msra.mxu0 0
        %4755 = vmatprep.subr.bf16.mxu0 0
        %4756 = vmatpush1.bf16.msra.mxu0 0
        %4757 = vmatprep.mubr.bf16.mxu0 0
        %4758 = vmatmul.mubr.bf16.gmra.mrb[0].mxu0 %v4714
        %v4759 = vpop.f32.mrb[0].mxu0
        %v4760 = vadd.f32 0.0, %v4759
        %v4761 = vpop.f32.mrb[0].mxu0
        %v4762 = vpop.f32.mrb[0].mxu0
        %v4763 = vadd.f32 0.0, %v4762
        %v4764 = vpop.f32.mrb[0].mxu0
        %4765 = vmatprep.mubr.bf16.mxu0 0
        %4766 = vmatmul.mubr.bf16.gmra.mrb[0].mxu0 %v4717
        %v4767 = vpop.f32.mrb[0].mxu0
        %v4768 = vadd.f32 0.0, %v4767
        %v4769 = vpop.f32.mrb[0].mxu0
        %v4770 = vpop.f32.mrb[0].mxu0
        %v4771 = vadd.f32 0.0, %v4770
        %v4772 = vpop.f32.mrb[0].mxu0
        %4773 = vmatprep.mubr.bf16.mxu0 0
        %4774 = vmatmul.mubr.bf16.gmra.mrb[0].mxu0 %v4720
        %v4775 = vpop.f32.mrb[0].mxu0
        %v4776 = vadd.f32 0.0, %v4775
        %v4777 = vpop.f32.mrb[0].mxu0
        %v4778 = vpop.f32.mrb[0].mxu0
        %v4779 = vadd.f32 0.0, %v4778
        %v4780 = vpop.f32.mrb[0].mxu0
        %4781 = vmatprep.mubr.bf16.mxu0 0
        %4782 = vmatmul.mubr.bf16.gmra.mrb[0].mxu0 %v4723
        %v4783 = vpop.f32.mrb[0].mxu0
        %v4784 = vadd.f32 0.0, %v4783
        %v4785 = vpop.f32.mrb[0].mxu0
        %v4786 = vpop.f32.mrb[0].mxu0
        %v4787 = vadd.f32 0.0, %v4786
        %v4788 = vpop.f32.mrb[0].mxu0
        %4789 = vdwg.mxu0
        %v4790 = vpack.c.bf16 %v4484, %v4481
        %v4791 = vpack.c.bf16 %v4492, %v4489
        %v4792 = vpack.c.bf16 %v4500, %v4497
        %v4793 = vpack.c.bf16 %v4508, %v4505
        %v4794 = vpack.c.bf16 %v4577, %v4574
        %v4795 = vpack.c.bf16 %v4585, %v4582
        %v4796 = vpack.c.bf16 %v4593, %v4590
        %v4797 = vpack.c.bf16 %v4601, %v4598
        %v4798 = vpack.c.bf16 %v4670, %v4667
        %v4799 = vpack.c.bf16 %v4678, %v4675
        %v4800 = vpack.c.bf16 %v4686, %v4683
        %v4801 = vpack.c.bf16 %v4694, %v4691
        %v4802 = vpack.c.bf16 %v4763, %v4760
        %v4803 = vpack.c.bf16 %v4771, %v4768
        %v4804 = vpack.c.bf16 %v4779, %v4776
        %v4805 = vpack.c.bf16 %v4787, %v4784
        %4822 = vrot.lane.b32.xlu0 %v4790, 64
        %v4823 = vpop.permute.xlu0 %4822
        %4824 = vrot.lane.b32.xlu0 %v4791, 64
        %v4825 = vpop.permute.xlu0 %4824
        %4826 = vrot.lane.b32.xlu0 %v4792, 64
        %v4827 = vpop.permute.xlu0 %4826
        %4828 = vrot.lane.b32.xlu0 %v4793, 64
        %v4829 = vpop.permute.xlu0 %4828
        %4830 = vrot.lane.b32.xlu0 %v4794, 64
        %v4831 = vpop.permute.xlu0 %4830
        %4832 = vrot.lane.b32.xlu0 %v4795, 64
        %v4833 = vpop.permute.xlu0 %4832
        %4834 = vrot.lane.b32.xlu0 %v4796, 64
        %v4835 = vpop.permute.xlu0 %4834
        %4836 = vrot.lane.b32.xlu0 %v4797, 64
        %v4837 = vpop.permute.xlu0 %4836
        %4838 = vrot.lane.b32.xlu0 %v4798, 64
        %v4839 = vpop.permute.xlu0 %4838
        %4840 = vrot.lane.b32.xlu0 %v4799, 64
        %v4841 = vpop.permute.xlu0 %4840
        %4842 = vrot.lane.b32.xlu0 %v4800, 64
        %v4843 = vpop.permute.xlu0 %4842
        %4844 = vrot.lane.b32.xlu0 %v4801, 64
        %v4845 = vpop.permute.xlu0 %4844
        %4846 = vrot.lane.b32.xlu0 %v4802, 64
        %v4847 = vpop.permute.xlu0 %4846
        %4848 = vrot.lane.b32.xlu0 %v4803, 64
        %v4849 = vpop.permute.xlu0 %4848
        %4850 = vrot.lane.b32.xlu0 %v4804, 64
        %v4851 = vpop.permute.xlu0 %4850
        %4852 = vrot.lane.b32.xlu0 %v4805, 64
        %v4853 = vpop.permute.xlu0 %4852
        %vm4870 = vcmask 785920
        %4871 = vst.msk [vmem:[#allocation3] sm:$0xff] %vm4870, %v4823
        %4872 = vst.msk [vmem:[#allocation3 + $0x8] sm:$0xff] %vm4870, %v4825
        %4873 = vst.msk [vmem:[#allocation3 + $0x10] sm:$0xff] %vm4870, %v4827
        %4874 = vst.msk [vmem:[#allocation3 + $0x18] sm:$0xff] %vm4870, %v4829
        %4875 = vst.msk [vmem:[#allocation3 + $0x20] sm:$0xff] %vm4870, %v4831
        %4876 = vst.msk [vmem:[#allocation3 + $0x28] sm:$0xff] %vm4870, %v4833
        %4877 = vst.msk [vmem:[#allocation3 + $0x30] sm:$0xff] %vm4870, %v4835
        %4878 = vst.msk [vmem:[#allocation3 + $0x38] sm:$0xff] %vm4870, %v4837
        %4879 = vst.msk [vmem:[#allocation3 + $0x40] sm:$0xff] %vm4870, %v4839
        %4880 = vst.msk [vmem:[#allocation3 + $0x48] sm:$0xff] %vm4870, %v4841
        %4881 = vst.msk [vmem:[#allocation3 + $0x50] sm:$0xff] %vm4870, %v4843
        %4882 = vst.msk [vmem:[#allocation3 + $0x58] sm:$0xff] %vm4870, %v4845
        %4883 = vst.msk [vmem:[#allocation3 + $0x60] sm:$0xff] %vm4870, %v4847
        %4884 = vst.msk [vmem:[#allocation3 + $0x68] sm:$0xff] %vm4870, %v4849
        %4885 = vst.msk [vmem:[#allocation3 + $0x70] sm:$0xff] %vm4870, %v4851
        %4886 = vst.msk [vmem:[#allocation3 + $0x78] sm:$0xff] %vm4870, %v4853
        %v4887 = vld [vmem:[#allocation2] sm:$0xff]
        %v4888 = vld [vmem:[#allocation2 + $0x18] sm:$0xff]
        %v4889 = vld [vmem:[#allocation2 + $0x30] sm:$0xff]
        %v4890 = vld [vmem:[#allocation2 + $0x48] sm:$0xff]
        %v4891 = vld [vmem:[#allocation2 + $0x60] sm:$0xff]
        %v4892 = vld [vmem:[#allocation2 + $0x78] sm:$0xff]
        %v4893 = vld [vmem:[#allocation2 + $0x90] sm:$0xff]
        %v4894 = vld [vmem:[#allocation2 + $0xa8] sm:$0xff]
        %v4895 = vld [vmem:[#allocation2 + $0xc0] sm:$0xff]
        %v4896 = vld [vmem:[#allocation2 + $0xd8] sm:$0xff]
        %v4897 = vld [vmem:[#allocation2 + $0xf0] sm:$0xff]
        %v4898 = vld [vmem:[#allocation2 + $0x108] sm:$0xff]
        %v4899 = vld [vmem:[#allocation2 + $0x120] sm:$0xff]
        %v4900 = vld [vmem:[#allocation2 + $0x138] sm:$0xff]
        %v4901 = vld [vmem:[#allocation2 + $0x150] sm:$0xff]
        %v4902 = vld [vmem:[#allocation2 + $0x168] sm:$0xff]
        %v4903 = vld [vmem:[#allocation2 + $0x8] sm:$0xff]
        %v4904 = vld [vmem:[#allocation2 + $0x20] sm:$0xff]
        %v4905 = vld [vmem:[#allocation2 + $0x38] sm:$0xff]
        %v4906 = vld [vmem:[#allocation2 + $0x50] sm:$0xff]
        %v4907 = vld [vmem:[#allocation2 + $0x68] sm:$0xff]
        %v4908 = vld [vmem:[#allocation2 + $0x80] sm:$0xff]
        %v4909 = vld [vmem:[#allocation2 + $0x98] sm:$0xff]
        %v4910 = vld [vmem:[#allocation2 + $0xb0] sm:$0xff]
        %v4911 = vld [vmem:[#allocation2 + $0xc8] sm:$0xff]
        %v4912 = vld [vmem:[#allocation2 + $0xe0] sm:$0xff]
        %v4913 = vld [vmem:[#allocation2 + $0xf8] sm:$0xff]
        %v4914 = vld [vmem:[#allocation2 + $0x110] sm:$0xff]
        %v4915 = vld [vmem:[#allocation2 + $0x128] sm:$0xff]
        %v4916 = vld [vmem:[#allocation2 + $0x140] sm:$0xff]
        %v4917 = vld [vmem:[#allocation2 + $0x158] sm:$0xff]
        %v4918 = vld [vmem:[#allocation2 + $0x170] sm:$0xff]
        %v4919 = vld [vmem:[#allocation2 + $0x10] sm:$0xff]
        %v4920 = vld [vmem:[#allocation2 + $0x28] sm:$0xff]
        %v4921 = vld [vmem:[#allocation2 + $0x40] sm:$0xff]
        %v4922 = vld [vmem:[#allocation2 + $0x58] sm:$0xff]
        %v4923 = vld [vmem:[#allocation2 + $0x70] sm:$0xff]
        %v4924 = vld [vmem:[#allocation2 + $0x88] sm:$0xff]
        %v4925 = vld [vmem:[#allocation2 + $0xa0] sm:$0xff]
        %v4926 = vld [vmem:[#allocation2 + $0xb8] sm:$0xff]
        %v4927 = vld [vmem:[#allocation2 + $0xd0] sm:$0xff]
        %v4928 = vld [vmem:[#allocation2 + $0xe8] sm:$0xff]
        %v4929 = vld [vmem:[#allocation2 + $0x100] sm:$0xff]
        %v4930 = vld [vmem:[#allocation2 + $0x118] sm:$0xff]
        %v4931 = vld [vmem:[#allocation2 + $0x130] sm:$0xff]
        %v4932 = vld [vmem:[#allocation2 + $0x148] sm:$0xff]
        %v4933 = vld [vmem:[#allocation2 + $0x160] sm:$0xff]
        %v4934 = vld [vmem:[#allocation2 + $0x178] sm:$0xff]
        %s4935 = scalar_lea.vmem [#allocation9], 192
        %v4936 = vld [vmem:[%s4935] sm:$0xff]
        %v4937 = vld [vmem:[%s4935 + $0x8] sm:$0xff]
        %v4938 = vld [vmem:[%s4935 + $0x10] sm:$0xff]
        %v4939 = vld [vmem:[%s4935 + $0x18] sm:$0xff]
        %v4940 = vld [vmem:[%s4935 + $0x20] sm:$0xff]
        %v4941 = vld [vmem:[%s4935 + $0x28] sm:$0xff]
        %v4942 = vld [vmem:[%s4935 + $0x30] sm:$0xff]
        %v4943 = vld [vmem:[%s4935 + $0x38] sm:$0xff]
        %4948 = vrot.lane.b32.xlu0 %v4887, 32
        %v4949 = vpop.permute.xlu0 %4948
        %4950 = vrot.lane.b32.xlu0 %v4888, 32
        %v4951 = vpop.permute.xlu0 %4950
        %4952 = vrot.lane.b32.xlu0 %v4889, 32
        %v4953 = vpop.permute.xlu0 %4952
        %4954 = vrot.lane.b32.xlu0 %v4890, 32
        %v4955 = vpop.permute.xlu0 %4954
        %4960 = vrot.lane.b32.xlu0 %v4903, 32
        %v4961 = vpop.permute.xlu0 %4960
        %4962 = vrot.lane.b32.xlu0 %v4904, 32
        %v4963 = vpop.permute.xlu0 %4962
        %4964 = vrot.lane.b32.xlu0 %v4905, 32
        %v4965 = vpop.permute.xlu0 %4964
        %4966 = vrot.lane.b32.xlu0 %v4906, 32
        %v4967 = vpop.permute.xlu0 %4966
        %v4969 = vsel %vm1129, %v4949, 0
        %v4972 = vsel %vm1129, %v4951, 0
        %v4975 = vsel %vm1129, %v4953, 0
        %v4978 = vsel %vm1129, %v4955, 0
        %v4981 = vsel %vm1129, %v4961, 0
        %v4984 = vsel %vm1129, %v4963, 0
        %v4987 = vsel %vm1129, %v4965, 0
        %v4990 = vsel %vm1129, %v4967, 0
        %4992 = vmatprep.subr.bf16.mxu0 0
        %4993 = vmatpush1.bf16.xpose.msra.mxu0 %v4981
        %4994 = vmatprep.subr.bf16.mxu0 0
        %4995 = vmatpush1.bf16.xpose.msra.mxu0 %v4984
        %4996 = vmatprep.subr.bf16.mxu0 0
        %4997 = vmatpush1.bf16.xpose.msra.mxu0 %v4987
        %4998 = vmatprep.subr.bf16.mxu0 0
        %4999 = vmatpush1.bf16.xpose.msra.mxu0 %v4990
        %5000 = vmatprep.subr.bf16.mxu0 0
        %5001 = vmatpush1.bf16.xpose.msra.mxu0 0
        %5002 = vmatprep.subr.bf16.mxu0 0
        %5003 = vmatpush1.bf16.xpose.msra.mxu0 0
        %5004 = vmatprep.subr.bf16.mxu0 0
        %5005 = vmatpush1.bf16.xpose.msra.mxu0 0
        %5006 = vmatprep.subr.bf16.mxu0 0
        %5007 = vmatpush1.bf16.xpose.msra.mxu0 0
        %5008 = vmatprep.subr.bf16.mxu0 0
        %5009 = vmatpush1.bf16.xpose.msra.mxu0 0
        %5010 = vmatprep.subr.bf16.mxu0 0
        %5011 = vmatpush1.bf16.xpose.msra.mxu0 0
        %5012 = vmatprep.subr.bf16.mxu0 0
        %5013 = vmatpush1.bf16.xpose.msra.mxu0 0
        %5014 = vmatprep.subr.bf16.mxu0 0
        %5015 = vmatpush1.bf16.xpose.msra.mxu0 0
        %5016 = vmatprep.subr.bf16.mxu0 0
        %5017 = vmatpush1.bf16.xpose.msra.mxu0 0
        %5018 = vmatprep.subr.bf16.mxu0 0
        %5019 = vmatpush1.bf16.xpose.msra.mxu0 0
        %5020 = vmatprep.subr.bf16.mxu0 0
        %5021 = vmatpush1.bf16.xpose.msra.mxu0 0
        %5022 = vmatprep.subr.bf16.mxu0 0
        %5023 = vmatpush1.bf16.xpose.msra.mxu0 0
        %5024 = vmatprep.mubr.bf16.mxu0 0
        %5025 = vmatmul.mubr.bf16.gmra.mrb[0].mxu0 %v4969
        %v5026 = vpop.f32.mrb[0].mxu0
        %v5027 = vadd.f32 %v4936, %v5026
        %v5028 = vpop.f32.mrb[0].mxu0
        %v5029 = vpop.f32.mrb[0].mxu0
        %v5030 = vadd.f32 %v4937, %v5029
        %v5031 = vpop.f32.mrb[0].mxu0
        %5032 = vmatprep.mubr.bf16.mxu0 0
        %5033 = vmatmul.mubr.bf16.gmra.mrb[0].mxu0 %v4972
        %v5034 = vpop.f32.mrb[0].mxu0
        %v5035 = vadd.f32 %v4938, %v5034
        %v5036 = vpop.f32.mrb[0].mxu0
        %v5037 = vpop.f32.mrb[0].mxu0
        %v5038 = vadd.f32 %v4939, %v5037
        %v5039 = vpop.f32.mrb[0].mxu0
        %5040 = vmatprep.mubr.bf16.mxu0 0
        %5041 = vmatmul.mubr.bf16.gmra.mrb[0].mxu0 %v4975
        %v5042 = vpop.f32.mrb[0].mxu0
        %v5043 = vadd.f32 %v4940, %v5042
        %v5044 = vpop.f32.mrb[0].mxu0
        %v5045 = vpop.f32.mrb[0].mxu0
        %v5046 = vadd.f32 %v4941, %v5045
        %v5047 = vpop.f32.mrb[0].mxu0
        %5048 = vmatprep.mubr.bf16.mxu0 0
        %5049 = vmatmul.mubr.bf16.gmra.mrb[0].mxu0 %v4978
        %v5050 = vpop.f32.mrb[0].mxu0
        %v5051 = vadd.f32 %v4942, %v5050
        %v5052 = vpop.f32.mrb[0].mxu0
        %v5053 = vpop.f32.mrb[0].mxu0
        %v5054 = vadd.f32 %v4943, %v5053
        %v5055 = vpop.f32.mrb[0].mxu0
        %5056 = vdwg.mxu0
        %5061 = vrot.lane.b32.xlu0 %v4891, 32
        %v5062 = vpop.permute.xlu0 %5061
        %5063 = vrot.lane.b32.xlu0 %v4892, 32
        %v5064 = vpop.permute.xlu0 %5063
        %5065 = vrot.lane.b32.xlu0 %v4893, 32
        %v5066 = vpop.permute.xlu0 %5065
        %5067 = vrot.lane.b32.xlu0 %v4894, 32
        %v5068 = vpop.permute.xlu0 %5067
        %5073 = vrot.lane.b32.xlu0 %v4907, 32
        %v5074 = vpop.permute.xlu0 %5073
        %5075 = vrot.lane.b32.xlu0 %v4908, 32
        %v5076 = vpop.permute.xlu0 %5075
        %5077 = vrot.lane.b32.xlu0 %v4909, 32
        %v5078 = vpop.permute.xlu0 %5077
        %5079 = vrot.lane.b32.xlu0 %v4910, 32
        %v5080 = vpop.permute.xlu0 %5079
        %v5082 = vsel %vm1129, %v5062, 0
        %v5085 = vsel %vm1129, %v5064, 0
        %v5088 = vsel %vm1129, %v5066, 0
        %v5091 = vsel %vm1129, %v5068, 0
        %v5094 = vsel %vm1129, %v5074, 0
        %v5097 = vsel %vm1129, %v5076, 0
        %v5100 = vsel %vm1129, %v5078, 0
        %v5103 = vsel %vm1129, %v5080, 0
        %5105 = vmatprep.subr.bf16.mxu0 0
        %5106 = vmatpush1.bf16.xpose.msra.mxu0 %v5094
        %5107 = vmatprep.subr.bf16.mxu0 0
        %5108 = vmatpush1.bf16.xpose.msra.mxu0 %v5097
        %5109 = vmatprep.subr.bf16.mxu0 0
        %5110 = vmatpush1.bf16.xpose.msra.mxu0 %v5100
        %5111 = vmatprep.subr.bf16.mxu0 0
        %5112 = vmatpush1.bf16.xpose.msra.mxu0 %v5103
        %5113 = vmatprep.subr.bf16.mxu0 0
        %5114 = vmatpush1.bf16.xpose.msra.mxu0 0
        %5115 = vmatprep.subr.bf16.mxu0 0
        %5116 = vmatpush1.bf16.xpose.msra.mxu0 0
        %5117 = vmatprep.subr.bf16.mxu0 0
        %5118 = vmatpush1.bf16.xpose.msra.mxu0 0
        %5119 = vmatprep.subr.bf16.mxu0 0
        %5120 = vmatpush1.bf16.xpose.msra.mxu0 0
        %5121 = vmatprep.subr.bf16.mxu0 0
        %5122 = vmatpush1.bf16.xpose.msra.mxu0 0
        %5123 = vmatprep.subr.bf16.mxu0 0
        %5124 = vmatpush1.bf16.xpose.msra.mxu0 0
        %5125 = vmatprep.subr.bf16.mxu0 0
        %5126 = vmatpush1.bf16.xpose.msra.mxu0 0
        %5127 = vmatprep.subr.bf16.mxu0 0
        %5128 = vmatpush1.bf16.xpose.msra.mxu0 0
        %5129 = vmatprep.subr.bf16.mxu0 0
        %5130 = vmatpush1.bf16.xpose.msra.mxu0 0
        %5131 = vmatprep.subr.bf16.mxu0 0
        %5132 = vmatpush1.bf16.xpose.msra.mxu0 0
        %5133 = vmatprep.subr.bf16.mxu0 0
        %5134 = vmatpush1.bf16.xpose.msra.mxu0 0
        %5135 = vmatprep.subr.bf16.mxu0 0
        %5136 = vmatpush1.bf16.xpose.msra.mxu0 0
        %5137 = vmatprep.mubr.bf16.mxu0 0
        %5138 = vmatmul.mubr.bf16.gmra.mrb[0].mxu0 %v5082
        %v5139 = vpop.f32.mrb[0].mxu0
        %v5140 = vadd.f32 %v4936, %v5139
        %v5141 = vpop.f32.mrb[0].mxu0
        %v5142 = vpop.f32.mrb[0].mxu0
        %v5143 = vadd.f32 %v4937, %v5142
        %v5144 = vpop.f32.mrb[0].mxu0
        %5145 = vmatprep.mubr.bf16.mxu0 0
        %5146 = vmatmul.mubr.bf16.gmra.mrb[0].mxu0 %v5085
        %v5147 = vpop.f32.mrb[0].mxu0
        %v5148 = vadd.f32 %v4938, %v5147
        %v5149 = vpop.f32.mrb[0].mxu0
        %v5150 = vpop.f32.mrb[0].mxu0
        %v5151 = vadd.f32 %v4939, %v5150
        %v5152 = vpop.f32.mrb[0].mxu0
        %5153 = vmatprep.mubr.bf16.mxu0 0
        %5154 = vmatmul.mubr.bf16.gmra.mrb[0].mxu0 %v5088
        %v5155 = vpop.f32.mrb[0].mxu0
        %v5156 = vadd.f32 %v4940, %v5155
        %v5157 = vpop.f32.mrb[0].mxu0
        %v5158 = vpop.f32.mrb[0].mxu0
        %v5159 = vadd.f32 %v4941, %v5158
        %v5160 = vpop.f32.mrb[0].mxu0
        %5161 = vmatprep.mubr.bf16.mxu0 0
        %5162 = vmatmul.mubr.bf16.gmra.mrb[0].mxu0 %v5091
        %v5163 = vpop.f32.mrb[0].mxu0
        %v5164 = vadd.f32 %v4942, %v5163
        %v5165 = vpop.f32.mrb[0].mxu0
        %v5166 = vpop.f32.mrb[0].mxu0
        %v5167 = vadd.f32 %v4943, %v5166
        %v5168 = vpop.f32.mrb[0].mxu0
        %5169 = vdwg.mxu0
        %5174 = vrot.lane.b32.xlu0 %v4895, 32
        %v5175 = vpop.permute.xlu0 %5174
        %5176 = vrot.lane.b32.xlu0 %v4896, 32
        %v5177 = vpop.permute.xlu0 %5176
        %5178 = vrot.lane.b32.xlu0 %v4897, 32
        %v5179 = vpop.permute.xlu0 %5178
        %5180 = vrot.lane.b32.xlu0 %v4898, 32
        %v5181 = vpop.permute.xlu0 %5180
        %5186 = vrot.lane.b32.xlu0 %v4911, 32
        %v5187 = vpop.permute.xlu0 %5186
        %5188 = vrot.lane.b32.xlu0 %v4912, 32
        %v5189 = vpop.permute.xlu0 %5188
        %5190 = vrot.lane.b32.xlu0 %v4913, 32
        %v5191 = vpop.permute.xlu0 %5190
        %5192 = vrot.lane.b32.xlu0 %v4914, 32
        %v5193 = vpop.permute.xlu0 %5192
        %v5195 = vsel %vm1129, %v5175, 0
        %v5198 = vsel %vm1129, %v5177, 0
        %v5201 = vsel %vm1129, %v5179, 0
        %v5204 = vsel %vm1129, %v5181, 0
        %v5207 = vsel %vm1129, %v5187, 0
        %v5210 = vsel %vm1129, %v5189, 0
        %v5213 = vsel %vm1129, %v5191, 0
        %v5216 = vsel %vm1129, %v5193, 0
        %5218 = vmatprep.subr.bf16.mxu0 0
        %5219 = vmatpush1.bf16.xpose.msra.mxu0 %v5207
        %5220 = vmatprep.subr.bf16.mxu0 0
        %5221 = vmatpush1.bf16.xpose.msra.mxu0 %v5210
        %5222 = vmatprep.subr.bf16.mxu0 0
        %5223 = vmatpush1.bf16.xpose.msra.mxu0 %v5213
        %5224 = vmatprep.subr.bf16.mxu0 0
        %5225 = vmatpush1.bf16.xpose.msra.mxu0 %v5216
        %5226 = vmatprep.subr.bf16.mxu0 0
        %5227 = vmatpush1.bf16.xpose.msra.mxu0 0
        %5228 = vmatprep.subr.bf16.mxu0 0
        %5229 = vmatpush1.bf16.xpose.msra.mxu0 0
        %5230 = vmatprep.subr.bf16.mxu0 0
        %5231 = vmatpush1.bf16.xpose.msra.mxu0 0
        %5232 = vmatprep.subr.bf16.mxu0 0
        %5233 = vmatpush1.bf16.xpose.msra.mxu0 0
        %5234 = vmatprep.subr.bf16.mxu0 0
        %5235 = vmatpush1.bf16.xpose.msra.mxu0 0
        %5236 = vmatprep.subr.bf16.mxu0 0
        %5237 = vmatpush1.bf16.xpose.msra.mxu0 0
        %5238 = vmatprep.subr.bf16.mxu0 0
        %5239 = vmatpush1.bf16.xpose.msra.mxu0 0
        %5240 = vmatprep.subr.bf16.mxu0 0
        %5241 = vmatpush1.bf16.xpose.msra.mxu0 0
        %5242 = vmatprep.subr.bf16.mxu0 0
        %5243 = vmatpush1.bf16.xpose.msra.mxu0 0
        %5244 = vmatprep.subr.bf16.mxu0 0
        %5245 = vmatpush1.bf16.xpose.msra.mxu0 0
        %5246 = vmatprep.subr.bf16.mxu0 0
        %5247 = vmatpush1.bf16.xpose.msra.mxu0 0
        %5248 = vmatprep.subr.bf16.mxu0 0
        %5249 = vmatpush1.bf16.xpose.msra.mxu0 0
        %5250 = vmatprep.mubr.bf16.mxu0 0
        %5251 = vmatmul.mubr.bf16.gmra.mrb[0].mxu0 %v5195
        %v5252 = vpop.f32.mrb[0].mxu0
        %v5253 = vadd.f32 %v4936, %v5252
        %v5254 = vpop.f32.mrb[0].mxu0
        %v5255 = vpop.f32.mrb[0].mxu0
        %v5256 = vadd.f32 %v4937, %v5255
        %v5257 = vpop.f32.mrb[0].mxu0
        %5258 = vmatprep.mubr.bf16.mxu0 0
        %5259 = vmatmul.mubr.bf16.gmra.mrb[0].mxu0 %v5198
        %v5260 = vpop.f32.mrb[0].mxu0
        %v5261 = vadd.f32 %v4938, %v5260
        %v5262 = vpop.f32.mrb[0].mxu0
        %v5263 = vpop.f32.mrb[0].mxu0
        %v5264 = vadd.f32 %v4939, %v5263
        %v5265 = vpop.f32.mrb[0].mxu0
        %5266 = vmatprep.mubr.bf16.mxu0 0
        %5267 = vmatmul.mubr.bf16.gmra.mrb[0].mxu0 %v5201
        %v5268 = vpop.f32.mrb[0].mxu0
        %v5269 = vadd.f32 %v4940, %v5268
        %v5270 = vpop.f32.mrb[0].mxu0
        %v5271 = vpop.f32.mrb[0].mxu0
        %v5272 = vadd.f32 %v4941, %v5271
        %v5273 = vpop.f32.mrb[0].mxu0
        %5274 = vmatprep.mubr.bf16.mxu0 0
        %5275 = vmatmul.mubr.bf16.gmra.mrb[0].mxu0 %v5204
        %v5276 = vpop.f32.mrb[0].mxu0
        %v5277 = vadd.f32 %v4942, %v5276
        %v5278 = vpop.f32.mrb[0].mxu0
        %v5279 = vpop.f32.mrb[0].mxu0
        %v5280 = vadd.f32 %v4943, %v5279
        %v5281 = vpop.f32.mrb[0].mxu0
        %5282 = vdwg.mxu0
        %5287 = vrot.lane.b32.xlu0 %v4899, 32
        %v5288 = vpop.permute.xlu0 %5287
        %5289 = vrot.lane.b32.xlu0 %v4900, 32
        %v5290 = vpop.permute.xlu0 %5289
        %5291 = vrot.lane.b32.xlu0 %v4901, 32
        %v5292 = vpop.permute.xlu0 %5291
        %5293 = vrot.lane.b32.xlu0 %v4902, 32
        %v5294 = vpop.permute.xlu0 %5293
        %5299 = vrot.lane.b32.xlu0 %v4915, 32
        %v5300 = vpop.permute.xlu0 %5299
        %5301 = vrot.lane.b32.xlu0 %v4916, 32
        %v5302 = vpop.permute.xlu0 %5301
        %5303 = vrot.lane.b32.xlu0 %v4917, 32
        %v5304 = vpop.permute.xlu0 %5303
        %5305 = vrot.lane.b32.xlu0 %v4918, 32
        %v5306 = vpop.permute.xlu0 %5305
        %v5308 = vsel %vm1129, %v5288, 0
        %v5311 = vsel %vm1129, %v5290, 0
        %v5314 = vsel %vm1129, %v5292, 0
        %v5317 = vsel %vm1129, %v5294, 0
        %v5320 = vsel %vm1129, %v5300, 0
        %v5323 = vsel %vm1129, %v5302, 0
        %v5326 = vsel %vm1129, %v5304, 0
        %v5329 = vsel %vm1129, %v5306, 0
        %5331 = vmatprep.subr.bf16.mxu0 0
        %5332 = vmatpush1.bf16.xpose.msra.mxu0 %v5320
        %5333 = vmatprep.subr.bf16.mxu0 0
        %5334 = vmatpush1.bf16.xpose.msra.mxu0 %v5323
        %5335 = vmatprep.subr.bf16.mxu0 0
        %5336 = vmatpush1.bf16.xpose.msra.mxu0 %v5326
        %5337 = vmatprep.subr.bf16.mxu0 0
        %5338 = vmatpush1.bf16.xpose.msra.mxu0 %v5329
        %5339 = vmatprep.subr.bf16.mxu0 0
        %5340 = vmatpush1.bf16.xpose.msra.mxu0 0
        %5341 = vmatprep.subr.bf16.mxu0 0
        %5342 = vmatpush1.bf16.xpose.msra.mxu0 0
        %5343 = vmatprep.subr.bf16.mxu0 0
        %5344 = vmatpush1.bf16.xpose.msra.mxu0 0
        %5345 = vmatprep.subr.bf16.mxu0 0
        %5346 = vmatpush1.bf16.xpose.msra.mxu0 0
        %5347 = vmatprep.subr.bf16.mxu0 0
        %5348 = vmatpush1.bf16.xpose.msra.mxu0 0
        %5349 = vmatprep.subr.bf16.mxu0 0
        %5350 = vmatpush1.bf16.xpose.msra.mxu0 0
        %5351 = vmatprep.subr.bf16.mxu0 0
        %5352 = vmatpush1.bf16.xpose.msra.mxu0 0
        %5353 = vmatprep.subr.bf16.mxu0 0
        %5354 = vmatpush1.bf16.xpose.msra.mxu0 0
        %5355 = vmatprep.subr.bf16.mxu0 0
        %5356 = vmatpush1.bf16.xpose.msra.mxu0 0
        %5357 = vmatprep.subr.bf16.mxu0 0
        %5358 = vmatpush1.bf16.xpose.msra.mxu0 0
        %5359 = vmatprep.subr.bf16.mxu0 0
        %5360 = vmatpush1.bf16.xpose.msra.mxu0 0
        %5361 = vmatprep.subr.bf16.mxu0 0
        %5362 = vmatpush1.bf16.xpose.msra.mxu0 0
        %5363 = vmatprep.mubr.bf16.mxu0 0
        %5364 = vmatmul.mubr.bf16.gmra.mrb[0].mxu0 %v5308
        %v5365 = vpop.f32.mrb[0].mxu0
        %v5366 = vadd.f32 %v4936, %v5365
        %v5367 = vpop.f32.mrb[0].mxu0
        %v5368 = vpop.f32.mrb[0].mxu0
        %v5369 = vadd.f32 %v4937, %v5368
        %v5370 = vpop.f32.mrb[0].mxu0
        %5371 = vmatprep.mubr.bf16.mxu0 0
        %5372 = vmatmul.mubr.bf16.gmra.mrb[0].mxu0 %v5311
        %v5373 = vpop.f32.mrb[0].mxu0
        %v5374 = vadd.f32 %v4938, %v5373
        %v5375 = vpop.f32.mrb[0].mxu0
        %v5376 = vpop.f32.mrb[0].mxu0
        %v5377 = vadd.f32 %v4939, %v5376
        %v5378 = vpop.f32.mrb[0].mxu0
        %5379 = vmatprep.mubr.bf16.mxu0 0
        %5380 = vmatmul.mubr.bf16.gmra.mrb[0].mxu0 %v5314
        %v5381 = vpop.f32.mrb[0].mxu0
        %v5382 = vadd.f32 %v4940, %v5381
        %v5383 = vpop.f32.mrb[0].mxu0
        %v5384 = vpop.f32.mrb[0].mxu0
        %v5385 = vadd.f32 %v4941, %v5384
        %v5386 = vpop.f32.mrb[0].mxu0
        %5387 = vmatprep.mubr.bf16.mxu0 0
        %5388 = vmatmul.mubr.bf16.gmra.mrb[0].mxu0 %v5317
        %v5389 = vpop.f32.mrb[0].mxu0
        %v5390 = vadd.f32 %v4942, %v5389
        %v5391 = vpop.f32.mrb[0].mxu0
        %v5392 = vpop.f32.mrb[0].mxu0
        %v5393 = vadd.f32 %v4943, %v5392
        %v5394 = vpop.f32.mrb[0].mxu0
        %5395 = vdwg.mxu0
        %v5396 = vsel %vm1486, %v5027, -inf
        %5397 = vmax.xlane.f32.xlu0 %v5396
        %v5398 = vpop.xlane.xlu0 %5397
        %v5399 = vsel %vm1486, %v5030, -inf
        %5400 = vmax.xlane.f32.xlu0 %v5399
        %v5401 = vpop.xlane.xlu0 %5400
        %v5402 = vsel %vm1486, %v5035, -inf
        %5403 = vmax.xlane.f32.xlu0 %v5402
        %v5404 = vpop.xlane.xlu0 %5403
        %v5405 = vsel %vm1486, %v5038, -inf
        %5406 = vmax.xlane.f32.xlu0 %v5405
        %v5407 = vpop.xlane.xlu0 %5406
        %v5408 = vsel %vm1486, %v5043, -inf
        %5409 = vmax.xlane.f32.xlu0 %v5408
        %v5410 = vpop.xlane.xlu0 %5409
        %v5411 = vsel %vm1486, %v5046, -inf
        %5412 = vmax.xlane.f32.xlu0 %v5411
        %v5413 = vpop.xlane.xlu0 %5412
        %v5414 = vsel %vm1486, %v5051, -inf
        %5415 = vmax.xlane.f32.xlu0 %v5414
        %v5416 = vpop.xlane.xlu0 %5415
        %v5417 = vsel %vm1486, %v5054, -inf
        %5418 = vmax.xlane.f32.xlu0 %v5417
        %v5419 = vpop.xlane.xlu0 %5418
        %v5420 = vsel %vm1486, %v5140, -inf
        %5421 = vmax.xlane.f32.xlu0 %v5420
        %v5422 = vpop.xlane.xlu0 %5421
        %v5423 = vsel %vm1486, %v5143, -inf
        %5424 = vmax.xlane.f32.xlu0 %v5423
        %v5425 = vpop.xlane.xlu0 %5424
        %v5426 = vsel %vm1486, %v5148, -inf
        %5427 = vmax.xlane.f32.xlu0 %v5426
        %v5428 = vpop.xlane.xlu0 %5427
        %v5429 = vsel %vm1486, %v5151, -inf
        %5430 = vmax.xlane.f32.xlu0 %v5429
        %v5431 = vpop.xlane.xlu0 %5430
        %v5432 = vsel %vm1486, %v5156, -inf
        %5433 = vmax.xlane.f32.xlu0 %v5432
        %v5434 = vpop.xlane.xlu0 %5433
        %v5435 = vsel %vm1486, %v5159, -inf
        %5436 = vmax.xlane.f32.xlu0 %v5435
        %v5437 = vpop.xlane.xlu0 %5436
        %v5438 = vsel %vm1486, %v5164, -inf
        %5439 = vmax.xlane.f32.xlu0 %v5438
        %v5440 = vpop.xlane.xlu0 %5439
        %v5441 = vsel %vm1486, %v5167, -inf
        %5442 = vmax.xlane.f32.xlu0 %v5441
        %v5443 = vpop.xlane.xlu0 %5442
        %v5444 = vsel %vm1486, %v5253, -inf
        %5445 = vmax.xlane.f32.xlu0 %v5444
        %v5446 = vpop.xlane.xlu0 %5445
        %v5447 = vsel %vm1486, %v5256, -inf
        %5448 = vmax.xlane.f32.xlu0 %v5447
        %v5449 = vpop.xlane.xlu0 %5448
        %v5450 = vsel %vm1486, %v5261, -inf
        %5451 = vmax.xlane.f32.xlu0 %v5450
        %v5452 = vpop.xlane.xlu0 %5451
        %v5453 = vsel %vm1486, %v5264, -inf
        %5454 = vmax.xlane.f32.xlu0 %v5453
        %v5455 = vpop.xlane.xlu0 %5454
        %v5456 = vsel %vm1486, %v5269, -inf
        %5457 = vmax.xlane.f32.xlu0 %v5456
        %v5458 = vpop.xlane.xlu0 %5457
        %v5459 = vsel %vm1486, %v5272, -inf
        %5460 = vmax.xlane.f32.xlu0 %v5459
        %v5461 = vpop.xlane.xlu0 %5460
        %v5462 = vsel %vm1486, %v5277, -inf
        %5463 = vmax.xlane.f32.xlu0 %v5462
        %v5464 = vpop.xlane.xlu0 %5463
        %v5465 = vsel %vm1486, %v5280, -inf
        %5466 = vmax.xlane.f32.xlu0 %v5465
        %v5467 = vpop.xlane.xlu0 %5466
        %v5468 = vsel %vm1486, %v5366, -inf
        %5469 = vmax.xlane.f32.xlu0 %v5468
        %v5470 = vpop.xlane.xlu0 %5469
        %v5471 = vsel %vm1486, %v5369, -inf
        %5472 = vmax.xlane.f32.xlu0 %v5471
        %v5473 = vpop.xlane.xlu0 %5472
        %v5474 = vsel %vm1486, %v5374, -inf
        %5475 = vmax.xlane.f32.xlu0 %v5474
        %v5476 = vpop.xlane.xlu0 %5475
        %v5477 = vsel %vm1486, %v5377, -inf
        %5478 = vmax.xlane.f32.xlu0 %v5477
        %v5479 = vpop.xlane.xlu0 %5478
        %v5480 = vsel %vm1486, %v5382, -inf
        %5481 = vmax.xlane.f32.xlu0 %v5480
        %v5482 = vpop.xlane.xlu0 %5481
        %v5483 = vsel %vm1486, %v5385, -inf
        %5484 = vmax.xlane.f32.xlu0 %v5483
        %v5485 = vpop.xlane.xlu0 %5484
        %v5486 = vsel %vm1486, %v5390, -inf
        %5487 = vmax.xlane.f32.xlu0 %v5486
        %v5488 = vpop.xlane.xlu0 %5487
        %v5489 = vsel %vm1486, %v5393, -inf
        %5490 = vmax.xlane.f32.xlu0 %v5489
        %v5491 = vpop.xlane.xlu0 %5490
        %v5492 = vsub.f32 %v5027, %v5398
        %v5493 = vsub.f32 %v5030, %v5401
        %v5494 = vsub.f32 %v5035, %v5404
        %v5495 = vsub.f32 %v5038, %v5407
        %v5496 = vsub.f32 %v5043, %v5410
        %v5497 = vsub.f32 %v5046, %v5413
        %v5498 = vsub.f32 %v5051, %v5416
        %v5499 = vsub.f32 %v5054, %v5419
        %v5500 = vsub.f32 %v5140, %v5422
        %v5501 = vsub.f32 %v5143, %v5425
        %v5502 = vsub.f32 %v5148, %v5428
        %v5503 = vsub.f32 %v5151, %v5431
        %v5504 = vsub.f32 %v5156, %v5434
        %v5505 = vsub.f32 %v5159, %v5437
        %v5506 = vsub.f32 %v5164, %v5440
        %v5507 = vsub.f32 %v5167, %v5443
        %v5508 = vsub.f32 %v5253, %v5446
        %v5509 = vsub.f32 %v5256, %v5449
        %v5510 = vsub.f32 %v5261, %v5452
        %v5511 = vsub.f32 %v5264, %v5455
        %v5512 = vsub.f32 %v5269, %v5458
        %v5513 = vsub.f32 %v5272, %v5461
        %v5514 = vsub.f32 %v5277, %v5464
        %v5515 = vsub.f32 %v5280, %v5467
        %v5516 = vsub.f32 %v5366, %v5470
        %v5517 = vsub.f32 %v5369, %v5473
        %v5518 = vsub.f32 %v5374, %v5476
        %v5519 = vsub.f32 %v5377, %v5479
        %v5520 = vsub.f32 %v5382, %v5482
        %v5521 = vsub.f32 %v5385, %v5485
        %v5522 = vsub.f32 %v5390, %v5488
        %v5523 = vsub.f32 %v5393, %v5491
        %v5524 = vmul.f32 %v5492, 1.442695
        %v5525 = vpow.pop %v5524
        %v5526 = vmul.f32 %v5493, 1.442695
        %v5527 = vpow.pop %v5526
        %v5528 = vmul.f32 %v5494, 1.442695
        %v5529 = vpow.pop %v5528
        %v5530 = vmul.f32 %v5495, 1.442695
        %v5531 = vpow.pop %v5530
        %v5532 = vmul.f32 %v5496, 1.442695
        %v5533 = vpow.pop %v5532
        %v5534 = vmul.f32 %v5497, 1.442695
        %v5535 = vpow.pop %v5534
        %v5536 = vmul.f32 %v5498, 1.442695
        %v5537 = vpow.pop %v5536
        %v5538 = vmul.f32 %v5499, 1.442695
        %v5539 = vpow.pop %v5538
        %v5540 = vmul.f32 %v5500, 1.442695
        %v5541 = vpow.pop %v5540
        %v5542 = vmul.f32 %v5501, 1.442695
        %v5543 = vpow.pop %v5542
        %v5544 = vmul.f32 %v5502, 1.442695
        %v5545 = vpow.pop %v5544
        %v5546 = vmul.f32 %v5503, 1.442695
        %v5547 = vpow.pop %v5546
        %v5548 = vmul.f32 %v5504, 1.442695
        %v5549 = vpow.pop %v5548
        %v5550 = vmul.f32 %v5505, 1.442695
        %v5551 = vpow.pop %v5550
        %v5552 = vmul.f32 %v5506, 1.442695
        %v5553 = vpow.pop %v5552
        %v5554 = vmul.f32 %v5507, 1.442695
        %v5555 = vpow.pop %v5554
        %v5556 = vmul.f32 %v5508, 1.442695
        %v5557 = vpow.pop %v5556
        %v5558 = vmul.f32 %v5509, 1.442695
        %v5559 = vpow.pop %v5558
        %v5560 = vmul.f32 %v5510, 1.442695
        %v5561 = vpow.pop %v5560
        %v5562 = vmul.f32 %v5511, 1.442695
        %v5563 = vpow.pop %v5562
        %v5564 = vmul.f32 %v5512, 1.442695
        %v5565 = vpow.pop %v5564
        %v5566 = vmul.f32 %v5513, 1.442695
        %v5567 = vpow.pop %v5566
        %v5568 = vmul.f32 %v5514, 1.442695
        %v5569 = vpow.pop %v5568
        %v5570 = vmul.f32 %v5515, 1.442695
        %v5571 = vpow.pop %v5570
        %v5572 = vmul.f32 %v5516, 1.442695
        %v5573 = vpow.pop %v5572
        %v5574 = vmul.f32 %v5517, 1.442695
        %v5575 = vpow.pop %v5574
        %v5576 = vmul.f32 %v5518, 1.442695
        %v5577 = vpow.pop %v5576
        %v5578 = vmul.f32 %v5519, 1.442695
        %v5579 = vpow.pop %v5578
        %v5580 = vmul.f32 %v5520, 1.442695
        %v5581 = vpow.pop %v5580
        %v5582 = vmul.f32 %v5521, 1.442695
        %v5583 = vpow.pop %v5582
        %v5584 = vmul.f32 %v5522, 1.442695
        %v5585 = vpow.pop %v5584
        %v5586 = vmul.f32 %v5523, 1.442695
        %v5587 = vpow.pop %v5586
        %v5588 = vsel %vm1486, %v5525, 0.0
        %5589 = vadd.xlane.f32.xlu0 %v5588
        %v5590 = vpop.xlane.xlu0 %5589
        %v5591 = vsel %vm1486, %v5527, 0.0
        %5592 = vadd.xlane.f32.xlu0 %v5591
        %v5593 = vpop.xlane.xlu0 %5592
        %v5594 = vsel %vm1486, %v5529, 0.0
        %5595 = vadd.xlane.f32.xlu0 %v5594
        %v5596 = vpop.xlane.xlu0 %5595
        %v5597 = vsel %vm1486, %v5531, 0.0
        %5598 = vadd.xlane.f32.xlu0 %v5597
        %v5599 = vpop.xlane.xlu0 %5598
        %v5600 = vsel %vm1486, %v5533, 0.0
        %5601 = vadd.xlane.f32.xlu0 %v5600
        %v5602 = vpop.xlane.xlu0 %5601
        %v5603 = vsel %vm1486, %v5535, 0.0
        %5604 = vadd.xlane.f32.xlu0 %v5603
        %v5605 = vpop.xlane.xlu0 %5604
        %v5606 = vsel %vm1486, %v5537, 0.0
        %5607 = vadd.xlane.f32.xlu0 %v5606
        %v5608 = vpop.xlane.xlu0 %5607
        %v5609 = vsel %vm1486, %v5539, 0.0
        %5610 = vadd.xlane.f32.xlu0 %v5609
        %v5611 = vpop.xlane.xlu0 %5610
        %v5612 = vsel %vm1486, %v5541, 0.0
        %5613 = vadd.xlane.f32.xlu0 %v5612
        %v5614 = vpop.xlane.xlu0 %5613
        %v5615 = vsel %vm1486, %v5543, 0.0
        %5616 = vadd.xlane.f32.xlu0 %v5615
        %v5617 = vpop.xlane.xlu0 %5616
        %v5618 = vsel %vm1486, %v5545, 0.0
        %5619 = vadd.xlane.f32.xlu0 %v5618
        %v5620 = vpop.xlane.xlu0 %5619
        %v5621 = vsel %vm1486, %v5547, 0.0
        %5622 = vadd.xlane.f32.xlu0 %v5621
        %v5623 = vpop.xlane.xlu0 %5622
        %v5624 = vsel %vm1486, %v5549, 0.0
        %5625 = vadd.xlane.f32.xlu0 %v5624
        %v5626 = vpop.xlane.xlu0 %5625
        %v5627 = vsel %vm1486, %v5551, 0.0
        %5628 = vadd.xlane.f32.xlu0 %v5627
        %v5629 = vpop.xlane.xlu0 %5628
        %v5630 = vsel %vm1486, %v5553, 0.0
        %5631 = vadd.xlane.f32.xlu0 %v5630
        %v5632 = vpop.xlane.xlu0 %5631
        %v5633 = vsel %vm1486, %v5555, 0.0
        %5634 = vadd.xlane.f32.xlu0 %v5633
        %v5635 = vpop.xlane.xlu0 %5634
        %v5636 = vsel %vm1486, %v5557, 0.0
        %5637 = vadd.xlane.f32.xlu0 %v5636
        %v5638 = vpop.xlane.xlu0 %5637
        %v5639 = vsel %vm1486, %v5559, 0.0
        %5640 = vadd.xlane.f32.xlu0 %v5639
        %v5641 = vpop.xlane.xlu0 %5640
        %v5642 = vsel %vm1486, %v5561, 0.0
        %5643 = vadd.xlane.f32.xlu0 %v5642
        %v5644 = vpop.xlane.xlu0 %5643
        %v5645 = vsel %vm1486, %v5563, 0.0
        %5646 = vadd.xlane.f32.xlu0 %v5645
        %v5647 = vpop.xlane.xlu0 %5646
        %v5648 = vsel %vm1486, %v5565, 0.0
        %5649 = vadd.xlane.f32.xlu0 %v5648
        %v5650 = vpop.xlane.xlu0 %5649
        %v5651 = vsel %vm1486, %v5567, 0.0
        %5652 = vadd.xlane.f32.xlu0 %v5651
        %v5653 = vpop.xlane.xlu0 %5652
        %v5654 = vsel %vm1486, %v5569, 0.0
        %5655 = vadd.xlane.f32.xlu0 %v5654
        %v5656 = vpop.xlane.xlu0 %5655
        %v5657 = vsel %vm1486, %v5571, 0.0
        %5658 = vadd.xlane.f32.xlu0 %v5657
        %v5659 = vpop.xlane.xlu0 %5658
        %v5660 = vsel %vm1486, %v5573, 0.0
        %5661 = vadd.xlane.f32.xlu0 %v5660
        %v5662 = vpop.xlane.xlu0 %5661
        %v5663 = vsel %vm1486, %v5575, 0.0
        %5664 = vadd.xlane.f32.xlu0 %v5663
        %v5665 = vpop.xlane.xlu0 %5664
        %v5666 = vsel %vm1486, %v5577, 0.0
        %5667 = vadd.xlane.f32.xlu0 %v5666
        %v5668 = vpop.xlane.xlu0 %5667
        %v5669 = vsel %vm1486, %v5579, 0.0
        %5670 = vadd.xlane.f32.xlu0 %v5669
        %v5671 = vpop.xlane.xlu0 %5670
        %v5672 = vsel %vm1486, %v5581, 0.0
        %5673 = vadd.xlane.f32.xlu0 %v5672
        %v5674 = vpop.xlane.xlu0 %5673
        %v5675 = vsel %vm1486, %v5583, 0.0
        %5676 = vadd.xlane.f32.xlu0 %v5675
        %v5677 = vpop.xlane.xlu0 %5676
        %v5678 = vsel %vm1486, %v5585, 0.0
        %5679 = vadd.xlane.f32.xlu0 %v5678
        %v5680 = vpop.xlane.xlu0 %5679
        %v5681 = vsel %vm1486, %v5587, 0.0
        %5682 = vadd.xlane.f32.xlu0 %v5681
        %v5683 = vpop.xlane.xlu0 %5682
        %v5684 = vrcp.pop %v5590
        %v5685 = vrcp.pop %v5593
        %v5686 = vrcp.pop %v5596
        %v5687 = vrcp.pop %v5599
        %v5688 = vrcp.pop %v5602
        %v5689 = vrcp.pop %v5605
        %v5690 = vrcp.pop %v5608
        %v5691 = vrcp.pop %v5611
        %v5692 = vrcp.pop %v5614
        %v5693 = vrcp.pop %v5617
        %v5694 = vrcp.pop %v5620
        %v5695 = vrcp.pop %v5623
        %v5696 = vrcp.pop %v5626
        %v5697 = vrcp.pop %v5629
        %v5698 = vrcp.pop %v5632
        %v5699 = vrcp.pop %v5635
        %v5700 = vrcp.pop %v5638
        %v5701 = vrcp.pop %v5641
        %v5702 = vrcp.pop %v5644
        %v5703 = vrcp.pop %v5647
        %v5704 = vrcp.pop %v5650
        %v5705 = vrcp.pop %v5653
        %v5706 = vrcp.pop %v5656
        %v5707 = vrcp.pop %v5659
        %v5708 = vrcp.pop %v5662
        %v5709 = vrcp.pop %v5665
        %v5710 = vrcp.pop %v5668
        %v5711 = vrcp.pop %v5671
        %v5712 = vrcp.pop %v5674
        %v5713 = vrcp.pop %v5677
        %v5714 = vrcp.pop %v5680
        %v5715 = vrcp.pop %v5683
        %v5716 = vmul.f32 %v5525, %v5684
        %v5717 = vmul.f32 %v5527, %v5685
        %v5718 = vmul.f32 %v5529, %v5686
        %v5719 = vmul.f32 %v5531, %v5687
        %v5720 = vmul.f32 %v5533, %v5688
        %v5721 = vmul.f32 %v5535, %v5689
        %v5722 = vmul.f32 %v5537, %v5690
        %v5723 = vmul.f32 %v5539, %v5691
        %v5724 = vmul.f32 %v5541, %v5692
        %v5725 = vmul.f32 %v5543, %v5693
        %v5726 = vmul.f32 %v5545, %v5694
        %v5727 = vmul.f32 %v5547, %v5695
        %v5728 = vmul.f32 %v5549, %v5696
        %v5729 = vmul.f32 %v5551, %v5697
        %v5730 = vmul.f32 %v5553, %v5698
        %v5731 = vmul.f32 %v5555, %v5699
        %v5732 = vmul.f32 %v5557, %v5700
        %v5733 = vmul.f32 %v5559, %v5701
        %v5734 = vmul.f32 %v5561, %v5702
        %v5735 = vmul.f32 %v5563, %v5703
        %v5736 = vmul.f32 %v5565, %v5704
        %v5737 = vmul.f32 %v5567, %v5705
        %v5738 = vmul.f32 %v5569, %v5706
        %v5739 = vmul.f32 %v5571, %v5707
        %v5740 = vmul.f32 %v5573, %v5708
        %v5741 = vmul.f32 %v5575, %v5709
        %v5742 = vmul.f32 %v5577, %v5710
        %v5743 = vmul.f32 %v5579, %v5711
        %v5744 = vmul.f32 %v5581, %v5712
        %v5745 = vmul.f32 %v5583, %v5713
        %v5746 = vmul.f32 %v5585, %v5714
        %v5747 = vmul.f32 %v5587, %v5715
        %v5748 = vpack.c.bf16 %v5717, %v5716
        %v5749 = vpack.c.bf16 %v5719, %v5718
        %v5750 = vpack.c.bf16 %v5721, %v5720
        %v5751 = vpack.c.bf16 %v5723, %v5722
        %v5752 = vpack.c.bf16 %v5725, %v5724
        %v5753 = vpack.c.bf16 %v5727, %v5726
        %v5754 = vpack.c.bf16 %v5729, %v5728
        %v5755 = vpack.c.bf16 %v5731, %v5730
        %v5756 = vpack.c.bf16 %v5733, %v5732
        %v5757 = vpack.c.bf16 %v5735, %v5734
        %v5758 = vpack.c.bf16 %v5737, %v5736
        %v5759 = vpack.c.bf16 %v5739, %v5738
        %v5760 = vpack.c.bf16 %v5741, %v5740
        %v5761 = vpack.c.bf16 %v5743, %v5742
        %v5762 = vpack.c.bf16 %v5745, %v5744
        %v5763 = vpack.c.bf16 %v5747, %v5746
        %5768 = vrot.lane.b32.xlu0 %v4919, 32
        %v5769 = vpop.permute.xlu0 %5768
        %5770 = vrot.lane.b32.xlu0 %v4920, 32
        %v5771 = vpop.permute.xlu0 %5770
        %5772 = vrot.lane.b32.xlu0 %v4921, 32
        %v5773 = vpop.permute.xlu0 %5772
        %5774 = vrot.lane.b32.xlu0 %v4922, 32
        %v5775 = vpop.permute.xlu0 %5774
        %v5781 = vsel %vm1486, %v5748, 0
        %v5784 = vsel %vm1486, %v5749, 0
        %v5787 = vsel %vm1486, %v5750, 0
        %v5790 = vsel %vm1486, %v5751, 0
        %5792 = vmatprep.subr.bf16.mxu0 0
        %5793 = vmatpush1.bf16.msra.mxu0 %v5769
        %5794 = vmatprep.subr.bf16.mxu0 0
        %5795 = vmatpush1.bf16.msra.mxu0 %v5771
        %5796 = vmatprep.subr.bf16.mxu0 0
        %5797 = vmatpush1.bf16.msra.mxu0 %v5773
        %5798 = vmatprep.subr.bf16.mxu0 0
        %5799 = vmatpush1.bf16.msra.mxu0 %v5775
        %5800 = vmatprep.subr.bf16.mxu0 0
        %5801 = vmatpush1.bf16.msra.mxu0 0
        %5802 = vmatprep.subr.bf16.mxu0 0
        %5803 = vmatpush1.bf16.msra.mxu0 0
        %5804 = vmatprep.subr.bf16.mxu0 0
        %5805 = vmatpush1.bf16.msra.mxu0 0
        %5806 = vmatprep.subr.bf16.mxu0 0
        %5807 = vmatpush1.bf16.msra.mxu0 0
        %5808 = vmatprep.subr.bf16.mxu0 0
        %5809 = vmatpush1.bf16.msra.mxu0 0
        %5810 = vmatprep.subr.bf16.mxu0 0
        %5811 = vmatpush1.bf16.msra.mxu0 0
        %5812 = vmatprep.subr.bf16.mxu0 0
        %5813 = vmatpush1.bf16.msra.mxu0 0
        %5814 = vmatprep.subr.bf16.mxu0 0
        %5815 = vmatpush1.bf16.msra.mxu0 0
        %5816 = vmatprep.subr.bf16.mxu0 0
        %5817 = vmatpush1.bf16.msra.mxu0 0
        %5818 = vmatprep.subr.bf16.mxu0 0
        %5819 = vmatpush1.bf16.msra.mxu0 0
        %5820 = vmatprep.subr.bf16.mxu0 0
        %5821 = vmatpush1.bf16.msra.mxu0 0
        %5822 = vmatprep.subr.bf16.mxu0 0
        %5823 = vmatpush1.bf16.msra.mxu0 0
        %5824 = vmatprep.mubr.bf16.mxu0 0
        %5825 = vmatmul.mubr.bf16.gmra.mrb[0].mxu0 %v5781
        %v5826 = vpop.f32.mrb[0].mxu0
        %v5827 = vadd.f32 0.0, %v5826
        %v5828 = vpop.f32.mrb[0].mxu0
        %v5829 = vpop.f32.mrb[0].mxu0
        %v5830 = vadd.f32 0.0, %v5829
        %v5831 = vpop.f32.mrb[0].mxu0
        %5832 = vmatprep.mubr.bf16.mxu0 0
        %5833 = vmatmul.mubr.bf16.gmra.mrb[0].mxu0 %v5784
        %v5834 = vpop.f32.mrb[0].mxu0
        %v5835 = vadd.f32 0.0, %v5834
        %v5836 = vpop.f32.mrb[0].mxu0
        %v5837 = vpop.f32.mrb[0].mxu0
        %v5838 = vadd.f32 0.0, %v5837
        %v5839 = vpop.f32.mrb[0].mxu0
        %5840 = vmatprep.mubr.bf16.mxu0 0
        %5841 = vmatmul.mubr.bf16.gmra.mrb[0].mxu0 %v5787
        %v5842 = vpop.f32.mrb[0].mxu0
        %v5843 = vadd.f32 0.0, %v5842
        %v5844 = vpop.f32.mrb[0].mxu0
        %v5845 = vpop.f32.mrb[0].mxu0
        %v5846 = vadd.f32 0.0, %v5845
        %v5847 = vpop.f32.mrb[0].mxu0
        %5848 = vmatprep.mubr.bf16.mxu0 0
        %5849 = vmatmul.mubr.bf16.gmra.mrb[0].mxu0 %v5790
        %v5850 = vpop.f32.mrb[0].mxu0
        %v5851 = vadd.f32 0.0, %v5850
        %v5852 = vpop.f32.mrb[0].mxu0
        %v5853 = vpop.f32.mrb[0].mxu0
        %v5854 = vadd.f32 0.0, %v5853
        %v5855 = vpop.f32.mrb[0].mxu0
        %5856 = vdwg.mxu0
        %5861 = vrot.lane.b32.xlu0 %v4923, 32
        %v5862 = vpop.permute.xlu0 %5861
        %5863 = vrot.lane.b32.xlu0 %v4924, 32
        %v5864 = vpop.permute.xlu0 %5863
        %5865 = vrot.lane.b32.xlu0 %v4925, 32
        %v5866 = vpop.permute.xlu0 %5865
        %5867 = vrot.lane.b32.xlu0 %v4926, 32
        %v5868 = vpop.permute.xlu0 %5867
        %v5874 = vsel %vm1486, %v5752, 0
        %v5877 = vsel %vm1486, %v5753, 0
        %v5880 = vsel %vm1486, %v5754, 0
        %v5883 = vsel %vm1486, %v5755, 0
        %5885 = vmatprep.subr.bf16.mxu0 0
        %5886 = vmatpush1.bf16.msra.mxu0 %v5862
        %5887 = vmatprep.subr.bf16.mxu0 0
        %5888 = vmatpush1.bf16.msra.mxu0 %v5864
        %5889 = vmatprep.subr.bf16.mxu0 0
        %5890 = vmatpush1.bf16.msra.mxu0 %v5866
        %5891 = vmatprep.subr.bf16.mxu0 0
        %5892 = vmatpush1.bf16.msra.mxu0 %v5868
        %5893 = vmatprep.subr.bf16.mxu0 0
        %5894 = vmatpush1.bf16.msra.mxu0 0
        %5895 = vmatprep.subr.bf16.mxu0 0
        %5896 = vmatpush1.bf16.msra.mxu0 0
        %5897 = vmatprep.subr.bf16.mxu0 0
        %5898 = vmatpush1.bf16.msra.mxu0 0
        %5899 = vmatprep.subr.bf16.mxu0 0
        %5900 = vmatpush1.bf16.msra.mxu0 0
        %5901 = vmatprep.subr.bf16.mxu0 0
        %5902 = vmatpush1.bf16.msra.mxu0 0
        %5903 = vmatprep.subr.bf16.mxu0 0
        %5904 = vmatpush1.bf16.msra.mxu0 0
        %5905 = vmatprep.subr.bf16.mxu0 0
        %5906 = vmatpush1.bf16.msra.mxu0 0
        %5907 = vmatprep.subr.bf16.mxu0 0
        %5908 = vmatpush1.bf16.msra.mxu0 0
        %5909 = vmatprep.subr.bf16.mxu0 0
        %5910 = vmatpush1.bf16.msra.mxu0 0
        %5911 = vmatprep.subr.bf16.mxu0 0
        %5912 = vmatpush1.bf16.msra.mxu0 0
        %5913 = vmatprep.subr.bf16.mxu0 0
        %5914 = vmatpush1.bf16.msra.mxu0 0
        %5915 = vmatprep.subr.bf16.mxu0 0
        %5916 = vmatpush1.bf16.msra.mxu0 0
        %5917 = vmatprep.mubr.bf16.mxu0 0
        %5918 = vmatmul.mubr.bf16.gmra.mrb[0].mxu0 %v5874
        %v5919 = vpop.f32.mrb[0].mxu0
        %v5920 = vadd.f32 0.0, %v5919
        %v5921 = vpop.f32.mrb[0].mxu0
        %v5922 = vpop.f32.mrb[0].mxu0
        %v5923 = vadd.f32 0.0, %v5922
        %v5924 = vpop.f32.mrb[0].mxu0
        %5925 = vmatprep.mubr.bf16.mxu0 0
        %5926 = vmatmul.mubr.bf16.gmra.mrb[0].mxu0 %v5877
        %v5927 = vpop.f32.mrb[0].mxu0
        %v5928 = vadd.f32 0.0, %v5927
        %v5929 = vpop.f32.mrb[0].mxu0
        %v5930 = vpop.f32.mrb[0].mxu0
        %v5931 = vadd.f32 0.0, %v5930
        %v5932 = vpop.f32.mrb[0].mxu0
        %5933 = vmatprep.mubr.bf16.mxu0 0
        %5934 = vmatmul.mubr.bf16.gmra.mrb[0].mxu0 %v5880
        %v5935 = vpop.f32.mrb[0].mxu0
        %v5936 = vadd.f32 0.0, %v5935
        %v5937 = vpop.f32.mrb[0].mxu0
        %v5938 = vpop.f32.mrb[0].mxu0
        %v5939 = vadd.f32 0.0, %v5938
        %v5940 = vpop.f32.mrb[0].mxu0
        %5941 = vmatprep.mubr.bf16.mxu0 0
        %5942 = vmatmul.mubr.bf16.gmra.mrb[0].mxu0 %v5883
        %v5943 = vpop.f32.mrb[0].mxu0
        %v5944 = vadd.f32 0.0, %v5943
        %v5945 = vpop.f32.mrb[0].mxu0
        %v5946 = vpop.f32.mrb[0].mxu0
        %v5947 = vadd.f32 0.0, %v5946
        %v5948 = vpop.f32.mrb[0].mxu0
        %5949 = vdwg.mxu0
        %5954 = vrot.lane.b32.xlu0 %v4927, 32
        %v5955 = vpop.permute.xlu0 %5954
        %5956 = vrot.lane.b32.xlu0 %v4928, 32
        %v5957 = vpop.permute.xlu0 %5956
        %5958 = vrot.lane.b32.xlu0 %v4929, 32
        %v5959 = vpop.permute.xlu0 %5958
        %5960 = vrot.lane.b32.xlu0 %v4930, 32
        %v5961 = vpop.permute.xlu0 %5960
        %v5967 = vsel %vm1486, %v5756, 0
        %v5970 = vsel %vm1486, %v5757, 0
        %v5973 = vsel %vm1486, %v5758, 0
        %v5976 = vsel %vm1486, %v5759, 0
        %5978 = vmatprep.subr.bf16.mxu0 0
        %5979 = vmatpush1.bf16.msra.mxu0 %v5955
        %5980 = vmatprep.subr.bf16.mxu0 0
        %5981 = vmatpush1.bf16.msra.mxu0 %v5957
        %5982 = vmatprep.subr.bf16.mxu0 0
        %5983 = vmatpush1.bf16.msra.mxu0 %v5959
        %5984 = vmatprep.subr.bf16.mxu0 0
        %5985 = vmatpush1.bf16.msra.mxu0 %v5961
        %5986 = vmatprep.subr.bf16.mxu0 0
        %5987 = vmatpush1.bf16.msra.mxu0 0
        %5988 = vmatprep.subr.bf16.mxu0 0
        %5989 = vmatpush1.bf16.msra.mxu0 0
        %5990 = vmatprep.subr.bf16.mxu0 0
        %5991 = vmatpush1.bf16.msra.mxu0 0
        %5992 = vmatprep.subr.bf16.mxu0 0
        %5993 = vmatpush1.bf16.msra.mxu0 0
        %5994 = vmatprep.subr.bf16.mxu0 0
        %5995 = vmatpush1.bf16.msra.mxu0 0
        %5996 = vmatprep.subr.bf16.mxu0 0
        %5997 = vmatpush1.bf16.msra.mxu0 0
        %5998 = vmatprep.subr.bf16.mxu0 0
        %5999 = vmatpush1.bf16.msra.mxu0 0
        %6000 = vmatprep.subr.bf16.mxu0 0
        %6001 = vmatpush1.bf16.msra.mxu0 0
        %6002 = vmatprep.subr.bf16.mxu0 0
        %6003 = vmatpush1.bf16.msra.mxu0 0
        %6004 = vmatprep.subr.bf16.mxu0 0
        %6005 = vmatpush1.bf16.msra.mxu0 0
        %6006 = vmatprep.subr.bf16.mxu0 0
        %6007 = vmatpush1.bf16.msra.mxu0 0
        %6008 = vmatprep.subr.bf16.mxu0 0
        %6009 = vmatpush1.bf16.msra.mxu0 0
        %6010 = vmatprep.mubr.bf16.mxu0 0
        %6011 = vmatmul.mubr.bf16.gmra.mrb[0].mxu0 %v5967
        %v6012 = vpop.f32.mrb[0].mxu0
        %v6013 = vadd.f32 0.0, %v6012
        %v6014 = vpop.f32.mrb[0].mxu0
        %v6015 = vpop.f32.mrb[0].mxu0
        %v6016 = vadd.f32 0.0, %v6015
        %v6017 = vpop.f32.mrb[0].mxu0
        %6018 = vmatprep.mubr.bf16.mxu0 0
        %6019 = vmatmul.mubr.bf16.gmra.mrb[0].mxu0 %v5970
        %v6020 = vpop.f32.mrb[0].mxu0
        %v6021 = vadd.f32 0.0, %v6020
        %v6022 = vpop.f32.mrb[0].mxu0
        %v6023 = vpop.f32.mrb[0].mxu0
        %v6024 = vadd.f32 0.0, %v6023
        %v6025 = vpop.f32.mrb[0].mxu0
        %6026 = vmatprep.mubr.bf16.mxu0 0
        %6027 = vmatmul.mubr.bf16.gmra.mrb[0].mxu0 %v5973
        %v6028 = vpop.f32.mrb[0].mxu0
        %v6029 = vadd.f32 0.0, %v6028
        %v6030 = vpop.f32.mrb[0].mxu0
        %v6031 = vpop.f32.mrb[0].mxu0
        %v6032 = vadd.f32 0.0, %v6031
        %v6033 = vpop.f32.mrb[0].mxu0
        %6034 = vmatprep.mubr.bf16.mxu0 0
        %6035 = vmatmul.mubr.bf16.gmra.mrb[0].mxu0 %v5976
        %v6036 = vpop.f32.mrb[0].mxu0
        %v6037 = vadd.f32 0.0, %v6036
        %v6038 = vpop.f32.mrb[0].mxu0
        %v6039 = vpop.f32.mrb[0].mxu0
        %v6040 = vadd.f32 0.0, %v6039
        %v6041 = vpop.f32.mrb[0].mxu0
        %6042 = vdwg.mxu0
        %6047 = vrot.lane.b32.xlu0 %v4931, 32
        %v6048 = vpop.permute.xlu0 %6047
        %6049 = vrot.lane.b32.xlu0 %v4932, 32
        %v6050 = vpop.permute.xlu0 %6049
        %6051 = vrot.lane.b32.xlu0 %v4933, 32
        %v6052 = vpop.permute.xlu0 %6051
        %6053 = vrot.lane.b32.xlu0 %v4934, 32
        %v6054 = vpop.permute.xlu0 %6053
        %v6060 = vsel %vm1486, %v5760, 0
        %v6063 = vsel %vm1486, %v5761, 0
        %v6066 = vsel %vm1486, %v5762, 0
        %v6069 = vsel %vm1486, %v5763, 0
        %6071 = vmatprep.subr.bf16.mxu0 0
        %6072 = vmatpush1.bf16.msra.mxu0 %v6048
        %6073 = vmatprep.subr.bf16.mxu0 0
        %6074 = vmatpush1.bf16.msra.mxu0 %v6050
        %6075 = vmatprep.subr.bf16.mxu0 0
        %6076 = vmatpush1.bf16.msra.mxu0 %v6052
        %6077 = vmatprep.subr.bf16.mxu0 0
        %6078 = vmatpush1.bf16.msra.mxu0 %v6054
        %6079 = vmatprep.subr.bf16.mxu0 0
        %6080 = vmatpush1.bf16.msra.mxu0 0
        %6081 = vmatprep.subr.bf16.mxu0 0
        %6082 = vmatpush1.bf16.msra.mxu0 0
        %6083 = vmatprep.subr.bf16.mxu0 0
        %6084 = vmatpush1.bf16.msra.mxu0 0
        %6085 = vmatprep.subr.bf16.mxu0 0
        %6086 = vmatpush1.bf16.msra.mxu0 0
        %6087 = vmatprep.subr.bf16.mxu0 0
        %6088 = vmatpush1.bf16.msra.mxu0 0
        %6089 = vmatprep.subr.bf16.mxu0 0
        %6090 = vmatpush1.bf16.msra.mxu0 0
        %6091 = vmatprep.subr.bf16.mxu0 0
        %6092 = vmatpush1.bf16.msra.mxu0 0
        %6093 = vmatprep.subr.bf16.mxu0 0
        %6094 = vmatpush1.bf16.msra.mxu0 0
        %6095 = vmatprep.subr.bf16.mxu0 0
        %6096 = vmatpush1.bf16.msra.mxu0 0
        %6097 = vmatprep.subr.bf16.mxu0 0
        %6098 = vmatpush1.bf16.msra.mxu0 0
        %6099 = vmatprep.subr.bf16.mxu0 0
        %6100 = vmatpush1.bf16.msra.mxu0 0
        %6101 = vmatprep.subr.bf16.mxu0 0
        %6102 = vmatpush1.bf16.msra.mxu0 0
        %6103 = vmatprep.mubr.bf16.mxu0 0
        %6104 = vmatmul.mubr.bf16.gmra.mrb[0].mxu0 %v6060
        %v6105 = vpop.f32.mrb[0].mxu0
        %v6106 = vadd.f32 0.0, %v6105
        %v6107 = vpop.f32.mrb[0].mxu0
        %v6108 = vpop.f32.mrb[0].mxu0
        %v6109 = vadd.f32 0.0, %v6108
        %v6110 = vpop.f32.mrb[0].mxu0
        %6111 = vmatprep.mubr.bf16.mxu0 0
        %6112 = vmatmul.mubr.bf16.gmra.mrb[0].mxu0 %v6063
        %v6113 = vpop.f32.mrb[0].mxu0
        %v6114 = vadd.f32 0.0, %v6113
        %v6115 = vpop.f32.mrb[0].mxu0
        %v6116 = vpop.f32.mrb[0].mxu0
        %v6117 = vadd.f32 0.0, %v6116
        %v6118 = vpop.f32.mrb[0].mxu0
        %6119 = vmatprep.mubr.bf16.mxu0 0
        %6120 = vmatmul.mubr.bf16.gmra.mrb[0].mxu0 %v6066
        %v6121 = vpop.f32.mrb[0].mxu0
        %v6122 = vadd.f32 0.0, %v6121
        %v6123 = vpop.f32.mrb[0].mxu0
        %v6124 = vpop.f32.mrb[0].mxu0
        %v6125 = vadd.f32 0.0, %v6124
        %v6126 = vpop.f32.mrb[0].mxu0
        %6127 = vmatprep.mubr.bf16.mxu0 0
        %6128 = vmatmul.mubr.bf16.gmra.mrb[0].mxu0 %v6069
        %v6129 = vpop.f32.mrb[0].mxu0
        %v6130 = vadd.f32 0.0, %v6129
        %v6131 = vpop.f32.mrb[0].mxu0
        %v6132 = vpop.f32.mrb[0].mxu0
        %v6133 = vadd.f32 0.0, %v6132
        %v6134 = vpop.f32.mrb[0].mxu0
        %6135 = vdwg.mxu0
        %v6136 = vpack.c.bf16 %v5830, %v5827
        %v6137 = vpack.c.bf16 %v5838, %v5835
        %v6138 = vpack.c.bf16 %v5846, %v5843
        %v6139 = vpack.c.bf16 %v5854, %v5851
        %v6140 = vpack.c.bf16 %v5923, %v5920
        %v6141 = vpack.c.bf16 %v5931, %v5928
        %v6142 = vpack.c.bf16 %v5939, %v5936
        %v6143 = vpack.c.bf16 %v5947, %v5944
        %v6144 = vpack.c.bf16 %v6016, %v6013
        %v6145 = vpack.c.bf16 %v6024, %v6021
        %v6146 = vpack.c.bf16 %v6032, %v6029
        %v6147 = vpack.c.bf16 %v6040, %v6037
        %v6148 = vpack.c.bf16 %v6109, %v6106
        %v6149 = vpack.c.bf16 %v6117, %v6114
        %v6150 = vpack.c.bf16 %v6125, %v6122
        %v6151 = vpack.c.bf16 %v6133, %v6130
        %6168 = vrot.lane.b32.xlu0 %v6136, 96
        %v6169 = vpop.permute.xlu0 %6168
        %6170 = vrot.lane.b32.xlu0 %v6137, 96
        %v6171 = vpop.permute.xlu0 %6170
        %6172 = vrot.lane.b32.xlu0 %v6138, 96
        %v6173 = vpop.permute.xlu0 %6172
        %6174 = vrot.lane.b32.xlu0 %v6139, 96
        %v6175 = vpop.permute.xlu0 %6174
        %6176 = vrot.lane.b32.xlu0 %v6140, 96
        %v6177 = vpop.permute.xlu0 %6176
        %6178 = vrot.lane.b32.xlu0 %v6141, 96
        %v6179 = vpop.permute.xlu0 %6178
        %6180 = vrot.lane.b32.xlu0 %v6142, 96
        %v6181 = vpop.permute.xlu0 %6180
        %6182 = vrot.lane.b32.xlu0 %v6143, 96
        %v6183 = vpop.permute.xlu0 %6182
        %6184 = vrot.lane.b32.xlu0 %v6144, 96
        %v6185 = vpop.permute.xlu0 %6184
        %6186 = vrot.lane.b32.xlu0 %v6145, 96
        %v6187 = vpop.permute.xlu0 %6186
        %6188 = vrot.lane.b32.xlu0 %v6146, 96
        %v6189 = vpop.permute.xlu0 %6188
        %6190 = vrot.lane.b32.xlu0 %v6147, 96
        %v6191 = vpop.permute.xlu0 %6190
        %6192 = vrot.lane.b32.xlu0 %v6148, 96
        %v6193 = vpop.permute.xlu0 %6192
        %6194 = vrot.lane.b32.xlu0 %v6149, 96
        %v6195 = vpop.permute.xlu0 %6194
        %6196 = vrot.lane.b32.xlu0 %v6150, 96
        %v6197 = vpop.permute.xlu0 %6196
        %6198 = vrot.lane.b32.xlu0 %v6151, 96
        %v6199 = vpop.permute.xlu0 %6198
        %vm6216 = vcmask 1048320
        %6217 = vst.msk [vmem:[#allocation3] sm:$0xff] %vm6216, %v6169
        %6218 = vst.msk [vmem:[#allocation3 + $0x8] sm:$0xff] %vm6216, %v6171
        %6219 = vst.msk [vmem:[#allocation3 + $0x10] sm:$0xff] %vm6216, %v6173
        %6220 = vst.msk [vmem:[#allocation3 + $0x18] sm:$0xff] %vm6216, %v6175
        %6221 = vst.msk [vmem:[#allocation3 + $0x20] sm:$0xff] %vm6216, %v6177
        %6222 = vst.msk [vmem:[#allocation3 + $0x28] sm:$0xff] %vm6216, %v6179
        %6223 = vst.msk [vmem:[#allocation3 + $0x30] sm:$0xff] %vm6216, %v6181
        %6224 = vst.msk [vmem:[#allocation3 + $0x38] sm:$0xff] %vm6216, %v6183
        %6225 = vst.msk [vmem:[#allocation3 + $0x40] sm:$0xff] %vm6216, %v6185
        %6226 = vst.msk [vmem:[#allocation3 + $0x48] sm:$0xff] %vm6216, %v6187
        %6227 = vst.msk [vmem:[#allocation3 + $0x50] sm:$0xff] %vm6216, %v6189
        %6228 = vst.msk [vmem:[#allocation3 + $0x58] sm:$0xff] %vm6216, %v6191
        %6229 = vst.msk [vmem:[#allocation3 + $0x60] sm:$0xff] %vm6216, %v6193
        %6230 = vst.msk [vmem:[#allocation3 + $0x68] sm:$0xff] %vm6216, %v6195
        %6231 = vst.msk [vmem:[#allocation3 + $0x70] sm:$0xff] %vm6216, %v6197
        %6232 = vst.msk [vmem:[#allocation3 + $0x78] sm:$0xff] %vm6216, %v6199
        %v6233 = vld [vmem:[#allocation3] sm:$0xff]
        %v6234 = vld [vmem:[#allocation3 + $0x8] sm:$0xff]
        %v6235 = vld [vmem:[#allocation3 + $0x10] sm:$0xff]
        %v6236 = vld [vmem:[#allocation3 + $0x18] sm:$0xff]
        %v6237 = vld [vmem:[#allocation3 + $0x20] sm:$0xff]
        %v6238 = vld [vmem:[#allocation3 + $0x28] sm:$0xff]
        %v6239 = vld [vmem:[#allocation3 + $0x30] sm:$0xff]
        %v6240 = vld [vmem:[#allocation3 + $0x38] sm:$0xff]
        %v6241 = vld [vmem:[#allocation3 + $0x40] sm:$0xff]
        %v6242 = vld [vmem:[#allocation3 + $0x48] sm:$0xff]
        %v6243 = vld [vmem:[#allocation3 + $0x50] sm:$0xff]
        %v6244 = vld [vmem:[#allocation3 + $0x58] sm:$0xff]
        %v6245 = vld [vmem:[#allocation3 + $0x60] sm:$0xff]
        %v6246 = vld [vmem:[#allocation3 + $0x68] sm:$0xff]
        %v6247 = vld [vmem:[#allocation3 + $0x70] sm:$0xff]
        %v6248 = vld [vmem:[#allocation3 + $0x78] sm:$0xff]
        %v6249 = vld [vmem:[#allocation10] sm:$0xf]
        %v6250 = vld [vmem:[#allocation10 + $0x4] sm:$0xf]
        %v6251 = vld [vmem:[#allocation10 + $0x8] sm:$0xf]
        %v6252 = vld [vmem:[#allocation10 + $0xc] sm:$0xf]
        %v6253 = vld [vmem:[#allocation10 + $0x10] sm:$0xf]
        %v6254 = vld [vmem:[#allocation10 + $0x14] sm:$0xf]
        %v6255 = vld [vmem:[#allocation10 + $0x18] sm:$0xf]
        %v6256 = vld [vmem:[#allocation10 + $0x1c] sm:$0xf]
        %v6257 = vld [vmem:[#allocation10 + $0x20] sm:$0xf]
        %v6258 = vld [vmem:[#allocation10 + $0x24] sm:$0xf]
        %v6259 = vld [vmem:[#allocation10 + $0x28] sm:$0xf]
        %v6260 = vld [vmem:[#allocation10 + $0x2c] sm:$0xf]
        %v6261 = vld [vmem:[#allocation10 + $0x30] sm:$0xf]
        %v6262 = vld [vmem:[#allocation10 + $0x34] sm:$0xf]
        %v6263 = vld [vmem:[#allocation10 + $0x38] sm:$0xf]
        %v6264 = vld [vmem:[#allocation10 + $0x3c] sm:$0xf]
        %v6265 = vld [vmem:[%s5] sm:$0x1]
        %v6267 = vlaneseq
        %v6268 = vshrl.u32 %v6267, 7
        %v6269 = vsub.s32 0, %v6268
        %v6270 = vrot.slane %v6265, %v6269
        %v6288 = vunpack.c.l.b16 %v6249
        %v6289 = vunpack.c.l.b16 %v6250
        %v6290 = vunpack.c.l.b16 %v6251
        %v6291 = vunpack.c.l.b16 %v6252
        %v6292 = vunpack.c.l.b16 %v6253
        %v6293 = vunpack.c.l.b16 %v6254
        %v6294 = vunpack.c.l.b16 %v6255
        %v6295 = vunpack.c.l.b16 %v6256
        %v6296 = vunpack.c.l.b16 %v6257
        %v6297 = vunpack.c.l.b16 %v6258
        %v6298 = vunpack.c.l.b16 %v6259
        %v6299 = vunpack.c.l.b16 %v6260
        %v6300 = vunpack.c.l.b16 %v6261
        %v6301 = vunpack.c.l.b16 %v6262
        %v6302 = vunpack.c.l.b16 %v6263
        %v6303 = vunpack.c.l.b16 %v6264
        %v6304 = vpack.c.b16 %v6289, %v6288
        %v6305 = vpack.c.b16 %v6291, %v6290
        %v6306 = vpack.c.b16 %v6293, %v6292
        %v6307 = vpack.c.b16 %v6295, %v6294
        %v6308 = vpack.c.b16 %v6297, %v6296
        %v6309 = vpack.c.b16 %v6299, %v6298
        %v6310 = vpack.c.b16 %v6301, %v6300
        %v6311 = vpack.c.b16 %v6303, %v6302
        %6320 = vmatprep.subr.bf16.mxu0 0
        %6321 = vmatpush1.bf16.msra.mxu0 %v6304
        %6322 = vmatprep.subr.bf16.mxu0 0
        %6323 = vmatpush1.bf16.msra.mxu0 %v6305
        %6324 = vmatprep.subr.bf16.mxu0 0
        %6325 = vmatpush1.bf16.msra.mxu0 %v6306
        %6326 = vmatprep.subr.bf16.mxu0 0
        %6327 = vmatpush1.bf16.msra.mxu0 %v6307
        %6328 = vmatprep.subr.bf16.mxu0 0
        %6329 = vmatpush1.bf16.msra.mxu0 %v6308
        %6330 = vmatprep.subr.bf16.mxu0 0
        %6331 = vmatpush1.bf16.msra.mxu0 %v6309
        %6332 = vmatprep.subr.bf16.mxu0 0
        %6333 = vmatpush1.bf16.msra.mxu0 %v6310
        %6334 = vmatprep.subr.bf16.mxu0 0
        %6335 = vmatpush1.bf16.msra.mxu0 %v6311
        %6336 = vmatprep.subr.bf16.mxu0 0
        %6337 = vmatpush1.bf16.msra.mxu0 0
        %6338 = vmatprep.subr.bf16.mxu0 0
        %6339 = vmatpush1.bf16.msra.mxu0 0
        %6340 = vmatprep.subr.bf16.mxu0 0
        %6341 = vmatpush1.bf16.msra.mxu0 0
        %6342 = vmatprep.subr.bf16.mxu0 0
        %6343 = vmatpush1.bf16.msra.mxu0 0
        %6344 = vmatprep.subr.bf16.mxu0 0
        %6345 = vmatpush1.bf16.msra.mxu0 0
        %6346 = vmatprep.subr.bf16.mxu0 0
        %6347 = vmatpush1.bf16.msra.mxu0 0
        %6348 = vmatprep.subr.bf16.mxu0 0
        %6349 = vmatpush1.bf16.msra.mxu0 0
        %6350 = vmatprep.subr.bf16.mxu0 0
        %6351 = vmatpush1.bf16.msra.mxu0 0
        %6352 = vmatprep.mubr.bf16.mxu0 0
        %6353 = vmatmul.mubr.bf16.gmra.mrb[0].mxu0 %v6233
        %v6354 = vpop.f32.mrb[0].mxu0
        %v6355 = vadd.f32 %v6270, %v6354
        %v6356 = vpop.f32.mrb[0].mxu0
        %v6357 = vpop.f32.mrb[0].mxu0
        %v6358 = vadd.f32 %v6270, %v6357
        %v6359 = vpop.f32.mrb[0].mxu0
        %6360 = vmatprep.mubr.bf16.mxu0 0
        %6361 = vmatmul.mubr.bf16.gmra.mrb[0].mxu0 %v6234
        %v6362 = vpop.f32.mrb[0].mxu0
        %v6363 = vadd.f32 %v6270, %v6362
        %v6364 = vpop.f32.mrb[0].mxu0
        %v6365 = vpop.f32.mrb[0].mxu0
        %v6366 = vadd.f32 %v6270, %v6365
        %v6367 = vpop.f32.mrb[0].mxu0
        %6368 = vmatprep.mubr.bf16.mxu0 0
        %6369 = vmatmul.mubr.bf16.gmra.mrb[0].mxu0 %v6235
        %v6370 = vpop.f32.mrb[0].mxu0
        %v6371 = vadd.f32 %v6270, %v6370
        %v6372 = vpop.f32.mrb[0].mxu0
        %v6373 = vpop.f32.mrb[0].mxu0
        %v6374 = vadd.f32 %v6270, %v6373
        %v6375 = vpop.f32.mrb[0].mxu0
        %6376 = vmatprep.mubr.bf16.mxu0 0
        %6377 = vmatmul.mubr.bf16.gmra.mrb[0].mxu0 %v6236
        %v6378 = vpop.f32.mrb[0].mxu0
        %v6379 = vadd.f32 %v6270, %v6378
        %v6380 = vpop.f32.mrb[0].mxu0
        %v6381 = vpop.f32.mrb[0].mxu0
        %v6382 = vadd.f32 %v6270, %v6381
        %v6383 = vpop.f32.mrb[0].mxu0
        %6384 = vmatprep.mubr.bf16.mxu0 0
        %6385 = vmatmul.mubr.bf16.gmra.mrb[0].mxu0 %v6237
        %v6386 = vpop.f32.mrb[0].mxu0
        %v6387 = vadd.f32 %v6270, %v6386
        %v6388 = vpop.f32.mrb[0].mxu0
        %v6389 = vpop.f32.mrb[0].mxu0
        %v6390 = vadd.f32 %v6270, %v6389
        %v6391 = vpop.f32.mrb[0].mxu0
        %6392 = vmatprep.mubr.bf16.mxu0 0
        %6393 = vmatmul.mubr.bf16.gmra.mrb[0].mxu0 %v6238
        %v6394 = vpop.f32.mrb[0].mxu0
        %v6395 = vadd.f32 %v6270, %v6394
        %v6396 = vpop.f32.mrb[0].mxu0
        %v6397 = vpop.f32.mrb[0].mxu0
        %v6398 = vadd.f32 %v6270, %v6397
        %v6399 = vpop.f32.mrb[0].mxu0
        %6400 = vmatprep.mubr.bf16.mxu0 0
        %6401 = vmatmul.mubr.bf16.gmra.mrb[0].mxu0 %v6239
        %v6402 = vpop.f32.mrb[0].mxu0
        %v6403 = vadd.f32 %v6270, %v6402
        %v6404 = vpop.f32.mrb[0].mxu0
        %v6405 = vpop.f32.mrb[0].mxu0
        %v6406 = vadd.f32 %v6270, %v6405
        %v6407 = vpop.f32.mrb[0].mxu0
        %6408 = vmatprep.mubr.bf16.mxu0 0
        %6409 = vmatmul.mubr.bf16.gmra.mrb[0].mxu0 %v6240
        %v6410 = vpop.f32.mrb[0].mxu0
        %v6411 = vadd.f32 %v6270, %v6410
        %v6412 = vpop.f32.mrb[0].mxu0
        %v6413 = vpop.f32.mrb[0].mxu0
        %v6414 = vadd.f32 %v6270, %v6413
        %v6415 = vpop.f32.mrb[0].mxu0
        %6416 = vmatprep.mubr.bf16.mxu0 0
        %6417 = vmatmul.mubr.bf16.gmra.mrb[0].mxu0 %v6241
        %v6418 = vpop.f32.mrb[0].mxu0
        %v6419 = vadd.f32 %v6270, %v6418
        %v6420 = vpop.f32.mrb[0].mxu0
        %v6421 = vpop.f32.mrb[0].mxu0
        %v6422 = vadd.f32 %v6270, %v6421
        %v6423 = vpop.f32.mrb[0].mxu0
        %6424 = vmatprep.mubr.bf16.mxu0 0
        %6425 = vmatmul.mubr.bf16.gmra.mrb[0].mxu0 %v6242
        %v6426 = vpop.f32.mrb[0].mxu0
        %v6427 = vadd.f32 %v6270, %v6426
        %v6428 = vpop.f32.mrb[0].mxu0
        %v6429 = vpop.f32.mrb[0].mxu0
        %v6430 = vadd.f32 %v6270, %v6429
        %v6431 = vpop.f32.mrb[0].mxu0
        %6432 = vmatprep.mubr.bf16.mxu0 0
        %6433 = vmatmul.mubr.bf16.gmra.mrb[0].mxu0 %v6243
        %v6434 = vpop.f32.mrb[0].mxu0
        %v6435 = vadd.f32 %v6270, %v6434
        %v6436 = vpop.f32.mrb[0].mxu0
        %v6437 = vpop.f32.mrb[0].mxu0
        %v6438 = vadd.f32 %v6270, %v6437
        %v6439 = vpop.f32.mrb[0].mxu0
        %6440 = vmatprep.mubr.bf16.mxu0 0
        %6441 = vmatmul.mubr.bf16.gmra.mrb[0].mxu0 %v6244
        %v6442 = vpop.f32.mrb[0].mxu0
        %v6443 = vadd.f32 %v6270, %v6442
        %v6444 = vpop.f32.mrb[0].mxu0
        %v6445 = vpop.f32.mrb[0].mxu0
        %v6446 = vadd.f32 %v6270, %v6445
        %v6447 = vpop.f32.mrb[0].mxu0
        %6448 = vmatprep.mubr.bf16.mxu0 0
        %6449 = vmatmul.mubr.bf16.gmra.mrb[0].mxu0 %v6245
        %v6450 = vpop.f32.mrb[0].mxu0
        %v6451 = vadd.f32 %v6270, %v6450
        %v6452 = vpop.f32.mrb[0].mxu0
        %v6453 = vpop.f32.mrb[0].mxu0
        %v6454 = vadd.f32 %v6270, %v6453
        %v6455 = vpop.f32.mrb[0].mxu0
        %6456 = vmatprep.mubr.bf16.mxu0 0
        %6457 = vmatmul.mubr.bf16.gmra.mrb[0].mxu0 %v6246
        %v6458 = vpop.f32.mrb[0].mxu0
        %v6459 = vadd.f32 %v6270, %v6458
        %v6460 = vpop.f32.mrb[0].mxu0
        %v6461 = vpop.f32.mrb[0].mxu0
        %v6462 = vadd.f32 %v6270, %v6461
        %v6463 = vpop.f32.mrb[0].mxu0
        %6464 = vmatprep.mubr.bf16.mxu0 0
        %6465 = vmatmul.mubr.bf16.gmra.mrb[0].mxu0 %v6247
        %v6466 = vpop.f32.mrb[0].mxu0
        %v6467 = vadd.f32 %v6270, %v6466
        %v6468 = vpop.f32.mrb[0].mxu0
        %v6469 = vpop.f32.mrb[0].mxu0
        %v6470 = vadd.f32 %v6270, %v6469
        %v6471 = vpop.f32.mrb[0].mxu0
        %6472 = vmatprep.mubr.bf16.mxu0 0
        %6473 = vmatmul.mubr.bf16.gmra.mrb[0].mxu0 %v6248
        %v6474 = vpop.f32.mrb[0].mxu0
        %v6475 = vadd.f32 %v6270, %v6474
        %v6476 = vpop.f32.mrb[0].mxu0
        %v6477 = vpop.f32.mrb[0].mxu0
        %v6478 = vadd.f32 %v6270, %v6477
        %v6479 = vpop.f32.mrb[0].mxu0
        %6480 = vdwg.mxu0
        %6481 = vst [vmem:[%s314] sm:$0xff] %v6355
        %6482 = vst [vmem:[%s314 + $0x8] sm:$0xff] %v6358
        %6483 = vst [vmem:[%s314 + $0x10] sm:$0xff] %v6363
        %6484 = vst [vmem:[%s314 + $0x18] sm:$0xff] %v6366
        %6485 = vst [vmem:[%s314 + $0x20] sm:$0xff] %v6371
        %6486 = vst [vmem:[%s314 + $0x28] sm:$0xff] %v6374
        %6487 = vst [vmem:[%s314 + $0x30] sm:$0xff] %v6379
        %6488 = vst [vmem:[%s314 + $0x38] sm:$0xff] %v6382
        %6489 = vst [vmem:[%s314 + $0x40] sm:$0xff] %v6387
        %6490 = vst [vmem:[%s314 + $0x48] sm:$0xff] %v6390
        %6491 = vst [vmem:[%s314 + $0x50] sm:$0xff] %v6395
        %6492 = vst [vmem:[%s314 + $0x58] sm:$0xff] %v6398
        %6493 = vst [vmem:[%s314 + $0x60] sm:$0xff] %v6403
        %6494 = vst [vmem:[%s314 + $0x68] sm:$0xff] %v6406
        %6495 = vst [vmem:[%s314 + $0x70] sm:$0xff] %v6411
        %6496 = vst [vmem:[%s314 + $0x78] sm:$0xff] %v6414
        %6497 = vst [vmem:[%s314 + $0x80] sm:$0xff] %v6419
        %6498 = vst [vmem:[%s314 + $0x88] sm:$0xff] %v6422
        %6499 = vst [vmem:[%s314 + $0x90] sm:$0xff] %v6427
        %6500 = vst [vmem:[%s314 + $0x98] sm:$0xff] %v6430
        %6501 = vst [vmem:[%s314 + $0xa0] sm:$0xff] %v6435
        %6502 = vst [vmem:[%s314 + $0xa8] sm:$0xff] %v6438
        %6503 = vst [vmem:[%s314 + $0xb0] sm:$0xff] %v6443
        %6504 = vst [vmem:[%s314 + $0xb8] sm:$0xff] %v6446
        %6505 = vst [vmem:[%s314 + $0xc0] sm:$0xff] %v6451
        %6506 = vst [vmem:[%s314 + $0xc8] sm:$0xff] %v6454
        %6507 = vst [vmem:[%s314 + $0xd0] sm:$0xff] %v6459
        %6508 = vst [vmem:[%s314 + $0xd8] sm:$0xff] %v6462
        %6509 = vst [vmem:[%s314 + $0xe0] sm:$0xff] %v6467
        %6510 = vst [vmem:[%s314 + $0xe8] sm:$0xff] %v6470
        %6511 = vst [vmem:[%s314 + $0xf0] sm:$0xff] %v6475
        %6512 = vst [vmem:[%s314 + $0xf8] sm:$0xff] %v6478
        %s6513 = sand.u32 %s164, 1
        %s6514 = scalar_lea.sflag [#allocation6], %s6513
        %s6515 = sand.u32 %s164, 1
        %s6516 = smul.addr %s6515, 256
        %s6517 = scalar_lea.vmem [#allocation12], %s6516
        // Predicated region
        $region61: #{tpu_custom_call.1} parent=43 // pred_check
          %p6518 = pneg %p174
        $region62: #{tpu_custom_call.1} parent=43 // pred_check_branch
          %6520 = sbr.rel (%p6518) target = $region64
        $region63: #{tpu_custom_call.1} parent=43 // pred_region
          %s6521 = smul.u32 4, %s25
          %s6523 = ssub.s32 4096, 4096
          %6524 = vsyncadd %s6514, %s6523
          %s6525 = smul.addr %s6521, 8
          %s6526 = smul.addr %s6525, 128
          %s6527 = scalar_lea.hbm %s6, %s6526
          %s6528 = sshll.u32 %s6517, 4
          %s6529 = int_to_ptr.vmem [resolvable:$true] %s6528
          %6534 = dma.vmem_to_hbm [thread:$0]  %s6529, 4096, %s6527, %s6514, 128, 128, 8
        $region64: #{tpu_custom_call.1} parent=43 // pred_fallthru
          _
      $region44: #{tpu_custom_call.1} parent=5 // pred_fallthru
        _
      %p6535 = scmp.le.s32.totalorder 2, %s20
      // Predicated region
      $region65: #{tpu_custom_call.1} parent=5 // pred_check
        %p6536 = pneg %p6535
      $region66: #{tpu_custom_call.1} parent=5 // pred_check_branch
        %6538 = sbr.rel (%p6536) target = $region68
      $region67: #{tpu_custom_call.1} parent=5 // pred_region
        %s6539 = ssub.s32 %s20, 2
        // Predicated region
        $region69: #{tpu_custom_call.1} parent=67 // pred_check
          %p6540 = pneg %p180
        $region70: #{tpu_custom_call.1} parent=67 // pred_check_branch
          %6542 = sbr.rel (%p6540) target = $region72
        $region71: #{tpu_custom_call.1} parent=67 // pred_region
          %s6543 = sand.u32 %s165, 1
          %s6544 = scalar_lea.sflag [#allocation6], %s6543
          %s6545 = sand.u32 %s165, 1
          %s6546 = smul.addr %s6545, 256
          %s6547 = scalar_lea.vmem [#allocation12], %s6546
          %6548 = dma.done %s6544, 4096
        $region72: #{tpu_custom_call.1} parent=67 // pred_fallthru
          _
      $region68: #{tpu_custom_call.1} parent=5 // pred_fallthru
        _
    $region6: #{tpu_custom_call.1} parent=1 // loop_footer
      %s24 = sadd.s32 1, %s20
    $region7: #{tpu_custom_call.1} parent=1 // loop_footer_branch
      %19 = sbr.rel target = $region3
    $region8: #{tpu_custom_call.1} parent=1 // loop_exit
      _
    %6549 = vsyncpa [#allocation5], 1
    %s6550 = scalar_lea.sflag [#allocation5], 1
    %6551 = vsyncpa %s6550, 1
    %6552 = vsyncpa [#allocation8], 1
    %6553 = vsyncpa [#allocation11], 1
    %6554 = vsyncpa [#allocation6], 1
    %s6555 = scalar_lea.sflag [#allocation6], 1
    %6556 = vsyncpa %s6555, 1

</llo_original>
